<compile_context>
chip_gen: v6e
topology: v6e:2x2x1
jax: 0.10.0
libtpu: 0.0.40
codegen_flags: <defaults>
</compile_context>

<pallas_src>
import numpy as np
import jax
import jax.numpy as jnp
from jax.experimental import pallas as pl
from jax.experimental.pallas import tpu as pltpu

# ---------------- model constants (phyre.FeaturizedObjects._NUM_FEATURES == 14) ----------
NUM_FEATURES = 14
DS = NUM_FEATURES + 3          # 17  (3 velocity channels + 14 object features)
DR = 3                         # relation one-hot size
DX = 1                         # external-effect channel
INTERACTIONS_SIZE = 50
INTERACTIONS_HIDDEN = 150
STATES_HIDDEN = 100
STATES_OUT = 3
INTERACTIONS_INPUT = 2 * DS + DR                # 37
STATES_INPUT = INTERACTIONS_SIZE + DS + DX      # 68


# ------------------------------- Pallas kernel -------------------------------------------
def interaction_network_kernel(
    tensor_ref, rec_ref, recT_ref, sendT_ref, relT_ref, ext_ref,
    w1r_ref, w1s_ref, w1rel_ref, w2_ref, w3_ref, w4_ref, w5_ref,
    ws1o_ref, ws1x_ref, ws1e_ref, ws2_ref, bias_ref,
    out_ref):
    f32 = jnp.float32
    bf16 = jnp.bfloat16

    TB = tensor_ref.shape[0]
    N = tensor_ref.shape[2]
    R = recT_ref.shape[1]
    H = w2_ref.shape[0]            # interactions hidden (150)
    E = w5_ref.shape[1]            # interactions size (50)
    SH = ws2_ref.shape[0]          # states hidden (100)
    SO = ws2_ref.shape[1]          # states out (3)
    DSl = w1r_ref.shape[0]         # 17
    DRl = w1rel_ref.shape[0]       # 3

    # ---- object features: velocities ++ last frame (assembled in-kernel, f32) ----
    t = tensor_ref[...]                                    # (TB, 2, N, F) f32
    f0 = t[:, 0]                                           # (TB, N, F)
    f1 = t[:, 1]                                           # (TB, N, F)
    vel = f1[:, :, :3] - f0[:, :, :3]                      # (TB, N, 3)
    objs = jnp.concatenate([vel, f1], axis=-1)             # (TB, N, DS) f32

    biases = bias_ref[...]                                 # (8, H) f32
    objs_flat = objs.reshape(TB * N, DSl)

    def mm(a, w_ref):
        return jnp.dot(a, w_ref[...], preferred_element_type=f32)

    # ---- first interactions layer: project objects (TB*N rows) BEFORE the relation gather
    pre_r = mm(objs_flat, w1r_ref).reshape(TB, N, H)       # (TB, N, H) f32
    pre_s = mm(objs_flat, w1s_ref).reshape(TB, N, H)       # (TB, N, H) f32

    recT = recT_ref[...]                                   # (TB, R, N) bf16 one-hot
    sendT = sendT_ref[...]                                 # (TB, R, N) bf16 one-hot
    relT_flat = relT_ref[...].reshape(TB * R, DRl)         # (TB*R, 3) bf16 one-hot

    gather = (jnp.einsum('brn,bnh->brh', recT, pre_r, preferred_element_type=f32)
              + jnp.einsum('brn,bnh->brh', sendT, pre_s, preferred_element_type=f32))
    rel_term = mm(relT_flat, w1rel_ref)                    # (TB*R, H) f32
    x1 = gather.reshape(TB * R, H) + rel_term + biases[0:1, :]

    # ---- interactions MLP (weights batch-shared); only a bf16 hidden copy kept live ----
    h = jnp.maximum(x1, 0.0).astype(bf16)
    h = jnp.maximum(mm(h, w2_ref) + biases[1:2, :], 0.0).astype(bf16)
    h = jnp.maximum(mm(h, w3_ref) + biases[2:3, :], 0.0).astype(bf16)
    h = jnp.maximum(mm(h, w4_ref) + biases[3:4, :], 0.0).astype(bf16)
    effects = mm(h, w5_ref) + biases[4:5, :E]              # (TB*R, E) f32 (kept f32)

    # ---- aggregate effects per receiver object (scatter-add as a matmul, f32) ----
    effects3 = effects.reshape(TB, R, E)
    rec = rec_ref[...]                                     # (TB, N, R) bf16 one-hot
    eff_agg = jnp.einsum('bnr,brf->bnf', rec, effects3,
                         preferred_element_type=f32)       # (TB, N, E) f32

    # ---- states MLP with split first-layer weights (no 68-wide concat), all f32 ----
    eff_flat = eff_agg.reshape(TB * N, E)
    ext_flat = ext_ref[...].reshape(TB * N, 1)             # f32, {0,1}

    s = (mm(objs_flat, ws1o_ref) + mm(eff_flat, ws1e_ref)
         + ext_flat * ws1x_ref[...] + biases[5:6, :SH])
    s = jnp.maximum(s, 0.0)
    states = mm(s, ws2_ref) + biases[6:7, :SO]             # (TB*N, SO) f32
    states3 = states.reshape(TB, N, SO)

    # ---- residual update of the first 3 state channels — single full-tile store ----
    out_ref[...] = jnp.concatenate([f1[:, :, :SO] + states3, f1[:, :, SO:]], axis=-1)


# ------------------------------- wrapper helpers ------------------------------------------
def _tpu_vmem_and_cores():
    """VMEM capacity and an effective TensorCore count for grid sizing (best effort)."""
    vmem = 32 << 20
    cores = 1
    try:
        info = pltpu.get_tpu_info()
        vmem = int(getattr(info, "vmem_capacity_bytes", vmem))
    except Exception:
        pass
    try:
        kind = jax.devices()[0].device_kind.lower()
        if "v7" in kind or "7x" in kind:
            cores = 2            # dual-TC part: keep >=2 "parallel" grid steps
    except Exception:
        pass
    return vmem, cores


def _step_vmem_bytes(TB, N, F, R):
    """Rough per-grid-step VMEM footprint (double-buffered streams + weights + activations)."""
    Hh, E, SH = INTERACTIONS_HIDDEN, INTERACTIONS_SIZE, STATES_HIDDEN
    stream = TB * (2 * N * F * 4          # history tensor (f32)
                   + 3 * R * N * 2        # rec / recT / sendT (bf16)
                   + R * DR * 2           # relT (bf16)
                   + N * 4                # ext (f32)
                   + N * F * 4)           # output tile (f32)
    weights = ((2 * DS * Hh + DR * Hh + 8 * Hh) * 4
               + (3 * Hh * Hh + Hh * E) * 2
               + (DS * SH + SH + E * SH + SH * STATES_OUT) * 4)
    acts = TB * (2 * R * Hh * 4 + 2 * N * Hh * 4 + R * E * 4 + N * (E + SH) * 4)
    return 2 * (stream + weights) + acts


def _pick_batch_block(B, R, N, F):
    """Fewest/biggest grid steps: 1 step on single-TC chips, >=2 on dual-TC, VMEM-capped."""
    vmem, cores = _tpu_vmem_and_cores()
    budget = vmem // 2
    divisors = sorted((d for d in range(1, B + 1) if B % d == 0), reverse=True)
    fitting = [d for d in divisors if _step_vmem_bytes(d, N, F, R) <= budget] or [1]
    preferred = [d for d in fitting if (B // d) >= cores]
    return (preferred[0] if preferred else fitting[0]), vmem


def _cost_estimate(B, N, F, R):
    Hh, E, SH, SO = INTERACTIONS_HIDDEN, INTERACTIONS_SIZE, STATES_HIDDEN, STATES_OUT
    flops = 2 * B * (2 * N * DS * Hh + 2 * R * N * Hh + R * DR * Hh
                     + 3 * R * Hh * Hh + R * Hh * E + N * R * E
                     + N * (DS + DX + E) * SH + N * SH * SO)
    bytes_accessed = (B * (2 * N * F * 4 + 3 * R * N * 2 + R * DR * 2 + N * 4 + N * F * 4)
                      + (2 * DS * Hh + DR * Hh + 8 * Hh) * 4
                      + (3 * Hh * Hh + Hh * E) * 2
                      + (DS * SH + SH + E * SH + SH * SO) * 4)
    return pl.CostEstimate(flops=flops, transcendentals=0, bytes_accessed=bytes_accessed)


# ------------------------------- wrapper --------------------------------------------------
def interaction_network_forward(tensor, mats, params, batch_block=None):
    """tensor: (B, 2, N, F) float32; mats: (rec, recT, sendT, relT, ext) stacked over batch."""
    B, H2, N, F = tensor.shape
    assert H2 == 2, "IN only for two historical frames"

    rec, recT, sendT, relT, ext = mats
    R = recT.shape[1]
    Hh = INTERACTIONS_HIDDEN

    TB, vmem_cap = _pick_batch_block(B, R, N, F)
    if batch_block is not None:
        TB = batch_block
    assert B % TB == 0, "batch must be divisible by the batch block"

    f32, bf16 = jnp.float32, jnp.bfloat16

    # ---- split first-layer weights host-side (f32: feeds the accuracy-sensitive paths) ----
    w1 = params['w1'].astype(f32)
    w1_rec = w1[:DS]                       # (17, 150)
    w1_send = w1[DS:2 * DS]                # (17, 150)
    w1_rel = w1[2 * DS:]                   # (3, 150) — relT one-hot picks a row on the MXU

    ws1 = params['ws1'].astype(f32)
    ws1_obj = ws1[:DS]                     # (17, 100)
    ws1_ext = ws1[DS:DS + 1]               # (1, 100)
    ws1_eff = ws1[DS + 1:]                 # (50, 100)

    # ---- pack all biases (b1 included) into one (8, H) array ----
    biases = jnp.zeros((8, Hh), f32)
    biases = biases.at[0, :].set(params['b1'].reshape(-1))
    biases = biases.at[1, :].set(params['b2'].reshape(-1))
    biases = biases.at[2, :].set(params['b3'].reshape(-1))
    biases = biases.at[3, :].set(params['b4'].reshape(-1))
    biases = biases.at[4, :INTERACTIONS_SIZE].set(params['b5'].reshape(-1))
    biases = biases.at[5, :STATES_HIDDEN].set(params['bs1'].reshape(-1))
    biases = biases.at[6, :STATES_OUT].set(params['bs2'].reshape(-1))

    data_in = [tensor.astype(f32),
               rec.astype(bf16), recT.astype(bf16), sendT.astype(bf16),
               relT.astype(bf16), ext.astype(f32)]
    weights = [w1_rec, w1_send, w1_rel,
               params['w2'].astype(bf16), params['w3'].astype(bf16),
               params['w4'].astype(bf16), params['w5'].astype(bf16),
               ws1_obj, ws1_ext, ws1_eff, params['ws2'].astype(f32),
               biases]

    def batch_spec(shape):
        nd = len(shape)
        return pl.BlockSpec((TB,) + shape, lambda b, _nd=nd: (b,) + (0,) * _nd)

    def full_spec(arr):
        nd = arr.ndim
        return pl.BlockSpec(arr.shape, lambda b, _nd=nd: (0,) * _nd)

    in_specs = [
        batch_spec((2, N, F)),      # raw history tensor
        batch_spec((N, R)),         # rec
        batch_spec((R, N)),         # recT
        batch_spec((R, N)),         # sendT
        batch_spec((R, DR)),        # relT one-hot (replaces the fat rel_bias stream)
        batch_spec((N, 1)),         # ext
    ] + [full_spec(w) for w in weights]

    out_spec = pl.BlockSpec((TB, N, F), lambda b: (b, 0, 0))

    step_bytes = _step_vmem_bytes(TB, N, F, R)
    vmem_limit = None
    if step_bytes > (30 << 20):
        vmem_limit = int(min(step_bytes + (4 << 20), vmem_cap))

    return pl.pallas_call(
        interaction_network_kernel,
        out_shape=jax.ShapeDtypeStruct((B, N, F), f32),
        grid=(B // TB,),
        in_specs=in_specs,
        out_specs=out_spec,
        cost_estimate=_cost_estimate(B, N, F, R),
        compiler_params=pltpu.CompilerParams(
            dimension_semantics=("parallel",),
            vmem_limit_bytes=vmem_limit),
    )(*data_in, *weights)


# -------------------- host-side glue: relation / external-effect matrices -----------------
# TODO(synk): the PyTorch module caches these per object-type tuple in a python dict;
# here they are rebuilt per call on the host (numpy), which is equivalent numerically.
def build_relation_matrices(frame0):
    """frame0: (N, F) numpy.  Mirrors _initialize_relations_matricies /
    _intialize_external_effects_matrix of the PyTorch module."""
    N = frame0.shape[0]
    black = frame0[:, -1] == 1.0
    purple = frame0[:, -3] == 1.0
    row_sum = frame0.sum(axis=-1)
    pad = row_sum == 0
    pad_idx = np.nonzero(pad)[0]
    pad_start = int(pad_idx.min()) if pad_idx.size else N
    is_static = black | purple
    dyn_idx = np.nonzero(~(is_static | pad))[0]
    static_idx = np.nonzero(is_static)[0]
    eye = np.eye(N, dtype=np.float32)

    send_rows, recv_rows, rel_rows = [], [], []

    def add(indices, relation_index, p_start):
        for idx in indices:
            senders = np.concatenate([eye[:idx], eye[idx + 1:p_start]], axis=0)
            if senders.shape[0] == 0:
                continue
            receivers = np.broadcast_to(eye[idx], senders.shape).copy()
            rel = np.zeros((senders.shape[0], DR), dtype=np.float32)
            rel[:, relation_index] = 1.0
            send_rows.append(senders)
            recv_rows.append(receivers)
            rel_rows.append(rel)

    add(dyn_idx, 0, pad_start)
    add(static_idx, 1, pad_start)
    add(pad_idx, 2, N)
    if pad_idx.size:
        for idx in np.concatenate([dyn_idx, static_idx]):
            senders = eye[pad_start:]
            if senders.shape[0] == 0:
                continue
            receivers = np.broadcast_to(eye[idx], senders.shape).copy()
            rel = np.zeros((senders.shape[0], DR), dtype=np.float32)
            rel[:, 2] = 1.0
            send_rows.append(senders)
            recv_rows.append(receivers)
            rel_rows.append(rel)

    sendT = np.concatenate(send_rows, axis=0)   # (R, N)
    recT = np.concatenate(recv_rows, axis=0)    # (R, N)
    relT = np.concatenate(rel_rows, axis=0)     # (R, DR)
    rec = np.ascontiguousarray(recT.T)          # (N, R)

    ext = np.ones((N, 1), dtype=np.float32)
    ext[is_static | pad] = 0.0                  # external effects only on dynamic objects
    return rec, recT, sendT, relT, ext


# ------------------------------- parameter init --------------------------------------------
def init_params(key):
    def linear_init(k, fan_in, fan_out):
        k1, k2 = jax.random.split(k)
        bound = 1.0 / np.sqrt(fan_in)
        w = jax.random.uniform(k1, (fan_in, fan_out), jnp.float32, -bound, bound)
        b = jax.random.uniform(k2, (1, fan_out), jnp.float32, -bound, bound)
        return w, b

    keys = jax.random.split(key, 7)
    p = {}
    p['w1'], p['b1'] = linear_init(keys[0], INTERACTIONS_INPUT, INTERACTIONS_HIDDEN)
    p['w2'], p['b2'] = linear_init(keys[1], INTERACTIONS_HIDDEN, INTERACTIONS_HIDDEN)
    p['w3'], p['b3'] = linear_init(keys[2], INTERACTIONS_HIDDEN, INTERACTIONS_HIDDEN)
    p['w4'], p['b4'] = linear_init(keys[3], INTERACTIONS_HIDDEN, INTERACTIONS_HIDDEN)
    p['w5'], p['b5'] = linear_init(keys[4], INTERACTIONS_HIDDEN, INTERACTIONS_SIZE)
    p['ws1'], p['bs1'] = linear_init(keys[5], STATES_INPUT, STATES_HIDDEN)
    p['ws2'], p['bs2'] = linear_init(keys[6], STATES_HIDDEN, STATES_OUT)
    return p


# ------------------------------- pure-JAX reference ----------------------------------------
def reference_forward(tensor, mats, params):
    rec, recT, sendT, relT, ext = mats
    vel = tensor[:, -1, :, :3] - tensor[:, 0, :, :3]
    objs = jnp.concatenate([vel, tensor[:, -1]], axis=-1)
    obj_rec = jnp.einsum('brn,bnd->brd', recT, objs)
    obj_send = jnp.einsum('brn,bnd->brd', sendT, objs)
    x = jnp.concatenate([obj_rec, obj_send, relT], axis=-1)
    relu = jax.nn.relu
    h = relu(x @ params['w1'] + params['b1'])
    h = relu(h @ params['w2'] + params['b2'])
    h = relu(h @ params['w3'] + params['b3'])
    h = relu(h @ params['w4'] + params['b4'])
    effects = h @ params['w5'] + params['b5']
    eff_agg = jnp.einsum('bnr,brf->bnf', rec, effects)
    agg = jnp.concatenate([objs, ext, eff_agg], axis=-1)
    s = relu(agg @ params['ws1'] + params['bs1'])
    states = s @ params['ws2'] + params['bs2']
    ns = tensor[:, -1]
    return ns.at[:, :, :3].add(states)


# ------------------------------- main -------------------------------------------------------
if __name__ == "__main__":
    B, N, F = 8, 8, NUM_FEATURES

    key = jax.random.PRNGKey(0)
    key, pkey, dkey = jax.random.split(key, 3)
    params = init_params(pkey)

    # Deterministic synthetic scene: objects 0-3 dynamic (red), 4 black (static),
    # 5 purple (static), 6-7 padding (all zeros).  Same type layout in both frames
    # and all batch items so the relation matrices share one relation count R.
    feats = np.array(jax.random.uniform(dkey, (B, 2, N, F), jnp.float32, 0.1, 0.9))
    feats[:, :, :, 8:] = 0.0        # clear color one-hots
    feats[:, :, 0:4, 8] = 1.0       # dynamic objects: red
    feats[:, :, 4, -1] = 1.0        # black  -> static
    feats[:, :, 5, -3] = 1.0        # purple -> static
    feats[:, :, 6:, :] = 0.0        # padding objects
    tensor = jnp.asarray(feats)

    mats_per_b = [build_relation_matrices(feats[b, 0]) for b in range(B)]
    assert len({m[0].shape[-1] for m in mats_per_b}) == 1, "batch must share relation count"
    mats = tuple(jnp.asarray(np.stack([m[i] for m in mats_per_b], axis=0))
                 for i in range(5))

    out = interaction_network_forward(tensor, mats, params)
    out = jax.block_until_ready(out)

    ref = jax.block_until_ready(reference_forward(tensor, mats, params))
    assert out.shape == (B, N, F)
    assert np.all(np.isfinite(np.asarray(out)))
    np.testing.assert_allclose(np.asarray(out), np.asarray(ref), atol=3e-2, rtol=3e-2)

    print("KERNEL_OK")
</pallas_src>

<mosaic_0001>
module attributes {stable_mosaic.version = 11 : i64} {
  func.func @interaction_network_kernel(%arg0: i32, %arg1: memref<8x2x8x14xf32, #tpu.memory_space<vmem>>, %arg2: memref<8x8x56xbf16, #tpu.memory_space<vmem>>, %arg3: memref<8x56x8xbf16, #tpu.memory_space<vmem>>, %arg4: memref<8x56x8xbf16, #tpu.memory_space<vmem>>, %arg5: memref<8x56x3xbf16, #tpu.memory_space<vmem>>, %arg6: memref<8x8x1xf32, #tpu.memory_space<vmem>>, %arg7: memref<17x150xf32, #tpu.memory_space<vmem>>, %arg8: memref<17x150xf32, #tpu.memory_space<vmem>>, %arg9: memref<3x150xf32, #tpu.memory_space<vmem>>, %arg10: memref<150x150xbf16, #tpu.memory_space<vmem>>, %arg11: memref<150x150xbf16, #tpu.memory_space<vmem>>, %arg12: memref<150x150xbf16, #tpu.memory_space<vmem>>, %arg13: memref<150x50xbf16, #tpu.memory_space<vmem>>, %arg14: memref<17x100xf32, #tpu.memory_space<vmem>>, %arg15: memref<1x100xf32, #tpu.memory_space<vmem>>, %arg16: memref<50x100xf32, #tpu.memory_space<vmem>>, %arg17: memref<100x3xf32, #tpu.memory_space<vmem>>, %arg18: memref<8x150xf32, #tpu.memory_space<vmem>>, %arg19: memref<8x8x14xf32, #tpu.memory_space<vmem>>) attributes {dimension_semantics = [#tpu.dimension_semantics<parallel>], iteration_bounds = array<i64: 1>, scalar_prefetch = 0 : i64, scratch_operands = 0 : i64, tpu.core_type = #tpu.core_type<tc>, window_params = [{transform_indices = @transform_0, window_bounds = array<i64: 8, 2, 8, 14>}, {transform_indices = @transform_1, window_bounds = array<i64: 8, 8, 56>}, {transform_indices = @transform_2, window_bounds = array<i64: 8, 56, 8>}, {transform_indices = @transform_3, window_bounds = array<i64: 8, 56, 8>}, {transform_indices = @transform_4, window_bounds = array<i64: 8, 56, 3>}, {transform_indices = @transform_5, window_bounds = array<i64: 8, 8, 1>}, {pipeline_mode = #tpu.pipeline_mode<synchronous>, transform_indices = @transform_6, window_bounds = array<i64: 17, 150>}, {pipeline_mode = #tpu.pipeline_mode<synchronous>, transform_indices = @transform_7, window_bounds = array<i64: 17, 150>}, {pipeline_mode = #tpu.pipeline_mode<synchronous>, transform_indices = @transform_8, window_bounds = array<i64: 3, 150>}, {pipeline_mode = #tpu.pipeline_mode<synchronous>, transform_indices = @transform_9, window_bounds = array<i64: 150, 150>}, {pipeline_mode = #tpu.pipeline_mode<synchronous>, transform_indices = @transform_10, window_bounds = array<i64: 150, 150>}, {pipeline_mode = #tpu.pipeline_mode<synchronous>, transform_indices = @transform_11, window_bounds = array<i64: 150, 150>}, {pipeline_mode = #tpu.pipeline_mode<synchronous>, transform_indices = @transform_12, window_bounds = array<i64: 150, 50>}, {pipeline_mode = #tpu.pipeline_mode<synchronous>, transform_indices = @transform_13, window_bounds = array<i64: 17, 100>}, {pipeline_mode = #tpu.pipeline_mode<synchronous>, transform_indices = @transform_14, window_bounds = array<i64: 1, 100>}, {pipeline_mode = #tpu.pipeline_mode<synchronous>, transform_indices = @transform_15, window_bounds = array<i64: 50, 100>}, {pipeline_mode = #tpu.pipeline_mode<synchronous>, transform_indices = @transform_16, window_bounds = array<i64: 100, 3>}, {pipeline_mode = #tpu.pipeline_mode<synchronous>, transform_indices = @transform_17, window_bounds = array<i64: 8, 150>}, {transform_indices = @transform_18, window_bounds = array<i64: 8, 8, 14>}]} {
    %c0 = arith.constant 0 : index
    %c0_0 = arith.constant 0 : index
    %c0_1 = arith.constant 0 : index
    %c0_2 = arith.constant 0 : index
    %0 = vector.load %arg1[%c0, %c0_0, %c0_1, %c0_2] : memref<8x2x8x14xf32, #tpu.memory_space<vmem>>, vector<8x2x8x14xf32>
    %1 = vector.extract_strided_slice %0 {offsets = [0, 0, 0, 0], sizes = [8, 1, 8, 14], strides = [1, 1, 1, 1]} : vector<8x2x8x14xf32> to vector<8x1x8x14xf32>
    %2 = vector.shape_cast %1 : vector<8x1x8x14xf32> to vector<8x8x14xf32>
    %3 = vector.extract_strided_slice %0 {offsets = [0, 1, 0, 0], sizes = [8, 1, 8, 14], strides = [1, 1, 1, 1]} : vector<8x2x8x14xf32> to vector<8x1x8x14xf32>
    %4 = vector.shape_cast %3 : vector<8x1x8x14xf32> to vector<8x8x14xf32>
    %5 = vector.extract_strided_slice %4 {offsets = [0, 0, 0], sizes = [8, 8, 3], strides = [1, 1, 1]} : vector<8x8x14xf32> to vector<8x8x3xf32>
    %6 = vector.extract_strided_slice %2 {offsets = [0, 0, 0], sizes = [8, 8, 3], strides = [1, 1, 1]} : vector<8x8x14xf32> to vector<8x8x3xf32>
    %7 = arith.subf %5, %6 : vector<8x8x3xf32>
    %8 = tpu.concatenate %7, %4 in 2 : vector<8x8x3xf32>, vector<8x8x14xf32> -> vector<8x8x17xf32>
    %c0_3 = arith.constant 0 : index
    %c0_4 = arith.constant 0 : index
    %9 = vector.load %arg18[%c0_3, %c0_4] : memref<8x150xf32, #tpu.memory_space<vmem>>, vector<8x150xf32>
    %10 = vector.shape_cast %8 : vector<8x8x17xf32> to vector<64x17xf32>
    %c0_5 = arith.constant 0 : index
    %c0_6 = arith.constant 0 : index
    %11 = vector.load %arg7[%c0_5, %c0_6] : memref<17x150xf32, #tpu.memory_space<vmem>>, vector<17x150xf32>
    %cst = arith.constant dense<0.000000e+00> : vector<64x150xf32>
    %12 = tpu.matmul %10, %11, %cst {dimension_numbers = #tpu.dot_dimension_numbers<[1], [0], [0], [1], [0, 0, 1, 1], [], []>} : vector<64x17xf32>, vector<17x150xf32>, vector<64x150xf32> -> vector<64x150xf32>
    %13 = vector.shape_cast %12 : vector<64x150xf32> to vector<8x8x150xf32>
    %c0_7 = arith.constant 0 : index
    %c0_8 = arith.constant 0 : index
    %14 = vector.load %arg8[%c0_7, %c0_8] : memref<17x150xf32, #tpu.memory_space<vmem>>, vector<17x150xf32>
    %cst_9 = arith.constant dense<0.000000e+00> : vector<64x150xf32>
    %15 = tpu.matmul %10, %14, %cst_9 {dimension_numbers = #tpu.dot_dimension_numbers<[1], [0], [0], [1], [0, 0, 1, 1], [], []>} : vector<64x17xf32>, vector<17x150xf32>, vector<64x150xf32> -> vector<64x150xf32>
    %16 = vector.shape_cast %15 : vector<64x150xf32> to vector<8x8x150xf32>
    %c0_10 = arith.constant 0 : index
    %c0_11 = arith.constant 0 : index
    %c0_12 = arith.constant 0 : index
    %17 = vector.load %arg3[%c0_10, %c0_11, %c0_12] : memref<8x56x8xbf16, #tpu.memory_space<vmem>>, vector<8x56x8xbf16>
    %c0_13 = arith.constant 0 : index
    %c0_14 = arith.constant 0 : index
    %c0_15 = arith.constant 0 : index
    %18 = vector.load %arg4[%c0_13, %c0_14, %c0_15] : memref<8x56x8xbf16, #tpu.memory_space<vmem>>, vector<8x56x8xbf16>
    %c0_16 = arith.constant 0 : index
    %c0_17 = arith.constant 0 : index
    %c0_18 = arith.constant 0 : index
    %19 = vector.load %arg5[%c0_16, %c0_17, %c0_18] : memref<8x56x3xbf16, #tpu.memory_space<vmem>>, vector<8x56x3xbf16>
    %20 = vector.shape_cast %19 : vector<8x56x3xbf16> to vector<448x3xbf16>
    "tpu.trace_start"() <{level = 10 : i32, message = "brn,bnh->brh"}> : () -> ()
    %cst_19 = arith.constant dense<0.000000e+00> : vector<8x56x150xf32>
    %21 = tpu.matmul %17, %13, %cst_19 {dimension_numbers = #tpu.dot_dimension_numbers<[2], [1], [1], [2], [0, 0, 0, 1, 1, 2], [0], [0]>} : vector<8x56x8xbf16>, vector<8x8x150xf32>, vector<8x56x150xf32> -> vector<8x56x150xf32>
    %cst_20 = arith.constant dense<0.000000e+00> : vector<8x56x150xf32>
    %22 = tpu.matmul %18, %16, %cst_20 {dimension_numbers = #tpu.dot_dimension_numbers<[2], [1], [1], [2], [0, 0, 0, 1, 1, 2], [0], [0]>} : vector<8x56x8xbf16>, vector<8x8x150xf32>, vector<8x56x150xf32> -> vector<8x56x150xf32>
    "tpu.trace_stop"() : () -> ()
    %23 = arith.addf %21, %22 : vector<8x56x150xf32>
    %c0_21 = arith.constant 0 : index
    %c0_22 = arith.constant 0 : index
    %24 = vector.load %arg9[%c0_21, %c0_22] : memref<3x150xf32, #tpu.memory_space<vmem>>, vector<3x150xf32>
    %cst_23 = arith.constant dense<0.000000e+00> : vector<448x150xf32>
    %25 = tpu.matmul %20, %24, %cst_23 {dimension_numbers = #tpu.dot_dimension_numbers<[1], [0], [0], [1], [0, 0, 1, 1], [], []>} : vector<448x3xbf16>, vector<3x150xf32>, vector<448x150xf32> -> vector<448x150xf32>
    %26 = vector.shape_cast %23 : vector<8x56x150xf32> to vector<448x150xf32>
    %27 = arith.addf %26, %25 : vector<448x150xf32>
    %28 = vector.extract_strided_slice %9 {offsets = [0, 0], sizes = [1, 150], strides = [1, 1]} : vector<8x150xf32> to vector<1x150xf32>
    %29 = vector.broadcast %28 : vector<1x150xf32> to vector<448x150xf32>
    %30 = arith.addf %27, %29 : vector<448x150xf32>
    %cst_24 = arith.constant 0.000000e+00 : f32
    %31 = vector.broadcast %cst_24 : f32 to vector<448x150xf32>
    %32 = arith.maximumf %30, %31 : vector<448x150xf32>
    %33 = arith.truncf %32 : vector<448x150xf32> to vector<448x150xbf16>
    %c0_25 = arith.constant 0 : index
    %c0_26 = arith.constant 0 : index
    %34 = vector.load %arg10[%c0_25, %c0_26] : memref<150x150xbf16, #tpu.memory_space<vmem>>, vector<150x150xbf16>
    %cst_27 = arith.constant dense<0.000000e+00> : vector<448x150xf32>
    %35 = tpu.matmul %33, %34, %cst_27 {dimension_numbers = #tpu.dot_dimension_numbers<[1], [0], [0], [1], [0, 0, 1, 1], [], []>} : vector<448x150xbf16>, vector<150x150xbf16>, vector<448x150xf32> -> vector<448x150xf32>
    %36 = vector.extract_strided_slice %9 {offsets = [1, 0], sizes = [1, 150], strides = [1, 1]} : vector<8x150xf32> to vector<1x150xf32>
    %37 = vector.broadcast %36 : vector<1x150xf32> to vector<448x150xf32>
    %38 = arith.addf %35, %37 : vector<448x150xf32>
    %cst_28 = arith.constant 0.000000e+00 : f32
    %39 = vector.broadcast %cst_28 : f32 to vector<448x150xf32>
    %40 = arith.maximumf %38, %39 : vector<448x150xf32>
    %41 = arith.truncf %40 : vector<448x150xf32> to vector<448x150xbf16>
    %c0_29 = arith.constant 0 : index
    %c0_30 = arith.constant 0 : index
    %42 = vector.load %arg11[%c0_29, %c0_30] : memref<150x150xbf16, #tpu.memory_space<vmem>>, vector<150x150xbf16>
    %cst_31 = arith.constant dense<0.000000e+00> : vector<448x150xf32>
    %43 = tpu.matmul %41, %42, %cst_31 {dimension_numbers = #tpu.dot_dimension_numbers<[1], [0], [0], [1], [0, 0, 1, 1], [], []>} : vector<448x150xbf16>, vector<150x150xbf16>, vector<448x150xf32> -> vector<448x150xf32>
    %44 = vector.extract_strided_slice %9 {offsets = [2, 0], sizes = [1, 150], strides = [1, 1]} : vector<8x150xf32> to vector<1x150xf32>
    %45 = vector.broadcast %44 : vector<1x150xf32> to vector<448x150xf32>
    %46 = arith.addf %43, %45 : vector<448x150xf32>
    %cst_32 = arith.constant 0.000000e+00 : f32
    %47 = vector.broadcast %cst_32 : f32 to vector<448x150xf32>
    %48 = arith.maximumf %46, %47 : vector<448x150xf32>
    %49 = arith.truncf %48 : vector<448x150xf32> to vector<448x150xbf16>
    %c0_33 = arith.constant 0 : index
    %c0_34 = arith.constant 0 : index
    %50 = vector.load %arg12[%c0_33, %c0_34] : memref<150x150xbf16, #tpu.memory_space<vmem>>, vector<150x150xbf16>
    %cst_35 = arith.constant dense<0.000000e+00> : vector<448x150xf32>
    %51 = tpu.matmul %49, %50, %cst_35 {dimension_numbers = #tpu.dot_dimension_numbers<[1], [0], [0], [1], [0, 0, 1, 1], [], []>} : vector<448x150xbf16>, vector<150x150xbf16>, vector<448x150xf32> -> vector<448x150xf32>
    %52 = vector.extract_strided_slice %9 {offsets = [3, 0], sizes = [1, 150], strides = [1, 1]} : vector<8x150xf32> to vector<1x150xf32>
    %53 = vector.broadcast %52 : vector<1x150xf32> to vector<448x150xf32>
    %54 = arith.addf %51, %53 : vector<448x150xf32>
    %cst_36 = arith.constant 0.000000e+00 : f32
    %55 = vector.broadcast %cst_36 : f32 to vector<448x150xf32>
    %56 = arith.maximumf %54, %55 : vector<448x150xf32>
    %57 = arith.truncf %56 : vector<448x150xf32> to vector<448x150xbf16>
    %c0_37 = arith.constant 0 : index
    %c0_38 = arith.constant 0 : index
    %58 = vector.load %arg13[%c0_37, %c0_38] : memref<150x50xbf16, #tpu.memory_space<vmem>>, vector<150x50xbf16>
    %cst_39 = arith.constant dense<0.000000e+00> : vector<448x50xf32>
    %59 = tpu.matmul %57, %58, %cst_39 {dimension_numbers = #tpu.dot_dimension_numbers<[1], [0], [0], [1], [0, 0, 1, 1], [], []>} : vector<448x150xbf16>, vector<150x50xbf16>, vector<448x50xf32> -> vector<448x50xf32>
    %60 = vector.extract_strided_slice %9 {offsets = [4, 0], sizes = [1, 50], strides = [1, 1]} : vector<8x150xf32> to vector<1x50xf32>
    %61 = vector.broadcast %60 : vector<1x50xf32> to vector<448x50xf32>
    %62 = arith.addf %59, %61 : vector<448x50xf32>
    %63 = vector.shape_cast %62 : vector<448x50xf32> to vector<8x56x50xf32>
    %c0_40 = arith.constant 0 : index
    %c0_41 = arith.constant 0 : index
    %c0_42 = arith.constant 0 : index
    %64 = vector.load %arg2[%c0_40, %c0_41, %c0_42] : memref<8x8x56xbf16, #tpu.memory_space<vmem>>, vector<8x8x56xbf16>
    "tpu.trace_start"() <{level = 10 : i32, message = "bnr,brf->bnf"}> : () -> ()
    %cst_43 = arith.constant dense<0.000000e+00> : vector<8x8x50xf32>
    %65 = tpu.matmul %64, %63, %cst_43 {dimension_numbers = #tpu.dot_dimension_numbers<[2], [1], [1], [2], [0, 0, 0, 1, 1, 2], [0], [0]>} : vector<8x8x56xbf16>, vector<8x56x50xf32>, vector<8x8x50xf32> -> vector<8x8x50xf32>
    "tpu.trace_stop"() : () -> ()
    %66 = vector.shape_cast %65 : vector<8x8x50xf32> to vector<64x50xf32>
    %c0_44 = arith.constant 0 : index
    %c0_45 = arith.constant 0 : index
    %c0_46 = arith.constant 0 : index
    %67 = vector.load %arg6[%c0_44, %c0_45, %c0_46] : memref<8x8x1xf32, #tpu.memory_space<vmem>>, vector<8x8x1xf32>
    %68 = vector.shape_cast %67 : vector<8x8x1xf32> to vector<64x1xf32>
    %c0_47 = arith.constant 0 : index
    %c0_48 = arith.constant 0 : index
    %69 = vector.load %arg14[%c0_47, %c0_48] : memref<17x100xf32, #tpu.memory_space<vmem>>, vector<17x100xf32>
    %cst_49 = arith.constant dense<0.000000e+00> : vector<64x100xf32>
    %70 = tpu.matmul %10, %69, %cst_49 {dimension_numbers = #tpu.dot_dimension_numbers<[1], [0], [0], [1], [0, 0, 1, 1], [], []>} : vector<64x17xf32>, vector<17x100xf32>, vector<64x100xf32> -> vector<64x100xf32>
    %c0_50 = arith.constant 0 : index
    %c0_51 = arith.constant 0 : index
    %71 = vector.load %arg16[%c0_50, %c0_51] : memref<50x100xf32, #tpu.memory_space<vmem>>, vector<50x100xf32>
    %cst_52 = arith.constant dense<0.000000e+00> : vector<64x100xf32>
    %72 = tpu.matmul %66, %71, %cst_52 {dimension_numbers = #tpu.dot_dimension_numbers<[1], [0], [0], [1], [0, 0, 1, 1], [], []>} : vector<64x50xf32>, vector<50x100xf32>, vector<64x100xf32> -> vector<64x100xf32>
    %73 = arith.addf %70, %72 : vector<64x100xf32>
    %c0_53 = arith.constant 0 : index
    %c0_54 = arith.constant 0 : index
    %74 = vector.load %arg15[%c0_53, %c0_54] : memref<1x100xf32, #tpu.memory_space<vmem>>, vector<1x100xf32>
    %75 = vector.broadcast %68 : vector<64x1xf32> to vector<64x100xf32>
    %76 = vector.broadcast %74 : vector<1x100xf32> to vector<64x100xf32>
    %77 = arith.mulf %75, %76 : vector<64x100xf32>
    %78 = arith.addf %73, %77 : vector<64x100xf32>
    %79 = vector.extract_strided_slice %9 {offsets = [5, 0], sizes = [1, 100], strides = [1, 1]} : vector<8x150xf32> to vector<1x100xf32>
    %80 = vector.broadcast %79 : vector<1x100xf32> to vector<64x100xf32>
    %81 = arith.addf %78, %80 : vector<64x100xf32>
    %cst_55 = arith.constant 0.000000e+00 : f32
    %82 = vector.broadcast %cst_55 : f32 to vector<64x100xf32>
    %83 = arith.maximumf %81, %82 : vector<64x100xf32>
    %c0_56 = arith.constant 0 : index
    %c0_57 = arith.constant 0 : index
    %84 = vector.load %arg17[%c0_56, %c0_57] : memref<100x3xf32, #tpu.memory_space<vmem>>, vector<100x3xf32>
    %cst_58 = arith.constant dense<0.000000e+00> : vector<64x3xf32>
    %85 = tpu.matmul %83, %84, %cst_58 {dimension_numbers = #tpu.dot_dimension_numbers<[1], [0], [0], [1], [0, 0, 1, 1], [], []>} : vector<64x100xf32>, vector<100x3xf32>, vector<64x3xf32> -> vector<64x3xf32>
    %86 = vector.extract_strided_slice %9 {offsets = [6, 0], sizes = [1, 3], strides = [1, 1]} : vector<8x150xf32> to vector<1x3xf32>
    %87 = vector.broadcast %86 : vector<1x3xf32> to vector<64x3xf32>
    %88 = arith.addf %85, %87 : vector<64x3xf32>
    %89 = vector.shape_cast %88 : vector<64x3xf32> to vector<8x8x3xf32>
    %90 = vector.extract_strided_slice %4 {offsets = [0, 0, 0], sizes = [8, 8, 3], strides = [1, 1, 1]} : vector<8x8x14xf32> to vector<8x8x3xf32>
    %91 = arith.addf %90, %89 : vector<8x8x3xf32>
    %92 = vector.extract_strided_slice %4 {offsets = [0, 0, 3], sizes = [8, 8, 11], strides = [1, 1, 1]} : vector<8x8x14xf32> to vector<8x8x11xf32>
    %93 = tpu.concatenate %91, %92 in 2 : vector<8x8x3xf32>, vector<8x8x11xf32> -> vector<8x8x14xf32>
    %c0_59 = arith.constant 0 : index
    %c0_60 = arith.constant 0 : index
    %c0_61 = arith.constant 0 : index
    %94 = vector.load %arg19[%c0_59, %c0_60, %c0_61] : memref<8x8x14xf32, #tpu.memory_space<vmem>>, vector<8x8x14xf32>
    tpu.vector_store %arg19[%c0_59, %c0_60, %c0_61], %93 {strides = array<i32>} : memref<8x8x14xf32, #tpu.memory_space<vmem>>, vector<8x8x14xf32>,
    return
  }
  func.func @transform_0(%arg0: i32) -> (i32, i32, i32, i32) {
    %c0_i32 = arith.constant 0 : i32
    %c0_i32_0 = arith.constant 0 : i32
    %c0_i32_1 = arith.constant 0 : i32
    %c0_i32_2 = arith.constant 0 : i32
    return %arg0, %c0_i32, %c0_i32_0, %c0_i32_1 : i32, i32, i32, i32
  }
  func.func @transform_1(%arg0: i32) -> (i32, i32, i32) {
    %c0_i32 = arith.constant 0 : i32
    %c0_i32_0 = arith.constant 0 : i32
    %c0_i32_1 = arith.constant 0 : i32
    return %arg0, %c0_i32, %c0_i32_0 : i32, i32, i32
  }
  func.func @transform_2(%arg0: i32) -> (i32, i32, i32) {
    %c0_i32 = arith.constant 0 : i32
    %c0_i32_0 = arith.constant 0 : i32
    %c0_i32_1 = arith.constant 0 : i32
    return %arg0, %c0_i32, %c0_i32_0 : i32, i32, i32
  }
  func.func @transform_3(%arg0: i32) -> (i32, i32, i32) {
    %c0_i32 = arith.constant 0 : i32
    %c0_i32_0 = arith.constant 0 : i32
    %c0_i32_1 = arith.constant 0 : i32
    return %arg0, %c0_i32, %c0_i32_0 : i32, i32, i32
  }
  func.func @transform_4(%arg0: i32) -> (i32, i32, i32) {
    %c0_i32 = arith.constant 0 : i32
    %c0_i32_0 = arith.constant 0 : i32
    %c0_i32_1 = arith.constant 0 : i32
    return %arg0, %c0_i32, %c0_i32_0 : i32, i32, i32
  }
  func.func @transform_5(%arg0: i32) -> (i32, i32, i32) {
    %c0_i32 = arith.constant 0 : i32
    %c0_i32_0 = arith.constant 0 : i32
    %c0_i32_1 = arith.constant 0 : i32
    return %arg0, %c0_i32, %c0_i32_0 : i32, i32, i32
  }
  func.func @transform_6(%arg0: i32) -> (i32, i32) {
    %c0_i32 = arith.constant 0 : i32
    %c0_i32_0 = arith.constant 0 : i32
    %c0_i32_1 = arith.constant 0 : i32
    return %c0_i32, %c0_i32_0 : i32, i32
  }
  func.func @transform_7(%arg0: i32) -> (i32, i32) {
    %c0_i32 = arith.constant 0 : i32
    %c0_i32_0 = arith.constant 0 : i32
    %c0_i32_1 = arith.constant 0 : i32
    return %c0_i32, %c0_i32_0 : i32, i32
  }
  func.func @transform_8(%arg0: i32) -> (i32, i32) {
    %c0_i32 = arith.constant 0 : i32
    %c0_i32_0 = arith.constant 0 : i32
    %c0_i32_1 = arith.constant 0 : i32
    return %c0_i32, %c0_i32_0 : i32, i32
  }
  func.func @transform_9(%arg0: i32) -> (i32, i32) {
    %c0_i32 = arith.constant 0 : i32
    %c0_i32_0 = arith.constant 0 : i32
    %c0_i32_1 = arith.constant 0 : i32
    return %c0_i32, %c0_i32_0 : i32, i32
  }
  func.func @transform_10(%arg0: i32) -> (i32, i32) {
    %c0_i32 = arith.constant 0 : i32
    %c0_i32_0 = arith.constant 0 : i32
    %c0_i32_1 = arith.constant 0 : i32
    return %c0_i32, %c0_i32_0 : i32, i32
  }
  func.func @transform_11(%arg0: i32) -> (i32, i32) {
    %c0_i32 = arith.constant 0 : i32
    %c0_i32_0 = arith.constant 0 : i32
    %c0_i32_1 = arith.constant 0 : i32
    return %c0_i32, %c0_i32_0 : i32, i32
  }
  func.func @transform_12(%arg0: i32) -> (i32, i32) {
    %c0_i32 = arith.constant 0 : i32
    %c0_i32_0 = arith.constant 0 : i32
    %c0_i32_1 = arith.constant 0 : i32
    return %c0_i32, %c0_i32_0 : i32, i32
  }
  func.func @transform_13(%arg0: i32) -> (i32, i32) {
    %c0_i32 = arith.constant 0 : i32
    %c0_i32_0 = arith.constant 0 : i32
    %c0_i32_1 = arith.constant 0 : i32
    return %c0_i32, %c0_i32_0 : i32, i32
  }
  func.func @transform_14(%arg0: i32) -> (i32, i32) {
    %c0_i32 = arith.constant 0 : i32
    %c0_i32_0 = arith.constant 0 : i32
    %c0_i32_1 = arith.constant 0 : i32
    return %c0_i32, %c0_i32_0 : i32, i32
  }
  func.func @transform_15(%arg0: i32) -> (i32, i32) {
    %c0_i32 = arith.constant 0 : i32
    %c0_i32_0 = arith.constant 0 : i32
    %c0_i32_1 = arith.constant 0 : i32
    return %c0_i32, %c0_i32_0 : i32, i32
  }
  func.func @transform_16(%arg0: i32) -> (i32, i32) {
    %c0_i32 = arith.constant 0 : i32
    %c0_i32_0 = arith.constant 0 : i32
    %c0_i32_1 = arith.constant 0 : i32
    return %c0_i32, %c0_i32_0 : i32, i32
  }
  func.func @transform_17(%arg0: i32) -> (i32, i32) {
    %c0_i32 = arith.constant 0 : i32
    %c0_i32_0 = arith.constant 0 : i32
    %c0_i32_1 = arith.constant 0 : i32
    return %c0_i32, %c0_i32_0 : i32, i32
  }
  func.func @transform_18(%arg0: i32) -> (i32, i32, i32) {
    %c0_i32 = arith.constant 0 : i32
    %c0_i32_0 = arith.constant 0 : i32
    %c0_i32_1 = arith.constant 0 : i32
    return %arg0, %c0_i32, %c0_i32_0 : i32, i32, i32
  }
}

</mosaic_0001>

<llo_original>
// kernel: tpu_custom_call.1
$region0: #{tpu_custom_call.1}
  #allocation0 [shape = 'u32[]', space=smem, size = 0x4, offset = 0x4, fixed_abs, tag = 'smem constant byte address 0x4 - core index']
  #allocation1 [shape = 'u32[144,128]{1,0:T(1,128)}', space=vmem, size = 0x12000, scoped, tag = 'internal scratch']
  %s0 = inlined_call_operand.vmem [shape: f32[8,2,8,14], index: 0, kind: input, shape index: {}]
  %s1 = inlined_call_operand.vmem [shape: bf16[8,8,56], index: 1, kind: input, shape index: {}]
  %s2 = inlined_call_operand.vmem [shape: bf16[8,56,8], index: 2, kind: input, shape index: {}]
  %s3 = inlined_call_operand.vmem [shape: bf16[8,56,8], index: 3, kind: input, shape index: {}]
  %s4 = inlined_call_operand.vmem [shape: bf16[8,56,3], index: 4, kind: input, shape index: {}]
  %s5 = inlined_call_operand.vmem [shape: f32[8,8,1], index: 5, kind: input, shape index: {}]
  %s6 = inlined_call_operand.vmem [shape: f32[17,150], index: 6, kind: input, shape index: {}]
  %s7 = inlined_call_operand.vmem [shape: f32[17,150], index: 7, kind: input, shape index: {}]
  %s8 = inlined_call_operand.vmem [shape: f32[3,150], index: 8, kind: input, shape index: {}]
  %s9 = inlined_call_operand.vmem [shape: bf16[150,150], index: 9, kind: input, shape index: {}]
  %s10 = inlined_call_operand.vmem [shape: bf16[150,150], index: 10, kind: input, shape index: {}]
  %s11 = inlined_call_operand.vmem [shape: bf16[150,150], index: 11, kind: input, shape index: {}]
  %s12 = inlined_call_operand.vmem [shape: bf16[150,50], index: 12, kind: input, shape index: {}]
  %s13 = inlined_call_operand.vmem [shape: f32[17,100], index: 13, kind: input, shape index: {}]
  %s14 = inlined_call_operand.vmem [shape: f32[1,100], index: 14, kind: input, shape index: {}]
  %s15 = inlined_call_operand.vmem [shape: f32[50,100], index: 15, kind: input, shape index: {}]
  %s16 = inlined_call_operand.vmem [shape: f32[100,3], index: 16, kind: input, shape index: {}]
  %s17 = inlined_call_operand.vmem [shape: f32[8,150], index: 17, kind: input, shape index: {}]
  %s18 = inlined_call_operand.hbm [shape: f32[8,8,14], index: 18, kind: output, shape index: {}]
  %s19 = sld [smem:[#allocation0]]
  $region82: #{tpu_custom_call.1} parent=0
    _
  %s21 = ssub.s32 1, %s19
  %s22 = scalar_select 0, %s21, %s19
  $region1: #{tpu_custom_call.1} parent=0
    #allocation2 [shape = 'u8[32768]{0}', space=vmem, size = 0x8000, scoped, tag = 'output window, operand 0, single buffered']
    #allocation3 [shape = 's32[1]{0}', space=sflag, size = 0x4, scoped, tag = 'scoped memory for tpu_custom_call.1']
    %23 = vsyncpa [#allocation3], 0
    // Predicated region
    $region2: #{tpu_custom_call.1} parent=1 // pred_check
      _
    $region3: #{tpu_custom_call.1} parent=1 // pred_check_branch
      %25 = sbr.rel (0) target = $region5
    $region4: #{tpu_custom_call.1} parent=1 // pred_region
      _
    $region5: #{tpu_custom_call.1} parent=1 // pred_fallthru
      _
    // Predicated region
    $region6: #{tpu_custom_call.1} parent=1 // pred_check
      _
    $region7: #{tpu_custom_call.1} parent=1 // pred_check_branch
      %27 = sbr.rel (0) target = $region9
    $region8: #{tpu_custom_call.1} parent=1 // pred_region
      _
    $region9: #{tpu_custom_call.1} parent=1 // pred_fallthru
      _
    // Predicated region
    $region10: #{tpu_custom_call.1} parent=1 // pred_check
      _
    $region11: #{tpu_custom_call.1} parent=1 // pred_check_branch
      %29 = sbr.rel (0) target = $region13
    $region12: #{tpu_custom_call.1} parent=1 // pred_region
      _
    $region13: #{tpu_custom_call.1} parent=1 // pred_fallthru
      _
    // Predicated region
    $region14: #{tpu_custom_call.1} parent=1 // pred_check
      _
    $region15: #{tpu_custom_call.1} parent=1 // pred_check_branch
      %31 = sbr.rel (0) target = $region17
    $region16: #{tpu_custom_call.1} parent=1 // pred_region
      _
    $region17: #{tpu_custom_call.1} parent=1 // pred_fallthru
      _
    // Predicated region
    $region18: #{tpu_custom_call.1} parent=1 // pred_check
      _
    $region19: #{tpu_custom_call.1} parent=1 // pred_check_branch
      %33 = sbr.rel (0) target = $region21
    $region20: #{tpu_custom_call.1} parent=1 // pred_region
      _
    $region21: #{tpu_custom_call.1} parent=1 // pred_fallthru
      _
    // Predicated region
    $region22: #{tpu_custom_call.1} parent=1 // pred_check
      _
    $region23: #{tpu_custom_call.1} parent=1 // pred_check_branch
      %35 = sbr.rel (0) target = $region25
    $region24: #{tpu_custom_call.1} parent=1 // pred_region
      _
    $region25: #{tpu_custom_call.1} parent=1 // pred_fallthru
      _
    // Predicated region
    $region26: #{tpu_custom_call.1} parent=1 // pred_check
      _
    $region27: #{tpu_custom_call.1} parent=1 // pred_check_branch
      %37 = sbr.rel (0) target = $region29
    $region28: #{tpu_custom_call.1} parent=1 // pred_region
      _
    $region29: #{tpu_custom_call.1} parent=1 // pred_fallthru
      _
    // Predicated region
    $region30: #{tpu_custom_call.1} parent=1 // pred_check
      _
    $region31: #{tpu_custom_call.1} parent=1 // pred_check_branch
      %39 = sbr.rel (0) target = $region33
    $region32: #{tpu_custom_call.1} parent=1 // pred_region
      _
    $region33: #{tpu_custom_call.1} parent=1 // pred_fallthru
      _
    // Predicated region
    $region34: #{tpu_custom_call.1} parent=1 // pred_check
      _
    $region35: #{tpu_custom_call.1} parent=1 // pred_check_branch
      %41 = sbr.rel (0) target = $region37
    $region36: #{tpu_custom_call.1} parent=1 // pred_region
      _
    $region37: #{tpu_custom_call.1} parent=1 // pred_fallthru
      _
    // Predicated region
    $region38: #{tpu_custom_call.1} parent=1 // pred_check
      _
    $region39: #{tpu_custom_call.1} parent=1 // pred_check_branch
      %43 = sbr.rel (0) target = $region41
    $region40: #{tpu_custom_call.1} parent=1 // pred_region
      _
    $region41: #{tpu_custom_call.1} parent=1 // pred_fallthru
      _
    // Predicated region
    $region42: #{tpu_custom_call.1} parent=1 // pred_check
      _
    $region43: #{tpu_custom_call.1} parent=1 // pred_check_branch
      %45 = sbr.rel (0) target = $region45
    $region44: #{tpu_custom_call.1} parent=1 // pred_region
      _
    $region45: #{tpu_custom_call.1} parent=1 // pred_fallthru
      _
    // Predicated region
    $region46: #{tpu_custom_call.1} parent=1 // pred_check
      _
    $region47: #{tpu_custom_call.1} parent=1 // pred_check_branch
      %47 = sbr.rel (0) target = $region49
    $region48: #{tpu_custom_call.1} parent=1 // pred_region
      _
    $region49: #{tpu_custom_call.1} parent=1 // pred_fallthru
      _
    // Predicated region
    $region50: #{tpu_custom_call.1} parent=1 // pred_check
      _
    $region51: #{tpu_custom_call.1} parent=1 // pred_check_branch
      %49 = sbr.rel (0) target = $region53
    $region52: #{tpu_custom_call.1} parent=1 // pred_region
      _
    $region53: #{tpu_custom_call.1} parent=1 // pred_fallthru
      _
    // Predicated region
    $region54: #{tpu_custom_call.1} parent=1 // pred_check
      _
    $region55: #{tpu_custom_call.1} parent=1 // pred_check_branch
      %51 = sbr.rel (0) target = $region57
    $region56: #{tpu_custom_call.1} parent=1 // pred_region
      _
    $region57: #{tpu_custom_call.1} parent=1 // pred_fallthru
      _
    // Predicated region
    $region58: #{tpu_custom_call.1} parent=1 // pred_check
      _
    $region59: #{tpu_custom_call.1} parent=1 // pred_check_branch
      %53 = sbr.rel (0) target = $region61
    $region60: #{tpu_custom_call.1} parent=1 // pred_region
      _
    $region61: #{tpu_custom_call.1} parent=1 // pred_fallthru
      _
    // Predicated region
    $region62: #{tpu_custom_call.1} parent=1 // pred_check
      _
    $region63: #{tpu_custom_call.1} parent=1 // pred_check_branch
      %55 = sbr.rel (0) target = $region65
    $region64: #{tpu_custom_call.1} parent=1 // pred_region
      _
    $region65: #{tpu_custom_call.1} parent=1 // pred_fallthru
      _
    // Predicated region
    $region66: #{tpu_custom_call.1} parent=1 // pred_check
      _
    $region67: #{tpu_custom_call.1} parent=1 // pred_check_branch
      %57 = sbr.rel (0) target = $region69
    $region68: #{tpu_custom_call.1} parent=1 // pred_region
      _
    $region69: #{tpu_custom_call.1} parent=1 // pred_fallthru
      _
    // Predicated region
    $region70: #{tpu_custom_call.1} parent=1 // pred_check
      _
    $region71: #{tpu_custom_call.1} parent=1 // pred_check_branch
      %59 = sbr.rel (0) target = $region73
    $region72: #{tpu_custom_call.1} parent=1 // pred_region
      _
    $region73: #{tpu_custom_call.1} parent=1 // pred_fallthru
      _
    %v61 = vld [vmem:[%s0] sm:$0xff]
    %v62 = vld [vmem:[%s0 + $0x8] sm:$0xff]
    %v63 = vld [vmem:[%s0 + $0x10] sm:$0xff]
    %v64 = vld [vmem:[%s0 + $0x18] sm:$0xff]
    %v65 = vld [vmem:[%s0 + $0x20] sm:$0xff]
    %v66 = vld [vmem:[%s0 + $0x28] sm:$0xff]
    %v67 = vld [vmem:[%s0 + $0x30] sm:$0xff]
    %v68 = vld [vmem:[%s0 + $0x38] sm:$0xff]
    %v69 = vld [vmem:[%s0 + $0x40] sm:$0xff]
    %v70 = vld [vmem:[%s0 + $0x48] sm:$0xff]
    %v71 = vld [vmem:[%s0 + $0x50] sm:$0xff]
    %v72 = vld [vmem:[%s0 + $0x58] sm:$0xff]
    %v73 = vld [vmem:[%s0 + $0x60] sm:$0xff]
    %v74 = vld [vmem:[%s0 + $0x68] sm:$0xff]
    %v75 = vld [vmem:[%s0 + $0x70] sm:$0xff]
    %v76 = vld [vmem:[%s0 + $0x78] sm:$0xff]
    %v77 = vsub.f32 %v62, %v61
    %v78 = vsub.f32 %v64, %v63
    %v79 = vsub.f32 %v66, %v65
    %v80 = vsub.f32 %v68, %v67
    %v81 = vsub.f32 %v70, %v69
    %v82 = vsub.f32 %v72, %v71
    %v83 = vsub.f32 %v74, %v73
    %v84 = vsub.f32 %v76, %v75
    %93 = vrot.lane.b32.xlu0 %v62, 3
    %v94 = vpop.permute.xlu0 %93
    %95 = vrot.lane.b32.xlu0 %v64, 3
    %v96 = vpop.permute.xlu0 %95
    %97 = vrot.lane.b32.xlu0 %v66, 3
    %v98 = vpop.permute.xlu0 %97
    %99 = vrot.lane.b32.xlu0 %v68, 3
    %v100 = vpop.permute.xlu0 %99
    %101 = vrot.lane.b32.xlu0 %v70, 3
    %v102 = vpop.permute.xlu0 %101
    %103 = vrot.lane.b32.xlu0 %v72, 3
    %v104 = vpop.permute.xlu0 %103
    %105 = vrot.lane.b32.xlu0 %v74, 3
    %v106 = vpop.permute.xlu0 %105
    %107 = vrot.lane.b32.xlu0 %v76, 3
    %v108 = vpop.permute.xlu0 %107
    %vm117 = vcmask 23552
    %v118 = vsel %vm117, %v77, %v94
    %v119 = vsel %vm117, %v78, %v96
    %v120 = vsel %vm117, %v79, %v98
    %v121 = vsel %vm117, %v80, %v100
    %v122 = vsel %vm117, %v81, %v102
    %v123 = vsel %vm117, %v82, %v104
    %v124 = vsel %vm117, %v83, %v106
    %v125 = vsel %vm117, %v84, %v108
    %v126 = vld [vmem:[%s17] sm:$0xff]
    %v127 = vld [vmem:[%s17 + $0x8] sm:$0xff]
    %v128 = vld [vmem:[%s6] sm:$0xff]
    %v129 = vld [vmem:[%s6 + $0x8] sm:$0xff]
    %v130 = vld [vmem:[%s6 + $0x10] sm:$0xff]
    %v131 = vld [vmem:[%s6 + $0x18] sm:$0xff]
    %v132 = vld [vmem:[%s6 + $0x20] sm:$0x1]
    %v133 = vld [vmem:[%s6 + $0x28] sm:$0x1]
    %vm134 = vcmask 138240
    %v136 = vsel %vm134, %v118, 0
    %v139 = vsel %vm134, %v119, 0
    %v142 = vsel %vm134, %v120, 0
    %v145 = vsel %vm134, %v121, 0
    %v148 = vsel %vm134, %v122, 0
    %v151 = vsel %vm134, %v123, 0
    %v154 = vsel %vm134, %v124, 0
    %v157 = vsel %vm134, %v125, 0
    %vm159 = vcmask 1040384
    %v161 = vsel %vm159, %v132, 0
    %v164 = vsel %vm159, %v133, 0
    %166 = vmatprep.subr.mxu0 0.0
    %167 = vmatpush1.msra.mxu0 0.0
    %168 = vmatprep.subr.mxu0 0.0
    %169 = vmatpush1.msra.mxu0 0.0
    %170 = vmatprep.subr.mxu0 0.0
    %171 = vmatpush1.msra.mxu0 0.0
    %172 = vmatprep.subr.mxu0 0.0
    %173 = vmatpush1.msra.mxu0 0.0
    %174 = vmatprep.subr.mxu0 0.0
    %175 = vmatpush1.msra.mxu0 0.0
    %176 = vmatprep.subr.mxu0 0.0
    %177 = vmatpush1.msra.mxu0 0.0
    %178 = vmatprep.subr.mxu0 0.0
    %179 = vmatpush1.msra.mxu0 0.0
    %180 = vmatprep.subr.mxu0 0.0
    %181 = vmatpush1.msra.mxu0 0.0
    %182 = vmatprep.subr.mxu0 0.0
    %183 = vmatpush1.msra.mxu0 0.0
    %184 = vmatprep.subr.mxu0 0.0
    %185 = vmatpush1.msra.mxu0 0.0
    %186 = vmatprep.subr.mxu0 0.0
    %187 = vmatpush1.msra.mxu0 0.0
    %188 = vmatprep.subr.mxu0 0.0
    %189 = vmatpush1.msra.mxu0 0.0
    %190 = vmatprep.subr.mxu0 0.0
    %191 = vmatpush1.msra.mxu0 0.0
    %192 = vmatprep.subr.mxu0 %v164
    %193 = vmatpush1.msra.mxu0 %v161
    %194 = vmatprep.subr.mxu0 %v131
    %195 = vmatpush1.msra.mxu0 %v130
    %196 = vmatprep.subr.mxu0 %v129
    %197 = vmatpush1.msra.mxu0 %v128
    %198 = vmatprep.subr.mxu0 0.0
    %199 = vmatpush2.msra.mxu0 0.0
    %200 = vmatprep.subr.mxu0 0.0
    %201 = vmatpush2.msra.mxu0 0.0
    %202 = vmatprep.subr.mxu0 0.0
    %203 = vmatpush2.msra.mxu0 0.0
    %204 = vmatprep.subr.mxu0 0.0
    %205 = vmatpush2.msra.mxu0 0.0
    %206 = vmatprep.subr.mxu0 0.0
    %207 = vmatpush2.msra.mxu0 0.0
    %208 = vmatprep.subr.mxu0 0.0
    %209 = vmatpush2.msra.mxu0 0.0
    %210 = vmatprep.subr.mxu0 0.0
    %211 = vmatpush2.msra.mxu0 0.0
    %212 = vmatprep.subr.mxu0 0.0
    %213 = vmatpush2.msra.mxu0 0.0
    %214 = vmatprep.subr.mxu0 0.0
    %215 = vmatpush2.msra.mxu0 0.0
    %216 = vmatprep.subr.mxu0 0.0
    %217 = vmatpush2.msra.mxu0 0.0
    %218 = vmatprep.subr.mxu0 0.0
    %219 = vmatpush2.msra.mxu0 0.0
    %220 = vmatprep.subr.mxu0 0.0
    %221 = vmatpush2.msra.mxu0 0.0
    %222 = vmatprep.subr.mxu0 0.0
    %223 = vmatpush2.msra.mxu0 0.0
    %224 = vmatprep.subr.mxu0 0.0
    %225 = vmatpush2.msra.mxu0 0.0
    %226 = vmatprep.subr.mxu0 0.0
    %227 = vmatpush2.msra.mxu0 0.0
    %228 = vmatprep.subr.mxu0 0.0
    %229 = vmatpush2.msra.mxu0 0.0
    %230 = vmatprep.mubr.f32.mxu0 0.0
    %231 = vmatmul.mubr.f32.gmra.mxu0 %v136
    %v232 = vpop.f32.mrf.mxu0
    %v233 = vadd.f32 0.0, %v232
    %v234 = vpop.f32.mrf.mxu0
    %v235 = vadd.f32 0.0, %v234
    %236 = vmatprep.mubr.f32.mxu0 0.0
    %237 = vmatmul.mubr.f32.gmra.mxu0 %v139
    %v238 = vpop.f32.mrf.mxu0
    %v239 = vadd.f32 0.0, %v238
    %v240 = vpop.f32.mrf.mxu0
    %v241 = vadd.f32 0.0, %v240
    %242 = vmatprep.mubr.f32.mxu0 0.0
    %243 = vmatmul.mubr.f32.gmra.mxu0 %v142
    %v244 = vpop.f32.mrf.mxu0
    %v245 = vadd.f32 0.0, %v244
    %v246 = vpop.f32.mrf.mxu0
    %v247 = vadd.f32 0.0, %v246
    %248 = vmatprep.mubr.f32.mxu0 0.0
    %249 = vmatmul.mubr.f32.gmra.mxu0 %v145
    %v250 = vpop.f32.mrf.mxu0
    %v251 = vadd.f32 0.0, %v250
    %v252 = vpop.f32.mrf.mxu0
    %v253 = vadd.f32 0.0, %v252
    %254 = vmatprep.mubr.f32.mxu0 0.0
    %255 = vmatmul.mubr.f32.gmra.mxu0 %v148
    %v256 = vpop.f32.mrf.mxu0
    %v257 = vadd.f32 0.0, %v256
    %v258 = vpop.f32.mrf.mxu0
    %v259 = vadd.f32 0.0, %v258
    %260 = vmatprep.mubr.f32.mxu0 0.0
    %261 = vmatmul.mubr.f32.gmra.mxu0 %v151
    %v262 = vpop.f32.mrf.mxu0
    %v263 = vadd.f32 0.0, %v262
    %v264 = vpop.f32.mrf.mxu0
    %v265 = vadd.f32 0.0, %v264
    %266 = vmatprep.mubr.f32.mxu0 0.0
    %267 = vmatmul.mubr.f32.gmra.mxu0 %v154
    %v268 = vpop.f32.mrf.mxu0
    %v269 = vadd.f32 0.0, %v268
    %v270 = vpop.f32.mrf.mxu0
    %v271 = vadd.f32 0.0, %v270
    %272 = vmatprep.mubr.f32.mxu0 0.0
    %273 = vmatmul.mubr.f32.gmra.mxu0 %v157
    %v274 = vpop.f32.mrf.mxu0
    %v275 = vadd.f32 0.0, %v274
    %v276 = vpop.f32.mrf.mxu0
    %v277 = vadd.f32 0.0, %v276
    %278 = vdwg.mxu0
    %v279 = vld [vmem:[%s7] sm:$0xff]
    %v280 = vld [vmem:[%s7 + $0x8] sm:$0xff]
    %v281 = vld [vmem:[%s7 + $0x10] sm:$0xff]
    %v282 = vld [vmem:[%s7 + $0x18] sm:$0xff]
    %v283 = vld [vmem:[%s7 + $0x20] sm:$0x1]
    %v284 = vld [vmem:[%s7 + $0x28] sm:$0x1]
    %v286 = vsel %vm159, %v283, 0
    %v289 = vsel %vm159, %v284, 0
    %291 = vmatprep.subr.mxu0 0.0
    %292 = vmatpush1.msra.mxu0 0.0
    %293 = vmatprep.subr.mxu0 0.0
    %294 = vmatpush1.msra.mxu0 0.0
    %295 = vmatprep.subr.mxu0 0.0
    %296 = vmatpush1.msra.mxu0 0.0
    %297 = vmatprep.subr.mxu0 0.0
    %298 = vmatpush1.msra.mxu0 0.0
    %299 = vmatprep.subr.mxu0 0.0
    %300 = vmatpush1.msra.mxu0 0.0
    %301 = vmatprep.subr.mxu0 0.0
    %302 = vmatpush1.msra.mxu0 0.0
    %303 = vmatprep.subr.mxu0 0.0
    %304 = vmatpush1.msra.mxu0 0.0
    %305 = vmatprep.subr.mxu0 0.0
    %306 = vmatpush1.msra.mxu0 0.0
    %307 = vmatprep.subr.mxu0 0.0
    %308 = vmatpush1.msra.mxu0 0.0
    %309 = vmatprep.subr.mxu0 0.0
    %310 = vmatpush1.msra.mxu0 0.0
    %311 = vmatprep.subr.mxu0 0.0
    %312 = vmatpush1.msra.mxu0 0.0
    %313 = vmatprep.subr.mxu0 0.0
    %314 = vmatpush1.msra.mxu0 0.0
    %315 = vmatprep.subr.mxu0 0.0
    %316 = vmatpush1.msra.mxu0 0.0
    %317 = vmatprep.subr.mxu0 %v289
    %318 = vmatpush1.msra.mxu0 %v286
    %319 = vmatprep.subr.mxu0 %v282
    %320 = vmatpush1.msra.mxu0 %v281
    %321 = vmatprep.subr.mxu0 %v280
    %322 = vmatpush1.msra.mxu0 %v279
    %323 = vmatprep.subr.mxu0 0.0
    %324 = vmatpush2.msra.mxu0 0.0
    %325 = vmatprep.subr.mxu0 0.0
    %326 = vmatpush2.msra.mxu0 0.0
    %327 = vmatprep.subr.mxu0 0.0
    %328 = vmatpush2.msra.mxu0 0.0
    %329 = vmatprep.subr.mxu0 0.0
    %330 = vmatpush2.msra.mxu0 0.0
    %331 = vmatprep.subr.mxu0 0.0
    %332 = vmatpush2.msra.mxu0 0.0
    %333 = vmatprep.subr.mxu0 0.0
    %334 = vmatpush2.msra.mxu0 0.0
    %335 = vmatprep.subr.mxu0 0.0
    %336 = vmatpush2.msra.mxu0 0.0
    %337 = vmatprep.subr.mxu0 0.0
    %338 = vmatpush2.msra.mxu0 0.0
    %339 = vmatprep.subr.mxu0 0.0
    %340 = vmatpush2.msra.mxu0 0.0
    %341 = vmatprep.subr.mxu0 0.0
    %342 = vmatpush2.msra.mxu0 0.0
    %343 = vmatprep.subr.mxu0 0.0
    %344 = vmatpush2.msra.mxu0 0.0
    %345 = vmatprep.subr.mxu0 0.0
    %346 = vmatpush2.msra.mxu0 0.0
    %347 = vmatprep.subr.mxu0 0.0
    %348 = vmatpush2.msra.mxu0 0.0
    %349 = vmatprep.subr.mxu0 0.0
    %350 = vmatpush2.msra.mxu0 0.0
    %351 = vmatprep.subr.mxu0 0.0
    %352 = vmatpush2.msra.mxu0 0.0
    %353 = vmatprep.subr.mxu0 0.0
    %354 = vmatpush2.msra.mxu0 0.0
    %355 = vmatprep.mubr.f32.mxu0 0.0
    %356 = vmatmul.mubr.f32.gmra.mxu0 %v136
    %v357 = vpop.f32.mrf.mxu0
    %v358 = vadd.f32 0.0, %v357
    %v359 = vpop.f32.mrf.mxu0
    %v360 = vadd.f32 0.0, %v359
    %361 = vmatprep.mubr.f32.mxu0 0.0
    %362 = vmatmul.mubr.f32.gmra.mxu0 %v139
    %v363 = vpop.f32.mrf.mxu0
    %v364 = vadd.f32 0.0, %v363
    %v365 = vpop.f32.mrf.mxu0
    %v366 = vadd.f32 0.0, %v365
    %367 = vmatprep.mubr.f32.mxu0 0.0
    %368 = vmatmul.mubr.f32.gmra.mxu0 %v142
    %v369 = vpop.f32.mrf.mxu0
    %v370 = vadd.f32 0.0, %v369
    %v371 = vpop.f32.mrf.mxu0
    %v372 = vadd.f32 0.0, %v371
    %373 = vmatprep.mubr.f32.mxu0 0.0
    %374 = vmatmul.mubr.f32.gmra.mxu0 %v145
    %v375 = vpop.f32.mrf.mxu0
    %v376 = vadd.f32 0.0, %v375
    %v377 = vpop.f32.mrf.mxu0
    %v378 = vadd.f32 0.0, %v377
    %379 = vmatprep.mubr.f32.mxu0 0.0
    %380 = vmatmul.mubr.f32.gmra.mxu0 %v148
    %v381 = vpop.f32.mrf.mxu0
    %v382 = vadd.f32 0.0, %v381
    %v383 = vpop.f32.mrf.mxu0
    %v384 = vadd.f32 0.0, %v383
    %385 = vmatprep.mubr.f32.mxu0 0.0
    %386 = vmatmul.mubr.f32.gmra.mxu0 %v151
    %v387 = vpop.f32.mrf.mxu0
    %v388 = vadd.f32 0.0, %v387
    %v389 = vpop.f32.mrf.mxu0
    %v390 = vadd.f32 0.0, %v389
    %391 = vmatprep.mubr.f32.mxu0 0.0
    %392 = vmatmul.mubr.f32.gmra.mxu0 %v154
    %v393 = vpop.f32.mrf.mxu0
    %v394 = vadd.f32 0.0, %v393
    %v395 = vpop.f32.mrf.mxu0
    %v396 = vadd.f32 0.0, %v395
    %397 = vmatprep.mubr.f32.mxu0 0.0
    %398 = vmatmul.mubr.f32.gmra.mxu0 %v157
    %v399 = vpop.f32.mrf.mxu0
    %v400 = vadd.f32 0.0, %v399
    %v401 = vpop.f32.mrf.mxu0
    %v402 = vadd.f32 0.0, %v401
    %403 = vdwg.mxu0
    %v404 = vld [vmem:[%s2] sm:$0xf]
    %v405 = vld [vmem:[%s2 + $0x4] sm:$0xf]
    %v406 = vld [vmem:[%s2 + $0x8] sm:$0xf]
    %v407 = vld [vmem:[%s2 + $0xc] sm:$0xf]
    %v408 = vld [vmem:[%s2 + $0x10] sm:$0xf]
    %v409 = vld [vmem:[%s2 + $0x14] sm:$0xf]
    %v410 = vld [vmem:[%s2 + $0x18] sm:$0xf]
    %v411 = vld [vmem:[%s2 + $0x1c] sm:$0xf]
    %v412 = vld [vmem:[%s2 + $0x20] sm:$0xf]
    %v413 = vld [vmem:[%s2 + $0x24] sm:$0xf]
    %v414 = vld [vmem:[%s2 + $0x28] sm:$0xf]
    %v415 = vld [vmem:[%s2 + $0x2c] sm:$0xf]
    %v416 = vld [vmem:[%s2 + $0x30] sm:$0xf]
    %v417 = vld [vmem:[%s2 + $0x34] sm:$0xf]
    %v418 = vld [vmem:[%s2 + $0x38] sm:$0xf]
    %v419 = vld [vmem:[%s2 + $0x3c] sm:$0xf]
    %v420 = vld [vmem:[%s2 + $0x40] sm:$0xf]
    %v421 = vld [vmem:[%s2 + $0x44] sm:$0xf]
    %v422 = vld [vmem:[%s2 + $0x48] sm:$0xf]
    %v423 = vld [vmem:[%s2 + $0x4c] sm:$0xf]
    %v424 = vld [vmem:[%s2 + $0x50] sm:$0xf]
    %v425 = vld [vmem:[%s2 + $0x54] sm:$0xf]
    %v426 = vld [vmem:[%s2 + $0x58] sm:$0xf]
    %v427 = vld [vmem:[%s2 + $0x5c] sm:$0xf]
    %v428 = vld [vmem:[%s2 + $0x60] sm:$0xf]
    %v429 = vld [vmem:[%s2 + $0x64] sm:$0xf]
    %v430 = vld [vmem:[%s2 + $0x68] sm:$0xf]
    %v431 = vld [vmem:[%s2 + $0x6c] sm:$0xf]
    %v432 = vld [vmem:[%s2 + $0x70] sm:$0xf]
    %v433 = vld [vmem:[%s2 + $0x74] sm:$0xf]
    %v434 = vld [vmem:[%s2 + $0x78] sm:$0xf]
    %v435 = vld [vmem:[%s2 + $0x7c] sm:$0xf]
    %v436 = vld [vmem:[%s2 + $0x80] sm:$0xf]
    %v437 = vld [vmem:[%s2 + $0x84] sm:$0xf]
    %v438 = vld [vmem:[%s2 + $0x88] sm:$0xf]
    %v439 = vld [vmem:[%s2 + $0x8c] sm:$0xf]
    %v440 = vld [vmem:[%s2 + $0x90] sm:$0xf]
    %v441 = vld [vmem:[%s2 + $0x94] sm:$0xf]
    %v442 = vld [vmem:[%s2 + $0x98] sm:$0xf]
    %v443 = vld [vmem:[%s2 + $0x9c] sm:$0xf]
    %v444 = vld [vmem:[%s2 + $0xa0] sm:$0xf]
    %v445 = vld [vmem:[%s2 + $0xa4] sm:$0xf]
    %v446 = vld [vmem:[%s2 + $0xa8] sm:$0xf]
    %v447 = vld [vmem:[%s2 + $0xac] sm:$0xf]
    %v448 = vld [vmem:[%s2 + $0xb0] sm:$0xf]
    %v449 = vld [vmem:[%s2 + $0xb4] sm:$0xf]
    %v450 = vld [vmem:[%s2 + $0xb8] sm:$0xf]
    %v451 = vld [vmem:[%s2 + $0xbc] sm:$0xf]
    %v452 = vld [vmem:[%s2 + $0xc0] sm:$0xf]
    %v453 = vld [vmem:[%s2 + $0xc4] sm:$0xf]
    %v454 = vld [vmem:[%s2 + $0xc8] sm:$0xf]
    %v455 = vld [vmem:[%s2 + $0xcc] sm:$0xf]
    %v456 = vld [vmem:[%s2 + $0xd0] sm:$0xf]
    %v457 = vld [vmem:[%s2 + $0xd4] sm:$0xf]
    %v458 = vld [vmem:[%s2 + $0xd8] sm:$0xf]
    %v459 = vld [vmem:[%s2 + $0xdc] sm:$0xf]
    %v460 = vld [vmem:[%s3] sm:$0xf]
    %v461 = vld [vmem:[%s3 + $0x4] sm:$0xf]
    %v462 = vld [vmem:[%s3 + $0x8] sm:$0xf]
    %v463 = vld [vmem:[%s3 + $0xc] sm:$0xf]
    %v464 = vld [vmem:[%s3 + $0x10] sm:$0xf]
    %v465 = vld [vmem:[%s3 + $0x14] sm:$0xf]
    %v466 = vld [vmem:[%s3 + $0x18] sm:$0xf]
    %v467 = vld [vmem:[%s3 + $0x1c] sm:$0xf]
    %v468 = vld [vmem:[%s3 + $0x20] sm:$0xf]
    %v469 = vld [vmem:[%s3 + $0x24] sm:$0xf]
    %v470 = vld [vmem:[%s3 + $0x28] sm:$0xf]
    %v471 = vld [vmem:[%s3 + $0x2c] sm:$0xf]
    %v472 = vld [vmem:[%s3 + $0x30] sm:$0xf]
    %v473 = vld [vmem:[%s3 + $0x34] sm:$0xf]
    %v474 = vld [vmem:[%s3 + $0x38] sm:$0xf]
    %v475 = vld [vmem:[%s3 + $0x3c] sm:$0xf]
    %v476 = vld [vmem:[%s3 + $0x40] sm:$0xf]
    %v477 = vld [vmem:[%s3 + $0x44] sm:$0xf]
    %v478 = vld [vmem:[%s3 + $0x48] sm:$0xf]
    %v479 = vld [vmem:[%s3 + $0x4c] sm:$0xf]
    %v480 = vld [vmem:[%s3 + $0x50] sm:$0xf]
    %v481 = vld [vmem:[%s3 + $0x54] sm:$0xf]
    %v482 = vld [vmem:[%s3 + $0x58] sm:$0xf]
    %v483 = vld [vmem:[%s3 + $0x5c] sm:$0xf]
    %v484 = vld [vmem:[%s3 + $0x60] sm:$0xf]
    %v485 = vld [vmem:[%s3 + $0x64] sm:$0xf]
    %v486 = vld [vmem:[%s3 + $0x68] sm:$0xf]
    %v487 = vld [vmem:[%s3 + $0x6c] sm:$0xf]
    %v488 = vld [vmem:[%s3 + $0x70] sm:$0xf]
    %v489 = vld [vmem:[%s3 + $0x74] sm:$0xf]
    %v490 = vld [vmem:[%s3 + $0x78] sm:$0xf]
    %v491 = vld [vmem:[%s3 + $0x7c] sm:$0xf]
    %v492 = vld [vmem:[%s3 + $0x80] sm:$0xf]
    %v493 = vld [vmem:[%s3 + $0x84] sm:$0xf]
    %v494 = vld [vmem:[%s3 + $0x88] sm:$0xf]
    %v495 = vld [vmem:[%s3 + $0x8c] sm:$0xf]
    %v496 = vld [vmem:[%s3 + $0x90] sm:$0xf]
    %v497 = vld [vmem:[%s3 + $0x94] sm:$0xf]
    %v498 = vld [vmem:[%s3 + $0x98] sm:$0xf]
    %v499 = vld [vmem:[%s3 + $0x9c] sm:$0xf]
    %v500 = vld [vmem:[%s3 + $0xa0] sm:$0xf]
    %v501 = vld [vmem:[%s3 + $0xa4] sm:$0xf]
    %v502 = vld [vmem:[%s3 + $0xa8] sm:$0xf]
    %v503 = vld [vmem:[%s3 + $0xac] sm:$0xf]
    %v504 = vld [vmem:[%s3 + $0xb0] sm:$0xf]
    %v505 = vld [vmem:[%s3 + $0xb4] sm:$0xf]
    %v506 = vld [vmem:[%s3 + $0xb8] sm:$0xf]
    %v507 = vld [vmem:[%s3 + $0xbc] sm:$0xf]
    %v508 = vld [vmem:[%s3 + $0xc0] sm:$0xf]
    %v509 = vld [vmem:[%s3 + $0xc4] sm:$0xf]
    %v510 = vld [vmem:[%s3 + $0xc8] sm:$0xf]
    %v511 = vld [vmem:[%s3 + $0xcc] sm:$0xf]
    %v512 = vld [vmem:[%s3 + $0xd0] sm:$0xf]
    %v513 = vld [vmem:[%s3 + $0xd4] sm:$0xf]
    %v514 = vld [vmem:[%s3 + $0xd8] sm:$0xf]
    %v515 = vld [vmem:[%s3 + $0xdc] sm:$0xf]
    %v516 = vld [vmem:[%s4] sm:$0xf]
    %v517 = vld [vmem:[%s4 + $0x4] sm:$0xf]
    %v518 = vld [vmem:[%s4 + $0x8] sm:$0xf]
    %v519 = vld [vmem:[%s4 + $0xc] sm:$0xf]
    %v520 = vld [vmem:[%s4 + $0x10] sm:$0xf]
    %v521 = vld [vmem:[%s4 + $0x14] sm:$0xf]
    %v522 = vld [vmem:[%s4 + $0x18] sm:$0xf]
    %v523 = vld [vmem:[%s4 + $0x1c] sm:$0xf]
    %v524 = vld [vmem:[%s4 + $0x20] sm:$0xf]
    %v525 = vld [vmem:[%s4 + $0x24] sm:$0xf]
    %v526 = vld [vmem:[%s4 + $0x28] sm:$0xf]
    %v527 = vld [vmem:[%s4 + $0x2c] sm:$0xf]
    %v528 = vld [vmem:[%s4 + $0x30] sm:$0xf]
    %v529 = vld [vmem:[%s4 + $0x34] sm:$0xf]
    %v530 = vld [vmem:[%s4 + $0x38] sm:$0xf]
    %v531 = vld [vmem:[%s4 + $0x3c] sm:$0xf]
    %v532 = vld [vmem:[%s4 + $0x40] sm:$0xf]
    %v533 = vld [vmem:[%s4 + $0x44] sm:$0xf]
    %v534 = vld [vmem:[%s4 + $0x48] sm:$0xf]
    %v535 = vld [vmem:[%s4 + $0x4c] sm:$0xf]
    %v536 = vld [vmem:[%s4 + $0x50] sm:$0xf]
    %v537 = vld [vmem:[%s4 + $0x54] sm:$0xf]
    %v538 = vld [vmem:[%s4 + $0x58] sm:$0xf]
    %v539 = vld [vmem:[%s4 + $0x5c] sm:$0xf]
    %v540 = vld [vmem:[%s4 + $0x60] sm:$0xf]
    %v541 = vld [vmem:[%s4 + $0x64] sm:$0xf]
    %v542 = vld [vmem:[%s4 + $0x68] sm:$0xf]
    %v543 = vld [vmem:[%s4 + $0x6c] sm:$0xf]
    %v544 = vld [vmem:[%s4 + $0x70] sm:$0xf]
    %v545 = vld [vmem:[%s4 + $0x74] sm:$0xf]
    %v546 = vld [vmem:[%s4 + $0x78] sm:$0xf]
    %v547 = vld [vmem:[%s4 + $0x7c] sm:$0xf]
    %v548 = vld [vmem:[%s4 + $0x80] sm:$0xf]
    %v549 = vld [vmem:[%s4 + $0x84] sm:$0xf]
    %v550 = vld [vmem:[%s4 + $0x88] sm:$0xf]
    %v551 = vld [vmem:[%s4 + $0x8c] sm:$0xf]
    %v552 = vld [vmem:[%s4 + $0x90] sm:$0xf]
    %v553 = vld [vmem:[%s4 + $0x94] sm:$0xf]
    %v554 = vld [vmem:[%s4 + $0x98] sm:$0xf]
    %v555 = vld [vmem:[%s4 + $0x9c] sm:$0xf]
    %v556 = vld [vmem:[%s4 + $0xa0] sm:$0xf]
    %v557 = vld [vmem:[%s4 + $0xa4] sm:$0xf]
    %v558 = vld [vmem:[%s4 + $0xa8] sm:$0xf]
    %v559 = vld [vmem:[%s4 + $0xac] sm:$0xf]
    %v560 = vld [vmem:[%s4 + $0xb0] sm:$0xf]
    %v561 = vld [vmem:[%s4 + $0xb4] sm:$0xf]
    %v562 = vld [vmem:[%s4 + $0xb8] sm:$0xf]
    %v563 = vld [vmem:[%s4 + $0xbc] sm:$0xf]
    %v564 = vld [vmem:[%s4 + $0xc0] sm:$0xf]
    %v565 = vld [vmem:[%s4 + $0xc4] sm:$0xf]
    %v566 = vld [vmem:[%s4 + $0xc8] sm:$0xf]
    %v567 = vld [vmem:[%s4 + $0xcc] sm:$0xf]
    %v568 = vld [vmem:[%s4 + $0xd0] sm:$0xf]
    %v569 = vld [vmem:[%s4 + $0xd4] sm:$0xf]
    %v570 = vld [vmem:[%s4 + $0xd8] sm:$0xf]
    %v571 = vld [vmem:[%s4 + $0xdc] sm:$0xf]
    %v579 = vunpack.c.l.b16 %v460
    %v580 = vunpack.c.l.b16 %v461
    %v581 = vunpack.c.l.b16 %v462
    %v582 = vunpack.c.l.b16 %v463
    %v583 = vunpack.c.l.b16 %v464
    %v584 = vunpack.c.l.b16 %v465
    %v585 = vunpack.c.l.b16 %v466
    %v586 = vpack.c.b16 %v580, %v579
    %v587 = vpack.c.b16 %v582, %v581
    %v588 = vpack.c.b16 %v584, %v583
    %v589 = vpack.c.b16 %v585, %v585
    %vm590 = vcmask 64512
    %v592 = vsel %vm590, %v586, 0
    %v595 = vsel %vm590, %v587, 0
    %v598 = vsel %vm590, %v588, 0
    %v601 = vsel %vm590, %v589, 0
    %603 = vmatprep.subr.mxu0 0.0
    %604 = vmatpush1.msra.mxu0 0.0
    %605 = vmatprep.subr.mxu0 0.0
    %606 = vmatpush1.msra.mxu0 0.0
    %607 = vmatprep.subr.mxu0 0.0
    %608 = vmatpush1.msra.mxu0 0.0
    %609 = vmatprep.subr.mxu0 0.0
    %610 = vmatpush1.msra.mxu0 0.0
    %611 = vmatprep.subr.mxu0 0.0
    %612 = vmatpush1.msra.mxu0 0.0
    %613 = vmatprep.subr.mxu0 0.0
    %614 = vmatpush1.msra.mxu0 0.0
    %615 = vmatprep.subr.mxu0 0.0
    %616 = vmatpush1.msra.mxu0 0.0
    %617 = vmatprep.subr.mxu0 0.0
    %618 = vmatpush1.msra.mxu0 0.0
    %619 = vmatprep.subr.mxu0 0.0
    %620 = vmatpush1.msra.mxu0 0.0
    %621 = vmatprep.subr.mxu0 0.0
    %622 = vmatpush1.msra.mxu0 0.0
    %623 = vmatprep.subr.mxu0 0.0
    %624 = vmatpush1.msra.mxu0 0.0
    %625 = vmatprep.subr.mxu0 0.0
    %626 = vmatpush1.msra.mxu0 0.0
    %627 = vmatprep.subr.mxu0 0.0
    %628 = vmatpush1.msra.mxu0 0.0
    %629 = vmatprep.subr.mxu0 0.0
    %630 = vmatpush1.msra.mxu0 0.0
    %631 = vmatprep.subr.mxu0 0.0
    %632 = vmatpush1.msra.mxu0 0.0
    %633 = vmatprep.subr.mxu0 %v360
    %634 = vmatpush1.msra.mxu0 %v358
    %635 = vmatprep.subr.mxu0 0.0
    %636 = vmatpush2.msra.mxu0 0.0
    %637 = vmatprep.subr.mxu0 0.0
    %638 = vmatpush2.msra.mxu0 0.0
    %639 = vmatprep.subr.mxu0 0.0
    %640 = vmatpush2.msra.mxu0 0.0
    %641 = vmatprep.subr.mxu0 0.0
    %642 = vmatpush2.msra.mxu0 0.0
    %643 = vmatprep.subr.mxu0 0.0
    %644 = vmatpush2.msra.mxu0 0.0
    %645 = vmatprep.subr.mxu0 0.0
    %646 = vmatpush2.msra.mxu0 0.0
    %647 = vmatprep.subr.mxu0 0.0
    %648 = vmatpush2.msra.mxu0 0.0
    %649 = vmatprep.subr.mxu0 0.0
    %650 = vmatpush2.msra.mxu0 0.0
    %651 = vmatprep.subr.mxu0 0.0
    %652 = vmatpush2.msra.mxu0 0.0
    %653 = vmatprep.subr.mxu0 0.0
    %654 = vmatpush2.msra.mxu0 0.0
    %655 = vmatprep.subr.mxu0 0.0
    %656 = vmatpush2.msra.mxu0 0.0
    %657 = vmatprep.subr.mxu0 0.0
    %658 = vmatpush2.msra.mxu0 0.0
    %659 = vmatprep.subr.mxu0 0.0
    %660 = vmatpush2.msra.mxu0 0.0
    %661 = vmatprep.subr.mxu0 0.0
    %662 = vmatpush2.msra.mxu0 0.0
    %663 = vmatprep.subr.mxu0 0.0
    %664 = vmatpush2.msra.mxu0 0.0
    %665 = vmatprep.subr.mxu0 0.0
    %666 = vmatpush2.msra.mxu0 0.0
    %667 = vmatprep.mubr.bf16.mxu0 0
    %668 = vmatmul.mubr.bf16.gmra.mxu0 %v592
    %v669 = vpop.f32.mrf.mxu0
    %v670 = vadd.f32 0.0, %v669
    %v671 = vpop.f32.mrf.mxu0
    %v672 = vadd.f32 0.0, %v671
    %v673 = vpop.f32.mrf.mxu0
    %v674 = vadd.f32 0.0, %v673
    %v675 = vpop.f32.mrf.mxu0
    %v676 = vadd.f32 0.0, %v675
    %677 = vmatprep.mubr.bf16.mxu0 0
    %678 = vmatmul.mubr.bf16.gmra.mxu0 %v595
    %v679 = vpop.f32.mrf.mxu0
    %v680 = vadd.f32 0.0, %v679
    %v681 = vpop.f32.mrf.mxu0
    %v682 = vadd.f32 0.0, %v681
    %v683 = vpop.f32.mrf.mxu0
    %v684 = vadd.f32 0.0, %v683
    %v685 = vpop.f32.mrf.mxu0
    %v686 = vadd.f32 0.0, %v685
    %687 = vmatprep.mubr.bf16.mxu0 0
    %688 = vmatmul.mubr.bf16.gmra.mxu0 %v598
    %v689 = vpop.f32.mrf.mxu0
    %v690 = vadd.f32 0.0, %v689
    %v691 = vpop.f32.mrf.mxu0
    %v692 = vadd.f32 0.0, %v691
    %v693 = vpop.f32.mrf.mxu0
    %v694 = vadd.f32 0.0, %v693
    %v695 = vpop.f32.mrf.mxu0
    %v696 = vadd.f32 0.0, %v695
    %697 = vmatprep.mubr.bf16.mxu0 0
    %698 = vmatmul.mubr.bf16.gmra.mxu0 %v601
    %v699 = vpop.f32.mrf.mxu0
    %v700 = vadd.f32 0.0, %v699
    %v701 = vpop.f32.mrf.mxu0
    %v702 = vadd.f32 0.0, %v701
    %v703 = vpop.f32.mrf.mxu0
    %v704 = vpop.f32.mrf.mxu0
    %705 = vdwg.mxu0
    %v713 = vunpack.c.l.b16 %v467
    %v714 = vunpack.c.l.b16 %v468
    %v715 = vunpack.c.l.b16 %v469
    %v716 = vunpack.c.l.b16 %v470
    %v717 = vunpack.c.l.b16 %v471
    %v718 = vunpack.c.l.b16 %v472
    %v719 = vunpack.c.l.b16 %v473
    %v720 = vpack.c.b16 %v714, %v713
    %v721 = vpack.c.b16 %v716, %v715
    %v722 = vpack.c.b16 %v718, %v717
    %v723 = vpack.c.b16 %v719, %v719
    %v725 = vsel %vm590, %v720, 0
    %v728 = vsel %vm590, %v721, 0
    %v731 = vsel %vm590, %v722, 0
    %v734 = vsel %vm590, %v723, 0
    %736 = vmatprep.subr.mxu0 0.0
    %737 = vmatpush1.msra.mxu0 0.0
    %738 = vmatprep.subr.mxu0 0.0
    %739 = vmatpush1.msra.mxu0 0.0
    %740 = vmatprep.subr.mxu0 0.0
    %741 = vmatpush1.msra.mxu0 0.0
    %742 = vmatprep.subr.mxu0 0.0
    %743 = vmatpush1.msra.mxu0 0.0
    %744 = vmatprep.subr.mxu0 0.0
    %745 = vmatpush1.msra.mxu0 0.0
    %746 = vmatprep.subr.mxu0 0.0
    %747 = vmatpush1.msra.mxu0 0.0
    %748 = vmatprep.subr.mxu0 0.0
    %749 = vmatpush1.msra.mxu0 0.0
    %750 = vmatprep.subr.mxu0 0.0
    %751 = vmatpush1.msra.mxu0 0.0
    %752 = vmatprep.subr.mxu0 0.0
    %753 = vmatpush1.msra.mxu0 0.0
    %754 = vmatprep.subr.mxu0 0.0
    %755 = vmatpush1.msra.mxu0 0.0
    %756 = vmatprep.subr.mxu0 0.0
    %757 = vmatpush1.msra.mxu0 0.0
    %758 = vmatprep.subr.mxu0 0.0
    %759 = vmatpush1.msra.mxu0 0.0
    %760 = vmatprep.subr.mxu0 0.0
    %761 = vmatpush1.msra.mxu0 0.0
    %762 = vmatprep.subr.mxu0 0.0
    %763 = vmatpush1.msra.mxu0 0.0
    %764 = vmatprep.subr.mxu0 0.0
    %765 = vmatpush1.msra.mxu0 0.0
    %766 = vmatprep.subr.mxu0 %v366
    %767 = vmatpush1.msra.mxu0 %v364
    %768 = vmatprep.subr.mxu0 0.0
    %769 = vmatpush2.msra.mxu0 0.0
    %770 = vmatprep.subr.mxu0 0.0
    %771 = vmatpush2.msra.mxu0 0.0
    %772 = vmatprep.subr.mxu0 0.0
    %773 = vmatpush2.msra.mxu0 0.0
    %774 = vmatprep.subr.mxu0 0.0
    %775 = vmatpush2.msra.mxu0 0.0
    %776 = vmatprep.subr.mxu0 0.0
    %777 = vmatpush2.msra.mxu0 0.0
    %778 = vmatprep.subr.mxu0 0.0
    %779 = vmatpush2.msra.mxu0 0.0
    %780 = vmatprep.subr.mxu0 0.0
    %781 = vmatpush2.msra.mxu0 0.0
    %782 = vmatprep.subr.mxu0 0.0
    %783 = vmatpush2.msra.mxu0 0.0
    %784 = vmatprep.subr.mxu0 0.0
    %785 = vmatpush2.msra.mxu0 0.0
    %786 = vmatprep.subr.mxu0 0.0
    %787 = vmatpush2.msra.mxu0 0.0
    %788 = vmatprep.subr.mxu0 0.0
    %789 = vmatpush2.msra.mxu0 0.0
    %790 = vmatprep.subr.mxu0 0.0
    %791 = vmatpush2.msra.mxu0 0.0
    %792 = vmatprep.subr.mxu0 0.0
    %793 = vmatpush2.msra.mxu0 0.0
    %794 = vmatprep.subr.mxu0 0.0
    %795 = vmatpush2.msra.mxu0 0.0
    %796 = vmatprep.subr.mxu0 0.0
    %797 = vmatpush2.msra.mxu0 0.0
    %798 = vmatprep.subr.mxu0 0.0
    %799 = vmatpush2.msra.mxu0 0.0
    %800 = vmatprep.mubr.bf16.mxu0 0
    %801 = vmatmul.mubr.bf16.gmra.mxu0 %v725
    %v802 = vpop.f32.mrf.mxu0
    %v803 = vadd.f32 0.0, %v802
    %v804 = vpop.f32.mrf.mxu0
    %v805 = vadd.f32 0.0, %v804
    %v806 = vpop.f32.mrf.mxu0
    %v807 = vadd.f32 0.0, %v806
    %v808 = vpop.f32.mrf.mxu0
    %v809 = vadd.f32 0.0, %v808
    %810 = vmatprep.mubr.bf16.mxu0 0
    %811 = vmatmul.mubr.bf16.gmra.mxu0 %v728
    %v812 = vpop.f32.mrf.mxu0
    %v813 = vadd.f32 0.0, %v812
    %v814 = vpop.f32.mrf.mxu0
    %v815 = vadd.f32 0.0, %v814
    %v816 = vpop.f32.mrf.mxu0
    %v817 = vadd.f32 0.0, %v816
    %v818 = vpop.f32.mrf.mxu0
    %v819 = vadd.f32 0.0, %v818
    %820 = vmatprep.mubr.bf16.mxu0 0
    %821 = vmatmul.mubr.bf16.gmra.mxu0 %v731
    %v822 = vpop.f32.mrf.mxu0
    %v823 = vadd.f32 0.0, %v822
    %v824 = vpop.f32.mrf.mxu0
    %v825 = vadd.f32 0.0, %v824
    %v826 = vpop.f32.mrf.mxu0
    %v827 = vadd.f32 0.0, %v826
    %v828 = vpop.f32.mrf.mxu0
    %v829 = vadd.f32 0.0, %v828
    %830 = vmatprep.mubr.bf16.mxu0 0
    %831 = vmatmul.mubr.bf16.gmra.mxu0 %v734
    %v832 = vpop.f32.mrf.mxu0
    %v833 = vadd.f32 0.0, %v832
    %v834 = vpop.f32.mrf.mxu0
    %v835 = vadd.f32 0.0, %v834
    %v836 = vpop.f32.mrf.mxu0
    %v837 = vpop.f32.mrf.mxu0
    %838 = vdwg.mxu0
    %v846 = vunpack.c.l.b16 %v474
    %v847 = vunpack.c.l.b16 %v475
    %v848 = vunpack.c.l.b16 %v476
    %v849 = vunpack.c.l.b16 %v477
    %v850 = vunpack.c.l.b16 %v478
    %v851 = vunpack.c.l.b16 %v479
    %v852 = vunpack.c.l.b16 %v480
    %v853 = vpack.c.b16 %v847, %v846
    %v854 = vpack.c.b16 %v849, %v848
    %v855 = vpack.c.b16 %v851, %v850
    %v856 = vpack.c.b16 %v852, %v852
    %v858 = vsel %vm590, %v853, 0
    %v861 = vsel %vm590, %v854, 0
    %v864 = vsel %vm590, %v855, 0
    %v867 = vsel %vm590, %v856, 0
    %869 = vmatprep.subr.mxu0 0.0
    %870 = vmatpush1.msra.mxu0 0.0
    %871 = vmatprep.subr.mxu0 0.0
    %872 = vmatpush1.msra.mxu0 0.0
    %873 = vmatprep.subr.mxu0 0.0
    %874 = vmatpush1.msra.mxu0 0.0
    %875 = vmatprep.subr.mxu0 0.0
    %876 = vmatpush1.msra.mxu0 0.0
    %877 = vmatprep.subr.mxu0 0.0
    %878 = vmatpush1.msra.mxu0 0.0
    %879 = vmatprep.subr.mxu0 0.0
    %880 = vmatpush1.msra.mxu0 0.0
    %881 = vmatprep.subr.mxu0 0.0
    %882 = vmatpush1.msra.mxu0 0.0
    %883 = vmatprep.subr.mxu0 0.0
    %884 = vmatpush1.msra.mxu0 0.0
    %885 = vmatprep.subr.mxu0 0.0
    %886 = vmatpush1.msra.mxu0 0.0
    %887 = vmatprep.subr.mxu0 0.0
    %888 = vmatpush1.msra.mxu0 0.0
    %889 = vmatprep.subr.mxu0 0.0
    %890 = vmatpush1.msra.mxu0 0.0
    %891 = vmatprep.subr.mxu0 0.0
    %892 = vmatpush1.msra.mxu0 0.0
    %893 = vmatprep.subr.mxu0 0.0
    %894 = vmatpush1.msra.mxu0 0.0
    %895 = vmatprep.subr.mxu0 0.0
    %896 = vmatpush1.msra.mxu0 0.0
    %897 = vmatprep.subr.mxu0 0.0
    %898 = vmatpush1.msra.mxu0 0.0
    %899 = vmatprep.subr.mxu0 %v372
    %900 = vmatpush1.msra.mxu0 %v370
    %901 = vmatprep.subr.mxu0 0.0
    %902 = vmatpush2.msra.mxu0 0.0
    %903 = vmatprep.subr.mxu0 0.0
    %904 = vmatpush2.msra.mxu0 0.0
    %905 = vmatprep.subr.mxu0 0.0
    %906 = vmatpush2.msra.mxu0 0.0
    %907 = vmatprep.subr.mxu0 0.0
    %908 = vmatpush2.msra.mxu0 0.0
    %909 = vmatprep.subr.mxu0 0.0
    %910 = vmatpush2.msra.mxu0 0.0
    %911 = vmatprep.subr.mxu0 0.0
    %912 = vmatpush2.msra.mxu0 0.0
    %913 = vmatprep.subr.mxu0 0.0
    %914 = vmatpush2.msra.mxu0 0.0
    %915 = vmatprep.subr.mxu0 0.0
    %916 = vmatpush2.msra.mxu0 0.0
    %917 = vmatprep.subr.mxu0 0.0
    %918 = vmatpush2.msra.mxu0 0.0
    %919 = vmatprep.subr.mxu0 0.0
    %920 = vmatpush2.msra.mxu0 0.0
    %921 = vmatprep.subr.mxu0 0.0
    %922 = vmatpush2.msra.mxu0 0.0
    %923 = vmatprep.subr.mxu0 0.0
    %924 = vmatpush2.msra.mxu0 0.0
    %925 = vmatprep.subr.mxu0 0.0
    %926 = vmatpush2.msra.mxu0 0.0
    %927 = vmatprep.subr.mxu0 0.0
    %928 = vmatpush2.msra.mxu0 0.0
    %929 = vmatprep.subr.mxu0 0.0
    %930 = vmatpush2.msra.mxu0 0.0
    %931 = vmatprep.subr.mxu0 0.0
    %932 = vmatpush2.msra.mxu0 0.0
    %933 = vmatprep.mubr.bf16.mxu0 0
    %934 = vmatmul.mubr.bf16.gmra.mxu0 %v858
    %v935 = vpop.f32.mrf.mxu0
    %v936 = vadd.f32 0.0, %v935
    %v937 = vpop.f32.mrf.mxu0
    %v938 = vadd.f32 0.0, %v937
    %v939 = vpop.f32.mrf.mxu0
    %v940 = vadd.f32 0.0, %v939
    %v941 = vpop.f32.mrf.mxu0
    %v942 = vadd.f32 0.0, %v941
    %943 = vmatprep.mubr.bf16.mxu0 0
    %944 = vmatmul.mubr.bf16.gmra.mxu0 %v861
    %v945 = vpop.f32.mrf.mxu0
    %v946 = vadd.f32 0.0, %v945
    %v947 = vpop.f32.mrf.mxu0
    %v948 = vadd.f32 0.0, %v947
    %v949 = vpop.f32.mrf.mxu0
    %v950 = vadd.f32 0.0, %v949
    %v951 = vpop.f32.mrf.mxu0
    %v952 = vadd.f32 0.0, %v951
    %953 = vmatprep.mubr.bf16.mxu0 0
    %954 = vmatmul.mubr.bf16.gmra.mxu0 %v864
    %v955 = vpop.f32.mrf.mxu0
    %v956 = vadd.f32 0.0, %v955
    %v957 = vpop.f32.mrf.mxu0
    %v958 = vadd.f32 0.0, %v957
    %v959 = vpop.f32.mrf.mxu0
    %v960 = vadd.f32 0.0, %v959
    %v961 = vpop.f32.mrf.mxu0
    %v962 = vadd.f32 0.0, %v961
    %963 = vmatprep.mubr.bf16.mxu0 0
    %964 = vmatmul.mubr.bf16.gmra.mxu0 %v867
    %v965 = vpop.f32.mrf.mxu0
    %v966 = vadd.f32 0.0, %v965
    %v967 = vpop.f32.mrf.mxu0
    %v968 = vadd.f32 0.0, %v967
    %v969 = vpop.f32.mrf.mxu0
    %v970 = vpop.f32.mrf.mxu0
    %971 = vdwg.mxu0
    %v979 = vunpack.c.l.b16 %v481
    %v980 = vunpack.c.l.b16 %v482
    %v981 = vunpack.c.l.b16 %v483
    %v982 = vunpack.c.l.b16 %v484
    %v983 = vunpack.c.l.b16 %v485
    %v984 = vunpack.c.l.b16 %v486
    %v985 = vunpack.c.l.b16 %v487
    %v986 = vpack.c.b16 %v980, %v979
    %v987 = vpack.c.b16 %v982, %v981
    %v988 = vpack.c.b16 %v984, %v983
    %v989 = vpack.c.b16 %v985, %v985
    %v991 = vsel %vm590, %v986, 0
    %v994 = vsel %vm590, %v987, 0
    %v997 = vsel %vm590, %v988, 0
    %v1000 = vsel %vm590, %v989, 0
    %1002 = vmatprep.subr.mxu0 0.0
    %1003 = vmatpush1.msra.mxu0 0.0
    %1004 = vmatprep.subr.mxu0 0.0
    %1005 = vmatpush1.msra.mxu0 0.0
    %1006 = vmatprep.subr.mxu0 0.0
    %1007 = vmatpush1.msra.mxu0 0.0
    %1008 = vmatprep.subr.mxu0 0.0
    %1009 = vmatpush1.msra.mxu0 0.0
    %1010 = vmatprep.subr.mxu0 0.0
    %1011 = vmatpush1.msra.mxu0 0.0
    %1012 = vmatprep.subr.mxu0 0.0
    %1013 = vmatpush1.msra.mxu0 0.0
    %1014 = vmatprep.subr.mxu0 0.0
    %1015 = vmatpush1.msra.mxu0 0.0
    %1016 = vmatprep.subr.mxu0 0.0
    %1017 = vmatpush1.msra.mxu0 0.0
    %1018 = vmatprep.subr.mxu0 0.0
    %1019 = vmatpush1.msra.mxu0 0.0
    %1020 = vmatprep.subr.mxu0 0.0
    %1021 = vmatpush1.msra.mxu0 0.0
    %1022 = vmatprep.subr.mxu0 0.0
    %1023 = vmatpush1.msra.mxu0 0.0
    %1024 = vmatprep.subr.mxu0 0.0
    %1025 = vmatpush1.msra.mxu0 0.0
    %1026 = vmatprep.subr.mxu0 0.0
    %1027 = vmatpush1.msra.mxu0 0.0
    %1028 = vmatprep.subr.mxu0 0.0
    %1029 = vmatpush1.msra.mxu0 0.0
    %1030 = vmatprep.subr.mxu0 0.0
    %1031 = vmatpush1.msra.mxu0 0.0
    %1032 = vmatprep.subr.mxu0 %v378
    %1033 = vmatpush1.msra.mxu0 %v376
    %1034 = vmatprep.subr.mxu0 0.0
    %1035 = vmatpush2.msra.mxu0 0.0
    %1036 = vmatprep.subr.mxu0 0.0
    %1037 = vmatpush2.msra.mxu0 0.0
    %1038 = vmatprep.subr.mxu0 0.0
    %1039 = vmatpush2.msra.mxu0 0.0
    %1040 = vmatprep.subr.mxu0 0.0
    %1041 = vmatpush2.msra.mxu0 0.0
    %1042 = vmatprep.subr.mxu0 0.0
    %1043 = vmatpush2.msra.mxu0 0.0
    %1044 = vmatprep.subr.mxu0 0.0
    %1045 = vmatpush2.msra.mxu0 0.0
    %1046 = vmatprep.subr.mxu0 0.0
    %1047 = vmatpush2.msra.mxu0 0.0
    %1048 = vmatprep.subr.mxu0 0.0
    %1049 = vmatpush2.msra.mxu0 0.0
    %1050 = vmatprep.subr.mxu0 0.0
    %1051 = vmatpush2.msra.mxu0 0.0
    %1052 = vmatprep.subr.mxu0 0.0
    %1053 = vmatpush2.msra.mxu0 0.0
    %1054 = vmatprep.subr.mxu0 0.0
    %1055 = vmatpush2.msra.mxu0 0.0
    %1056 = vmatprep.subr.mxu0 0.0
    %1057 = vmatpush2.msra.mxu0 0.0
    %1058 = vmatprep.subr.mxu0 0.0
    %1059 = vmatpush2.msra.mxu0 0.0
    %1060 = vmatprep.subr.mxu0 0.0
    %1061 = vmatpush2.msra.mxu0 0.0
    %1062 = vmatprep.subr.mxu0 0.0
    %1063 = vmatpush2.msra.mxu0 0.0
    %1064 = vmatprep.subr.mxu0 0.0
    %1065 = vmatpush2.msra.mxu0 0.0
    %1066 = vmatprep.mubr.bf16.mxu0 0
    %1067 = vmatmul.mubr.bf16.gmra.mxu0 %v991
    %v1068 = vpop.f32.mrf.mxu0
    %v1069 = vadd.f32 0.0, %v1068
    %v1070 = vpop.f32.mrf.mxu0
    %v1071 = vadd.f32 0.0, %v1070
    %v1072 = vpop.f32.mrf.mxu0
    %v1073 = vadd.f32 0.0, %v1072
    %v1074 = vpop.f32.mrf.mxu0
    %v1075 = vadd.f32 0.0, %v1074
    %1076 = vmatprep.mubr.bf16.mxu0 0
    %1077 = vmatmul.mubr.bf16.gmra.mxu0 %v994
    %v1078 = vpop.f32.mrf.mxu0
    %v1079 = vadd.f32 0.0, %v1078
    %v1080 = vpop.f32.mrf.mxu0
    %v1081 = vadd.f32 0.0, %v1080
    %v1082 = vpop.f32.mrf.mxu0
    %v1083 = vadd.f32 0.0, %v1082
    %v1084 = vpop.f32.mrf.mxu0
    %v1085 = vadd.f32 0.0, %v1084
    %1086 = vmatprep.mubr.bf16.mxu0 0
    %1087 = vmatmul.mubr.bf16.gmra.mxu0 %v997
    %v1088 = vpop.f32.mrf.mxu0
    %v1089 = vadd.f32 0.0, %v1088
    %v1090 = vpop.f32.mrf.mxu0
    %v1091 = vadd.f32 0.0, %v1090
    %v1092 = vpop.f32.mrf.mxu0
    %v1093 = vadd.f32 0.0, %v1092
    %v1094 = vpop.f32.mrf.mxu0
    %v1095 = vadd.f32 0.0, %v1094
    %1096 = vmatprep.mubr.bf16.mxu0 0
    %1097 = vmatmul.mubr.bf16.gmra.mxu0 %v1000
    %v1098 = vpop.f32.mrf.mxu0
    %v1099 = vadd.f32 0.0, %v1098
    %v1100 = vpop.f32.mrf.mxu0
    %v1101 = vadd.f32 0.0, %v1100
    %v1102 = vpop.f32.mrf.mxu0
    %v1103 = vpop.f32.mrf.mxu0
    %1104 = vdwg.mxu0
    %v1112 = vunpack.c.l.b16 %v488
    %v1113 = vunpack.c.l.b16 %v489
    %v1114 = vunpack.c.l.b16 %v490
    %v1115 = vunpack.c.l.b16 %v491
    %v1116 = vunpack.c.l.b16 %v492
    %v1117 = vunpack.c.l.b16 %v493
    %v1118 = vunpack.c.l.b16 %v494
    %v1119 = vpack.c.b16 %v1113, %v1112
    %v1120 = vpack.c.b16 %v1115, %v1114
    %v1121 = vpack.c.b16 %v1117, %v1116
    %v1122 = vpack.c.b16 %v1118, %v1118
    %v1124 = vsel %vm590, %v1119, 0
    %v1127 = vsel %vm590, %v1120, 0
    %v1130 = vsel %vm590, %v1121, 0
    %v1133 = vsel %vm590, %v1122, 0
    %1135 = vmatprep.subr.mxu0 0.0
    %1136 = vmatpush1.msra.mxu0 0.0
    %1137 = vmatprep.subr.mxu0 0.0
    %1138 = vmatpush1.msra.mxu0 0.0
    %1139 = vmatprep.subr.mxu0 0.0
    %1140 = vmatpush1.msra.mxu0 0.0
    %1141 = vmatprep.subr.mxu0 0.0
    %1142 = vmatpush1.msra.mxu0 0.0
    %1143 = vmatprep.subr.mxu0 0.0
    %1144 = vmatpush1.msra.mxu0 0.0
    %1145 = vmatprep.subr.mxu0 0.0
    %1146 = vmatpush1.msra.mxu0 0.0
    %1147 = vmatprep.subr.mxu0 0.0
    %1148 = vmatpush1.msra.mxu0 0.0
    %1149 = vmatprep.subr.mxu0 0.0
    %1150 = vmatpush1.msra.mxu0 0.0
    %1151 = vmatprep.subr.mxu0 0.0
    %1152 = vmatpush1.msra.mxu0 0.0
    %1153 = vmatprep.subr.mxu0 0.0
    %1154 = vmatpush1.msra.mxu0 0.0
    %1155 = vmatprep.subr.mxu0 0.0
    %1156 = vmatpush1.msra.mxu0 0.0
    %1157 = vmatprep.subr.mxu0 0.0
    %1158 = vmatpush1.msra.mxu0 0.0
    %1159 = vmatprep.subr.mxu0 0.0
    %1160 = vmatpush1.msra.mxu0 0.0
    %1161 = vmatprep.subr.mxu0 0.0
    %1162 = vmatpush1.msra.mxu0 0.0
    %1163 = vmatprep.subr.mxu0 0.0
    %1164 = vmatpush1.msra.mxu0 0.0
    %1165 = vmatprep.subr.mxu0 %v384
    %1166 = vmatpush1.msra.mxu0 %v382
    %1167 = vmatprep.subr.mxu0 0.0
    %1168 = vmatpush2.msra.mxu0 0.0
    %1169 = vmatprep.subr.mxu0 0.0
    %1170 = vmatpush2.msra.mxu0 0.0
    %1171 = vmatprep.subr.mxu0 0.0
    %1172 = vmatpush2.msra.mxu0 0.0
    %1173 = vmatprep.subr.mxu0 0.0
    %1174 = vmatpush2.msra.mxu0 0.0
    %1175 = vmatprep.subr.mxu0 0.0
    %1176 = vmatpush2.msra.mxu0 0.0
    %1177 = vmatprep.subr.mxu0 0.0
    %1178 = vmatpush2.msra.mxu0 0.0
    %1179 = vmatprep.subr.mxu0 0.0
    %1180 = vmatpush2.msra.mxu0 0.0
    %1181 = vmatprep.subr.mxu0 0.0
    %1182 = vmatpush2.msra.mxu0 0.0
    %1183 = vmatprep.subr.mxu0 0.0
    %1184 = vmatpush2.msra.mxu0 0.0
    %1185 = vmatprep.subr.mxu0 0.0
    %1186 = vmatpush2.msra.mxu0 0.0
    %1187 = vmatprep.subr.mxu0 0.0
    %1188 = vmatpush2.msra.mxu0 0.0
    %1189 = vmatprep.subr.mxu0 0.0
    %1190 = vmatpush2.msra.mxu0 0.0
    %1191 = vmatprep.subr.mxu0 0.0
    %1192 = vmatpush2.msra.mxu0 0.0
    %1193 = vmatprep.subr.mxu0 0.0
    %1194 = vmatpush2.msra.mxu0 0.0
    %1195 = vmatprep.subr.mxu0 0.0
    %1196 = vmatpush2.msra.mxu0 0.0
    %1197 = vmatprep.subr.mxu0 0.0
    %1198 = vmatpush2.msra.mxu0 0.0
    %1199 = vmatprep.mubr.bf16.mxu0 0
    %1200 = vmatmul.mubr.bf16.gmra.mxu0 %v1124
    %v1201 = vpop.f32.mrf.mxu0
    %v1202 = vadd.f32 0.0, %v1201
    %v1203 = vpop.f32.mrf.mxu0
    %v1204 = vadd.f32 0.0, %v1203
    %v1205 = vpop.f32.mrf.mxu0
    %v1206 = vadd.f32 0.0, %v1205
    %v1207 = vpop.f32.mrf.mxu0
    %v1208 = vadd.f32 0.0, %v1207
    %1209 = vmatprep.mubr.bf16.mxu0 0
    %1210 = vmatmul.mubr.bf16.gmra.mxu0 %v1127
    %v1211 = vpop.f32.mrf.mxu0
    %v1212 = vadd.f32 0.0, %v1211
    %v1213 = vpop.f32.mrf.mxu0
    %v1214 = vadd.f32 0.0, %v1213
    %v1215 = vpop.f32.mrf.mxu0
    %v1216 = vadd.f32 0.0, %v1215
    %v1217 = vpop.f32.mrf.mxu0
    %v1218 = vadd.f32 0.0, %v1217
    %1219 = vmatprep.mubr.bf16.mxu0 0
    %1220 = vmatmul.mubr.bf16.gmra.mxu0 %v1130
    %v1221 = vpop.f32.mrf.mxu0
    %v1222 = vadd.f32 0.0, %v1221
    %v1223 = vpop.f32.mrf.mxu0
    %v1224 = vadd.f32 0.0, %v1223
    %v1225 = vpop.f32.mrf.mxu0
    %v1226 = vadd.f32 0.0, %v1225
    %v1227 = vpop.f32.mrf.mxu0
    %v1228 = vadd.f32 0.0, %v1227
    %1229 = vmatprep.mubr.bf16.mxu0 0
    %1230 = vmatmul.mubr.bf16.gmra.mxu0 %v1133
    %v1231 = vpop.f32.mrf.mxu0
    %v1232 = vadd.f32 0.0, %v1231
    %v1233 = vpop.f32.mrf.mxu0
    %v1234 = vadd.f32 0.0, %v1233
    %v1235 = vpop.f32.mrf.mxu0
    %v1236 = vpop.f32.mrf.mxu0
    %1237 = vdwg.mxu0
    %v1245 = vunpack.c.l.b16 %v495
    %v1246 = vunpack.c.l.b16 %v496
    %v1247 = vunpack.c.l.b16 %v497
    %v1248 = vunpack.c.l.b16 %v498
    %v1249 = vunpack.c.l.b16 %v499
    %v1250 = vunpack.c.l.b16 %v500
    %v1251 = vunpack.c.l.b16 %v501
    %v1252 = vpack.c.b16 %v1246, %v1245
    %v1253 = vpack.c.b16 %v1248, %v1247
    %v1254 = vpack.c.b16 %v1250, %v1249
    %v1255 = vpack.c.b16 %v1251, %v1251
    %v1257 = vsel %vm590, %v1252, 0
    %v1260 = vsel %vm590, %v1253, 0
    %v1263 = vsel %vm590, %v1254, 0
    %v1266 = vsel %vm590, %v1255, 0
    %1268 = vmatprep.subr.mxu0 0.0
    %1269 = vmatpush1.msra.mxu0 0.0
    %1270 = vmatprep.subr.mxu0 0.0
    %1271 = vmatpush1.msra.mxu0 0.0
    %1272 = vmatprep.subr.mxu0 0.0
    %1273 = vmatpush1.msra.mxu0 0.0
    %1274 = vmatprep.subr.mxu0 0.0
    %1275 = vmatpush1.msra.mxu0 0.0
    %1276 = vmatprep.subr.mxu0 0.0
    %1277 = vmatpush1.msra.mxu0 0.0
    %1278 = vmatprep.subr.mxu0 0.0
    %1279 = vmatpush1.msra.mxu0 0.0
    %1280 = vmatprep.subr.mxu0 0.0
    %1281 = vmatpush1.msra.mxu0 0.0
    %1282 = vmatprep.subr.mxu0 0.0
    %1283 = vmatpush1.msra.mxu0 0.0
    %1284 = vmatprep.subr.mxu0 0.0
    %1285 = vmatpush1.msra.mxu0 0.0
    %1286 = vmatprep.subr.mxu0 0.0
    %1287 = vmatpush1.msra.mxu0 0.0
    %1288 = vmatprep.subr.mxu0 0.0
    %1289 = vmatpush1.msra.mxu0 0.0
    %1290 = vmatprep.subr.mxu0 0.0
    %1291 = vmatpush1.msra.mxu0 0.0
    %1292 = vmatprep.subr.mxu0 0.0
    %1293 = vmatpush1.msra.mxu0 0.0
    %1294 = vmatprep.subr.mxu0 0.0
    %1295 = vmatpush1.msra.mxu0 0.0
    %1296 = vmatprep.subr.mxu0 0.0
    %1297 = vmatpush1.msra.mxu0 0.0
    %1298 = vmatprep.subr.mxu0 %v390
    %1299 = vmatpush1.msra.mxu0 %v388
    %1300 = vmatprep.subr.mxu0 0.0
    %1301 = vmatpush2.msra.mxu0 0.0
    %1302 = vmatprep.subr.mxu0 0.0
    %1303 = vmatpush2.msra.mxu0 0.0
    %1304 = vmatprep.subr.mxu0 0.0
    %1305 = vmatpush2.msra.mxu0 0.0
    %1306 = vmatprep.subr.mxu0 0.0
    %1307 = vmatpush2.msra.mxu0 0.0
    %1308 = vmatprep.subr.mxu0 0.0
    %1309 = vmatpush2.msra.mxu0 0.0
    %1310 = vmatprep.subr.mxu0 0.0
    %1311 = vmatpush2.msra.mxu0 0.0
    %1312 = vmatprep.subr.mxu0 0.0
    %1313 = vmatpush2.msra.mxu0 0.0
    %1314 = vmatprep.subr.mxu0 0.0
    %1315 = vmatpush2.msra.mxu0 0.0
    %1316 = vmatprep.subr.mxu0 0.0
    %1317 = vmatpush2.msra.mxu0 0.0
    %1318 = vmatprep.subr.mxu0 0.0
    %1319 = vmatpush2.msra.mxu0 0.0
    %1320 = vmatprep.subr.mxu0 0.0
    %1321 = vmatpush2.msra.mxu0 0.0
    %1322 = vmatprep.subr.mxu0 0.0
    %1323 = vmatpush2.msra.mxu0 0.0
    %1324 = vmatprep.subr.mxu0 0.0
    %1325 = vmatpush2.msra.mxu0 0.0
    %1326 = vmatprep.subr.mxu0 0.0
    %1327 = vmatpush2.msra.mxu0 0.0
    %1328 = vmatprep.subr.mxu0 0.0
    %1329 = vmatpush2.msra.mxu0 0.0
    %1330 = vmatprep.subr.mxu0 0.0
    %1331 = vmatpush2.msra.mxu0 0.0
    %1332 = vmatprep.mubr.bf16.mxu0 0
    %1333 = vmatmul.mubr.bf16.gmra.mxu0 %v1257
    %v1334 = vpop.f32.mrf.mxu0
    %v1335 = vadd.f32 0.0, %v1334
    %v1336 = vpop.f32.mrf.mxu0
    %v1337 = vadd.f32 0.0, %v1336
    %v1338 = vpop.f32.mrf.mxu0
    %v1339 = vadd.f32 0.0, %v1338
    %v1340 = vpop.f32.mrf.mxu0
    %v1341 = vadd.f32 0.0, %v1340
    %1342 = vmatprep.mubr.bf16.mxu0 0
    %1343 = vmatmul.mubr.bf16.gmra.mxu0 %v1260
    %v1344 = vpop.f32.mrf.mxu0
    %v1345 = vadd.f32 0.0, %v1344
    %v1346 = vpop.f32.mrf.mxu0
    %v1347 = vadd.f32 0.0, %v1346
    %v1348 = vpop.f32.mrf.mxu0
    %v1349 = vadd.f32 0.0, %v1348
    %v1350 = vpop.f32.mrf.mxu0
    %v1351 = vadd.f32 0.0, %v1350
    %1352 = vmatprep.mubr.bf16.mxu0 0
    %1353 = vmatmul.mubr.bf16.gmra.mxu0 %v1263
    %v1354 = vpop.f32.mrf.mxu0
    %v1355 = vadd.f32 0.0, %v1354
    %v1356 = vpop.f32.mrf.mxu0
    %v1357 = vadd.f32 0.0, %v1356
    %v1358 = vpop.f32.mrf.mxu0
    %v1359 = vadd.f32 0.0, %v1358
    %v1360 = vpop.f32.mrf.mxu0
    %v1361 = vadd.f32 0.0, %v1360
    %1362 = vmatprep.mubr.bf16.mxu0 0
    %1363 = vmatmul.mubr.bf16.gmra.mxu0 %v1266
    %v1364 = vpop.f32.mrf.mxu0
    %v1365 = vadd.f32 0.0, %v1364
    %v1366 = vpop.f32.mrf.mxu0
    %v1367 = vadd.f32 0.0, %v1366
    %v1368 = vpop.f32.mrf.mxu0
    %v1369 = vpop.f32.mrf.mxu0
    %1370 = vdwg.mxu0
    %v1378 = vunpack.c.l.b16 %v502
    %v1379 = vunpack.c.l.b16 %v503
    %v1380 = vunpack.c.l.b16 %v504
    %v1381 = vunpack.c.l.b16 %v505
    %v1382 = vunpack.c.l.b16 %v506
    %v1383 = vunpack.c.l.b16 %v507
    %v1384 = vunpack.c.l.b16 %v508
    %v1385 = vpack.c.b16 %v1379, %v1378
    %v1386 = vpack.c.b16 %v1381, %v1380
    %v1387 = vpack.c.b16 %v1383, %v1382
    %v1388 = vpack.c.b16 %v1384, %v1384
    %v1390 = vsel %vm590, %v1385, 0
    %v1393 = vsel %vm590, %v1386, 0
    %v1396 = vsel %vm590, %v1387, 0
    %v1399 = vsel %vm590, %v1388, 0
    %1401 = vmatprep.subr.mxu0 0.0
    %1402 = vmatpush1.msra.mxu0 0.0
    %1403 = vmatprep.subr.mxu0 0.0
    %1404 = vmatpush1.msra.mxu0 0.0
    %1405 = vmatprep.subr.mxu0 0.0
    %1406 = vmatpush1.msra.mxu0 0.0
    %1407 = vmatprep.subr.mxu0 0.0
    %1408 = vmatpush1.msra.mxu0 0.0
    %1409 = vmatprep.subr.mxu0 0.0
    %1410 = vmatpush1.msra.mxu0 0.0
    %1411 = vmatprep.subr.mxu0 0.0
    %1412 = vmatpush1.msra.mxu0 0.0
    %1413 = vmatprep.subr.mxu0 0.0
    %1414 = vmatpush1.msra.mxu0 0.0
    %1415 = vmatprep.subr.mxu0 0.0
    %1416 = vmatpush1.msra.mxu0 0.0
    %1417 = vmatprep.subr.mxu0 0.0
    %1418 = vmatpush1.msra.mxu0 0.0
    %1419 = vmatprep.subr.mxu0 0.0
    %1420 = vmatpush1.msra.mxu0 0.0
    %1421 = vmatprep.subr.mxu0 0.0
    %1422 = vmatpush1.msra.mxu0 0.0
    %1423 = vmatprep.subr.mxu0 0.0
    %1424 = vmatpush1.msra.mxu0 0.0
    %1425 = vmatprep.subr.mxu0 0.0
    %1426 = vmatpush1.msra.mxu0 0.0
    %1427 = vmatprep.subr.mxu0 0.0
    %1428 = vmatpush1.msra.mxu0 0.0
    %1429 = vmatprep.subr.mxu0 0.0
    %1430 = vmatpush1.msra.mxu0 0.0
    %1431 = vmatprep.subr.mxu0 %v396
    %1432 = vmatpush1.msra.mxu0 %v394
    %1433 = vmatprep.subr.mxu0 0.0
    %1434 = vmatpush2.msra.mxu0 0.0
    %1435 = vmatprep.subr.mxu0 0.0
    %1436 = vmatpush2.msra.mxu0 0.0
    %1437 = vmatprep.subr.mxu0 0.0
    %1438 = vmatpush2.msra.mxu0 0.0
    %1439 = vmatprep.subr.mxu0 0.0
    %1440 = vmatpush2.msra.mxu0 0.0
    %1441 = vmatprep.subr.mxu0 0.0
    %1442 = vmatpush2.msra.mxu0 0.0
    %1443 = vmatprep.subr.mxu0 0.0
    %1444 = vmatpush2.msra.mxu0 0.0
    %1445 = vmatprep.subr.mxu0 0.0
    %1446 = vmatpush2.msra.mxu0 0.0
    %1447 = vmatprep.subr.mxu0 0.0
    %1448 = vmatpush2.msra.mxu0 0.0
    %1449 = vmatprep.subr.mxu0 0.0
    %1450 = vmatpush2.msra.mxu0 0.0
    %1451 = vmatprep.subr.mxu0 0.0
    %1452 = vmatpush2.msra.mxu0 0.0
    %1453 = vmatprep.subr.mxu0 0.0
    %1454 = vmatpush2.msra.mxu0 0.0
    %1455 = vmatprep.subr.mxu0 0.0
    %1456 = vmatpush2.msra.mxu0 0.0
    %1457 = vmatprep.subr.mxu0 0.0
    %1458 = vmatpush2.msra.mxu0 0.0
    %1459 = vmatprep.subr.mxu0 0.0
    %1460 = vmatpush2.msra.mxu0 0.0
    %1461 = vmatprep.subr.mxu0 0.0
    %1462 = vmatpush2.msra.mxu0 0.0
    %1463 = vmatprep.subr.mxu0 0.0
    %1464 = vmatpush2.msra.mxu0 0.0
    %1465 = vmatprep.mubr.bf16.mxu0 0
    %1466 = vmatmul.mubr.bf16.gmra.mxu0 %v1390
    %v1467 = vpop.f32.mrf.mxu0
    %v1468 = vadd.f32 0.0, %v1467
    %v1469 = vpop.f32.mrf.mxu0
    %v1470 = vadd.f32 0.0, %v1469
    %v1471 = vpop.f32.mrf.mxu0
    %v1472 = vadd.f32 0.0, %v1471
    %v1473 = vpop.f32.mrf.mxu0
    %v1474 = vadd.f32 0.0, %v1473
    %1475 = vmatprep.mubr.bf16.mxu0 0
    %1476 = vmatmul.mubr.bf16.gmra.mxu0 %v1393
    %v1477 = vpop.f32.mrf.mxu0
    %v1478 = vadd.f32 0.0, %v1477
    %v1479 = vpop.f32.mrf.mxu0
    %v1480 = vadd.f32 0.0, %v1479
    %v1481 = vpop.f32.mrf.mxu0
    %v1482 = vadd.f32 0.0, %v1481
    %v1483 = vpop.f32.mrf.mxu0
    %v1484 = vadd.f32 0.0, %v1483
    %1485 = vmatprep.mubr.bf16.mxu0 0
    %1486 = vmatmul.mubr.bf16.gmra.mxu0 %v1396
    %v1487 = vpop.f32.mrf.mxu0
    %v1488 = vadd.f32 0.0, %v1487
    %v1489 = vpop.f32.mrf.mxu0
    %v1490 = vadd.f32 0.0, %v1489
    %v1491 = vpop.f32.mrf.mxu0
    %v1492 = vadd.f32 0.0, %v1491
    %v1493 = vpop.f32.mrf.mxu0
    %v1494 = vadd.f32 0.0, %v1493
    %1495 = vmatprep.mubr.bf16.mxu0 0
    %1496 = vmatmul.mubr.bf16.gmra.mxu0 %v1399
    %v1497 = vpop.f32.mrf.mxu0
    %v1498 = vadd.f32 0.0, %v1497
    %v1499 = vpop.f32.mrf.mxu0
    %v1500 = vadd.f32 0.0, %v1499
    %v1501 = vpop.f32.mrf.mxu0
    %v1502 = vpop.f32.mrf.mxu0
    %1503 = vdwg.mxu0
    %v1511 = vunpack.c.l.b16 %v509
    %v1512 = vunpack.c.l.b16 %v510
    %v1513 = vunpack.c.l.b16 %v511
    %v1514 = vunpack.c.l.b16 %v512
    %v1515 = vunpack.c.l.b16 %v513
    %v1516 = vunpack.c.l.b16 %v514
    %v1517 = vunpack.c.l.b16 %v515
    %v1518 = vpack.c.b16 %v1512, %v1511
    %v1519 = vpack.c.b16 %v1514, %v1513
    %v1520 = vpack.c.b16 %v1516, %v1515
    %v1521 = vpack.c.b16 %v1517, %v1517
    %v1523 = vsel %vm590, %v1518, 0
    %v1526 = vsel %vm590, %v1519, 0
    %v1529 = vsel %vm590, %v1520, 0
    %v1532 = vsel %vm590, %v1521, 0
    %1534 = vmatprep.subr.mxu0 0.0
    %1535 = vmatpush1.msra.mxu0 0.0
    %1536 = vmatprep.subr.mxu0 0.0
    %1537 = vmatpush1.msra.mxu0 0.0
    %1538 = vmatprep.subr.mxu0 0.0
    %1539 = vmatpush1.msra.mxu0 0.0
    %1540 = vmatprep.subr.mxu0 0.0
    %1541 = vmatpush1.msra.mxu0 0.0
    %1542 = vmatprep.subr.mxu0 0.0
    %1543 = vmatpush1.msra.mxu0 0.0
    %1544 = vmatprep.subr.mxu0 0.0
    %1545 = vmatpush1.msra.mxu0 0.0
    %1546 = vmatprep.subr.mxu0 0.0
    %1547 = vmatpush1.msra.mxu0 0.0
    %1548 = vmatprep.subr.mxu0 0.0
    %1549 = vmatpush1.msra.mxu0 0.0
    %1550 = vmatprep.subr.mxu0 0.0
    %1551 = vmatpush1.msra.mxu0 0.0
    %1552 = vmatprep.subr.mxu0 0.0
    %1553 = vmatpush1.msra.mxu0 0.0
    %1554 = vmatprep.subr.mxu0 0.0
    %1555 = vmatpush1.msra.mxu0 0.0
    %1556 = vmatprep.subr.mxu0 0.0
    %1557 = vmatpush1.msra.mxu0 0.0
    %1558 = vmatprep.subr.mxu0 0.0
    %1559 = vmatpush1.msra.mxu0 0.0
    %1560 = vmatprep.subr.mxu0 0.0
    %1561 = vmatpush1.msra.mxu0 0.0
    %1562 = vmatprep.subr.mxu0 0.0
    %1563 = vmatpush1.msra.mxu0 0.0
    %1564 = vmatprep.subr.mxu0 %v402
    %1565 = vmatpush1.msra.mxu0 %v400
    %1566 = vmatprep.subr.mxu0 0.0
    %1567 = vmatpush2.msra.mxu0 0.0
    %1568 = vmatprep.subr.mxu0 0.0
    %1569 = vmatpush2.msra.mxu0 0.0
    %1570 = vmatprep.subr.mxu0 0.0
    %1571 = vmatpush2.msra.mxu0 0.0
    %1572 = vmatprep.subr.mxu0 0.0
    %1573 = vmatpush2.msra.mxu0 0.0
    %1574 = vmatprep.subr.mxu0 0.0
    %1575 = vmatpush2.msra.mxu0 0.0
    %1576 = vmatprep.subr.mxu0 0.0
    %1577 = vmatpush2.msra.mxu0 0.0
    %1578 = vmatprep.subr.mxu0 0.0
    %1579 = vmatpush2.msra.mxu0 0.0
    %1580 = vmatprep.subr.mxu0 0.0
    %1581 = vmatpush2.msra.mxu0 0.0
    %1582 = vmatprep.subr.mxu0 0.0
    %1583 = vmatpush2.msra.mxu0 0.0
    %1584 = vmatprep.subr.mxu0 0.0
    %1585 = vmatpush2.msra.mxu0 0.0
    %1586 = vmatprep.subr.mxu0 0.0
    %1587 = vmatpush2.msra.mxu0 0.0
    %1588 = vmatprep.subr.mxu0 0.0
    %1589 = vmatpush2.msra.mxu0 0.0
    %1590 = vmatprep.subr.mxu0 0.0
    %1591 = vmatpush2.msra.mxu0 0.0
    %1592 = vmatprep.subr.mxu0 0.0
    %1593 = vmatpush2.msra.mxu0 0.0
    %1594 = vmatprep.subr.mxu0 0.0
    %1595 = vmatpush2.msra.mxu0 0.0
    %1596 = vmatprep.subr.mxu0 0.0
    %1597 = vmatpush2.msra.mxu0 0.0
    %1598 = vmatprep.mubr.bf16.mxu0 0
    %1599 = vmatmul.mubr.bf16.gmra.mxu0 %v1523
    %v1600 = vpop.f32.mrf.mxu0
    %v1601 = vadd.f32 0.0, %v1600
    %v1602 = vpop.f32.mrf.mxu0
    %v1603 = vadd.f32 0.0, %v1602
    %v1604 = vpop.f32.mrf.mxu0
    %v1605 = vadd.f32 0.0, %v1604
    %v1606 = vpop.f32.mrf.mxu0
    %v1607 = vadd.f32 0.0, %v1606
    %1608 = vmatprep.mubr.bf16.mxu0 0
    %1609 = vmatmul.mubr.bf16.gmra.mxu0 %v1526
    %v1610 = vpop.f32.mrf.mxu0
    %v1611 = vadd.f32 0.0, %v1610
    %v1612 = vpop.f32.mrf.mxu0
    %v1613 = vadd.f32 0.0, %v1612
    %v1614 = vpop.f32.mrf.mxu0
    %v1615 = vadd.f32 0.0, %v1614
    %v1616 = vpop.f32.mrf.mxu0
    %v1617 = vadd.f32 0.0, %v1616
    %1618 = vmatprep.mubr.bf16.mxu0 0
    %1619 = vmatmul.mubr.bf16.gmra.mxu0 %v1529
    %v1620 = vpop.f32.mrf.mxu0
    %v1621 = vadd.f32 0.0, %v1620
    %v1622 = vpop.f32.mrf.mxu0
    %v1623 = vadd.f32 0.0, %v1622
    %v1624 = vpop.f32.mrf.mxu0
    %v1625 = vadd.f32 0.0, %v1624
    %v1626 = vpop.f32.mrf.mxu0
    %v1627 = vadd.f32 0.0, %v1626
    %1628 = vmatprep.mubr.bf16.mxu0 0
    %1629 = vmatmul.mubr.bf16.gmra.mxu0 %v1532
    %v1630 = vpop.f32.mrf.mxu0
    %v1631 = vadd.f32 0.0, %v1630
    %v1632 = vpop.f32.mrf.mxu0
    %v1633 = vadd.f32 0.0, %v1632
    %v1634 = vpop.f32.mrf.mxu0
    %v1635 = vpop.f32.mrf.mxu0
    %1636 = vdwg.mxu0
    %v1644 = vunpack.c.l.b16 %v404
    %v1645 = vunpack.c.l.b16 %v405
    %v1646 = vunpack.c.l.b16 %v406
    %v1647 = vunpack.c.l.b16 %v407
    %v1648 = vunpack.c.l.b16 %v408
    %v1649 = vunpack.c.l.b16 %v409
    %v1650 = vunpack.c.l.b16 %v410
    %v1651 = vpack.c.b16 %v1645, %v1644
    %v1652 = vpack.c.b16 %v1647, %v1646
    %v1653 = vpack.c.b16 %v1649, %v1648
    %v1654 = vpack.c.b16 %v1650, %v1650
    %v1656 = vsel %vm590, %v1651, 0
    %v1659 = vsel %vm590, %v1652, 0
    %v1662 = vsel %vm590, %v1653, 0
    %v1665 = vsel %vm590, %v1654, 0
    %1667 = vmatprep.subr.mxu0 0.0
    %1668 = vmatpush1.msra.mxu0 0.0
    %1669 = vmatprep.subr.mxu0 0.0
    %1670 = vmatpush1.msra.mxu0 0.0
    %1671 = vmatprep.subr.mxu0 0.0
    %1672 = vmatpush1.msra.mxu0 0.0
    %1673 = vmatprep.subr.mxu0 0.0
    %1674 = vmatpush1.msra.mxu0 0.0
    %1675 = vmatprep.subr.mxu0 0.0
    %1676 = vmatpush1.msra.mxu0 0.0
    %1677 = vmatprep.subr.mxu0 0.0
    %1678 = vmatpush1.msra.mxu0 0.0
    %1679 = vmatprep.subr.mxu0 0.0
    %1680 = vmatpush1.msra.mxu0 0.0
    %1681 = vmatprep.subr.mxu0 0.0
    %1682 = vmatpush1.msra.mxu0 0.0
    %1683 = vmatprep.subr.mxu0 0.0
    %1684 = vmatpush1.msra.mxu0 0.0
    %1685 = vmatprep.subr.mxu0 0.0
    %1686 = vmatpush1.msra.mxu0 0.0
    %1687 = vmatprep.subr.mxu0 0.0
    %1688 = vmatpush1.msra.mxu0 0.0
    %1689 = vmatprep.subr.mxu0 0.0
    %1690 = vmatpush1.msra.mxu0 0.0
    %1691 = vmatprep.subr.mxu0 0.0
    %1692 = vmatpush1.msra.mxu0 0.0
    %1693 = vmatprep.subr.mxu0 0.0
    %1694 = vmatpush1.msra.mxu0 0.0
    %1695 = vmatprep.subr.mxu0 0.0
    %1696 = vmatpush1.msra.mxu0 0.0
    %1697 = vmatprep.subr.mxu0 %v235
    %1698 = vmatpush1.msra.mxu0 %v233
    %1699 = vmatprep.subr.mxu0 0.0
    %1700 = vmatpush2.msra.mxu0 0.0
    %1701 = vmatprep.subr.mxu0 0.0
    %1702 = vmatpush2.msra.mxu0 0.0
    %1703 = vmatprep.subr.mxu0 0.0
    %1704 = vmatpush2.msra.mxu0 0.0
    %1705 = vmatprep.subr.mxu0 0.0
    %1706 = vmatpush2.msra.mxu0 0.0
    %1707 = vmatprep.subr.mxu0 0.0
    %1708 = vmatpush2.msra.mxu0 0.0
    %1709 = vmatprep.subr.mxu0 0.0
    %1710 = vmatpush2.msra.mxu0 0.0
    %1711 = vmatprep.subr.mxu0 0.0
    %1712 = vmatpush2.msra.mxu0 0.0
    %1713 = vmatprep.subr.mxu0 0.0
    %1714 = vmatpush2.msra.mxu0 0.0
    %1715 = vmatprep.subr.mxu0 0.0
    %1716 = vmatpush2.msra.mxu0 0.0
    %1717 = vmatprep.subr.mxu0 0.0
    %1718 = vmatpush2.msra.mxu0 0.0
    %1719 = vmatprep.subr.mxu0 0.0
    %1720 = vmatpush2.msra.mxu0 0.0
    %1721 = vmatprep.subr.mxu0 0.0
    %1722 = vmatpush2.msra.mxu0 0.0
    %1723 = vmatprep.subr.mxu0 0.0
    %1724 = vmatpush2.msra.mxu0 0.0
    %1725 = vmatprep.subr.mxu0 0.0
    %1726 = vmatpush2.msra.mxu0 0.0
    %1727 = vmatprep.subr.mxu0 0.0
    %1728 = vmatpush2.msra.mxu0 0.0
    %1729 = vmatprep.subr.mxu0 0.0
    %1730 = vmatpush2.msra.mxu0 0.0
    %1731 = vmatprep.mubr.bf16.mxu0 0
    %1732 = vmatmul.mubr.bf16.gmra.mxu0 %v1656
    %v1733 = vpop.f32.mrf.mxu0
    %v1734 = vadd.f32 %v670, %v1733
    %v1735 = vpop.f32.mrf.mxu0
    %v1736 = vadd.f32 %v672, %v1735
    %v1737 = vpop.f32.mrf.mxu0
    %v1738 = vadd.f32 %v674, %v1737
    %v1739 = vpop.f32.mrf.mxu0
    %v1740 = vadd.f32 %v676, %v1739
    %1741 = vmatprep.mubr.bf16.mxu0 0
    %1742 = vmatmul.mubr.bf16.gmra.mxu0 %v1659
    %v1743 = vpop.f32.mrf.mxu0
    %v1744 = vadd.f32 %v680, %v1743
    %v1745 = vpop.f32.mrf.mxu0
    %v1746 = vadd.f32 %v682, %v1745
    %v1747 = vpop.f32.mrf.mxu0
    %v1748 = vadd.f32 %v684, %v1747
    %v1749 = vpop.f32.mrf.mxu0
    %v1750 = vadd.f32 %v686, %v1749
    %1751 = vmatprep.mubr.bf16.mxu0 0
    %1752 = vmatmul.mubr.bf16.gmra.mxu0 %v1662
    %v1753 = vpop.f32.mrf.mxu0
    %v1754 = vadd.f32 %v690, %v1753
    %v1755 = vpop.f32.mrf.mxu0
    %v1756 = vadd.f32 %v692, %v1755
    %v1757 = vpop.f32.mrf.mxu0
    %v1758 = vadd.f32 %v694, %v1757
    %v1759 = vpop.f32.mrf.mxu0
    %v1760 = vadd.f32 %v696, %v1759
    %1761 = vmatprep.mubr.bf16.mxu0 0
    %1762 = vmatmul.mubr.bf16.gmra.mxu0 %v1665
    %v1763 = vpop.f32.mrf.mxu0
    %v1764 = vadd.f32 %v700, %v1763
    %v1765 = vpop.f32.mrf.mxu0
    %v1766 = vadd.f32 %v702, %v1765
    %v1767 = vpop.f32.mrf.mxu0
    %v1768 = vpop.f32.mrf.mxu0
    %1769 = vdwg.mxu0
    %v1777 = vunpack.c.l.b16 %v411
    %v1778 = vunpack.c.l.b16 %v412
    %v1779 = vunpack.c.l.b16 %v413
    %v1780 = vunpack.c.l.b16 %v414
    %v1781 = vunpack.c.l.b16 %v415
    %v1782 = vunpack.c.l.b16 %v416
    %v1783 = vunpack.c.l.b16 %v417
    %v1784 = vpack.c.b16 %v1778, %v1777
    %v1785 = vpack.c.b16 %v1780, %v1779
    %v1786 = vpack.c.b16 %v1782, %v1781
    %v1787 = vpack.c.b16 %v1783, %v1783
    %v1789 = vsel %vm590, %v1784, 0
    %v1792 = vsel %vm590, %v1785, 0
    %v1795 = vsel %vm590, %v1786, 0
    %v1798 = vsel %vm590, %v1787, 0
    %1800 = vmatprep.subr.mxu0 0.0
    %1801 = vmatpush1.msra.mxu0 0.0
    %1802 = vmatprep.subr.mxu0 0.0
    %1803 = vmatpush1.msra.mxu0 0.0
    %1804 = vmatprep.subr.mxu0 0.0
    %1805 = vmatpush1.msra.mxu0 0.0
    %1806 = vmatprep.subr.mxu0 0.0
    %1807 = vmatpush1.msra.mxu0 0.0
    %1808 = vmatprep.subr.mxu0 0.0
    %1809 = vmatpush1.msra.mxu0 0.0
    %1810 = vmatprep.subr.mxu0 0.0
    %1811 = vmatpush1.msra.mxu0 0.0
    %1812 = vmatprep.subr.mxu0 0.0
    %1813 = vmatpush1.msra.mxu0 0.0
    %1814 = vmatprep.subr.mxu0 0.0
    %1815 = vmatpush1.msra.mxu0 0.0
    %1816 = vmatprep.subr.mxu0 0.0
    %1817 = vmatpush1.msra.mxu0 0.0
    %1818 = vmatprep.subr.mxu0 0.0
    %1819 = vmatpush1.msra.mxu0 0.0
    %1820 = vmatprep.subr.mxu0 0.0
    %1821 = vmatpush1.msra.mxu0 0.0
    %1822 = vmatprep.subr.mxu0 0.0
    %1823 = vmatpush1.msra.mxu0 0.0
    %1824 = vmatprep.subr.mxu0 0.0
    %1825 = vmatpush1.msra.mxu0 0.0
    %1826 = vmatprep.subr.mxu0 0.0
    %1827 = vmatpush1.msra.mxu0 0.0
    %1828 = vmatprep.subr.mxu0 0.0
    %1829 = vmatpush1.msra.mxu0 0.0
    %1830 = vmatprep.subr.mxu0 %v241
    %1831 = vmatpush1.msra.mxu0 %v239
    %1832 = vmatprep.subr.mxu0 0.0
    %1833 = vmatpush2.msra.mxu0 0.0
    %1834 = vmatprep.subr.mxu0 0.0
    %1835 = vmatpush2.msra.mxu0 0.0
    %1836 = vmatprep.subr.mxu0 0.0
    %1837 = vmatpush2.msra.mxu0 0.0
    %1838 = vmatprep.subr.mxu0 0.0
    %1839 = vmatpush2.msra.mxu0 0.0
    %1840 = vmatprep.subr.mxu0 0.0
    %1841 = vmatpush2.msra.mxu0 0.0
    %1842 = vmatprep.subr.mxu0 0.0
    %1843 = vmatpush2.msra.mxu0 0.0
    %1844 = vmatprep.subr.mxu0 0.0
    %1845 = vmatpush2.msra.mxu0 0.0
    %1846 = vmatprep.subr.mxu0 0.0
    %1847 = vmatpush2.msra.mxu0 0.0
    %1848 = vmatprep.subr.mxu0 0.0
    %1849 = vmatpush2.msra.mxu0 0.0
    %1850 = vmatprep.subr.mxu0 0.0
    %1851 = vmatpush2.msra.mxu0 0.0
    %1852 = vmatprep.subr.mxu0 0.0
    %1853 = vmatpush2.msra.mxu0 0.0
    %1854 = vmatprep.subr.mxu0 0.0
    %1855 = vmatpush2.msra.mxu0 0.0
    %1856 = vmatprep.subr.mxu0 0.0
    %1857 = vmatpush2.msra.mxu0 0.0
    %1858 = vmatprep.subr.mxu0 0.0
    %1859 = vmatpush2.msra.mxu0 0.0
    %1860 = vmatprep.subr.mxu0 0.0
    %1861 = vmatpush2.msra.mxu0 0.0
    %1862 = vmatprep.subr.mxu0 0.0
    %1863 = vmatpush2.msra.mxu0 0.0
    %1864 = vmatprep.mubr.bf16.mxu0 0
    %1865 = vmatmul.mubr.bf16.gmra.mxu0 %v1789
    %v1866 = vpop.f32.mrf.mxu0
    %v1867 = vadd.f32 %v803, %v1866
    %v1868 = vpop.f32.mrf.mxu0
    %v1869 = vadd.f32 %v805, %v1868
    %v1870 = vpop.f32.mrf.mxu0
    %v1871 = vadd.f32 %v807, %v1870
    %v1872 = vpop.f32.mrf.mxu0
    %v1873 = vadd.f32 %v809, %v1872
    %1874 = vmatprep.mubr.bf16.mxu0 0
    %1875 = vmatmul.mubr.bf16.gmra.mxu0 %v1792
    %v1876 = vpop.f32.mrf.mxu0
    %v1877 = vadd.f32 %v813, %v1876
    %v1878 = vpop.f32.mrf.mxu0
    %v1879 = vadd.f32 %v815, %v1878
    %v1880 = vpop.f32.mrf.mxu0
    %v1881 = vadd.f32 %v817, %v1880
    %v1882 = vpop.f32.mrf.mxu0
    %v1883 = vadd.f32 %v819, %v1882
    %1884 = vmatprep.mubr.bf16.mxu0 0
    %1885 = vmatmul.mubr.bf16.gmra.mxu0 %v1795
    %v1886 = vpop.f32.mrf.mxu0
    %v1887 = vadd.f32 %v823, %v1886
    %v1888 = vpop.f32.mrf.mxu0
    %v1889 = vadd.f32 %v825, %v1888
    %v1890 = vpop.f32.mrf.mxu0
    %v1891 = vadd.f32 %v827, %v1890
    %v1892 = vpop.f32.mrf.mxu0
    %v1893 = vadd.f32 %v829, %v1892
    %1894 = vmatprep.mubr.bf16.mxu0 0
    %1895 = vmatmul.mubr.bf16.gmra.mxu0 %v1798
    %v1896 = vpop.f32.mrf.mxu0
    %v1897 = vadd.f32 %v833, %v1896
    %v1898 = vpop.f32.mrf.mxu0
    %v1899 = vadd.f32 %v835, %v1898
    %v1900 = vpop.f32.mrf.mxu0
    %v1901 = vpop.f32.mrf.mxu0
    %1902 = vdwg.mxu0
    %v1910 = vunpack.c.l.b16 %v418
    %v1911 = vunpack.c.l.b16 %v419
    %v1912 = vunpack.c.l.b16 %v420
    %v1913 = vunpack.c.l.b16 %v421
    %v1914 = vunpack.c.l.b16 %v422
    %v1915 = vunpack.c.l.b16 %v423
    %v1916 = vunpack.c.l.b16 %v424
    %v1917 = vpack.c.b16 %v1911, %v1910
    %v1918 = vpack.c.b16 %v1913, %v1912
    %v1919 = vpack.c.b16 %v1915, %v1914
    %v1920 = vpack.c.b16 %v1916, %v1916
    %v1922 = vsel %vm590, %v1917, 0
    %v1925 = vsel %vm590, %v1918, 0
    %v1928 = vsel %vm590, %v1919, 0
    %v1931 = vsel %vm590, %v1920, 0
    %1933 = vmatprep.subr.mxu0 0.0
    %1934 = vmatpush1.msra.mxu0 0.0
    %1935 = vmatprep.subr.mxu0 0.0
    %1936 = vmatpush1.msra.mxu0 0.0
    %1937 = vmatprep.subr.mxu0 0.0
    %1938 = vmatpush1.msra.mxu0 0.0
    %1939 = vmatprep.subr.mxu0 0.0
    %1940 = vmatpush1.msra.mxu0 0.0
    %1941 = vmatprep.subr.mxu0 0.0
    %1942 = vmatpush1.msra.mxu0 0.0
    %1943 = vmatprep.subr.mxu0 0.0
    %1944 = vmatpush1.msra.mxu0 0.0
    %1945 = vmatprep.subr.mxu0 0.0
    %1946 = vmatpush1.msra.mxu0 0.0
    %1947 = vmatprep.subr.mxu0 0.0
    %1948 = vmatpush1.msra.mxu0 0.0
    %1949 = vmatprep.subr.mxu0 0.0
    %1950 = vmatpush1.msra.mxu0 0.0
    %1951 = vmatprep.subr.mxu0 0.0
    %1952 = vmatpush1.msra.mxu0 0.0
    %1953 = vmatprep.subr.mxu0 0.0
    %1954 = vmatpush1.msra.mxu0 0.0
    %1955 = vmatprep.subr.mxu0 0.0
    %1956 = vmatpush1.msra.mxu0 0.0
    %1957 = vmatprep.subr.mxu0 0.0
    %1958 = vmatpush1.msra.mxu0 0.0
    %1959 = vmatprep.subr.mxu0 0.0
    %1960 = vmatpush1.msra.mxu0 0.0
    %1961 = vmatprep.subr.mxu0 0.0
    %1962 = vmatpush1.msra.mxu0 0.0
    %1963 = vmatprep.subr.mxu0 %v247
    %1964 = vmatpush1.msra.mxu0 %v245
    %1965 = vmatprep.subr.mxu0 0.0
    %1966 = vmatpush2.msra.mxu0 0.0
    %1967 = vmatprep.subr.mxu0 0.0
    %1968 = vmatpush2.msra.mxu0 0.0
    %1969 = vmatprep.subr.mxu0 0.0
    %1970 = vmatpush2.msra.mxu0 0.0
    %1971 = vmatprep.subr.mxu0 0.0
    %1972 = vmatpush2.msra.mxu0 0.0
    %1973 = vmatprep.subr.mxu0 0.0
    %1974 = vmatpush2.msra.mxu0 0.0
    %1975 = vmatprep.subr.mxu0 0.0
    %1976 = vmatpush2.msra.mxu0 0.0
    %1977 = vmatprep.subr.mxu0 0.0
    %1978 = vmatpush2.msra.mxu0 0.0
    %1979 = vmatprep.subr.mxu0 0.0
    %1980 = vmatpush2.msra.mxu0 0.0
    %1981 = vmatprep.subr.mxu0 0.0
    %1982 = vmatpush2.msra.mxu0 0.0
    %1983 = vmatprep.subr.mxu0 0.0
    %1984 = vmatpush2.msra.mxu0 0.0
    %1985 = vmatprep.subr.mxu0 0.0
    %1986 = vmatpush2.msra.mxu0 0.0
    %1987 = vmatprep.subr.mxu0 0.0
    %1988 = vmatpush2.msra.mxu0 0.0
    %1989 = vmatprep.subr.mxu0 0.0
    %1990 = vmatpush2.msra.mxu0 0.0
    %1991 = vmatprep.subr.mxu0 0.0
    %1992 = vmatpush2.msra.mxu0 0.0
    %1993 = vmatprep.subr.mxu0 0.0
    %1994 = vmatpush2.msra.mxu0 0.0
    %1995 = vmatprep.subr.mxu0 0.0
    %1996 = vmatpush2.msra.mxu0 0.0
    %1997 = vmatprep.mubr.bf16.mxu0 0
    %1998 = vmatmul.mubr.bf16.gmra.mxu0 %v1922
    %v1999 = vpop.f32.mrf.mxu0
    %v2000 = vadd.f32 %v936, %v1999
    %v2001 = vpop.f32.mrf.mxu0
    %v2002 = vadd.f32 %v938, %v2001
    %v2003 = vpop.f32.mrf.mxu0
    %v2004 = vadd.f32 %v940, %v2003
    %v2005 = vpop.f32.mrf.mxu0
    %v2006 = vadd.f32 %v942, %v2005
    %2007 = vmatprep.mubr.bf16.mxu0 0
    %2008 = vmatmul.mubr.bf16.gmra.mxu0 %v1925
    %v2009 = vpop.f32.mrf.mxu0
    %v2010 = vadd.f32 %v946, %v2009
    %v2011 = vpop.f32.mrf.mxu0
    %v2012 = vadd.f32 %v948, %v2011
    %v2013 = vpop.f32.mrf.mxu0
    %v2014 = vadd.f32 %v950, %v2013
    %v2015 = vpop.f32.mrf.mxu0
    %v2016 = vadd.f32 %v952, %v2015
    %2017 = vmatprep.mubr.bf16.mxu0 0
    %2018 = vmatmul.mubr.bf16.gmra.mxu0 %v1928
    %v2019 = vpop.f32.mrf.mxu0
    %v2020 = vadd.f32 %v956, %v2019
    %v2021 = vpop.f32.mrf.mxu0
    %v2022 = vadd.f32 %v958, %v2021
    %v2023 = vpop.f32.mrf.mxu0
    %v2024 = vadd.f32 %v960, %v2023
    %v2025 = vpop.f32.mrf.mxu0
    %v2026 = vadd.f32 %v962, %v2025
    %2027 = vmatprep.mubr.bf16.mxu0 0
    %2028 = vmatmul.mubr.bf16.gmra.mxu0 %v1931
    %v2029 = vpop.f32.mrf.mxu0
    %v2030 = vadd.f32 %v966, %v2029
    %v2031 = vpop.f32.mrf.mxu0
    %v2032 = vadd.f32 %v968, %v2031
    %v2033 = vpop.f32.mrf.mxu0
    %v2034 = vpop.f32.mrf.mxu0
    %2035 = vdwg.mxu0
    %v2043 = vunpack.c.l.b16 %v425
    %v2044 = vunpack.c.l.b16 %v426
    %v2045 = vunpack.c.l.b16 %v427
    %v2046 = vunpack.c.l.b16 %v428
    %v2047 = vunpack.c.l.b16 %v429
    %v2048 = vunpack.c.l.b16 %v430
    %v2049 = vunpack.c.l.b16 %v431
    %v2050 = vpack.c.b16 %v2044, %v2043
    %v2051 = vpack.c.b16 %v2046, %v2045
    %v2052 = vpack.c.b16 %v2048, %v2047
    %v2053 = vpack.c.b16 %v2049, %v2049
    %v2055 = vsel %vm590, %v2050, 0
    %v2058 = vsel %vm590, %v2051, 0
    %v2061 = vsel %vm590, %v2052, 0
    %v2064 = vsel %vm590, %v2053, 0
    %2066 = vmatprep.subr.mxu0 0.0
    %2067 = vmatpush1.msra.mxu0 0.0
    %2068 = vmatprep.subr.mxu0 0.0
    %2069 = vmatpush1.msra.mxu0 0.0
    %2070 = vmatprep.subr.mxu0 0.0
    %2071 = vmatpush1.msra.mxu0 0.0
    %2072 = vmatprep.subr.mxu0 0.0
    %2073 = vmatpush1.msra.mxu0 0.0
    %2074 = vmatprep.subr.mxu0 0.0
    %2075 = vmatpush1.msra.mxu0 0.0
    %2076 = vmatprep.subr.mxu0 0.0
    %2077 = vmatpush1.msra.mxu0 0.0
    %2078 = vmatprep.subr.mxu0 0.0
    %2079 = vmatpush1.msra.mxu0 0.0
    %2080 = vmatprep.subr.mxu0 0.0
    %2081 = vmatpush1.msra.mxu0 0.0
    %2082 = vmatprep.subr.mxu0 0.0
    %2083 = vmatpush1.msra.mxu0 0.0
    %2084 = vmatprep.subr.mxu0 0.0
    %2085 = vmatpush1.msra.mxu0 0.0
    %2086 = vmatprep.subr.mxu0 0.0
    %2087 = vmatpush1.msra.mxu0 0.0
    %2088 = vmatprep.subr.mxu0 0.0
    %2089 = vmatpush1.msra.mxu0 0.0
    %2090 = vmatprep.subr.mxu0 0.0
    %2091 = vmatpush1.msra.mxu0 0.0
    %2092 = vmatprep.subr.mxu0 0.0
    %2093 = vmatpush1.msra.mxu0 0.0
    %2094 = vmatprep.subr.mxu0 0.0
    %2095 = vmatpush1.msra.mxu0 0.0
    %2096 = vmatprep.subr.mxu0 %v253
    %2097 = vmatpush1.msra.mxu0 %v251
    %2098 = vmatprep.subr.mxu0 0.0
    %2099 = vmatpush2.msra.mxu0 0.0
    %2100 = vmatprep.subr.mxu0 0.0
    %2101 = vmatpush2.msra.mxu0 0.0
    %2102 = vmatprep.subr.mxu0 0.0
    %2103 = vmatpush2.msra.mxu0 0.0
    %2104 = vmatprep.subr.mxu0 0.0
    %2105 = vmatpush2.msra.mxu0 0.0
    %2106 = vmatprep.subr.mxu0 0.0
    %2107 = vmatpush2.msra.mxu0 0.0
    %2108 = vmatprep.subr.mxu0 0.0
    %2109 = vmatpush2.msra.mxu0 0.0
    %2110 = vmatprep.subr.mxu0 0.0
    %2111 = vmatpush2.msra.mxu0 0.0
    %2112 = vmatprep.subr.mxu0 0.0
    %2113 = vmatpush2.msra.mxu0 0.0
    %2114 = vmatprep.subr.mxu0 0.0
    %2115 = vmatpush2.msra.mxu0 0.0
    %2116 = vmatprep.subr.mxu0 0.0
    %2117 = vmatpush2.msra.mxu0 0.0
    %2118 = vmatprep.subr.mxu0 0.0
    %2119 = vmatpush2.msra.mxu0 0.0
    %2120 = vmatprep.subr.mxu0 0.0
    %2121 = vmatpush2.msra.mxu0 0.0
    %2122 = vmatprep.subr.mxu0 0.0
    %2123 = vmatpush2.msra.mxu0 0.0
    %2124 = vmatprep.subr.mxu0 0.0
    %2125 = vmatpush2.msra.mxu0 0.0
    %2126 = vmatprep.subr.mxu0 0.0
    %2127 = vmatpush2.msra.mxu0 0.0
    %2128 = vmatprep.subr.mxu0 0.0
    %2129 = vmatpush2.msra.mxu0 0.0
    %2130 = vmatprep.mubr.bf16.mxu0 0
    %2131 = vmatmul.mubr.bf16.gmra.mxu0 %v2055
    %v2132 = vpop.f32.mrf.mxu0
    %v2133 = vadd.f32 %v1069, %v2132
    %v2134 = vpop.f32.mrf.mxu0
    %v2135 = vadd.f32 %v1071, %v2134
    %v2136 = vpop.f32.mrf.mxu0
    %v2137 = vadd.f32 %v1073, %v2136
    %v2138 = vpop.f32.mrf.mxu0
    %v2139 = vadd.f32 %v1075, %v2138
    %2140 = vmatprep.mubr.bf16.mxu0 0
    %2141 = vmatmul.mubr.bf16.gmra.mxu0 %v2058
    %v2142 = vpop.f32.mrf.mxu0
    %v2143 = vadd.f32 %v1079, %v2142
    %v2144 = vpop.f32.mrf.mxu0
    %v2145 = vadd.f32 %v1081, %v2144
    %v2146 = vpop.f32.mrf.mxu0
    %v2147 = vadd.f32 %v1083, %v2146
    %v2148 = vpop.f32.mrf.mxu0
    %v2149 = vadd.f32 %v1085, %v2148
    %2150 = vmatprep.mubr.bf16.mxu0 0
    %2151 = vmatmul.mubr.bf16.gmra.mxu0 %v2061
    %v2152 = vpop.f32.mrf.mxu0
    %v2153 = vadd.f32 %v1089, %v2152
    %v2154 = vpop.f32.mrf.mxu0
    %v2155 = vadd.f32 %v1091, %v2154
    %v2156 = vpop.f32.mrf.mxu0
    %v2157 = vadd.f32 %v1093, %v2156
    %v2158 = vpop.f32.mrf.mxu0
    %v2159 = vadd.f32 %v1095, %v2158
    %2160 = vmatprep.mubr.bf16.mxu0 0
    %2161 = vmatmul.mubr.bf16.gmra.mxu0 %v2064
    %v2162 = vpop.f32.mrf.mxu0
    %v2163 = vadd.f32 %v1099, %v2162
    %v2164 = vpop.f32.mrf.mxu0
    %v2165 = vadd.f32 %v1101, %v2164
    %v2166 = vpop.f32.mrf.mxu0
    %v2167 = vpop.f32.mrf.mxu0
    %2168 = vdwg.mxu0
    %v2176 = vunpack.c.l.b16 %v432
    %v2177 = vunpack.c.l.b16 %v433
    %v2178 = vunpack.c.l.b16 %v434
    %v2179 = vunpack.c.l.b16 %v435
    %v2180 = vunpack.c.l.b16 %v436
    %v2181 = vunpack.c.l.b16 %v437
    %v2182 = vunpack.c.l.b16 %v438
    %v2183 = vpack.c.b16 %v2177, %v2176
    %v2184 = vpack.c.b16 %v2179, %v2178
    %v2185 = vpack.c.b16 %v2181, %v2180
    %v2186 = vpack.c.b16 %v2182, %v2182
    %v2188 = vsel %vm590, %v2183, 0
    %v2191 = vsel %vm590, %v2184, 0
    %v2194 = vsel %vm590, %v2185, 0
    %v2197 = vsel %vm590, %v2186, 0
    %2199 = vmatprep.subr.mxu0 0.0
    %2200 = vmatpush1.msra.mxu0 0.0
    %2201 = vmatprep.subr.mxu0 0.0
    %2202 = vmatpush1.msra.mxu0 0.0
    %2203 = vmatprep.subr.mxu0 0.0
    %2204 = vmatpush1.msra.mxu0 0.0
    %2205 = vmatprep.subr.mxu0 0.0
    %2206 = vmatpush1.msra.mxu0 0.0
    %2207 = vmatprep.subr.mxu0 0.0
    %2208 = vmatpush1.msra.mxu0 0.0
    %2209 = vmatprep.subr.mxu0 0.0
    %2210 = vmatpush1.msra.mxu0 0.0
    %2211 = vmatprep.subr.mxu0 0.0
    %2212 = vmatpush1.msra.mxu0 0.0
    %2213 = vmatprep.subr.mxu0 0.0
    %2214 = vmatpush1.msra.mxu0 0.0
    %2215 = vmatprep.subr.mxu0 0.0
    %2216 = vmatpush1.msra.mxu0 0.0
    %2217 = vmatprep.subr.mxu0 0.0
    %2218 = vmatpush1.msra.mxu0 0.0
    %2219 = vmatprep.subr.mxu0 0.0
    %2220 = vmatpush1.msra.mxu0 0.0
    %2221 = vmatprep.subr.mxu0 0.0
    %2222 = vmatpush1.msra.mxu0 0.0
    %2223 = vmatprep.subr.mxu0 0.0
    %2224 = vmatpush1.msra.mxu0 0.0
    %2225 = vmatprep.subr.mxu0 0.0
    %2226 = vmatpush1.msra.mxu0 0.0
    %2227 = vmatprep.subr.mxu0 0.0
    %2228 = vmatpush1.msra.mxu0 0.0
    %2229 = vmatprep.subr.mxu0 %v259
    %2230 = vmatpush1.msra.mxu0 %v257
    %2231 = vmatprep.subr.mxu0 0.0
    %2232 = vmatpush2.msra.mxu0 0.0
    %2233 = vmatprep.subr.mxu0 0.0
    %2234 = vmatpush2.msra.mxu0 0.0
    %2235 = vmatprep.subr.mxu0 0.0
    %2236 = vmatpush2.msra.mxu0 0.0
    %2237 = vmatprep.subr.mxu0 0.0
    %2238 = vmatpush2.msra.mxu0 0.0
    %2239 = vmatprep.subr.mxu0 0.0
    %2240 = vmatpush2.msra.mxu0 0.0
    %2241 = vmatprep.subr.mxu0 0.0
    %2242 = vmatpush2.msra.mxu0 0.0
    %2243 = vmatprep.subr.mxu0 0.0
    %2244 = vmatpush2.msra.mxu0 0.0
    %2245 = vmatprep.subr.mxu0 0.0
    %2246 = vmatpush2.msra.mxu0 0.0
    %2247 = vmatprep.subr.mxu0 0.0
    %2248 = vmatpush2.msra.mxu0 0.0
    %2249 = vmatprep.subr.mxu0 0.0
    %2250 = vmatpush2.msra.mxu0 0.0
    %2251 = vmatprep.subr.mxu0 0.0
    %2252 = vmatpush2.msra.mxu0 0.0
    %2253 = vmatprep.subr.mxu0 0.0
    %2254 = vmatpush2.msra.mxu0 0.0
    %2255 = vmatprep.subr.mxu0 0.0
    %2256 = vmatpush2.msra.mxu0 0.0
    %2257 = vmatprep.subr.mxu0 0.0
    %2258 = vmatpush2.msra.mxu0 0.0
    %2259 = vmatprep.subr.mxu0 0.0
    %2260 = vmatpush2.msra.mxu0 0.0
    %2261 = vmatprep.subr.mxu0 0.0
    %2262 = vmatpush2.msra.mxu0 0.0
    %2263 = vmatprep.mubr.bf16.mxu0 0
    %2264 = vmatmul.mubr.bf16.gmra.mxu0 %v2188
    %v2265 = vpop.f32.mrf.mxu0
    %v2266 = vadd.f32 %v1202, %v2265
    %v2267 = vpop.f32.mrf.mxu0
    %v2268 = vadd.f32 %v1204, %v2267
    %v2269 = vpop.f32.mrf.mxu0
    %v2270 = vadd.f32 %v1206, %v2269
    %v2271 = vpop.f32.mrf.mxu0
    %v2272 = vadd.f32 %v1208, %v2271
    %2273 = vmatprep.mubr.bf16.mxu0 0
    %2274 = vmatmul.mubr.bf16.gmra.mxu0 %v2191
    %v2275 = vpop.f32.mrf.mxu0
    %v2276 = vadd.f32 %v1212, %v2275
    %v2277 = vpop.f32.mrf.mxu0
    %v2278 = vadd.f32 %v1214, %v2277
    %v2279 = vpop.f32.mrf.mxu0
    %v2280 = vadd.f32 %v1216, %v2279
    %v2281 = vpop.f32.mrf.mxu0
    %v2282 = vadd.f32 %v1218, %v2281
    %2283 = vmatprep.mubr.bf16.mxu0 0
    %2284 = vmatmul.mubr.bf16.gmra.mxu0 %v2194
    %v2285 = vpop.f32.mrf.mxu0
    %v2286 = vadd.f32 %v1222, %v2285
    %v2287 = vpop.f32.mrf.mxu0
    %v2288 = vadd.f32 %v1224, %v2287
    %v2289 = vpop.f32.mrf.mxu0
    %v2290 = vadd.f32 %v1226, %v2289
    %v2291 = vpop.f32.mrf.mxu0
    %v2292 = vadd.f32 %v1228, %v2291
    %2293 = vmatprep.mubr.bf16.mxu0 0
    %2294 = vmatmul.mubr.bf16.gmra.mxu0 %v2197
    %v2295 = vpop.f32.mrf.mxu0
    %v2296 = vadd.f32 %v1232, %v2295
    %v2297 = vpop.f32.mrf.mxu0
    %v2298 = vadd.f32 %v1234, %v2297
    %v2299 = vpop.f32.mrf.mxu0
    %v2300 = vpop.f32.mrf.mxu0
    %2301 = vdwg.mxu0
    %v2309 = vunpack.c.l.b16 %v439
    %v2310 = vunpack.c.l.b16 %v440
    %v2311 = vunpack.c.l.b16 %v441
    %v2312 = vunpack.c.l.b16 %v442
    %v2313 = vunpack.c.l.b16 %v443
    %v2314 = vunpack.c.l.b16 %v444
    %v2315 = vunpack.c.l.b16 %v445
    %v2316 = vpack.c.b16 %v2310, %v2309
    %v2317 = vpack.c.b16 %v2312, %v2311
    %v2318 = vpack.c.b16 %v2314, %v2313
    %v2319 = vpack.c.b16 %v2315, %v2315
    %v2321 = vsel %vm590, %v2316, 0
    %v2324 = vsel %vm590, %v2317, 0
    %v2327 = vsel %vm590, %v2318, 0
    %v2330 = vsel %vm590, %v2319, 0
    %2332 = vmatprep.subr.mxu0 0.0
    %2333 = vmatpush1.msra.mxu0 0.0
    %2334 = vmatprep.subr.mxu0 0.0
    %2335 = vmatpush1.msra.mxu0 0.0
    %2336 = vmatprep.subr.mxu0 0.0
    %2337 = vmatpush1.msra.mxu0 0.0
    %2338 = vmatprep.subr.mxu0 0.0
    %2339 = vmatpush1.msra.mxu0 0.0
    %2340 = vmatprep.subr.mxu0 0.0
    %2341 = vmatpush1.msra.mxu0 0.0
    %2342 = vmatprep.subr.mxu0 0.0
    %2343 = vmatpush1.msra.mxu0 0.0
    %2344 = vmatprep.subr.mxu0 0.0
    %2345 = vmatpush1.msra.mxu0 0.0
    %2346 = vmatprep.subr.mxu0 0.0
    %2347 = vmatpush1.msra.mxu0 0.0
    %2348 = vmatprep.subr.mxu0 0.0
    %2349 = vmatpush1.msra.mxu0 0.0
    %2350 = vmatprep.subr.mxu0 0.0
    %2351 = vmatpush1.msra.mxu0 0.0
    %2352 = vmatprep.subr.mxu0 0.0
    %2353 = vmatpush1.msra.mxu0 0.0
    %2354 = vmatprep.subr.mxu0 0.0
    %2355 = vmatpush1.msra.mxu0 0.0
    %2356 = vmatprep.subr.mxu0 0.0
    %2357 = vmatpush1.msra.mxu0 0.0
    %2358 = vmatprep.subr.mxu0 0.0
    %2359 = vmatpush1.msra.mxu0 0.0
    %2360 = vmatprep.subr.mxu0 0.0
    %2361 = vmatpush1.msra.mxu0 0.0
    %2362 = vmatprep.subr.mxu0 %v265
    %2363 = vmatpush1.msra.mxu0 %v263
    %2364 = vmatprep.subr.mxu0 0.0
    %2365 = vmatpush2.msra.mxu0 0.0
    %2366 = vmatprep.subr.mxu0 0.0
    %2367 = vmatpush2.msra.mxu0 0.0
    %2368 = vmatprep.subr.mxu0 0.0
    %2369 = vmatpush2.msra.mxu0 0.0
    %2370 = vmatprep.subr.mxu0 0.0
    %2371 = vmatpush2.msra.mxu0 0.0
    %2372 = vmatprep.subr.mxu0 0.0
    %2373 = vmatpush2.msra.mxu0 0.0
    %2374 = vmatprep.subr.mxu0 0.0
    %2375 = vmatpush2.msra.mxu0 0.0
    %2376 = vmatprep.subr.mxu0 0.0
    %2377 = vmatpush2.msra.mxu0 0.0
    %2378 = vmatprep.subr.mxu0 0.0
    %2379 = vmatpush2.msra.mxu0 0.0
    %2380 = vmatprep.subr.mxu0 0.0
    %2381 = vmatpush2.msra.mxu0 0.0
    %2382 = vmatprep.subr.mxu0 0.0
    %2383 = vmatpush2.msra.mxu0 0.0
    %2384 = vmatprep.subr.mxu0 0.0
    %2385 = vmatpush2.msra.mxu0 0.0
    %2386 = vmatprep.subr.mxu0 0.0
    %2387 = vmatpush2.msra.mxu0 0.0
    %2388 = vmatprep.subr.mxu0 0.0
    %2389 = vmatpush2.msra.mxu0 0.0
    %2390 = vmatprep.subr.mxu0 0.0
    %2391 = vmatpush2.msra.mxu0 0.0
    %2392 = vmatprep.subr.mxu0 0.0
    %2393 = vmatpush2.msra.mxu0 0.0
    %2394 = vmatprep.subr.mxu0 0.0
    %2395 = vmatpush2.msra.mxu0 0.0
    %2396 = vmatprep.mubr.bf16.mxu0 0
    %2397 = vmatmul.mubr.bf16.gmra.mxu0 %v2321
    %v2398 = vpop.f32.mrf.mxu0
    %v2399 = vadd.f32 %v1335, %v2398
    %v2400 = vpop.f32.mrf.mxu0
    %v2401 = vadd.f32 %v1337, %v2400
    %v2402 = vpop.f32.mrf.mxu0
    %v2403 = vadd.f32 %v1339, %v2402
    %v2404 = vpop.f32.mrf.mxu0
    %v2405 = vadd.f32 %v1341, %v2404
    %2406 = vmatprep.mubr.bf16.mxu0 0
    %2407 = vmatmul.mubr.bf16.gmra.mxu0 %v2324
    %v2408 = vpop.f32.mrf.mxu0
    %v2409 = vadd.f32 %v1345, %v2408
    %v2410 = vpop.f32.mrf.mxu0
    %v2411 = vadd.f32 %v1347, %v2410
    %v2412 = vpop.f32.mrf.mxu0
    %v2413 = vadd.f32 %v1349, %v2412
    %v2414 = vpop.f32.mrf.mxu0
    %v2415 = vadd.f32 %v1351, %v2414
    %2416 = vmatprep.mubr.bf16.mxu0 0
    %2417 = vmatmul.mubr.bf16.gmra.mxu0 %v2327
    %v2418 = vpop.f32.mrf.mxu0
    %v2419 = vadd.f32 %v1355, %v2418
    %v2420 = vpop.f32.mrf.mxu0
    %v2421 = vadd.f32 %v1357, %v2420
    %v2422 = vpop.f32.mrf.mxu0
    %v2423 = vadd.f32 %v1359, %v2422
    %v2424 = vpop.f32.mrf.mxu0
    %v2425 = vadd.f32 %v1361, %v2424
    %2426 = vmatprep.mubr.bf16.mxu0 0
    %2427 = vmatmul.mubr.bf16.gmra.mxu0 %v2330
    %v2428 = vpop.f32.mrf.mxu0
    %v2429 = vadd.f32 %v1365, %v2428
    %v2430 = vpop.f32.mrf.mxu0
    %v2431 = vadd.f32 %v1367, %v2430
    %v2432 = vpop.f32.mrf.mxu0
    %v2433 = vpop.f32.mrf.mxu0
    %2434 = vdwg.mxu0
    %v2442 = vunpack.c.l.b16 %v446
    %v2443 = vunpack.c.l.b16 %v447
    %v2444 = vunpack.c.l.b16 %v448
    %v2445 = vunpack.c.l.b16 %v449
    %v2446 = vunpack.c.l.b16 %v450
    %v2447 = vunpack.c.l.b16 %v451
    %v2448 = vunpack.c.l.b16 %v452
    %v2449 = vpack.c.b16 %v2443, %v2442
    %v2450 = vpack.c.b16 %v2445, %v2444
    %v2451 = vpack.c.b16 %v2447, %v2446
    %v2452 = vpack.c.b16 %v2448, %v2448
    %v2454 = vsel %vm590, %v2449, 0
    %v2457 = vsel %vm590, %v2450, 0
    %v2460 = vsel %vm590, %v2451, 0
    %v2463 = vsel %vm590, %v2452, 0
    %2465 = vmatprep.subr.mxu0 0.0
    %2466 = vmatpush1.msra.mxu0 0.0
    %2467 = vmatprep.subr.mxu0 0.0
    %2468 = vmatpush1.msra.mxu0 0.0
    %2469 = vmatprep.subr.mxu0 0.0
    %2470 = vmatpush1.msra.mxu0 0.0
    %2471 = vmatprep.subr.mxu0 0.0
    %2472 = vmatpush1.msra.mxu0 0.0
    %2473 = vmatprep.subr.mxu0 0.0
    %2474 = vmatpush1.msra.mxu0 0.0
    %2475 = vmatprep.subr.mxu0 0.0
    %2476 = vmatpush1.msra.mxu0 0.0
    %2477 = vmatprep.subr.mxu0 0.0
    %2478 = vmatpush1.msra.mxu0 0.0
    %2479 = vmatprep.subr.mxu0 0.0
    %2480 = vmatpush1.msra.mxu0 0.0
    %2481 = vmatprep.subr.mxu0 0.0
    %2482 = vmatpush1.msra.mxu0 0.0
    %2483 = vmatprep.subr.mxu0 0.0
    %2484 = vmatpush1.msra.mxu0 0.0
    %2485 = vmatprep.subr.mxu0 0.0
    %2486 = vmatpush1.msra.mxu0 0.0
    %2487 = vmatprep.subr.mxu0 0.0
    %2488 = vmatpush1.msra.mxu0 0.0
    %2489 = vmatprep.subr.mxu0 0.0
    %2490 = vmatpush1.msra.mxu0 0.0
    %2491 = vmatprep.subr.mxu0 0.0
    %2492 = vmatpush1.msra.mxu0 0.0
    %2493 = vmatprep.subr.mxu0 0.0
    %2494 = vmatpush1.msra.mxu0 0.0
    %2495 = vmatprep.subr.mxu0 %v271
    %2496 = vmatpush1.msra.mxu0 %v269
    %2497 = vmatprep.subr.mxu0 0.0
    %2498 = vmatpush2.msra.mxu0 0.0
    %2499 = vmatprep.subr.mxu0 0.0
    %2500 = vmatpush2.msra.mxu0 0.0
    %2501 = vmatprep.subr.mxu0 0.0
    %2502 = vmatpush2.msra.mxu0 0.0
    %2503 = vmatprep.subr.mxu0 0.0
    %2504 = vmatpush2.msra.mxu0 0.0
    %2505 = vmatprep.subr.mxu0 0.0
    %2506 = vmatpush2.msra.mxu0 0.0
    %2507 = vmatprep.subr.mxu0 0.0
    %2508 = vmatpush2.msra.mxu0 0.0
    %2509 = vmatprep.subr.mxu0 0.0
    %2510 = vmatpush2.msra.mxu0 0.0
    %2511 = vmatprep.subr.mxu0 0.0
    %2512 = vmatpush2.msra.mxu0 0.0
    %2513 = vmatprep.subr.mxu0 0.0
    %2514 = vmatpush2.msra.mxu0 0.0
    %2515 = vmatprep.subr.mxu0 0.0
    %2516 = vmatpush2.msra.mxu0 0.0
    %2517 = vmatprep.subr.mxu0 0.0
    %2518 = vmatpush2.msra.mxu0 0.0
    %2519 = vmatprep.subr.mxu0 0.0
    %2520 = vmatpush2.msra.mxu0 0.0
    %2521 = vmatprep.subr.mxu0 0.0
    %2522 = vmatpush2.msra.mxu0 0.0
    %2523 = vmatprep.subr.mxu0 0.0
    %2524 = vmatpush2.msra.mxu0 0.0
    %2525 = vmatprep.subr.mxu0 0.0
    %2526 = vmatpush2.msra.mxu0 0.0
    %2527 = vmatprep.subr.mxu0 0.0
    %2528 = vmatpush2.msra.mxu0 0.0
    %2529 = vmatprep.mubr.bf16.mxu0 0
    %2530 = vmatmul.mubr.bf16.gmra.mxu0 %v2454
    %v2531 = vpop.f32.mrf.mxu0
    %v2532 = vadd.f32 %v1468, %v2531
    %v2533 = vpop.f32.mrf.mxu0
    %v2534 = vadd.f32 %v1470, %v2533
    %v2535 = vpop.f32.mrf.mxu0
    %v2536 = vadd.f32 %v1472, %v2535
    %v2537 = vpop.f32.mrf.mxu0
    %v2538 = vadd.f32 %v1474, %v2537
    %2539 = vmatprep.mubr.bf16.mxu0 0
    %2540 = vmatmul.mubr.bf16.gmra.mxu0 %v2457
    %v2541 = vpop.f32.mrf.mxu0
    %v2542 = vadd.f32 %v1478, %v2541
    %v2543 = vpop.f32.mrf.mxu0
    %v2544 = vadd.f32 %v1480, %v2543
    %v2545 = vpop.f32.mrf.mxu0
    %v2546 = vadd.f32 %v1482, %v2545
    %v2547 = vpop.f32.mrf.mxu0
    %v2548 = vadd.f32 %v1484, %v2547
    %2549 = vmatprep.mubr.bf16.mxu0 0
    %2550 = vmatmul.mubr.bf16.gmra.mxu0 %v2460
    %v2551 = vpop.f32.mrf.mxu0
    %v2552 = vadd.f32 %v1488, %v2551
    %v2553 = vpop.f32.mrf.mxu0
    %v2554 = vadd.f32 %v1490, %v2553
    %v2555 = vpop.f32.mrf.mxu0
    %v2556 = vadd.f32 %v1492, %v2555
    %v2557 = vpop.f32.mrf.mxu0
    %v2558 = vadd.f32 %v1494, %v2557
    %2559 = vmatprep.mubr.bf16.mxu0 0
    %2560 = vmatmul.mubr.bf16.gmra.mxu0 %v2463
    %v2561 = vpop.f32.mrf.mxu0
    %v2562 = vadd.f32 %v1498, %v2561
    %v2563 = vpop.f32.mrf.mxu0
    %v2564 = vadd.f32 %v1500, %v2563
    %v2565 = vpop.f32.mrf.mxu0
    %v2566 = vpop.f32.mrf.mxu0
    %2567 = vdwg.mxu0
    %v2575 = vunpack.c.l.b16 %v453
    %v2576 = vunpack.c.l.b16 %v454
    %v2577 = vunpack.c.l.b16 %v455
    %v2578 = vunpack.c.l.b16 %v456
    %v2579 = vunpack.c.l.b16 %v457
    %v2580 = vunpack.c.l.b16 %v458
    %v2581 = vunpack.c.l.b16 %v459
    %v2582 = vpack.c.b16 %v2576, %v2575
    %v2583 = vpack.c.b16 %v2578, %v2577
    %v2584 = vpack.c.b16 %v2580, %v2579
    %v2585 = vpack.c.b16 %v2581, %v2581
    %v2587 = vsel %vm590, %v2582, 0
    %v2590 = vsel %vm590, %v2583, 0
    %v2593 = vsel %vm590, %v2584, 0
    %v2596 = vsel %vm590, %v2585, 0
    %2598 = vmatprep.subr.mxu0 0.0
    %2599 = vmatpush1.msra.mxu0 0.0
    %2600 = vmatprep.subr.mxu0 0.0
    %2601 = vmatpush1.msra.mxu0 0.0
    %2602 = vmatprep.subr.mxu0 0.0
    %2603 = vmatpush1.msra.mxu0 0.0
    %2604 = vmatprep.subr.mxu0 0.0
    %2605 = vmatpush1.msra.mxu0 0.0
    %2606 = vmatprep.subr.mxu0 0.0
    %2607 = vmatpush1.msra.mxu0 0.0
    %2608 = vmatprep.subr.mxu0 0.0
    %2609 = vmatpush1.msra.mxu0 0.0
    %2610 = vmatprep.subr.mxu0 0.0
    %2611 = vmatpush1.msra.mxu0 0.0
    %2612 = vmatprep.subr.mxu0 0.0
    %2613 = vmatpush1.msra.mxu0 0.0
    %2614 = vmatprep.subr.mxu0 0.0
    %2615 = vmatpush1.msra.mxu0 0.0
    %2616 = vmatprep.subr.mxu0 0.0
    %2617 = vmatpush1.msra.mxu0 0.0
    %2618 = vmatprep.subr.mxu0 0.0
    %2619 = vmatpush1.msra.mxu0 0.0
    %2620 = vmatprep.subr.mxu0 0.0
    %2621 = vmatpush1.msra.mxu0 0.0
    %2622 = vmatprep.subr.mxu0 0.0
    %2623 = vmatpush1.msra.mxu0 0.0
    %2624 = vmatprep.subr.mxu0 0.0
    %2625 = vmatpush1.msra.mxu0 0.0
    %2626 = vmatprep.subr.mxu0 0.0
    %2627 = vmatpush1.msra.mxu0 0.0
    %2628 = vmatprep.subr.mxu0 %v277
    %2629 = vmatpush1.msra.mxu0 %v275
    %2630 = vmatprep.subr.mxu0 0.0
    %2631 = vmatpush2.msra.mxu0 0.0
    %2632 = vmatprep.subr.mxu0 0.0
    %2633 = vmatpush2.msra.mxu0 0.0
    %2634 = vmatprep.subr.mxu0 0.0
    %2635 = vmatpush2.msra.mxu0 0.0
    %2636 = vmatprep.subr.mxu0 0.0
    %2637 = vmatpush2.msra.mxu0 0.0
    %2638 = vmatprep.subr.mxu0 0.0
    %2639 = vmatpush2.msra.mxu0 0.0
    %2640 = vmatprep.subr.mxu0 0.0
    %2641 = vmatpush2.msra.mxu0 0.0
    %2642 = vmatprep.subr.mxu0 0.0
    %2643 = vmatpush2.msra.mxu0 0.0
    %2644 = vmatprep.subr.mxu0 0.0
    %2645 = vmatpush2.msra.mxu0 0.0
    %2646 = vmatprep.subr.mxu0 0.0
    %2647 = vmatpush2.msra.mxu0 0.0
    %2648 = vmatprep.subr.mxu0 0.0
    %2649 = vmatpush2.msra.mxu0 0.0
    %2650 = vmatprep.subr.mxu0 0.0
    %2651 = vmatpush2.msra.mxu0 0.0
    %2652 = vmatprep.subr.mxu0 0.0
    %2653 = vmatpush2.msra.mxu0 0.0
    %2654 = vmatprep.subr.mxu0 0.0
    %2655 = vmatpush2.msra.mxu0 0.0
    %2656 = vmatprep.subr.mxu0 0.0
    %2657 = vmatpush2.msra.mxu0 0.0
    %2658 = vmatprep.subr.mxu0 0.0
    %2659 = vmatpush2.msra.mxu0 0.0
    %2660 = vmatprep.subr.mxu0 0.0
    %2661 = vmatpush2.msra.mxu0 0.0
    %2662 = vmatprep.mubr.bf16.mxu0 0
    %2663 = vmatmul.mubr.bf16.gmra.mxu0 %v2587
    %v2664 = vpop.f32.mrf.mxu0
    %v2665 = vadd.f32 %v1601, %v2664
    %v2666 = vpop.f32.mrf.mxu0
    %v2667 = vadd.f32 %v1603, %v2666
    %v2668 = vpop.f32.mrf.mxu0
    %v2669 = vadd.f32 %v1605, %v2668
    %v2670 = vpop.f32.mrf.mxu0
    %v2671 = vadd.f32 %v1607, %v2670
    %2672 = vmatprep.mubr.bf16.mxu0 0
    %2673 = vmatmul.mubr.bf16.gmra.mxu0 %v2590
    %v2674 = vpop.f32.mrf.mxu0
    %v2675 = vadd.f32 %v1611, %v2674
    %v2676 = vpop.f32.mrf.mxu0
    %v2677 = vadd.f32 %v1613, %v2676
    %v2678 = vpop.f32.mrf.mxu0
    %v2679 = vadd.f32 %v1615, %v2678
    %v2680 = vpop.f32.mrf.mxu0
    %v2681 = vadd.f32 %v1617, %v2680
    %2682 = vmatprep.mubr.bf16.mxu0 0
    %2683 = vmatmul.mubr.bf16.gmra.mxu0 %v2593
    %v2684 = vpop.f32.mrf.mxu0
    %v2685 = vadd.f32 %v1621, %v2684
    %v2686 = vpop.f32.mrf.mxu0
    %v2687 = vadd.f32 %v1623, %v2686
    %v2688 = vpop.f32.mrf.mxu0
    %v2689 = vadd.f32 %v1625, %v2688
    %v2690 = vpop.f32.mrf.mxu0
    %v2691 = vadd.f32 %v1627, %v2690
    %2692 = vmatprep.mubr.bf16.mxu0 0
    %2693 = vmatmul.mubr.bf16.gmra.mxu0 %v2596
    %v2694 = vpop.f32.mrf.mxu0
    %v2695 = vadd.f32 %v1631, %v2694
    %v2696 = vpop.f32.mrf.mxu0
    %v2697 = vadd.f32 %v1633, %v2696
    %v2698 = vpop.f32.mrf.mxu0
    %v2699 = vpop.f32.mrf.mxu0
    %2700 = vdwg.mxu0
    %v2701 = vld [vmem:[%s8] sm:$0x77]
    %v2758 = vunpack.c.l.b16 %v516
    %v2759 = vunpack.c.l.b16 %v517
    %v2760 = vunpack.c.l.b16 %v518
    %v2761 = vunpack.c.l.b16 %v519
    %v2762 = vunpack.c.l.b16 %v520
    %v2763 = vunpack.c.l.b16 %v521
    %v2764 = vunpack.c.l.b16 %v522
    %v2765 = vunpack.c.l.b16 %v523
    %v2766 = vunpack.c.l.b16 %v524
    %v2767 = vunpack.c.l.b16 %v525
    %v2768 = vunpack.c.l.b16 %v526
    %v2769 = vunpack.c.l.b16 %v527
    %v2770 = vunpack.c.l.b16 %v528
    %v2771 = vunpack.c.l.b16 %v529
    %v2772 = vunpack.c.l.b16 %v530
    %v2773 = vunpack.c.l.b16 %v531
    %v2774 = vunpack.c.l.b16 %v532
    %v2775 = vunpack.c.l.b16 %v533
    %v2776 = vunpack.c.l.b16 %v534
    %v2777 = vunpack.c.l.b16 %v535
    %v2778 = vunpack.c.l.b16 %v536
    %v2779 = vunpack.c.l.b16 %v537
    %v2780 = vunpack.c.l.b16 %v538
    %v2781 = vunpack.c.l.b16 %v539
    %v2782 = vunpack.c.l.b16 %v540
    %v2783 = vunpack.c.l.b16 %v541
    %v2784 = vunpack.c.l.b16 %v542
    %v2785 = vunpack.c.l.b16 %v543
    %v2786 = vunpack.c.l.b16 %v544
    %v2787 = vunpack.c.l.b16 %v545
    %v2788 = vunpack.c.l.b16 %v546
    %v2789 = vunpack.c.l.b16 %v547
    %v2790 = vunpack.c.l.b16 %v548
    %v2791 = vunpack.c.l.b16 %v549
    %v2792 = vunpack.c.l.b16 %v550
    %v2793 = vunpack.c.l.b16 %v551
    %v2794 = vunpack.c.l.b16 %v552
    %v2795 = vunpack.c.l.b16 %v553
    %v2796 = vunpack.c.l.b16 %v554
    %v2797 = vunpack.c.l.b16 %v555
    %v2798 = vunpack.c.l.b16 %v556
    %v2799 = vunpack.c.l.b16 %v557
    %v2800 = vunpack.c.l.b16 %v558
    %v2801 = vunpack.c.l.b16 %v559
    %v2802 = vunpack.c.l.b16 %v560
    %v2803 = vunpack.c.l.b16 %v561
    %v2804 = vunpack.c.l.b16 %v562
    %v2805 = vunpack.c.l.b16 %v563
    %v2806 = vunpack.c.l.b16 %v564
    %v2807 = vunpack.c.l.b16 %v565
    %v2808 = vunpack.c.l.b16 %v566
    %v2809 = vunpack.c.l.b16 %v567
    %v2810 = vunpack.c.l.b16 %v568
    %v2811 = vunpack.c.l.b16 %v569
    %v2812 = vunpack.c.l.b16 %v570
    %v2813 = vunpack.c.l.b16 %v571
    %v2814 = vpack.c.b16 %v2759, %v2758
    %v2815 = vpack.c.b16 %v2761, %v2760
    %v2816 = vpack.c.b16 %v2763, %v2762
    %v2817 = vpack.c.b16 %v2765, %v2764
    %v2818 = vpack.c.b16 %v2767, %v2766
    %v2819 = vpack.c.b16 %v2769, %v2768
    %v2820 = vpack.c.b16 %v2771, %v2770
    %v2821 = vpack.c.b16 %v2773, %v2772
    %v2822 = vpack.c.b16 %v2775, %v2774
    %v2823 = vpack.c.b16 %v2777, %v2776
    %v2824 = vpack.c.b16 %v2779, %v2778
    %v2825 = vpack.c.b16 %v2781, %v2780
    %v2826 = vpack.c.b16 %v2783, %v2782
    %v2827 = vpack.c.b16 %v2785, %v2784
    %v2828 = vpack.c.b16 %v2787, %v2786
    %v2829 = vpack.c.b16 %v2789, %v2788
    %v2830 = vpack.c.b16 %v2791, %v2790
    %v2831 = vpack.c.b16 %v2793, %v2792
    %v2832 = vpack.c.b16 %v2795, %v2794
    %v2833 = vpack.c.b16 %v2797, %v2796
    %v2834 = vpack.c.b16 %v2799, %v2798
    %v2835 = vpack.c.b16 %v2801, %v2800
    %v2836 = vpack.c.b16 %v2803, %v2802
    %v2837 = vpack.c.b16 %v2805, %v2804
    %v2838 = vpack.c.b16 %v2807, %v2806
    %v2839 = vpack.c.b16 %v2809, %v2808
    %v2840 = vpack.c.b16 %v2811, %v2810
    %v2841 = vpack.c.b16 %v2813, %v2812
    %v2843 = vcombine.high %v2701, %v2701
    %v2845 = vsel %vm117, %v2814, 0
    %v2848 = vsel %vm117, %v2815, 0
    %v2851 = vsel %vm117, %v2816, 0
    %v2854 = vsel %vm117, %v2817, 0
    %v2857 = vsel %vm117, %v2818, 0
    %v2860 = vsel %vm117, %v2819, 0
    %v2863 = vsel %vm117, %v2820, 0
    %v2866 = vsel %vm117, %v2821, 0
    %v2869 = vsel %vm117, %v2822, 0
    %v2872 = vsel %vm117, %v2823, 0
    %v2875 = vsel %vm117, %v2824, 0
    %v2878 = vsel %vm117, %v2825, 0
    %v2881 = vsel %vm117, %v2826, 0
    %v2884 = vsel %vm117, %v2827, 0
    %v2887 = vsel %vm117, %v2828, 0
    %v2890 = vsel %vm117, %v2829, 0
    %v2893 = vsel %vm117, %v2830, 0
    %v2896 = vsel %vm117, %v2831, 0
    %v2899 = vsel %vm117, %v2832, 0
    %v2902 = vsel %vm117, %v2833, 0
    %v2905 = vsel %vm117, %v2834, 0
    %v2908 = vsel %vm117, %v2835, 0
    %v2911 = vsel %vm117, %v2836, 0
    %v2914 = vsel %vm117, %v2837, 0
    %v2917 = vsel %vm117, %v2838, 0
    %v2920 = vsel %vm117, %v2839, 0
    %v2923 = vsel %vm117, %v2840, 0
    %v2926 = vsel %vm117, %v2841, 0
    %vm2928 = vcmask 1042432
    %v2929 = vsel %vm2928, %v2701, 0
    %v2931 = vsel %vm2928, %v2843, 0
    %2933 = vmatprep.subr.mxu0 0.0
    %2934 = vmatpush1.msra.mxu0 0.0
    %2935 = vmatprep.subr.mxu0 0.0
    %2936 = vmatpush1.msra.mxu0 0.0
    %2937 = vmatprep.subr.mxu0 0.0
    %2938 = vmatpush1.msra.mxu0 0.0
    %2939 = vmatprep.subr.mxu0 0.0
    %2940 = vmatpush1.msra.mxu0 0.0
    %2941 = vmatprep.subr.mxu0 0.0
    %2942 = vmatpush1.msra.mxu0 0.0
    %2943 = vmatprep.subr.mxu0 0.0
    %2944 = vmatpush1.msra.mxu0 0.0
    %2945 = vmatprep.subr.mxu0 0.0
    %2946 = vmatpush1.msra.mxu0 0.0
    %2947 = vmatprep.subr.mxu0 0.0
    %2948 = vmatpush1.msra.mxu0 0.0
    %2949 = vmatprep.subr.mxu0 0.0
    %2950 = vmatpush1.msra.mxu0 0.0
    %2951 = vmatprep.subr.mxu0 0.0
    %2952 = vmatpush1.msra.mxu0 0.0
    %2953 = vmatprep.subr.mxu0 0.0
    %2954 = vmatpush1.msra.mxu0 0.0
    %2955 = vmatprep.subr.mxu0 0.0
    %2956 = vmatpush1.msra.mxu0 0.0
    %2957 = vmatprep.subr.mxu0 0.0
    %2958 = vmatpush1.msra.mxu0 0.0
    %2959 = vmatprep.subr.mxu0 0.0
    %2960 = vmatpush1.msra.mxu0 0.0
    %2961 = vmatprep.subr.mxu0 0.0
    %2962 = vmatpush1.msra.mxu0 0.0
    %2963 = vmatprep.subr.mxu0 %v2931
    %2964 = vmatpush1.msra.mxu0 %v2929
    %2965 = vmatprep.subr.mxu0 0.0
    %2966 = vmatpush2.msra.mxu0 0.0
    %2967 = vmatprep.subr.mxu0 0.0
    %2968 = vmatpush2.msra.mxu0 0.0
    %2969 = vmatprep.subr.mxu0 0.0
    %2970 = vmatpush2.msra.mxu0 0.0
    %2971 = vmatprep.subr.mxu0 0.0
    %2972 = vmatpush2.msra.mxu0 0.0
    %2973 = vmatprep.subr.mxu0 0.0
    %2974 = vmatpush2.msra.mxu0 0.0
    %2975 = vmatprep.subr.mxu0 0.0
    %2976 = vmatpush2.msra.mxu0 0.0
    %2977 = vmatprep.subr.mxu0 0.0
    %2978 = vmatpush2.msra.mxu0 0.0
    %2979 = vmatprep.subr.mxu0 0.0
    %2980 = vmatpush2.msra.mxu0 0.0
    %2981 = vmatprep.subr.mxu0 0.0
    %2982 = vmatpush2.msra.mxu0 0.0
    %2983 = vmatprep.subr.mxu0 0.0
    %2984 = vmatpush2.msra.mxu0 0.0
    %2985 = vmatprep.subr.mxu0 0.0
    %2986 = vmatpush2.msra.mxu0 0.0
    %2987 = vmatprep.subr.mxu0 0.0
    %2988 = vmatpush2.msra.mxu0 0.0
    %2989 = vmatprep.subr.mxu0 0.0
    %2990 = vmatpush2.msra.mxu0 0.0
    %2991 = vmatprep.subr.mxu0 0.0
    %2992 = vmatpush2.msra.mxu0 0.0
    %2993 = vmatprep.subr.mxu0 0.0
    %2994 = vmatpush2.msra.mxu0 0.0
    %2995 = vmatprep.subr.mxu0 0.0
    %2996 = vmatpush2.msra.mxu0 0.0
    %2997 = vmatprep.mubr.bf16.mxu0 0
    %2998 = vmatmul.mubr.bf16.gmra.mxu0 %v2845
    %v2999 = vpop.f32.mrf.mxu0
    %v3000 = vadd.f32 0.0, %v2999
    %v3001 = vpop.f32.mrf.mxu0
    %v3002 = vadd.f32 0.0, %v3001
    %v3003 = vpop.f32.mrf.mxu0
    %v3004 = vadd.f32 0.0, %v3003
    %v3005 = vpop.f32.mrf.mxu0
    %v3006 = vadd.f32 0.0, %v3005
    %3007 = vmatprep.mubr.bf16.mxu0 0
    %3008 = vmatmul.mubr.bf16.gmra.mxu0 %v2848
    %v3009 = vpop.f32.mrf.mxu0
    %v3010 = vadd.f32 0.0, %v3009
    %v3011 = vpop.f32.mrf.mxu0
    %v3012 = vadd.f32 0.0, %v3011
    %v3013 = vpop.f32.mrf.mxu0
    %v3014 = vadd.f32 0.0, %v3013
    %v3015 = vpop.f32.mrf.mxu0
    %v3016 = vadd.f32 0.0, %v3015
    %3017 = vmatprep.mubr.bf16.mxu0 0
    %3018 = vmatmul.mubr.bf16.gmra.mxu0 %v2851
    %v3019 = vpop.f32.mrf.mxu0
    %v3020 = vadd.f32 0.0, %v3019
    %v3021 = vpop.f32.mrf.mxu0
    %v3022 = vadd.f32 0.0, %v3021
    %v3023 = vpop.f32.mrf.mxu0
    %v3024 = vadd.f32 0.0, %v3023
    %v3025 = vpop.f32.mrf.mxu0
    %v3026 = vadd.f32 0.0, %v3025
    %3027 = vmatprep.mubr.bf16.mxu0 0
    %3028 = vmatmul.mubr.bf16.gmra.mxu0 %v2854
    %v3029 = vpop.f32.mrf.mxu0
    %v3030 = vadd.f32 0.0, %v3029
    %v3031 = vpop.f32.mrf.mxu0
    %v3032 = vadd.f32 0.0, %v3031
    %v3033 = vpop.f32.mrf.mxu0
    %v3034 = vadd.f32 0.0, %v3033
    %v3035 = vpop.f32.mrf.mxu0
    %v3036 = vadd.f32 0.0, %v3035
    %3037 = vmatprep.mubr.bf16.mxu0 0
    %3038 = vmatmul.mubr.bf16.gmra.mxu0 %v2857
    %v3039 = vpop.f32.mrf.mxu0
    %v3040 = vadd.f32 0.0, %v3039
    %v3041 = vpop.f32.mrf.mxu0
    %v3042 = vadd.f32 0.0, %v3041
    %v3043 = vpop.f32.mrf.mxu0
    %v3044 = vadd.f32 0.0, %v3043
    %v3045 = vpop.f32.mrf.mxu0
    %v3046 = vadd.f32 0.0, %v3045
    %3047 = vmatprep.mubr.bf16.mxu0 0
    %3048 = vmatmul.mubr.bf16.gmra.mxu0 %v2860
    %v3049 = vpop.f32.mrf.mxu0
    %v3050 = vadd.f32 0.0, %v3049
    %v3051 = vpop.f32.mrf.mxu0
    %v3052 = vadd.f32 0.0, %v3051
    %v3053 = vpop.f32.mrf.mxu0
    %v3054 = vadd.f32 0.0, %v3053
    %v3055 = vpop.f32.mrf.mxu0
    %v3056 = vadd.f32 0.0, %v3055
    %3057 = vmatprep.mubr.bf16.mxu0 0
    %3058 = vmatmul.mubr.bf16.gmra.mxu0 %v2863
    %v3059 = vpop.f32.mrf.mxu0
    %v3060 = vadd.f32 0.0, %v3059
    %v3061 = vpop.f32.mrf.mxu0
    %v3062 = vadd.f32 0.0, %v3061
    %v3063 = vpop.f32.mrf.mxu0
    %v3064 = vadd.f32 0.0, %v3063
    %v3065 = vpop.f32.mrf.mxu0
    %v3066 = vadd.f32 0.0, %v3065
    %3067 = vmatprep.mubr.bf16.mxu0 0
    %3068 = vmatmul.mubr.bf16.gmra.mxu0 %v2866
    %v3069 = vpop.f32.mrf.mxu0
    %v3070 = vadd.f32 0.0, %v3069
    %v3071 = vpop.f32.mrf.mxu0
    %v3072 = vadd.f32 0.0, %v3071
    %v3073 = vpop.f32.mrf.mxu0
    %v3074 = vadd.f32 0.0, %v3073
    %v3075 = vpop.f32.mrf.mxu0
    %v3076 = vadd.f32 0.0, %v3075
    %3077 = vmatprep.mubr.bf16.mxu0 0
    %3078 = vmatmul.mubr.bf16.gmra.mxu0 %v2869
    %v3079 = vpop.f32.mrf.mxu0
    %v3080 = vadd.f32 0.0, %v3079
    %v3081 = vpop.f32.mrf.mxu0
    %v3082 = vadd.f32 0.0, %v3081
    %v3083 = vpop.f32.mrf.mxu0
    %v3084 = vadd.f32 0.0, %v3083
    %v3085 = vpop.f32.mrf.mxu0
    %v3086 = vadd.f32 0.0, %v3085
    %3087 = vmatprep.mubr.bf16.mxu0 0
    %3088 = vmatmul.mubr.bf16.gmra.mxu0 %v2872
    %v3089 = vpop.f32.mrf.mxu0
    %v3090 = vadd.f32 0.0, %v3089
    %v3091 = vpop.f32.mrf.mxu0
    %v3092 = vadd.f32 0.0, %v3091
    %v3093 = vpop.f32.mrf.mxu0
    %v3094 = vadd.f32 0.0, %v3093
    %v3095 = vpop.f32.mrf.mxu0
    %v3096 = vadd.f32 0.0, %v3095
    %3097 = vmatprep.mubr.bf16.mxu0 0
    %3098 = vmatmul.mubr.bf16.gmra.mxu0 %v2875
    %v3099 = vpop.f32.mrf.mxu0
    %v3100 = vadd.f32 0.0, %v3099
    %v3101 = vpop.f32.mrf.mxu0
    %v3102 = vadd.f32 0.0, %v3101
    %v3103 = vpop.f32.mrf.mxu0
    %v3104 = vadd.f32 0.0, %v3103
    %v3105 = vpop.f32.mrf.mxu0
    %v3106 = vadd.f32 0.0, %v3105
    %3107 = vmatprep.mubr.bf16.mxu0 0
    %3108 = vmatmul.mubr.bf16.gmra.mxu0 %v2878
    %v3109 = vpop.f32.mrf.mxu0
    %v3110 = vadd.f32 0.0, %v3109
    %v3111 = vpop.f32.mrf.mxu0
    %v3112 = vadd.f32 0.0, %v3111
    %v3113 = vpop.f32.mrf.mxu0
    %v3114 = vadd.f32 0.0, %v3113
    %v3115 = vpop.f32.mrf.mxu0
    %v3116 = vadd.f32 0.0, %v3115
    %3117 = vmatprep.mubr.bf16.mxu0 0
    %3118 = vmatmul.mubr.bf16.gmra.mxu0 %v2881
    %v3119 = vpop.f32.mrf.mxu0
    %v3120 = vadd.f32 0.0, %v3119
    %v3121 = vpop.f32.mrf.mxu0
    %v3122 = vadd.f32 0.0, %v3121
    %v3123 = vpop.f32.mrf.mxu0
    %v3124 = vadd.f32 0.0, %v3123
    %v3125 = vpop.f32.mrf.mxu0
    %v3126 = vadd.f32 0.0, %v3125
    %3127 = vmatprep.mubr.bf16.mxu0 0
    %3128 = vmatmul.mubr.bf16.gmra.mxu0 %v2884
    %v3129 = vpop.f32.mrf.mxu0
    %v3130 = vadd.f32 0.0, %v3129
    %v3131 = vpop.f32.mrf.mxu0
    %v3132 = vadd.f32 0.0, %v3131
    %v3133 = vpop.f32.mrf.mxu0
    %v3134 = vadd.f32 0.0, %v3133
    %v3135 = vpop.f32.mrf.mxu0
    %v3136 = vadd.f32 0.0, %v3135
    %3137 = vmatprep.mubr.bf16.mxu0 0
    %3138 = vmatmul.mubr.bf16.gmra.mxu0 %v2887
    %v3139 = vpop.f32.mrf.mxu0
    %v3140 = vadd.f32 0.0, %v3139
    %v3141 = vpop.f32.mrf.mxu0
    %v3142 = vadd.f32 0.0, %v3141
    %v3143 = vpop.f32.mrf.mxu0
    %v3144 = vadd.f32 0.0, %v3143
    %v3145 = vpop.f32.mrf.mxu0
    %v3146 = vadd.f32 0.0, %v3145
    %3147 = vmatprep.mubr.bf16.mxu0 0
    %3148 = vmatmul.mubr.bf16.gmra.mxu0 %v2890
    %v3149 = vpop.f32.mrf.mxu0
    %v3150 = vadd.f32 0.0, %v3149
    %v3151 = vpop.f32.mrf.mxu0
    %v3152 = vadd.f32 0.0, %v3151
    %v3153 = vpop.f32.mrf.mxu0
    %v3154 = vadd.f32 0.0, %v3153
    %v3155 = vpop.f32.mrf.mxu0
    %v3156 = vadd.f32 0.0, %v3155
    %3157 = vmatprep.mubr.bf16.mxu0 0
    %3158 = vmatmul.mubr.bf16.gmra.mxu0 %v2893
    %v3159 = vpop.f32.mrf.mxu0
    %v3160 = vadd.f32 0.0, %v3159
    %v3161 = vpop.f32.mrf.mxu0
    %v3162 = vadd.f32 0.0, %v3161
    %v3163 = vpop.f32.mrf.mxu0
    %v3164 = vadd.f32 0.0, %v3163
    %v3165 = vpop.f32.mrf.mxu0
    %v3166 = vadd.f32 0.0, %v3165
    %3167 = vmatprep.mubr.bf16.mxu0 0
    %3168 = vmatmul.mubr.bf16.gmra.mxu0 %v2896
    %v3169 = vpop.f32.mrf.mxu0
    %v3170 = vadd.f32 0.0, %v3169
    %v3171 = vpop.f32.mrf.mxu0
    %v3172 = vadd.f32 0.0, %v3171
    %v3173 = vpop.f32.mrf.mxu0
    %v3174 = vadd.f32 0.0, %v3173
    %v3175 = vpop.f32.mrf.mxu0
    %v3176 = vadd.f32 0.0, %v3175
    %3177 = vmatprep.mubr.bf16.mxu0 0
    %3178 = vmatmul.mubr.bf16.gmra.mxu0 %v2899
    %v3179 = vpop.f32.mrf.mxu0
    %v3180 = vadd.f32 0.0, %v3179
    %v3181 = vpop.f32.mrf.mxu0
    %v3182 = vadd.f32 0.0, %v3181
    %v3183 = vpop.f32.mrf.mxu0
    %v3184 = vadd.f32 0.0, %v3183
    %v3185 = vpop.f32.mrf.mxu0
    %v3186 = vadd.f32 0.0, %v3185
    %3187 = vmatprep.mubr.bf16.mxu0 0
    %3188 = vmatmul.mubr.bf16.gmra.mxu0 %v2902
    %v3189 = vpop.f32.mrf.mxu0
    %v3190 = vadd.f32 0.0, %v3189
    %v3191 = vpop.f32.mrf.mxu0
    %v3192 = vadd.f32 0.0, %v3191
    %v3193 = vpop.f32.mrf.mxu0
    %v3194 = vadd.f32 0.0, %v3193
    %v3195 = vpop.f32.mrf.mxu0
    %v3196 = vadd.f32 0.0, %v3195
    %3197 = vmatprep.mubr.bf16.mxu0 0
    %3198 = vmatmul.mubr.bf16.gmra.mxu0 %v2905
    %v3199 = vpop.f32.mrf.mxu0
    %v3200 = vadd.f32 0.0, %v3199
    %v3201 = vpop.f32.mrf.mxu0
    %v3202 = vadd.f32 0.0, %v3201
    %v3203 = vpop.f32.mrf.mxu0
    %v3204 = vadd.f32 0.0, %v3203
    %v3205 = vpop.f32.mrf.mxu0
    %v3206 = vadd.f32 0.0, %v3205
    %3207 = vmatprep.mubr.bf16.mxu0 0
    %3208 = vmatmul.mubr.bf16.gmra.mxu0 %v2908
    %v3209 = vpop.f32.mrf.mxu0
    %v3210 = vadd.f32 0.0, %v3209
    %v3211 = vpop.f32.mrf.mxu0
    %v3212 = vadd.f32 0.0, %v3211
    %v3213 = vpop.f32.mrf.mxu0
    %v3214 = vadd.f32 0.0, %v3213
    %v3215 = vpop.f32.mrf.mxu0
    %v3216 = vadd.f32 0.0, %v3215
    %3217 = vmatprep.mubr.bf16.mxu0 0
    %3218 = vmatmul.mubr.bf16.gmra.mxu0 %v2911
    %v3219 = vpop.f32.mrf.mxu0
    %v3220 = vadd.f32 0.0, %v3219
    %v3221 = vpop.f32.mrf.mxu0
    %v3222 = vadd.f32 0.0, %v3221
    %v3223 = vpop.f32.mrf.mxu0
    %v3224 = vadd.f32 0.0, %v3223
    %v3225 = vpop.f32.mrf.mxu0
    %v3226 = vadd.f32 0.0, %v3225
    %3227 = vmatprep.mubr.bf16.mxu0 0
    %3228 = vmatmul.mubr.bf16.gmra.mxu0 %v2914
    %v3229 = vpop.f32.mrf.mxu0
    %v3230 = vadd.f32 0.0, %v3229
    %v3231 = vpop.f32.mrf.mxu0
    %v3232 = vadd.f32 0.0, %v3231
    %v3233 = vpop.f32.mrf.mxu0
    %v3234 = vadd.f32 0.0, %v3233
    %v3235 = vpop.f32.mrf.mxu0
    %v3236 = vadd.f32 0.0, %v3235
    %3237 = vmatprep.mubr.bf16.mxu0 0
    %3238 = vmatmul.mubr.bf16.gmra.mxu0 %v2917
    %v3239 = vpop.f32.mrf.mxu0
    %v3240 = vadd.f32 0.0, %v3239
    %v3241 = vpop.f32.mrf.mxu0
    %v3242 = vadd.f32 0.0, %v3241
    %v3243 = vpop.f32.mrf.mxu0
    %v3244 = vadd.f32 0.0, %v3243
    %v3245 = vpop.f32.mrf.mxu0
    %v3246 = vadd.f32 0.0, %v3245
    %3247 = vmatprep.mubr.bf16.mxu0 0
    %3248 = vmatmul.mubr.bf16.gmra.mxu0 %v2920
    %v3249 = vpop.f32.mrf.mxu0
    %v3250 = vadd.f32 0.0, %v3249
    %v3251 = vpop.f32.mrf.mxu0
    %v3252 = vadd.f32 0.0, %v3251
    %v3253 = vpop.f32.mrf.mxu0
    %v3254 = vadd.f32 0.0, %v3253
    %v3255 = vpop.f32.mrf.mxu0
    %v3256 = vadd.f32 0.0, %v3255
    %3257 = vmatprep.mubr.bf16.mxu0 0
    %3258 = vmatmul.mubr.bf16.gmra.mxu0 %v2923
    %v3259 = vpop.f32.mrf.mxu0
    %v3260 = vadd.f32 0.0, %v3259
    %v3261 = vpop.f32.mrf.mxu0
    %v3262 = vadd.f32 0.0, %v3261
    %v3263 = vpop.f32.mrf.mxu0
    %v3264 = vadd.f32 0.0, %v3263
    %v3265 = vpop.f32.mrf.mxu0
    %v3266 = vadd.f32 0.0, %v3265
    %3267 = vmatprep.mubr.bf16.mxu0 0
    %3268 = vmatmul.mubr.bf16.gmra.mxu0 %v2926
    %v3269 = vpop.f32.mrf.mxu0
    %v3270 = vadd.f32 0.0, %v3269
    %v3271 = vpop.f32.mrf.mxu0
    %v3272 = vadd.f32 0.0, %v3271
    %v3273 = vpop.f32.mrf.mxu0
    %v3274 = vadd.f32 0.0, %v3273
    %v3275 = vpop.f32.mrf.mxu0
    %v3276 = vadd.f32 0.0, %v3275
    %3277 = vdwg.mxu0
    %v3278 = vadd.f32 %v1734, %v3000
    %v3279 = vadd.f32 %v1736, %v3002
    %v3280 = vadd.f32 %v1738, %v3004
    %v3281 = vadd.f32 %v1740, %v3006
    %v3282 = vadd.f32 %v1744, %v3010
    %v3283 = vadd.f32 %v1746, %v3012
    %v3284 = vadd.f32 %v1748, %v3014
    %v3285 = vadd.f32 %v1750, %v3016
    %v3286 = vadd.f32 %v1754, %v3020
    %v3287 = vadd.f32 %v1756, %v3022
    %v3288 = vadd.f32 %v1758, %v3024
    %v3289 = vadd.f32 %v1760, %v3026
    %v3290 = vadd.f32 %v1764, %v3030
    %v3291 = vadd.f32 %v1766, %v3032
    %v3292 = vadd.f32 %v1867, %v3034
    %v3293 = vadd.f32 %v1869, %v3036
    %v3294 = vadd.f32 %v1871, %v3040
    %v3295 = vadd.f32 %v1873, %v3042
    %v3296 = vadd.f32 %v1877, %v3044
    %v3297 = vadd.f32 %v1879, %v3046
    %v3298 = vadd.f32 %v1881, %v3050
    %v3299 = vadd.f32 %v1883, %v3052
    %v3300 = vadd.f32 %v1887, %v3054
    %v3301 = vadd.f32 %v1889, %v3056
    %v3302 = vadd.f32 %v1891, %v3060
    %v3303 = vadd.f32 %v1893, %v3062
    %v3304 = vadd.f32 %v1897, %v3064
    %v3305 = vadd.f32 %v1899, %v3066
    %v3306 = vadd.f32 %v2000, %v3070
    %v3307 = vadd.f32 %v2002, %v3072
    %v3308 = vadd.f32 %v2004, %v3074
    %v3309 = vadd.f32 %v2006, %v3076
    %v3310 = vadd.f32 %v2010, %v3080
    %v3311 = vadd.f32 %v2012, %v3082
    %v3312 = vadd.f32 %v2014, %v3084
    %v3313 = vadd.f32 %v2016, %v3086
    %v3314 = vadd.f32 %v2020, %v3090
    %v3315 = vadd.f32 %v2022, %v3092
    %v3316 = vadd.f32 %v2024, %v3094
    %v3317 = vadd.f32 %v2026, %v3096
    %v3318 = vadd.f32 %v2030, %v3100
    %v3319 = vadd.f32 %v2032, %v3102
    %v3320 = vadd.f32 %v2133, %v3104
    %v3321 = vadd.f32 %v2135, %v3106
    %v3322 = vadd.f32 %v2137, %v3110
    %v3323 = vadd.f32 %v2139, %v3112
    %v3324 = vadd.f32 %v2143, %v3114
    %v3325 = vadd.f32 %v2145, %v3116
    %v3326 = vadd.f32 %v2147, %v3120
    %v3327 = vadd.f32 %v2149, %v3122
    %v3328 = vadd.f32 %v2153, %v3124
    %v3329 = vadd.f32 %v2155, %v3126
    %v3330 = vadd.f32 %v2157, %v3130
    %v3331 = vadd.f32 %v2159, %v3132
    %v3332 = vadd.f32 %v2163, %v3134
    %v3333 = vadd.f32 %v2165, %v3136
    %v3334 = vadd.f32 %v2266, %v3140
    %v3335 = vadd.f32 %v2268, %v3142
    %v3336 = vadd.f32 %v2270, %v3144
    %v3337 = vadd.f32 %v2272, %v3146
    %v3338 = vadd.f32 %v2276, %v3150
    %v3339 = vadd.f32 %v2278, %v3152
    %v3340 = vadd.f32 %v2280, %v3154
    %v3341 = vadd.f32 %v2282, %v3156
    %v3342 = vadd.f32 %v2286, %v3160
    %v3343 = vadd.f32 %v2288, %v3162
    %v3344 = vadd.f32 %v2290, %v3164
    %v3345 = vadd.f32 %v2292, %v3166
    %v3346 = vadd.f32 %v2296, %v3170
    %v3347 = vadd.f32 %v2298, %v3172
    %v3348 = vadd.f32 %v2399, %v3174
    %v3349 = vadd.f32 %v2401, %v3176
    %v3350 = vadd.f32 %v2403, %v3180
    %v3351 = vadd.f32 %v2405, %v3182
    %v3352 = vadd.f32 %v2409, %v3184
    %v3353 = vadd.f32 %v2411, %v3186
    %v3354 = vadd.f32 %v2413, %v3190
    %v3355 = vadd.f32 %v2415, %v3192
    %v3356 = vadd.f32 %v2419, %v3194
    %v3357 = vadd.f32 %v2421, %v3196
    %v3358 = vadd.f32 %v2423, %v3200
    %v3359 = vadd.f32 %v2425, %v3202
    %v3360 = vadd.f32 %v2429, %v3204
    %v3361 = vadd.f32 %v2431, %v3206
    %v3362 = vadd.f32 %v2532, %v3210
    %v3363 = vadd.f32 %v2534, %v3212
    %v3364 = vadd.f32 %v2536, %v3214
    %v3365 = vadd.f32 %v2538, %v3216
    %v3366 = vadd.f32 %v2542, %v3220
    %v3367 = vadd.f32 %v2544, %v3222
    %v3368 = vadd.f32 %v2546, %v3224
    %v3369 = vadd.f32 %v2548, %v3226
    %v3370 = vadd.f32 %v2552, %v3230
    %v3371 = vadd.f32 %v2554, %v3232
    %v3372 = vadd.f32 %v2556, %v3234
    %v3373 = vadd.f32 %v2558, %v3236
    %v3374 = vadd.f32 %v2562, %v3240
    %v3375 = vadd.f32 %v2564, %v3242
    %v3376 = vadd.f32 %v2665, %v3244
    %v3377 = vadd.f32 %v2667, %v3246
    %v3378 = vadd.f32 %v2669, %v3250
    %v3379 = vadd.f32 %v2671, %v3252
    %v3380 = vadd.f32 %v2675, %v3254
    %v3381 = vadd.f32 %v2677, %v3256
    %v3382 = vadd.f32 %v2679, %v3260
    %v3383 = vadd.f32 %v2681, %v3262
    %v3384 = vadd.f32 %v2685, %v3264
    %v3385 = vadd.f32 %v2687, %v3266
    %v3386 = vadd.f32 %v2689, %v3270
    %v3387 = vadd.f32 %v2691, %v3272
    %v3388 = vadd.f32 %v2695, %v3274
    %v3389 = vadd.f32 %v2697, %v3276
    %v3390 = vlaneseq
    %v3391 = vshrl.u32 %v3390, 7
    %v3392 = vsub.s32 0, %v3391
    %v3393 = vrot.slane %v126, %v3392
    %v3394 = vlaneseq
    %v3395 = vshrl.u32 %v3394, 7
    %v3396 = vsub.s32 0, %v3395
    %v3397 = vrot.slane %v127, %v3396
    %v3398 = vadd.f32 %v3278, %v3393
    %v3399 = vadd.f32 %v3279, %v3397
    %v3400 = vadd.f32 %v3280, %v3393
    %v3401 = vadd.f32 %v3281, %v3397
    %v3402 = vadd.f32 %v3282, %v3393
    %v3403 = vadd.f32 %v3283, %v3397
    %v3404 = vadd.f32 %v3284, %v3393
    %v3405 = vadd.f32 %v3285, %v3397
    %v3406 = vadd.f32 %v3286, %v3393
    %v3407 = vadd.f32 %v3287, %v3397
    %v3408 = vadd.f32 %v3288, %v3393
    %v3409 = vadd.f32 %v3289, %v3397
    %v3410 = vadd.f32 %v3290, %v3393
    %v3411 = vadd.f32 %v3291, %v3397
    %v3412 = vadd.f32 %v3292, %v3393
    %v3413 = vadd.f32 %v3293, %v3397
    %v3414 = vadd.f32 %v3294, %v3393
    %v3415 = vadd.f32 %v3295, %v3397
    %v3416 = vadd.f32 %v3296, %v3393
    %v3417 = vadd.f32 %v3297, %v3397
    %v3418 = vadd.f32 %v3298, %v3393
    %v3419 = vadd.f32 %v3299, %v3397
    %v3420 = vadd.f32 %v3300, %v3393
    %v3421 = vadd.f32 %v3301, %v3397
    %v3422 = vadd.f32 %v3302, %v3393
    %v3423 = vadd.f32 %v3303, %v3397
    %v3424 = vadd.f32 %v3304, %v3393
    %v3425 = vadd.f32 %v3305, %v3397
    %v3426 = vadd.f32 %v3306, %v3393
    %v3427 = vadd.f32 %v3307, %v3397
    %v3428 = vadd.f32 %v3308, %v3393
    %v3429 = vadd.f32 %v3309, %v3397
    %v3430 = vadd.f32 %v3310, %v3393
    %v3431 = vadd.f32 %v3311, %v3397
    %v3432 = vadd.f32 %v3312, %v3393
    %v3433 = vadd.f32 %v3313, %v3397
    %v3434 = vadd.f32 %v3314, %v3393
    %v3435 = vadd.f32 %v3315, %v3397
    %v3436 = vadd.f32 %v3316, %v3393
    %v3437 = vadd.f32 %v3317, %v3397
    %v3438 = vadd.f32 %v3318, %v3393
    %v3439 = vadd.f32 %v3319, %v3397
    %v3440 = vadd.f32 %v3320, %v3393
    %v3441 = vadd.f32 %v3321, %v3397
    %v3442 = vadd.f32 %v3322, %v3393
    %v3443 = vadd.f32 %v3323, %v3397
    %v3444 = vadd.f32 %v3324, %v3393
    %v3445 = vadd.f32 %v3325, %v3397
    %v3446 = vadd.f32 %v3326, %v3393
    %v3447 = vadd.f32 %v3327, %v3397
    %v3448 = vadd.f32 %v3328, %v3393
    %v3449 = vadd.f32 %v3329, %v3397
    %v3450 = vadd.f32 %v3330, %v3393
    %v3451 = vadd.f32 %v3331, %v3397
    %v3452 = vadd.f32 %v3332, %v3393
    %v3453 = vadd.f32 %v3333, %v3397
    %v3454 = vadd.f32 %v3334, %v3393
    %v3455 = vadd.f32 %v3335, %v3397
    %v3456 = vadd.f32 %v3336, %v3393
    %v3457 = vadd.f32 %v3337, %v3397
    %v3458 = vadd.f32 %v3338, %v3393
    %v3459 = vadd.f32 %v3339, %v3397
    %v3460 = vadd.f32 %v3340, %v3393
    %v3461 = vadd.f32 %v3341, %v3397
    %v3462 = vadd.f32 %v3342, %v3393
    %v3463 = vadd.f32 %v3343, %v3397
    %v3464 = vadd.f32 %v3344, %v3393
    %v3465 = vadd.f32 %v3345, %v3397
    %v3466 = vadd.f32 %v3346, %v3393
    %v3467 = vadd.f32 %v3347, %v3397
    %v3468 = vadd.f32 %v3348, %v3393
    %v3469 = vadd.f32 %v3349, %v3397
    %v3470 = vadd.f32 %v3350, %v3393
    %v3471 = vadd.f32 %v3351, %v3397
    %v3472 = vadd.f32 %v3352, %v3393
    %v3473 = vadd.f32 %v3353, %v3397
    %v3474 = vadd.f32 %v3354, %v3393
    %v3475 = vadd.f32 %v3355, %v3397
    %v3476 = vadd.f32 %v3356, %v3393
    %v3477 = vadd.f32 %v3357, %v3397
    %v3478 = vadd.f32 %v3358, %v3393
    %v3479 = vadd.f32 %v3359, %v3397
    %v3480 = vadd.f32 %v3360, %v3393
    %v3481 = vadd.f32 %v3361, %v3397
    %v3482 = vadd.f32 %v3362, %v3393
    %v3483 = vadd.f32 %v3363, %v3397
    %v3484 = vadd.f32 %v3364, %v3393
    %v3485 = vadd.f32 %v3365, %v3397
    %v3486 = vadd.f32 %v3366, %v3393
    %v3487 = vadd.f32 %v3367, %v3397
    %v3488 = vadd.f32 %v3368, %v3393
    %v3489 = vadd.f32 %v3369, %v3397
    %v3490 = vadd.f32 %v3370, %v3393
    %v3491 = vadd.f32 %v3371, %v3397
    %v3492 = vadd.f32 %v3372, %v3393
    %v3493 = vadd.f32 %v3373, %v3397
    %v3494 = vadd.f32 %v3374, %v3393
    %v3495 = vadd.f32 %v3375, %v3397
    %v3496 = vadd.f32 %v3376, %v3393
    %v3497 = vadd.f32 %v3377, %v3397
    %v3498 = vadd.f32 %v3378, %v3393
    %v3499 = vadd.f32 %v3379, %v3397
    %v3500 = vadd.f32 %v3380, %v3393
    %v3501 = vadd.f32 %v3381, %v3397
    %v3502 = vadd.f32 %v3382, %v3393
    %v3503 = vadd.f32 %v3383, %v3397
    %v3504 = vadd.f32 %v3384, %v3393
    %v3505 = vadd.f32 %v3385, %v3397
    %v3506 = vadd.f32 %v3386, %v3393
    %v3507 = vadd.f32 %v3387, %v3397
    %v3508 = vadd.f32 %v3388, %v3393
    %v3509 = vadd.f32 %v3389, %v3397
    %v3510 = vmax.f32 %v3398, 0.0
    %v3511 = vmax.f32 %v3399, 0.0
    %v3512 = vmax.f32 %v3400, 0.0
    %v3513 = vmax.f32 %v3401, 0.0
    %v3514 = vmax.f32 %v3402, 0.0
    %v3515 = vmax.f32 %v3403, 0.0
    %v3516 = vmax.f32 %v3404, 0.0
    %v3517 = vmax.f32 %v3405, 0.0
    %v3518 = vmax.f32 %v3406, 0.0
    %v3519 = vmax.f32 %v3407, 0.0
    %v3520 = vmax.f32 %v3408, 0.0
    %v3521 = vmax.f32 %v3409, 0.0
    %v3522 = vmax.f32 %v3410, 0.0
    %v3523 = vmax.f32 %v3411, 0.0
    %v3524 = vmax.f32 %v3412, 0.0
    %v3525 = vmax.f32 %v3413, 0.0
    %v3526 = vmax.f32 %v3414, 0.0
    %v3527 = vmax.f32 %v3415, 0.0
    %v3528 = vmax.f32 %v3416, 0.0
    %v3529 = vmax.f32 %v3417, 0.0
    %v3530 = vmax.f32 %v3418, 0.0
    %v3531 = vmax.f32 %v3419, 0.0
    %v3532 = vmax.f32 %v3420, 0.0
    %v3533 = vmax.f32 %v3421, 0.0
    %v3534 = vmax.f32 %v3422, 0.0
    %v3535 = vmax.f32 %v3423, 0.0
    %v3536 = vmax.f32 %v3424, 0.0
    %v3537 = vmax.f32 %v3425, 0.0
    %v3538 = vmax.f32 %v3426, 0.0
    %v3539 = vmax.f32 %v3427, 0.0
    %v3540 = vmax.f32 %v3428, 0.0
    %v3541 = vmax.f32 %v3429, 0.0
    %v3542 = vmax.f32 %v3430, 0.0
    %v3543 = vmax.f32 %v3431, 0.0
    %v3544 = vmax.f32 %v3432, 0.0
    %v3545 = vmax.f32 %v3433, 0.0
    %v3546 = vmax.f32 %v3434, 0.0
    %v3547 = vmax.f32 %v3435, 0.0
    %v3548 = vmax.f32 %v3436, 0.0
    %v3549 = vmax.f32 %v3437, 0.0
    %v3550 = vmax.f32 %v3438, 0.0
    %v3551 = vmax.f32 %v3439, 0.0
    %v3552 = vmax.f32 %v3440, 0.0
    %v3553 = vmax.f32 %v3441, 0.0
    %v3554 = vmax.f32 %v3442, 0.0
    %v3555 = vmax.f32 %v3443, 0.0
    %v3556 = vmax.f32 %v3444, 0.0
    %v3557 = vmax.f32 %v3445, 0.0
    %v3558 = vmax.f32 %v3446, 0.0
    %v3559 = vmax.f32 %v3447, 0.0
    %v3560 = vmax.f32 %v3448, 0.0
    %v3561 = vmax.f32 %v3449, 0.0
    %v3562 = vmax.f32 %v3450, 0.0
    %v3563 = vmax.f32 %v3451, 0.0
    %v3564 = vmax.f32 %v3452, 0.0
    %v3565 = vmax.f32 %v3453, 0.0
    %v3566 = vmax.f32 %v3454, 0.0
    %v3567 = vmax.f32 %v3455, 0.0
    %v3568 = vmax.f32 %v3456, 0.0
    %v3569 = vmax.f32 %v3457, 0.0
    %v3570 = vmax.f32 %v3458, 0.0
    %v3571 = vmax.f32 %v3459, 0.0
    %v3572 = vmax.f32 %v3460, 0.0
    %v3573 = vmax.f32 %v3461, 0.0
    %v3574 = vmax.f32 %v3462, 0.0
    %v3575 = vmax.f32 %v3463, 0.0
    %v3576 = vmax.f32 %v3464, 0.0
    %v3577 = vmax.f32 %v3465, 0.0
    %v3578 = vmax.f32 %v3466, 0.0
    %v3579 = vmax.f32 %v3467, 0.0
    %v3580 = vmax.f32 %v3468, 0.0
    %v3581 = vmax.f32 %v3469, 0.0
    %v3582 = vmax.f32 %v3470, 0.0
    %v3583 = vmax.f32 %v3471, 0.0
    %v3584 = vmax.f32 %v3472, 0.0
    %v3585 = vmax.f32 %v3473, 0.0
    %v3586 = vmax.f32 %v3474, 0.0
    %v3587 = vmax.f32 %v3475, 0.0
    %v3588 = vmax.f32 %v3476, 0.0
    %v3589 = vmax.f32 %v3477, 0.0
    %v3590 = vmax.f32 %v3478, 0.0
    %v3591 = vmax.f32 %v3479, 0.0
    %v3592 = vmax.f32 %v3480, 0.0
    %v3593 = vmax.f32 %v3481, 0.0
    %v3594 = vmax.f32 %v3482, 0.0
    %v3595 = vmax.f32 %v3483, 0.0
    %v3596 = vmax.f32 %v3484, 0.0
    %v3597 = vmax.f32 %v3485, 0.0
    %v3598 = vmax.f32 %v3486, 0.0
    %v3599 = vmax.f32 %v3487, 0.0
    %v3600 = vmax.f32 %v3488, 0.0
    %v3601 = vmax.f32 %v3489, 0.0
    %v3602 = vmax.f32 %v3490, 0.0
    %v3603 = vmax.f32 %v3491, 0.0
    %v3604 = vmax.f32 %v3492, 0.0
    %v3605 = vmax.f32 %v3493, 0.0
    %v3606 = vmax.f32 %v3494, 0.0
    %v3607 = vmax.f32 %v3495, 0.0
    %v3608 = vmax.f32 %v3496, 0.0
    %v3609 = vmax.f32 %v3497, 0.0
    %v3610 = vmax.f32 %v3498, 0.0
    %v3611 = vmax.f32 %v3499, 0.0
    %v3612 = vmax.f32 %v3500, 0.0
    %v3613 = vmax.f32 %v3501, 0.0
    %v3614 = vmax.f32 %v3502, 0.0
    %v3615 = vmax.f32 %v3503, 0.0
    %v3616 = vmax.f32 %v3504, 0.0
    %v3617 = vmax.f32 %v3505, 0.0
    %v3618 = vmax.f32 %v3506, 0.0
    %v3619 = vmax.f32 %v3507, 0.0
    %v3620 = vmax.f32 %v3508, 0.0
    %v3621 = vmax.f32 %v3509, 0.0
    %v3622 = vpack.c.bf16 %v3512, %v3510
    %v3623 = vpack.c.bf16 %v3513, %v3511
    %v3624 = vpack.c.bf16 %v3516, %v3514
    %v3625 = vpack.c.bf16 %v3517, %v3515
    %v3626 = vpack.c.bf16 %v3520, %v3518
    %v3627 = vpack.c.bf16 %v3521, %v3519
    %v3628 = vpack.c.bf16 %v3524, %v3522
    %v3629 = vpack.c.bf16 %v3525, %v3523
    %v3630 = vpack.c.bf16 %v3528, %v3526
    %v3631 = vpack.c.bf16 %v3529, %v3527
    %v3632 = vpack.c.bf16 %v3532, %v3530
    %v3633 = vpack.c.bf16 %v3533, %v3531
    %v3634 = vpack.c.bf16 %v3536, %v3534
    %v3635 = vpack.c.bf16 %v3537, %v3535
    %v3636 = vpack.c.bf16 %v3540, %v3538
    %v3637 = vpack.c.bf16 %v3541, %v3539
    %v3638 = vpack.c.bf16 %v3544, %v3542
    %v3639 = vpack.c.bf16 %v3545, %v3543
    %v3640 = vpack.c.bf16 %v3548, %v3546
    %v3641 = vpack.c.bf16 %v3549, %v3547
    %v3642 = vpack.c.bf16 %v3552, %v3550
    %v3643 = vpack.c.bf16 %v3553, %v3551
    %v3644 = vpack.c.bf16 %v3556, %v3554
    %v3645 = vpack.c.bf16 %v3557, %v3555
    %v3646 = vpack.c.bf16 %v3560, %v3558
    %v3647 = vpack.c.bf16 %v3561, %v3559
    %v3648 = vpack.c.bf16 %v3564, %v3562
    %v3649 = vpack.c.bf16 %v3565, %v3563
    %v3650 = vpack.c.bf16 %v3568, %v3566
    %v3651 = vpack.c.bf16 %v3569, %v3567
    %v3652 = vpack.c.bf16 %v3572, %v3570
    %v3653 = vpack.c.bf16 %v3573, %v3571
    %v3654 = vpack.c.bf16 %v3576, %v3574
    %v3655 = vpack.c.bf16 %v3577, %v3575
    %v3656 = vpack.c.bf16 %v3580, %v3578
    %v3657 = vpack.c.bf16 %v3581, %v3579
    %v3658 = vpack.c.bf16 %v3584, %v3582
    %v3659 = vpack.c.bf16 %v3585, %v3583
    %v3660 = vpack.c.bf16 %v3588, %v3586
    %v3661 = vpack.c.bf16 %v3589, %v3587
    %v3662 = vpack.c.bf16 %v3592, %v3590
    %v3663 = vpack.c.bf16 %v3593, %v3591
    %v3664 = vpack.c.bf16 %v3596, %v3594
    %v3665 = vpack.c.bf16 %v3597, %v3595
    %v3666 = vpack.c.bf16 %v3600, %v3598
    %v3667 = vpack.c.bf16 %v3601, %v3599
    %v3668 = vpack.c.bf16 %v3604, %v3602
    %v3669 = vpack.c.bf16 %v3605, %v3603
    %v3670 = vpack.c.bf16 %v3608, %v3606
    %v3671 = vpack.c.bf16 %v3609, %v3607
    %v3672 = vpack.c.bf16 %v3612, %v3610
    %v3673 = vpack.c.bf16 %v3613, %v3611
    %v3674 = vpack.c.bf16 %v3616, %v3614
    %v3675 = vpack.c.bf16 %v3617, %v3615
    %v3676 = vpack.c.bf16 %v3620, %v3618
    %v3677 = vpack.c.bf16 %v3621, %v3619
    %v3678 = vld [vmem:[%s9] sm:$0xff]
    %v3679 = vld [vmem:[%s9 + $0x8] sm:$0xff]
    %v3680 = vld [vmem:[%s9 + $0x10] sm:$0xff]
    %v3681 = vld [vmem:[%s9 + $0x18] sm:$0xff]
    %v3682 = vld [vmem:[%s9 + $0x20] sm:$0xff]
    %v3683 = vld [vmem:[%s9 + $0x28] sm:$0xff]
    %v3684 = vld [vmem:[%s9 + $0x30] sm:$0xff]
    %v3685 = vld [vmem:[%s9 + $0x38] sm:$0xff]
    %v3686 = vld [vmem:[%s9 + $0x40] sm:$0xff]
    %v3687 = vld [vmem:[%s9 + $0x48] sm:$0xff]
    %v3688 = vld [vmem:[%s9 + $0x50] sm:$0xff]
    %v3689 = vld [vmem:[%s9 + $0x58] sm:$0xff]
    %v3690 = vld [vmem:[%s9 + $0x60] sm:$0xff]
    %v3691 = vld [vmem:[%s9 + $0x68] sm:$0xff]
    %v3692 = vld [vmem:[%s9 + $0x70] sm:$0xff]
    %v3693 = vld [vmem:[%s9 + $0x78] sm:$0xff]
    %v3694 = vld [vmem:[%s9 + $0x80] sm:$0xff]
    %v3695 = vld [vmem:[%s9 + $0x88] sm:$0xff]
    %v3696 = vld [vmem:[%s9 + $0x90] sm:$0x77]
    %v3697 = vlaneseq
    %v3698 = vshrl.u32 %v3697, 7
    %v3699 = vsub.s32 1, %v3698
    %v3700 = vrot.slane %v126, %v3699
    %v3701 = vlaneseq
    %v3702 = vshrl.u32 %v3701, 7
    %v3703 = vsub.s32 1, %v3702
    %v3704 = vrot.slane %v127, %v3703
    %v3724 = vunpack.c.l.b16 %v3678
    %v3725 = vunpack.c.h.b16 %v3678
    %v3726 = vunpack.c.l.b16 %v3679
    %v3727 = vunpack.c.h.b16 %v3679
    %v3728 = vunpack.c.l.b16 %v3680
    %v3729 = vunpack.c.h.b16 %v3680
    %v3730 = vunpack.c.l.b16 %v3681
    %v3731 = vunpack.c.h.b16 %v3681
    %v3732 = vunpack.c.l.b16 %v3682
    %v3733 = vunpack.c.h.b16 %v3682
    %v3734 = vunpack.c.l.b16 %v3683
    %v3735 = vunpack.c.h.b16 %v3683
    %v3736 = vunpack.c.l.b16 %v3684
    %v3737 = vunpack.c.h.b16 %v3684
    %v3738 = vunpack.c.l.b16 %v3685
    %v3739 = vunpack.c.h.b16 %v3685
    %v3740 = vunpack.c.l.b16 %v3686
    %v3741 = vunpack.c.h.b16 %v3686
    %v3742 = vunpack.c.l.b16 %v3687
    %v3743 = vunpack.c.h.b16 %v3687
    %v3744 = vunpack.c.l.b16 %v3688
    %v3745 = vunpack.c.h.b16 %v3688
    %v3746 = vunpack.c.l.b16 %v3689
    %v3747 = vunpack.c.h.b16 %v3689
    %v3748 = vunpack.c.l.b16 %v3690
    %v3749 = vunpack.c.h.b16 %v3690
    %v3750 = vunpack.c.l.b16 %v3691
    %v3751 = vunpack.c.h.b16 %v3691
    %v3752 = vunpack.c.l.b16 %v3692
    %v3753 = vunpack.c.h.b16 %v3692
    %v3754 = vunpack.c.l.b16 %v3693
    %v3755 = vunpack.c.h.b16 %v3693
    %v3756 = vunpack.c.l.b16 %v3694
    %v3757 = vunpack.c.h.b16 %v3694
    %v3758 = vunpack.c.l.b16 %v3695
    %v3759 = vunpack.c.h.b16 %v3695
    %v3760 = vunpack.c.l.b16 %v3696
    %v3761 = vunpack.c.h.b16 %v3696
    %v3762 = vpack.c.b16 %v3726, %v3724
    %v3763 = vpack.c.b16 %v3727, %v3725
    %v3764 = vpack.c.b16 %v3730, %v3728
    %v3765 = vpack.c.b16 %v3731, %v3729
    %v3766 = vpack.c.b16 %v3734, %v3732
    %v3767 = vpack.c.b16 %v3735, %v3733
    %v3768 = vpack.c.b16 %v3738, %v3736
    %v3769 = vpack.c.b16 %v3739, %v3737
    %v3770 = vpack.c.b16 %v3742, %v3740
    %v3771 = vpack.c.b16 %v3743, %v3741
    %v3772 = vpack.c.b16 %v3746, %v3744
    %v3773 = vpack.c.b16 %v3747, %v3745
    %v3774 = vpack.c.b16 %v3750, %v3748
    %v3775 = vpack.c.b16 %v3751, %v3749
    %v3776 = vpack.c.b16 %v3754, %v3752
    %v3777 = vpack.c.b16 %v3755, %v3753
    %v3778 = vpack.c.b16 %v3758, %v3756
    %v3779 = vpack.c.b16 %v3759, %v3757
    %v3780 = vpack.c.b16 %v3760, %v3760
    %v3781 = vpack.c.b16 %v3761, %v3761
    %vm3800 = vcmask 179200
    %v3802 = vsel %vm3800, %v3623, 0
    %v3805 = vsel %vm3800, %v3625, 0
    %v3808 = vsel %vm3800, %v3627, 0
    %v3811 = vsel %vm3800, %v3629, 0
    %v3814 = vsel %vm3800, %v3631, 0
    %v3817 = vsel %vm3800, %v3633, 0
    %v3820 = vsel %vm3800, %v3635, 0
    %v3823 = vsel %vm3800, %v3637, 0
    %v3826 = vsel %vm3800, %v3639, 0
    %v3829 = vsel %vm3800, %v3641, 0
    %v3832 = vsel %vm3800, %v3643, 0
    %v3835 = vsel %vm3800, %v3645, 0
    %v3838 = vsel %vm3800, %v3647, 0
    %v3841 = vsel %vm3800, %v3649, 0
    %v3844 = vsel %vm3800, %v3651, 0
    %v3847 = vsel %vm3800, %v3653, 0
    %v3850 = vsel %vm3800, %v3655, 0
    %v3853 = vsel %vm3800, %v3657, 0
    %v3856 = vsel %vm3800, %v3659, 0
    %v3859 = vsel %vm3800, %v3661, 0
    %v3862 = vsel %vm3800, %v3663, 0
    %v3865 = vsel %vm3800, %v3665, 0
    %v3868 = vsel %vm3800, %v3667, 0
    %v3871 = vsel %vm3800, %v3669, 0
    %v3874 = vsel %vm3800, %v3671, 0
    %v3877 = vsel %vm3800, %v3673, 0
    %v3880 = vsel %vm3800, %v3675, 0
    %v3883 = vsel %vm3800, %v3677, 0
    %v3886 = vsel %vm2928, %v3780, 0
    %v3889 = vsel %vm2928, %v3781, 0
    %3891 = vmatprep.subr.bf16.mxu0 %v3777
    %3892 = vmatpush1.bf16.msra.mxu0 %v3776
    %3893 = vmatprep.subr.bf16.mxu0 %v3775
    %3894 = vmatpush1.bf16.msra.mxu0 %v3774
    %3895 = vmatprep.subr.bf16.mxu0 %v3773
    %3896 = vmatpush1.bf16.msra.mxu0 %v3772
    %3897 = vmatprep.subr.bf16.mxu0 %v3771
    %3898 = vmatpush1.bf16.msra.mxu0 %v3770
    %3899 = vmatprep.subr.bf16.mxu0 %v3769
    %3900 = vmatpush1.bf16.msra.mxu0 %v3768
    %3901 = vmatprep.subr.bf16.mxu0 %v3767
    %3902 = vmatpush1.bf16.msra.mxu0 %v3766
    %3903 = vmatprep.subr.bf16.mxu0 %v3765
    %3904 = vmatpush1.bf16.msra.mxu0 %v3764
    %3905 = vmatprep.subr.bf16.mxu0 %v3763
    %3906 = vmatpush1.bf16.msra.mxu0 %v3762
    %3907 = vmatprep.subr.bf16.mxu0 0
    %3908 = vmatpush2.bf16.msra.mxu0 0
    %3909 = vmatprep.subr.bf16.mxu0 0
    %3910 = vmatpush2.bf16.msra.mxu0 0
    %3911 = vmatprep.subr.bf16.mxu0 0
    %3912 = vmatpush2.bf16.msra.mxu0 0
    %3913 = vmatprep.subr.bf16.mxu0 0
    %3914 = vmatpush2.bf16.msra.mxu0 0
    %3915 = vmatprep.subr.bf16.mxu0 0
    %3916 = vmatpush2.bf16.msra.mxu0 0
    %3917 = vmatprep.subr.bf16.mxu0 0
    %3918 = vmatpush2.bf16.msra.mxu0 0
    %3919 = vmatprep.subr.bf16.mxu0 %v3889
    %3920 = vmatpush2.bf16.msra.mxu0 %v3886
    %3921 = vmatprep.subr.bf16.mxu0 %v3779
    %3922 = vmatpush2.bf16.msra.mxu0 %v3778
    %3923 = vmatprep.mubr.bf16.mxu0 %v3802
    %3924 = vmatmul.mubr.bf16.gmra.mxu0 %v3622
    %v3925 = vpop.f32.mrf.mxu0
    %v3926 = vadd.f32 %v3700, %v3925
    %v3927 = vpop.f32.mrf.mxu0
    %v3928 = vadd.f32 %v3704, %v3927
    %v3929 = vpop.f32.mrf.mxu0
    %v3930 = vadd.f32 %v3700, %v3929
    %v3931 = vpop.f32.mrf.mxu0
    %v3932 = vadd.f32 %v3704, %v3931
    %3933 = vmatprep.mubr.bf16.mxu0 %v3805
    %3934 = vmatmul.mubr.bf16.gmra.mxu0 %v3624
    %v3935 = vpop.f32.mrf.mxu0
    %v3936 = vadd.f32 %v3700, %v3935
    %v3937 = vpop.f32.mrf.mxu0
    %v3938 = vadd.f32 %v3704, %v3937
    %v3939 = vpop.f32.mrf.mxu0
    %v3940 = vadd.f32 %v3700, %v3939
    %v3941 = vpop.f32.mrf.mxu0
    %v3942 = vadd.f32 %v3704, %v3941
    %3943 = vmatprep.mubr.bf16.mxu0 %v3808
    %3944 = vmatmul.mubr.bf16.gmra.mxu0 %v3626
    %v3945 = vpop.f32.mrf.mxu0
    %v3946 = vadd.f32 %v3700, %v3945
    %v3947 = vpop.f32.mrf.mxu0
    %v3948 = vadd.f32 %v3704, %v3947
    %v3949 = vpop.f32.mrf.mxu0
    %v3950 = vadd.f32 %v3700, %v3949
    %v3951 = vpop.f32.mrf.mxu0
    %v3952 = vadd.f32 %v3704, %v3951
    %3953 = vmatprep.mubr.bf16.mxu0 %v3811
    %3954 = vmatmul.mubr.bf16.gmra.mxu0 %v3628
    %v3955 = vpop.f32.mrf.mxu0
    %v3956 = vadd.f32 %v3700, %v3955
    %v3957 = vpop.f32.mrf.mxu0
    %v3958 = vadd.f32 %v3704, %v3957
    %v3959 = vpop.f32.mrf.mxu0
    %v3960 = vadd.f32 %v3700, %v3959
    %v3961 = vpop.f32.mrf.mxu0
    %v3962 = vadd.f32 %v3704, %v3961
    %3963 = vmatprep.mubr.bf16.mxu0 %v3814
    %3964 = vmatmul.mubr.bf16.gmra.mxu0 %v3630
    %v3965 = vpop.f32.mrf.mxu0
    %v3966 = vadd.f32 %v3700, %v3965
    %v3967 = vpop.f32.mrf.mxu0
    %v3968 = vadd.f32 %v3704, %v3967
    %v3969 = vpop.f32.mrf.mxu0
    %v3970 = vadd.f32 %v3700, %v3969
    %v3971 = vpop.f32.mrf.mxu0
    %v3972 = vadd.f32 %v3704, %v3971
    %3973 = vmatprep.mubr.bf16.mxu0 %v3817
    %3974 = vmatmul.mubr.bf16.gmra.mxu0 %v3632
    %v3975 = vpop.f32.mrf.mxu0
    %v3976 = vadd.f32 %v3700, %v3975
    %v3977 = vpop.f32.mrf.mxu0
    %v3978 = vadd.f32 %v3704, %v3977
    %v3979 = vpop.f32.mrf.mxu0
    %v3980 = vadd.f32 %v3700, %v3979
    %v3981 = vpop.f32.mrf.mxu0
    %v3982 = vadd.f32 %v3704, %v3981
    %3983 = vmatprep.mubr.bf16.mxu0 %v3820
    %3984 = vmatmul.mubr.bf16.gmra.mxu0 %v3634
    %v3985 = vpop.f32.mrf.mxu0
    %v3986 = vadd.f32 %v3700, %v3985
    %v3987 = vpop.f32.mrf.mxu0
    %v3988 = vadd.f32 %v3704, %v3987
    %v3989 = vpop.f32.mrf.mxu0
    %v3990 = vadd.f32 %v3700, %v3989
    %v3991 = vpop.f32.mrf.mxu0
    %v3992 = vadd.f32 %v3704, %v3991
    %3993 = vmatprep.mubr.bf16.mxu0 %v3823
    %3994 = vmatmul.mubr.bf16.gmra.mxu0 %v3636
    %v3995 = vpop.f32.mrf.mxu0
    %v3996 = vadd.f32 %v3700, %v3995
    %v3997 = vpop.f32.mrf.mxu0
    %v3998 = vadd.f32 %v3704, %v3997
    %v3999 = vpop.f32.mrf.mxu0
    %v4000 = vadd.f32 %v3700, %v3999
    %v4001 = vpop.f32.mrf.mxu0
    %v4002 = vadd.f32 %v3704, %v4001
    %4003 = vmatprep.mubr.bf16.mxu0 %v3826
    %4004 = vmatmul.mubr.bf16.gmra.mxu0 %v3638
    %v4005 = vpop.f32.mrf.mxu0
    %v4006 = vadd.f32 %v3700, %v4005
    %v4007 = vpop.f32.mrf.mxu0
    %v4008 = vadd.f32 %v3704, %v4007
    %v4009 = vpop.f32.mrf.mxu0
    %v4010 = vadd.f32 %v3700, %v4009
    %v4011 = vpop.f32.mrf.mxu0
    %v4012 = vadd.f32 %v3704, %v4011
    %4013 = vmatprep.mubr.bf16.mxu0 %v3829
    %4014 = vmatmul.mubr.bf16.gmra.mxu0 %v3640
    %v4015 = vpop.f32.mrf.mxu0
    %v4016 = vadd.f32 %v3700, %v4015
    %v4017 = vpop.f32.mrf.mxu0
    %v4018 = vadd.f32 %v3704, %v4017
    %v4019 = vpop.f32.mrf.mxu0
    %v4020 = vadd.f32 %v3700, %v4019
    %v4021 = vpop.f32.mrf.mxu0
    %v4022 = vadd.f32 %v3704, %v4021
    %4023 = vmatprep.mubr.bf16.mxu0 %v3832
    %4024 = vmatmul.mubr.bf16.gmra.mxu0 %v3642
    %v4025 = vpop.f32.mrf.mxu0
    %v4026 = vadd.f32 %v3700, %v4025
    %v4027 = vpop.f32.mrf.mxu0
    %v4028 = vadd.f32 %v3704, %v4027
    %v4029 = vpop.f32.mrf.mxu0
    %v4030 = vadd.f32 %v3700, %v4029
    %v4031 = vpop.f32.mrf.mxu0
    %v4032 = vadd.f32 %v3704, %v4031
    %4033 = vmatprep.mubr.bf16.mxu0 %v3835
    %4034 = vmatmul.mubr.bf16.gmra.mxu0 %v3644
    %v4035 = vpop.f32.mrf.mxu0
    %v4036 = vadd.f32 %v3700, %v4035
    %v4037 = vpop.f32.mrf.mxu0
    %v4038 = vadd.f32 %v3704, %v4037
    %v4039 = vpop.f32.mrf.mxu0
    %v4040 = vadd.f32 %v3700, %v4039
    %v4041 = vpop.f32.mrf.mxu0
    %v4042 = vadd.f32 %v3704, %v4041
    %4043 = vmatprep.mubr.bf16.mxu0 %v3838
    %4044 = vmatmul.mubr.bf16.gmra.mxu0 %v3646
    %v4045 = vpop.f32.mrf.mxu0
    %v4046 = vadd.f32 %v3700, %v4045
    %v4047 = vpop.f32.mrf.mxu0
    %v4048 = vadd.f32 %v3704, %v4047
    %v4049 = vpop.f32.mrf.mxu0
    %v4050 = vadd.f32 %v3700, %v4049
    %v4051 = vpop.f32.mrf.mxu0
    %v4052 = vadd.f32 %v3704, %v4051
    %4053 = vmatprep.mubr.bf16.mxu0 %v3841
    %4054 = vmatmul.mubr.bf16.gmra.mxu0 %v3648
    %v4055 = vpop.f32.mrf.mxu0
    %v4056 = vadd.f32 %v3700, %v4055
    %v4057 = vpop.f32.mrf.mxu0
    %v4058 = vadd.f32 %v3704, %v4057
    %v4059 = vpop.f32.mrf.mxu0
    %v4060 = vadd.f32 %v3700, %v4059
    %v4061 = vpop.f32.mrf.mxu0
    %v4062 = vadd.f32 %v3704, %v4061
    %4063 = vmatprep.mubr.bf16.mxu0 %v3844
    %4064 = vmatmul.mubr.bf16.gmra.mxu0 %v3650
    %v4065 = vpop.f32.mrf.mxu0
    %v4066 = vadd.f32 %v3700, %v4065
    %v4067 = vpop.f32.mrf.mxu0
    %v4068 = vadd.f32 %v3704, %v4067
    %v4069 = vpop.f32.mrf.mxu0
    %v4070 = vadd.f32 %v3700, %v4069
    %v4071 = vpop.f32.mrf.mxu0
    %v4072 = vadd.f32 %v3704, %v4071
    %4073 = vmatprep.mubr.bf16.mxu0 %v3847
    %4074 = vmatmul.mubr.bf16.gmra.mxu0 %v3652
    %v4075 = vpop.f32.mrf.mxu0
    %v4076 = vadd.f32 %v3700, %v4075
    %v4077 = vpop.f32.mrf.mxu0
    %v4078 = vadd.f32 %v3704, %v4077
    %v4079 = vpop.f32.mrf.mxu0
    %v4080 = vadd.f32 %v3700, %v4079
    %v4081 = vpop.f32.mrf.mxu0
    %v4082 = vadd.f32 %v3704, %v4081
    %4083 = vmatprep.mubr.bf16.mxu0 %v3850
    %4084 = vmatmul.mubr.bf16.gmra.mxu0 %v3654
    %v4085 = vpop.f32.mrf.mxu0
    %v4086 = vadd.f32 %v3700, %v4085
    %v4087 = vpop.f32.mrf.mxu0
    %v4088 = vadd.f32 %v3704, %v4087
    %v4089 = vpop.f32.mrf.mxu0
    %v4090 = vadd.f32 %v3700, %v4089
    %v4091 = vpop.f32.mrf.mxu0
    %v4092 = vadd.f32 %v3704, %v4091
    %4093 = vmatprep.mubr.bf16.mxu0 %v3853
    %4094 = vmatmul.mubr.bf16.gmra.mxu0 %v3656
    %v4095 = vpop.f32.mrf.mxu0
    %v4096 = vadd.f32 %v3700, %v4095
    %v4097 = vpop.f32.mrf.mxu0
    %v4098 = vadd.f32 %v3704, %v4097
    %v4099 = vpop.f32.mrf.mxu0
    %v4100 = vadd.f32 %v3700, %v4099
    %v4101 = vpop.f32.mrf.mxu0
    %v4102 = vadd.f32 %v3704, %v4101
    %4103 = vmatprep.mubr.bf16.mxu0 %v3856
    %4104 = vmatmul.mubr.bf16.gmra.mxu0 %v3658
    %v4105 = vpop.f32.mrf.mxu0
    %v4106 = vadd.f32 %v3700, %v4105
    %v4107 = vpop.f32.mrf.mxu0
    %v4108 = vadd.f32 %v3704, %v4107
    %v4109 = vpop.f32.mrf.mxu0
    %v4110 = vadd.f32 %v3700, %v4109
    %v4111 = vpop.f32.mrf.mxu0
    %v4112 = vadd.f32 %v3704, %v4111
    %4113 = vmatprep.mubr.bf16.mxu0 %v3859
    %4114 = vmatmul.mubr.bf16.gmra.mxu0 %v3660
    %v4115 = vpop.f32.mrf.mxu0
    %v4116 = vadd.f32 %v3700, %v4115
    %v4117 = vpop.f32.mrf.mxu0
    %v4118 = vadd.f32 %v3704, %v4117
    %v4119 = vpop.f32.mrf.mxu0
    %v4120 = vadd.f32 %v3700, %v4119
    %v4121 = vpop.f32.mrf.mxu0
    %v4122 = vadd.f32 %v3704, %v4121
    %4123 = vmatprep.mubr.bf16.mxu0 %v3862
    %4124 = vmatmul.mubr.bf16.gmra.mxu0 %v3662
    %v4125 = vpop.f32.mrf.mxu0
    %v4126 = vadd.f32 %v3700, %v4125
    %v4127 = vpop.f32.mrf.mxu0
    %v4128 = vadd.f32 %v3704, %v4127
    %v4129 = vpop.f32.mrf.mxu0
    %v4130 = vadd.f32 %v3700, %v4129
    %v4131 = vpop.f32.mrf.mxu0
    %v4132 = vadd.f32 %v3704, %v4131
    %4133 = vmatprep.mubr.bf16.mxu0 %v3865
    %4134 = vmatmul.mubr.bf16.gmra.mxu0 %v3664
    %v4135 = vpop.f32.mrf.mxu0
    %v4136 = vadd.f32 %v3700, %v4135
    %v4137 = vpop.f32.mrf.mxu0
    %v4138 = vadd.f32 %v3704, %v4137
    %v4139 = vpop.f32.mrf.mxu0
    %v4140 = vadd.f32 %v3700, %v4139
    %v4141 = vpop.f32.mrf.mxu0
    %v4142 = vadd.f32 %v3704, %v4141
    %4143 = vmatprep.mubr.bf16.mxu0 %v3868
    %4144 = vmatmul.mubr.bf16.gmra.mxu0 %v3666
    %v4145 = vpop.f32.mrf.mxu0
    %v4146 = vadd.f32 %v3700, %v4145
    %v4147 = vpop.f32.mrf.mxu0
    %v4148 = vadd.f32 %v3704, %v4147
    %v4149 = vpop.f32.mrf.mxu0
    %v4150 = vadd.f32 %v3700, %v4149
    %v4151 = vpop.f32.mrf.mxu0
    %v4152 = vadd.f32 %v3704, %v4151
    %4153 = vmatprep.mubr.bf16.mxu0 %v3871
    %4154 = vmatmul.mubr.bf16.gmra.mxu0 %v3668
    %v4155 = vpop.f32.mrf.mxu0
    %v4156 = vadd.f32 %v3700, %v4155
    %v4157 = vpop.f32.mrf.mxu0
    %v4158 = vadd.f32 %v3704, %v4157
    %v4159 = vpop.f32.mrf.mxu0
    %v4160 = vadd.f32 %v3700, %v4159
    %v4161 = vpop.f32.mrf.mxu0
    %v4162 = vadd.f32 %v3704, %v4161
    %4163 = vmatprep.mubr.bf16.mxu0 %v3874
    %4164 = vmatmul.mubr.bf16.gmra.mxu0 %v3670
    %v4165 = vpop.f32.mrf.mxu0
    %v4166 = vadd.f32 %v3700, %v4165
    %v4167 = vpop.f32.mrf.mxu0
    %v4168 = vadd.f32 %v3704, %v4167
    %v4169 = vpop.f32.mrf.mxu0
    %v4170 = vadd.f32 %v3700, %v4169
    %v4171 = vpop.f32.mrf.mxu0
    %v4172 = vadd.f32 %v3704, %v4171
    %4173 = vmatprep.mubr.bf16.mxu0 %v3877
    %4174 = vmatmul.mubr.bf16.gmra.mxu0 %v3672
    %v4175 = vpop.f32.mrf.mxu0
    %v4176 = vadd.f32 %v3700, %v4175
    %v4177 = vpop.f32.mrf.mxu0
    %v4178 = vadd.f32 %v3704, %v4177
    %v4179 = vpop.f32.mrf.mxu0
    %v4180 = vadd.f32 %v3700, %v4179
    %v4181 = vpop.f32.mrf.mxu0
    %v4182 = vadd.f32 %v3704, %v4181
    %4183 = vmatprep.mubr.bf16.mxu0 %v3880
    %4184 = vmatmul.mubr.bf16.gmra.mxu0 %v3674
    %v4185 = vpop.f32.mrf.mxu0
    %v4186 = vadd.f32 %v3700, %v4185
    %v4187 = vpop.f32.mrf.mxu0
    %v4188 = vadd.f32 %v3704, %v4187
    %v4189 = vpop.f32.mrf.mxu0
    %v4190 = vadd.f32 %v3700, %v4189
    %v4191 = vpop.f32.mrf.mxu0
    %v4192 = vadd.f32 %v3704, %v4191
    %4193 = vmatprep.mubr.bf16.mxu0 %v3883
    %4194 = vmatmul.mubr.bf16.gmra.mxu0 %v3676
    %v4195 = vpop.f32.mrf.mxu0
    %v4196 = vadd.f32 %v3700, %v4195
    %v4197 = vpop.f32.mrf.mxu0
    %v4198 = vadd.f32 %v3704, %v4197
    %v4199 = vpop.f32.mrf.mxu0
    %v4200 = vadd.f32 %v3700, %v4199
    %v4201 = vpop.f32.mrf.mxu0
    %v4202 = vadd.f32 %v3704, %v4201
    %4203 = vdwg.mxu0
    %v4204 = vmax.f32 %v3926, 0.0
    %v4205 = vmax.f32 %v3928, 0.0
    %v4206 = vmax.f32 %v3930, 0.0
    %v4207 = vmax.f32 %v3932, 0.0
    %v4208 = vmax.f32 %v3936, 0.0
    %v4209 = vmax.f32 %v3938, 0.0
    %v4210 = vmax.f32 %v3940, 0.0
    %v4211 = vmax.f32 %v3942, 0.0
    %v4212 = vmax.f32 %v3946, 0.0
    %v4213 = vmax.f32 %v3948, 0.0
    %v4214 = vmax.f32 %v3950, 0.0
    %v4215 = vmax.f32 %v3952, 0.0
    %v4216 = vmax.f32 %v3956, 0.0
    %v4217 = vmax.f32 %v3958, 0.0
    %v4218 = vmax.f32 %v3960, 0.0
    %v4219 = vmax.f32 %v3962, 0.0
    %v4220 = vmax.f32 %v3966, 0.0
    %v4221 = vmax.f32 %v3968, 0.0
    %v4222 = vmax.f32 %v3970, 0.0
    %v4223 = vmax.f32 %v3972, 0.0
    %v4224 = vmax.f32 %v3976, 0.0
    %v4225 = vmax.f32 %v3978, 0.0
    %v4226 = vmax.f32 %v3980, 0.0
    %v4227 = vmax.f32 %v3982, 0.0
    %v4228 = vmax.f32 %v3986, 0.0
    %v4229 = vmax.f32 %v3988, 0.0
    %v4230 = vmax.f32 %v3990, 0.0
    %v4231 = vmax.f32 %v3992, 0.0
    %v4232 = vmax.f32 %v3996, 0.0
    %v4233 = vmax.f32 %v3998, 0.0
    %v4234 = vmax.f32 %v4000, 0.0
    %v4235 = vmax.f32 %v4002, 0.0
    %v4236 = vmax.f32 %v4006, 0.0
    %v4237 = vmax.f32 %v4008, 0.0
    %v4238 = vmax.f32 %v4010, 0.0
    %v4239 = vmax.f32 %v4012, 0.0
    %v4240 = vmax.f32 %v4016, 0.0
    %v4241 = vmax.f32 %v4018, 0.0
    %v4242 = vmax.f32 %v4020, 0.0
    %v4243 = vmax.f32 %v4022, 0.0
    %v4244 = vmax.f32 %v4026, 0.0
    %v4245 = vmax.f32 %v4028, 0.0
    %v4246 = vmax.f32 %v4030, 0.0
    %v4247 = vmax.f32 %v4032, 0.0
    %v4248 = vmax.f32 %v4036, 0.0
    %v4249 = vmax.f32 %v4038, 0.0
    %v4250 = vmax.f32 %v4040, 0.0
    %v4251 = vmax.f32 %v4042, 0.0
    %v4252 = vmax.f32 %v4046, 0.0
    %v4253 = vmax.f32 %v4048, 0.0
    %v4254 = vmax.f32 %v4050, 0.0
    %v4255 = vmax.f32 %v4052, 0.0
    %v4256 = vmax.f32 %v4056, 0.0
    %v4257 = vmax.f32 %v4058, 0.0
    %v4258 = vmax.f32 %v4060, 0.0
    %v4259 = vmax.f32 %v4062, 0.0
    %v4260 = vmax.f32 %v4066, 0.0
    %v4261 = vmax.f32 %v4068, 0.0
    %v4262 = vmax.f32 %v4070, 0.0
    %v4263 = vmax.f32 %v4072, 0.0
    %v4264 = vmax.f32 %v4076, 0.0
    %v4265 = vmax.f32 %v4078, 0.0
    %v4266 = vmax.f32 %v4080, 0.0
    %v4267 = vmax.f32 %v4082, 0.0
    %v4268 = vmax.f32 %v4086, 0.0
    %v4269 = vmax.f32 %v4088, 0.0
    %v4270 = vmax.f32 %v4090, 0.0
    %v4271 = vmax.f32 %v4092, 0.0
    %v4272 = vmax.f32 %v4096, 0.0
    %v4273 = vmax.f32 %v4098, 0.0
    %v4274 = vmax.f32 %v4100, 0.0
    %v4275 = vmax.f32 %v4102, 0.0
    %v4276 = vmax.f32 %v4106, 0.0
    %v4277 = vmax.f32 %v4108, 0.0
    %v4278 = vmax.f32 %v4110, 0.0
    %v4279 = vmax.f32 %v4112, 0.0
    %v4280 = vmax.f32 %v4116, 0.0
    %v4281 = vmax.f32 %v4118, 0.0
    %v4282 = vmax.f32 %v4120, 0.0
    %v4283 = vmax.f32 %v4122, 0.0
    %v4284 = vmax.f32 %v4126, 0.0
    %v4285 = vmax.f32 %v4128, 0.0
    %v4286 = vmax.f32 %v4130, 0.0
    %v4287 = vmax.f32 %v4132, 0.0
    %v4288 = vmax.f32 %v4136, 0.0
    %v4289 = vmax.f32 %v4138, 0.0
    %v4290 = vmax.f32 %v4140, 0.0
    %v4291 = vmax.f32 %v4142, 0.0
    %v4292 = vmax.f32 %v4146, 0.0
    %v4293 = vmax.f32 %v4148, 0.0
    %v4294 = vmax.f32 %v4150, 0.0
    %v4295 = vmax.f32 %v4152, 0.0
    %v4296 = vmax.f32 %v4156, 0.0
    %v4297 = vmax.f32 %v4158, 0.0
    %v4298 = vmax.f32 %v4160, 0.0
    %v4299 = vmax.f32 %v4162, 0.0
    %v4300 = vmax.f32 %v4166, 0.0
    %v4301 = vmax.f32 %v4168, 0.0
    %v4302 = vmax.f32 %v4170, 0.0
    %v4303 = vmax.f32 %v4172, 0.0
    %v4304 = vmax.f32 %v4176, 0.0
    %v4305 = vmax.f32 %v4178, 0.0
    %v4306 = vmax.f32 %v4180, 0.0
    %v4307 = vmax.f32 %v4182, 0.0
    %v4308 = vmax.f32 %v4186, 0.0
    %v4309 = vmax.f32 %v4188, 0.0
    %v4310 = vmax.f32 %v4190, 0.0
    %v4311 = vmax.f32 %v4192, 0.0
    %v4312 = vmax.f32 %v4196, 0.0
    %v4313 = vmax.f32 %v4198, 0.0
    %v4314 = vmax.f32 %v4200, 0.0
    %v4315 = vmax.f32 %v4202, 0.0
    %v4316 = vpack.c.bf16 %v4206, %v4204
    %v4317 = vpack.c.bf16 %v4207, %v4205
    %v4318 = vpack.c.bf16 %v4210, %v4208
    %v4319 = vpack.c.bf16 %v4211, %v4209
    %v4320 = vpack.c.bf16 %v4214, %v4212
    %v4321 = vpack.c.bf16 %v4215, %v4213
    %v4322 = vpack.c.bf16 %v4218, %v4216
    %v4323 = vpack.c.bf16 %v4219, %v4217
    %v4324 = vpack.c.bf16 %v4222, %v4220
    %v4325 = vpack.c.bf16 %v4223, %v4221
    %v4326 = vpack.c.bf16 %v4226, %v4224
    %v4327 = vpack.c.bf16 %v4227, %v4225
    %v4328 = vpack.c.bf16 %v4230, %v4228
    %v4329 = vpack.c.bf16 %v4231, %v4229
    %v4330 = vpack.c.bf16 %v4234, %v4232
    %v4331 = vpack.c.bf16 %v4235, %v4233
    %v4332 = vpack.c.bf16 %v4238, %v4236
    %v4333 = vpack.c.bf16 %v4239, %v4237
    %v4334 = vpack.c.bf16 %v4242, %v4240
    %v4335 = vpack.c.bf16 %v4243, %v4241
    %v4336 = vpack.c.bf16 %v4246, %v4244
    %v4337 = vpack.c.bf16 %v4247, %v4245
    %v4338 = vpack.c.bf16 %v4250, %v4248
    %v4339 = vpack.c.bf16 %v4251, %v4249
    %v4340 = vpack.c.bf16 %v4254, %v4252
    %v4341 = vpack.c.bf16 %v4255, %v4253
    %v4342 = vpack.c.bf16 %v4258, %v4256
    %v4343 = vpack.c.bf16 %v4259, %v4257
    %v4344 = vpack.c.bf16 %v4262, %v4260
    %v4345 = vpack.c.bf16 %v4263, %v4261
    %v4346 = vpack.c.bf16 %v4266, %v4264
    %v4347 = vpack.c.bf16 %v4267, %v4265
    %v4348 = vpack.c.bf16 %v4270, %v4268
    %v4349 = vpack.c.bf16 %v4271, %v4269
    %v4350 = vpack.c.bf16 %v4274, %v4272
    %v4351 = vpack.c.bf16 %v4275, %v4273
    %v4352 = vpack.c.bf16 %v4278, %v4276
    %v4353 = vpack.c.bf16 %v4279, %v4277
    %v4354 = vpack.c.bf16 %v4282, %v4280
    %v4355 = vpack.c.bf16 %v4283, %v4281
    %v4356 = vpack.c.bf16 %v4286, %v4284
    %v4357 = vpack.c.bf16 %v4287, %v4285
    %v4358 = vpack.c.bf16 %v4290, %v4288
    %v4359 = vpack.c.bf16 %v4291, %v4289
    %v4360 = vpack.c.bf16 %v4294, %v4292
    %v4361 = vpack.c.bf16 %v4295, %v4293
    %v4362 = vpack.c.bf16 %v4298, %v4296
    %v4363 = vpack.c.bf16 %v4299, %v4297
    %v4364 = vpack.c.bf16 %v4302, %v4300
    %v4365 = vpack.c.bf16 %v4303, %v4301
    %v4366 = vpack.c.bf16 %v4306, %v4304
    %v4367 = vpack.c.bf16 %v4307, %v4305
    %v4368 = vpack.c.bf16 %v4310, %v4308
    %v4369 = vpack.c.bf16 %v4311, %v4309
    %v4370 = vpack.c.bf16 %v4314, %v4312
    %v4371 = vpack.c.bf16 %v4315, %v4313
    %v4372 = vld [vmem:[%s10] sm:$0xff]
    %v4373 = vld [vmem:[%s10 + $0x8] sm:$0xff]
    %v4374 = vld [vmem:[%s10 + $0x10] sm:$0xff]
    %v4375 = vld [vmem:[%s10 + $0x18] sm:$0xff]
    %v4376 = vld [vmem:[%s10 + $0x20] sm:$0xff]
    %v4377 = vld [vmem:[%s10 + $0x28] sm:$0xff]
    %v4378 = vld [vmem:[%s10 + $0x30] sm:$0xff]
    %v4379 = vld [vmem:[%s10 + $0x38] sm:$0xff]
    %v4380 = vld [vmem:[%s10 + $0x40] sm:$0xff]
    %v4381 = vld [vmem:[%s10 + $0x48] sm:$0xff]
    %v4382 = vld [vmem:[%s10 + $0x50] sm:$0xff]
    %v4383 = vld [vmem:[%s10 + $0x58] sm:$0xff]
    %v4384 = vld [vmem:[%s10 + $0x60] sm:$0xff]
    %v4385 = vld [vmem:[%s10 + $0x68] sm:$0xff]
    %v4386 = vld [vmem:[%s10 + $0x70] sm:$0xff]
    %v4387 = vld [vmem:[%s10 + $0x78] sm:$0xff]
    %v4388 = vld [vmem:[%s10 + $0x80] sm:$0xff]
    %v4389 = vld [vmem:[%s10 + $0x88] sm:$0xff]
    %v4390 = vld [vmem:[%s10 + $0x90] sm:$0x77]
    %v4391 = vlaneseq
    %v4392 = vshrl.u32 %v4391, 7
    %v4393 = vsub.s32 2, %v4392
    %v4394 = vrot.slane %v126, %v4393
    %v4395 = vlaneseq
    %v4396 = vshrl.u32 %v4395, 7
    %v4397 = vsub.s32 2, %v4396
    %v4398 = vrot.slane %v127, %v4397
    %v4418 = vunpack.c.l.b16 %v4372
    %v4419 = vunpack.c.h.b16 %v4372
    %v4420 = vunpack.c.l.b16 %v4373
    %v4421 = vunpack.c.h.b16 %v4373
    %v4422 = vunpack.c.l.b16 %v4374
    %v4423 = vunpack.c.h.b16 %v4374
    %v4424 = vunpack.c.l.b16 %v4375
    %v4425 = vunpack.c.h.b16 %v4375
    %v4426 = vunpack.c.l.b16 %v4376
    %v4427 = vunpack.c.h.b16 %v4376
    %v4428 = vunpack.c.l.b16 %v4377
    %v4429 = vunpack.c.h.b16 %v4377
    %v4430 = vunpack.c.l.b16 %v4378
    %v4431 = vunpack.c.h.b16 %v4378
    %v4432 = vunpack.c.l.b16 %v4379
    %v4433 = vunpack.c.h.b16 %v4379
    %v4434 = vunpack.c.l.b16 %v4380
    %v4435 = vunpack.c.h.b16 %v4380
    %v4436 = vunpack.c.l.b16 %v4381
    %v4437 = vunpack.c.h.b16 %v4381
    %v4438 = vunpack.c.l.b16 %v4382
    %v4439 = vunpack.c.h.b16 %v4382
    %v4440 = vunpack.c.l.b16 %v4383
    %v4441 = vunpack.c.h.b16 %v4383
    %v4442 = vunpack.c.l.b16 %v4384
    %v4443 = vunpack.c.h.b16 %v4384
    %v4444 = vunpack.c.l.b16 %v4385
    %v4445 = vunpack.c.h.b16 %v4385
    %v4446 = vunpack.c.l.b16 %v4386
    %v4447 = vunpack.c.h.b16 %v4386
    %v4448 = vunpack.c.l.b16 %v4387
    %v4449 = vunpack.c.h.b16 %v4387
    %v4450 = vunpack.c.l.b16 %v4388
    %v4451 = vunpack.c.h.b16 %v4388
    %v4452 = vunpack.c.l.b16 %v4389
    %v4453 = vunpack.c.h.b16 %v4389
    %v4454 = vunpack.c.l.b16 %v4390
    %v4455 = vunpack.c.h.b16 %v4390
    %v4456 = vpack.c.b16 %v4420, %v4418
    %v4457 = vpack.c.b16 %v4421, %v4419
    %v4458 = vpack.c.b16 %v4424, %v4422
    %v4459 = vpack.c.b16 %v4425, %v4423
    %v4460 = vpack.c.b16 %v4428, %v4426
    %v4461 = vpack.c.b16 %v4429, %v4427
    %v4462 = vpack.c.b16 %v4432, %v4430
    %v4463 = vpack.c.b16 %v4433, %v4431
    %v4464 = vpack.c.b16 %v4436, %v4434
    %v4465 = vpack.c.b16 %v4437, %v4435
    %v4466 = vpack.c.b16 %v4440, %v4438
    %v4467 = vpack.c.b16 %v4441, %v4439
    %v4468 = vpack.c.b16 %v4444, %v4442
    %v4469 = vpack.c.b16 %v4445, %v4443
    %v4470 = vpack.c.b16 %v4448, %v4446
    %v4471 = vpack.c.b16 %v4449, %v4447
    %v4472 = vpack.c.b16 %v4452, %v4450
    %v4473 = vpack.c.b16 %v4453, %v4451
    %v4474 = vpack.c.b16 %v4454, %v4454
    %v4475 = vpack.c.b16 %v4455, %v4455
    %v4495 = vsel %vm3800, %v4317, 0
    %v4498 = vsel %vm3800, %v4319, 0
    %v4501 = vsel %vm3800, %v4321, 0
    %v4504 = vsel %vm3800, %v4323, 0
    %v4507 = vsel %vm3800, %v4325, 0
    %v4510 = vsel %vm3800, %v4327, 0
    %v4513 = vsel %vm3800, %v4329, 0
    %v4516 = vsel %vm3800, %v4331, 0
    %v4519 = vsel %vm3800, %v4333, 0
    %v4522 = vsel %vm3800, %v4335, 0
    %v4525 = vsel %vm3800, %v4337, 0
    %v4528 = vsel %vm3800, %v4339, 0
    %v4531 = vsel %vm3800, %v4341, 0
    %v4534 = vsel %vm3800, %v4343, 0
    %v4537 = vsel %vm3800, %v4345, 0
    %v4540 = vsel %vm3800, %v4347, 0
    %v4543 = vsel %vm3800, %v4349, 0
    %v4546 = vsel %vm3800, %v4351, 0
    %v4549 = vsel %vm3800, %v4353, 0
    %v4552 = vsel %vm3800, %v4355, 0
    %v4555 = vsel %vm3800, %v4357, 0
    %v4558 = vsel %vm3800, %v4359, 0
    %v4561 = vsel %vm3800, %v4361, 0
    %v4564 = vsel %vm3800, %v4363, 0
    %v4567 = vsel %vm3800, %v4365, 0
    %v4570 = vsel %vm3800, %v4367, 0
    %v4573 = vsel %vm3800, %v4369, 0
    %v4576 = vsel %vm3800, %v4371, 0
    %v4579 = vsel %vm2928, %v4474, 0
    %v4582 = vsel %vm2928, %v4475, 0
    %4584 = vmatprep.subr.bf16.mxu0 %v4471
    %4585 = vmatpush1.bf16.msra.mxu0 %v4470
    %4586 = vmatprep.subr.bf16.mxu0 %v4469
    %4587 = vmatpush1.bf16.msra.mxu0 %v4468
    %4588 = vmatprep.subr.bf16.mxu0 %v4467
    %4589 = vmatpush1.bf16.msra.mxu0 %v4466
    %4590 = vmatprep.subr.bf16.mxu0 %v4465
    %4591 = vmatpush1.bf16.msra.mxu0 %v4464
    %4592 = vmatprep.subr.bf16.mxu0 %v4463
    %4593 = vmatpush1.bf16.msra.mxu0 %v4462
    %4594 = vmatprep.subr.bf16.mxu0 %v4461
    %4595 = vmatpush1.bf16.msra.mxu0 %v4460
    %4596 = vmatprep.subr.bf16.mxu0 %v4459
    %4597 = vmatpush1.bf16.msra.mxu0 %v4458
    %4598 = vmatprep.subr.bf16.mxu0 %v4457
    %4599 = vmatpush1.bf16.msra.mxu0 %v4456
    %4600 = vmatprep.subr.bf16.mxu0 0
    %4601 = vmatpush2.bf16.msra.mxu0 0
    %4602 = vmatprep.subr.bf16.mxu0 0
    %4603 = vmatpush2.bf16.msra.mxu0 0
    %4604 = vmatprep.subr.bf16.mxu0 0
    %4605 = vmatpush2.bf16.msra.mxu0 0
    %4606 = vmatprep.subr.bf16.mxu0 0
    %4607 = vmatpush2.bf16.msra.mxu0 0
    %4608 = vmatprep.subr.bf16.mxu0 0
    %4609 = vmatpush2.bf16.msra.mxu0 0
    %4610 = vmatprep.subr.bf16.mxu0 0
    %4611 = vmatpush2.bf16.msra.mxu0 0
    %4612 = vmatprep.subr.bf16.mxu0 %v4582
    %4613 = vmatpush2.bf16.msra.mxu0 %v4579
    %4614 = vmatprep.subr.bf16.mxu0 %v4473
    %4615 = vmatpush2.bf16.msra.mxu0 %v4472
    %4616 = vmatprep.mubr.bf16.mxu0 %v4495
    %4617 = vmatmul.mubr.bf16.gmra.mxu0 %v4316
    %v4618 = vpop.f32.mrf.mxu0
    %v4619 = vadd.f32 %v4394, %v4618
    %v4620 = vpop.f32.mrf.mxu0
    %v4621 = vadd.f32 %v4398, %v4620
    %v4622 = vpop.f32.mrf.mxu0
    %v4623 = vadd.f32 %v4394, %v4622
    %v4624 = vpop.f32.mrf.mxu0
    %v4625 = vadd.f32 %v4398, %v4624
    %4626 = vmatprep.mubr.bf16.mxu0 %v4498
    %4627 = vmatmul.mubr.bf16.gmra.mxu0 %v4318
    %v4628 = vpop.f32.mrf.mxu0
    %v4629 = vadd.f32 %v4394, %v4628
    %v4630 = vpop.f32.mrf.mxu0
    %v4631 = vadd.f32 %v4398, %v4630
    %v4632 = vpop.f32.mrf.mxu0
    %v4633 = vadd.f32 %v4394, %v4632
    %v4634 = vpop.f32.mrf.mxu0
    %v4635 = vadd.f32 %v4398, %v4634
    %4636 = vmatprep.mubr.bf16.mxu0 %v4501
    %4637 = vmatmul.mubr.bf16.gmra.mxu0 %v4320
    %v4638 = vpop.f32.mrf.mxu0
    %v4639 = vadd.f32 %v4394, %v4638
    %v4640 = vpop.f32.mrf.mxu0
    %v4641 = vadd.f32 %v4398, %v4640
    %v4642 = vpop.f32.mrf.mxu0
    %v4643 = vadd.f32 %v4394, %v4642
    %v4644 = vpop.f32.mrf.mxu0
    %v4645 = vadd.f32 %v4398, %v4644
    %4646 = vmatprep.mubr.bf16.mxu0 %v4504
    %4647 = vmatmul.mubr.bf16.gmra.mxu0 %v4322
    %v4648 = vpop.f32.mrf.mxu0
    %v4649 = vadd.f32 %v4394, %v4648
    %v4650 = vpop.f32.mrf.mxu0
    %v4651 = vadd.f32 %v4398, %v4650
    %v4652 = vpop.f32.mrf.mxu0
    %v4653 = vadd.f32 %v4394, %v4652
    %v4654 = vpop.f32.mrf.mxu0
    %v4655 = vadd.f32 %v4398, %v4654
    %4656 = vmatprep.mubr.bf16.mxu0 %v4507
    %4657 = vmatmul.mubr.bf16.gmra.mxu0 %v4324
    %v4658 = vpop.f32.mrf.mxu0
    %v4659 = vadd.f32 %v4394, %v4658
    %v4660 = vpop.f32.mrf.mxu0
    %v4661 = vadd.f32 %v4398, %v4660
    %v4662 = vpop.f32.mrf.mxu0
    %v4663 = vadd.f32 %v4394, %v4662
    %v4664 = vpop.f32.mrf.mxu0
    %v4665 = vadd.f32 %v4398, %v4664
    %4666 = vmatprep.mubr.bf16.mxu0 %v4510
    %4667 = vmatmul.mubr.bf16.gmra.mxu0 %v4326
    %v4668 = vpop.f32.mrf.mxu0
    %v4669 = vadd.f32 %v4394, %v4668
    %v4670 = vpop.f32.mrf.mxu0
    %v4671 = vadd.f32 %v4398, %v4670
    %v4672 = vpop.f32.mrf.mxu0
    %v4673 = vadd.f32 %v4394, %v4672
    %v4674 = vpop.f32.mrf.mxu0
    %v4675 = vadd.f32 %v4398, %v4674
    %4676 = vmatprep.mubr.bf16.mxu0 %v4513
    %4677 = vmatmul.mubr.bf16.gmra.mxu0 %v4328
    %v4678 = vpop.f32.mrf.mxu0
    %v4679 = vadd.f32 %v4394, %v4678
    %v4680 = vpop.f32.mrf.mxu0
    %v4681 = vadd.f32 %v4398, %v4680
    %v4682 = vpop.f32.mrf.mxu0
    %v4683 = vadd.f32 %v4394, %v4682
    %v4684 = vpop.f32.mrf.mxu0
    %v4685 = vadd.f32 %v4398, %v4684
    %4686 = vmatprep.mubr.bf16.mxu0 %v4516
    %4687 = vmatmul.mubr.bf16.gmra.mxu0 %v4330
    %v4688 = vpop.f32.mrf.mxu0
    %v4689 = vadd.f32 %v4394, %v4688
    %v4690 = vpop.f32.mrf.mxu0
    %v4691 = vadd.f32 %v4398, %v4690
    %v4692 = vpop.f32.mrf.mxu0
    %v4693 = vadd.f32 %v4394, %v4692
    %v4694 = vpop.f32.mrf.mxu0
    %v4695 = vadd.f32 %v4398, %v4694
    %4696 = vmatprep.mubr.bf16.mxu0 %v4519
    %4697 = vmatmul.mubr.bf16.gmra.mxu0 %v4332
    %v4698 = vpop.f32.mrf.mxu0
    %v4699 = vadd.f32 %v4394, %v4698
    %v4700 = vpop.f32.mrf.mxu0
    %v4701 = vadd.f32 %v4398, %v4700
    %v4702 = vpop.f32.mrf.mxu0
    %v4703 = vadd.f32 %v4394, %v4702
    %v4704 = vpop.f32.mrf.mxu0
    %v4705 = vadd.f32 %v4398, %v4704
    %4706 = vmatprep.mubr.bf16.mxu0 %v4522
    %4707 = vmatmul.mubr.bf16.gmra.mxu0 %v4334
    %v4708 = vpop.f32.mrf.mxu0
    %v4709 = vadd.f32 %v4394, %v4708
    %v4710 = vpop.f32.mrf.mxu0
    %v4711 = vadd.f32 %v4398, %v4710
    %v4712 = vpop.f32.mrf.mxu0
    %v4713 = vadd.f32 %v4394, %v4712
    %v4714 = vpop.f32.mrf.mxu0
    %v4715 = vadd.f32 %v4398, %v4714
    %4716 = vmatprep.mubr.bf16.mxu0 %v4525
    %4717 = vmatmul.mubr.bf16.gmra.mxu0 %v4336
    %v4718 = vpop.f32.mrf.mxu0
    %v4719 = vadd.f32 %v4394, %v4718
    %v4720 = vpop.f32.mrf.mxu0
    %v4721 = vadd.f32 %v4398, %v4720
    %v4722 = vpop.f32.mrf.mxu0
    %v4723 = vadd.f32 %v4394, %v4722
    %v4724 = vpop.f32.mrf.mxu0
    %v4725 = vadd.f32 %v4398, %v4724
    %4726 = vmatprep.mubr.bf16.mxu0 %v4528
    %4727 = vmatmul.mubr.bf16.gmra.mxu0 %v4338
    %v4728 = vpop.f32.mrf.mxu0
    %v4729 = vadd.f32 %v4394, %v4728
    %v4730 = vpop.f32.mrf.mxu0
    %v4731 = vadd.f32 %v4398, %v4730
    %v4732 = vpop.f32.mrf.mxu0
    %v4733 = vadd.f32 %v4394, %v4732
    %v4734 = vpop.f32.mrf.mxu0
    %v4735 = vadd.f32 %v4398, %v4734
    %4736 = vmatprep.mubr.bf16.mxu0 %v4531
    %4737 = vmatmul.mubr.bf16.gmra.mxu0 %v4340
    %v4738 = vpop.f32.mrf.mxu0
    %v4739 = vadd.f32 %v4394, %v4738
    %v4740 = vpop.f32.mrf.mxu0
    %v4741 = vadd.f32 %v4398, %v4740
    %v4742 = vpop.f32.mrf.mxu0
    %v4743 = vadd.f32 %v4394, %v4742
    %v4744 = vpop.f32.mrf.mxu0
    %v4745 = vadd.f32 %v4398, %v4744
    %4746 = vmatprep.mubr.bf16.mxu0 %v4534
    %4747 = vmatmul.mubr.bf16.gmra.mxu0 %v4342
    %v4748 = vpop.f32.mrf.mxu0
    %v4749 = vadd.f32 %v4394, %v4748
    %v4750 = vpop.f32.mrf.mxu0
    %v4751 = vadd.f32 %v4398, %v4750
    %v4752 = vpop.f32.mrf.mxu0
    %v4753 = vadd.f32 %v4394, %v4752
    %v4754 = vpop.f32.mrf.mxu0
    %v4755 = vadd.f32 %v4398, %v4754
    %4756 = vmatprep.mubr.bf16.mxu0 %v4537
    %4757 = vmatmul.mubr.bf16.gmra.mxu0 %v4344
    %v4758 = vpop.f32.mrf.mxu0
    %v4759 = vadd.f32 %v4394, %v4758
    %v4760 = vpop.f32.mrf.mxu0
    %v4761 = vadd.f32 %v4398, %v4760
    %v4762 = vpop.f32.mrf.mxu0
    %v4763 = vadd.f32 %v4394, %v4762
    %v4764 = vpop.f32.mrf.mxu0
    %v4765 = vadd.f32 %v4398, %v4764
    %4766 = vmatprep.mubr.bf16.mxu0 %v4540
    %4767 = vmatmul.mubr.bf16.gmra.mxu0 %v4346
    %v4768 = vpop.f32.mrf.mxu0
    %v4769 = vadd.f32 %v4394, %v4768
    %v4770 = vpop.f32.mrf.mxu0
    %v4771 = vadd.f32 %v4398, %v4770
    %v4772 = vpop.f32.mrf.mxu0
    %v4773 = vadd.f32 %v4394, %v4772
    %v4774 = vpop.f32.mrf.mxu0
    %v4775 = vadd.f32 %v4398, %v4774
    %4776 = vmatprep.mubr.bf16.mxu0 %v4543
    %4777 = vmatmul.mubr.bf16.gmra.mxu0 %v4348
    %v4778 = vpop.f32.mrf.mxu0
    %v4779 = vadd.f32 %v4394, %v4778
    %v4780 = vpop.f32.mrf.mxu0
    %v4781 = vadd.f32 %v4398, %v4780
    %v4782 = vpop.f32.mrf.mxu0
    %v4783 = vadd.f32 %v4394, %v4782
    %v4784 = vpop.f32.mrf.mxu0
    %v4785 = vadd.f32 %v4398, %v4784
    %4786 = vmatprep.mubr.bf16.mxu0 %v4546
    %4787 = vmatmul.mubr.bf16.gmra.mxu0 %v4350
    %v4788 = vpop.f32.mrf.mxu0
    %v4789 = vadd.f32 %v4394, %v4788
    %v4790 = vpop.f32.mrf.mxu0
    %v4791 = vadd.f32 %v4398, %v4790
    %v4792 = vpop.f32.mrf.mxu0
    %v4793 = vadd.f32 %v4394, %v4792
    %v4794 = vpop.f32.mrf.mxu0
    %v4795 = vadd.f32 %v4398, %v4794
    %4796 = vmatprep.mubr.bf16.mxu0 %v4549
    %4797 = vmatmul.mubr.bf16.gmra.mxu0 %v4352
    %v4798 = vpop.f32.mrf.mxu0
    %v4799 = vadd.f32 %v4394, %v4798
    %v4800 = vpop.f32.mrf.mxu0
    %v4801 = vadd.f32 %v4398, %v4800
    %v4802 = vpop.f32.mrf.mxu0
    %v4803 = vadd.f32 %v4394, %v4802
    %v4804 = vpop.f32.mrf.mxu0
    %v4805 = vadd.f32 %v4398, %v4804
    %4806 = vmatprep.mubr.bf16.mxu0 %v4552
    %4807 = vmatmul.mubr.bf16.gmra.mxu0 %v4354
    %v4808 = vpop.f32.mrf.mxu0
    %v4809 = vadd.f32 %v4394, %v4808
    %v4810 = vpop.f32.mrf.mxu0
    %v4811 = vadd.f32 %v4398, %v4810
    %v4812 = vpop.f32.mrf.mxu0
    %v4813 = vadd.f32 %v4394, %v4812
    %v4814 = vpop.f32.mrf.mxu0
    %v4815 = vadd.f32 %v4398, %v4814
    %4816 = vmatprep.mubr.bf16.mxu0 %v4555
    %4817 = vmatmul.mubr.bf16.gmra.mxu0 %v4356
    %v4818 = vpop.f32.mrf.mxu0
    %v4819 = vadd.f32 %v4394, %v4818
    %v4820 = vpop.f32.mrf.mxu0
    %v4821 = vadd.f32 %v4398, %v4820
    %v4822 = vpop.f32.mrf.mxu0
    %v4823 = vadd.f32 %v4394, %v4822
    %v4824 = vpop.f32.mrf.mxu0
    %v4825 = vadd.f32 %v4398, %v4824
    %4826 = vmatprep.mubr.bf16.mxu0 %v4558
    %4827 = vmatmul.mubr.bf16.gmra.mxu0 %v4358
    %v4828 = vpop.f32.mrf.mxu0
    %v4829 = vadd.f32 %v4394, %v4828
    %v4830 = vpop.f32.mrf.mxu0
    %v4831 = vadd.f32 %v4398, %v4830
    %v4832 = vpop.f32.mrf.mxu0
    %v4833 = vadd.f32 %v4394, %v4832
    %v4834 = vpop.f32.mrf.mxu0
    %v4835 = vadd.f32 %v4398, %v4834
    %4836 = vmatprep.mubr.bf16.mxu0 %v4561
    %4837 = vmatmul.mubr.bf16.gmra.mxu0 %v4360
    %v4838 = vpop.f32.mrf.mxu0
    %v4839 = vadd.f32 %v4394, %v4838
    %v4840 = vpop.f32.mrf.mxu0
    %v4841 = vadd.f32 %v4398, %v4840
    %v4842 = vpop.f32.mrf.mxu0
    %v4843 = vadd.f32 %v4394, %v4842
    %v4844 = vpop.f32.mrf.mxu0
    %v4845 = vadd.f32 %v4398, %v4844
    %4846 = vmatprep.mubr.bf16.mxu0 %v4564
    %4847 = vmatmul.mubr.bf16.gmra.mxu0 %v4362
    %v4848 = vpop.f32.mrf.mxu0
    %v4849 = vadd.f32 %v4394, %v4848
    %v4850 = vpop.f32.mrf.mxu0
    %v4851 = vadd.f32 %v4398, %v4850
    %v4852 = vpop.f32.mrf.mxu0
    %v4853 = vadd.f32 %v4394, %v4852
    %v4854 = vpop.f32.mrf.mxu0
    %v4855 = vadd.f32 %v4398, %v4854
    %4856 = vmatprep.mubr.bf16.mxu0 %v4567
    %4857 = vmatmul.mubr.bf16.gmra.mxu0 %v4364
    %v4858 = vpop.f32.mrf.mxu0
    %v4859 = vadd.f32 %v4394, %v4858
    %v4860 = vpop.f32.mrf.mxu0
    %v4861 = vadd.f32 %v4398, %v4860
    %v4862 = vpop.f32.mrf.mxu0
    %v4863 = vadd.f32 %v4394, %v4862
    %v4864 = vpop.f32.mrf.mxu0
    %v4865 = vadd.f32 %v4398, %v4864
    %4866 = vmatprep.mubr.bf16.mxu0 %v4570
    %4867 = vmatmul.mubr.bf16.gmra.mxu0 %v4366
    %v4868 = vpop.f32.mrf.mxu0
    %v4869 = vadd.f32 %v4394, %v4868
    %v4870 = vpop.f32.mrf.mxu0
    %v4871 = vadd.f32 %v4398, %v4870
    %v4872 = vpop.f32.mrf.mxu0
    %v4873 = vadd.f32 %v4394, %v4872
    %v4874 = vpop.f32.mrf.mxu0
    %v4875 = vadd.f32 %v4398, %v4874
    %4876 = vmatprep.mubr.bf16.mxu0 %v4573
    %4877 = vmatmul.mubr.bf16.gmra.mxu0 %v4368
    %v4878 = vpop.f32.mrf.mxu0
    %v4879 = vadd.f32 %v4394, %v4878
    %v4880 = vpop.f32.mrf.mxu0
    %v4881 = vadd.f32 %v4398, %v4880
    %v4882 = vpop.f32.mrf.mxu0
    %v4883 = vadd.f32 %v4394, %v4882
    %v4884 = vpop.f32.mrf.mxu0
    %v4885 = vadd.f32 %v4398, %v4884
    %4886 = vmatprep.mubr.bf16.mxu0 %v4576
    %4887 = vmatmul.mubr.bf16.gmra.mxu0 %v4370
    %v4888 = vpop.f32.mrf.mxu0
    %v4889 = vadd.f32 %v4394, %v4888
    %v4890 = vpop.f32.mrf.mxu0
    %v4891 = vadd.f32 %v4398, %v4890
    %v4892 = vpop.f32.mrf.mxu0
    %v4893 = vadd.f32 %v4394, %v4892
    %v4894 = vpop.f32.mrf.mxu0
    %v4895 = vadd.f32 %v4398, %v4894
    %4896 = vdwg.mxu0
    %v4897 = vmax.f32 %v4619, 0.0
    %v4898 = vmax.f32 %v4621, 0.0
    %v4899 = vmax.f32 %v4623, 0.0
    %v4900 = vmax.f32 %v4625, 0.0
    %v4901 = vmax.f32 %v4629, 0.0
    %v4902 = vmax.f32 %v4631, 0.0
    %v4903 = vmax.f32 %v4633, 0.0
    %v4904 = vmax.f32 %v4635, 0.0
    %v4905 = vmax.f32 %v4639, 0.0
    %v4906 = vmax.f32 %v4641, 0.0
    %v4907 = vmax.f32 %v4643, 0.0
    %v4908 = vmax.f32 %v4645, 0.0
    %v4909 = vmax.f32 %v4649, 0.0
    %v4910 = vmax.f32 %v4651, 0.0
    %v4911 = vmax.f32 %v4653, 0.0
    %v4912 = vmax.f32 %v4655, 0.0
    %v4913 = vmax.f32 %v4659, 0.0
    %v4914 = vmax.f32 %v4661, 0.0
    %v4915 = vmax.f32 %v4663, 0.0
    %v4916 = vmax.f32 %v4665, 0.0
    %v4917 = vmax.f32 %v4669, 0.0
    %v4918 = vmax.f32 %v4671, 0.0
    %v4919 = vmax.f32 %v4673, 0.0
    %v4920 = vmax.f32 %v4675, 0.0
    %v4921 = vmax.f32 %v4679, 0.0
    %v4922 = vmax.f32 %v4681, 0.0
    %v4923 = vmax.f32 %v4683, 0.0
    %v4924 = vmax.f32 %v4685, 0.0
    %v4925 = vmax.f32 %v4689, 0.0
    %v4926 = vmax.f32 %v4691, 0.0
    %v4927 = vmax.f32 %v4693, 0.0
    %v4928 = vmax.f32 %v4695, 0.0
    %v4929 = vmax.f32 %v4699, 0.0
    %v4930 = vmax.f32 %v4701, 0.0
    %v4931 = vmax.f32 %v4703, 0.0
    %v4932 = vmax.f32 %v4705, 0.0
    %v4933 = vmax.f32 %v4709, 0.0
    %v4934 = vmax.f32 %v4711, 0.0
    %v4935 = vmax.f32 %v4713, 0.0
    %v4936 = vmax.f32 %v4715, 0.0
    %v4937 = vmax.f32 %v4719, 0.0
    %v4938 = vmax.f32 %v4721, 0.0
    %v4939 = vmax.f32 %v4723, 0.0
    %v4940 = vmax.f32 %v4725, 0.0
    %v4941 = vmax.f32 %v4729, 0.0
    %v4942 = vmax.f32 %v4731, 0.0
    %v4943 = vmax.f32 %v4733, 0.0
    %v4944 = vmax.f32 %v4735, 0.0
    %v4945 = vmax.f32 %v4739, 0.0
    %v4946 = vmax.f32 %v4741, 0.0
    %v4947 = vmax.f32 %v4743, 0.0
    %v4948 = vmax.f32 %v4745, 0.0
    %v4949 = vmax.f32 %v4749, 0.0
    %v4950 = vmax.f32 %v4751, 0.0
    %v4951 = vmax.f32 %v4753, 0.0
    %v4952 = vmax.f32 %v4755, 0.0
    %v4953 = vmax.f32 %v4759, 0.0
    %v4954 = vmax.f32 %v4761, 0.0
    %v4955 = vmax.f32 %v4763, 0.0
    %v4956 = vmax.f32 %v4765, 0.0
    %v4957 = vmax.f32 %v4769, 0.0
    %v4958 = vmax.f32 %v4771, 0.0
    %v4959 = vmax.f32 %v4773, 0.0
    %v4960 = vmax.f32 %v4775, 0.0
    %v4961 = vmax.f32 %v4779, 0.0
    %v4962 = vmax.f32 %v4781, 0.0
    %v4963 = vmax.f32 %v4783, 0.0
    %v4964 = vmax.f32 %v4785, 0.0
    %v4965 = vmax.f32 %v4789, 0.0
    %v4966 = vmax.f32 %v4791, 0.0
    %v4967 = vmax.f32 %v4793, 0.0
    %v4968 = vmax.f32 %v4795, 0.0
    %v4969 = vmax.f32 %v4799, 0.0
    %v4970 = vmax.f32 %v4801, 0.0
    %v4971 = vmax.f32 %v4803, 0.0
    %v4972 = vmax.f32 %v4805, 0.0
    %v4973 = vmax.f32 %v4809, 0.0
    %v4974 = vmax.f32 %v4811, 0.0
    %v4975 = vmax.f32 %v4813, 0.0
    %v4976 = vmax.f32 %v4815, 0.0
    %v4977 = vmax.f32 %v4819, 0.0
    %v4978 = vmax.f32 %v4821, 0.0
    %v4979 = vmax.f32 %v4823, 0.0
    %v4980 = vmax.f32 %v4825, 0.0
    %v4981 = vmax.f32 %v4829, 0.0
    %v4982 = vmax.f32 %v4831, 0.0
    %v4983 = vmax.f32 %v4833, 0.0
    %v4984 = vmax.f32 %v4835, 0.0
    %v4985 = vmax.f32 %v4839, 0.0
    %v4986 = vmax.f32 %v4841, 0.0
    %v4987 = vmax.f32 %v4843, 0.0
    %v4988 = vmax.f32 %v4845, 0.0
    %v4989 = vmax.f32 %v4849, 0.0
    %v4990 = vmax.f32 %v4851, 0.0
    %v4991 = vmax.f32 %v4853, 0.0
    %v4992 = vmax.f32 %v4855, 0.0
    %v4993 = vmax.f32 %v4859, 0.0
    %v4994 = vmax.f32 %v4861, 0.0
    %v4995 = vmax.f32 %v4863, 0.0
    %v4996 = vmax.f32 %v4865, 0.0
    %v4997 = vmax.f32 %v4869, 0.0
    %v4998 = vmax.f32 %v4871, 0.0
    %v4999 = vmax.f32 %v4873, 0.0
    %v5000 = vmax.f32 %v4875, 0.0
    %v5001 = vmax.f32 %v4879, 0.0
    %v5002 = vmax.f32 %v4881, 0.0
    %v5003 = vmax.f32 %v4883, 0.0
    %v5004 = vmax.f32 %v4885, 0.0
    %v5005 = vmax.f32 %v4889, 0.0
    %v5006 = vmax.f32 %v4891, 0.0
    %v5007 = vmax.f32 %v4893, 0.0
    %v5008 = vmax.f32 %v4895, 0.0
    %v5009 = vpack.c.bf16 %v4899, %v4897
    %v5010 = vpack.c.bf16 %v4900, %v4898
    %v5011 = vpack.c.bf16 %v4903, %v4901
    %v5012 = vpack.c.bf16 %v4904, %v4902
    %v5013 = vpack.c.bf16 %v4907, %v4905
    %v5014 = vpack.c.bf16 %v4908, %v4906
    %v5015 = vpack.c.bf16 %v4911, %v4909
    %v5016 = vpack.c.bf16 %v4912, %v4910
    %v5017 = vpack.c.bf16 %v4915, %v4913
    %v5018 = vpack.c.bf16 %v4916, %v4914
    %v5019 = vpack.c.bf16 %v4919, %v4917
    %v5020 = vpack.c.bf16 %v4920, %v4918
    %v5021 = vpack.c.bf16 %v4923, %v4921
    %v5022 = vpack.c.bf16 %v4924, %v4922
    %v5023 = vpack.c.bf16 %v4927, %v4925
    %v5024 = vpack.c.bf16 %v4928, %v4926
    %v5025 = vpack.c.bf16 %v4931, %v4929
    %v5026 = vpack.c.bf16 %v4932, %v4930
    %v5027 = vpack.c.bf16 %v4935, %v4933
    %v5028 = vpack.c.bf16 %v4936, %v4934
    %v5029 = vpack.c.bf16 %v4939, %v4937
    %v5030 = vpack.c.bf16 %v4940, %v4938
    %v5031 = vpack.c.bf16 %v4943, %v4941
    %v5032 = vpack.c.bf16 %v4944, %v4942
    %v5033 = vpack.c.bf16 %v4947, %v4945
    %v5034 = vpack.c.bf16 %v4948, %v4946
    %v5035 = vpack.c.bf16 %v4951, %v4949
    %v5036 = vpack.c.bf16 %v4952, %v4950
    %v5037 = vpack.c.bf16 %v4955, %v4953
    %v5038 = vpack.c.bf16 %v4956, %v4954
    %v5039 = vpack.c.bf16 %v4959, %v4957
    %v5040 = vpack.c.bf16 %v4960, %v4958
    %v5041 = vpack.c.bf16 %v4963, %v4961
    %v5042 = vpack.c.bf16 %v4964, %v4962
    %v5043 = vpack.c.bf16 %v4967, %v4965
    %v5044 = vpack.c.bf16 %v4968, %v4966
    %v5045 = vpack.c.bf16 %v4971, %v4969
    %v5046 = vpack.c.bf16 %v4972, %v4970
    %v5047 = vpack.c.bf16 %v4975, %v4973
    %v5048 = vpack.c.bf16 %v4976, %v4974
    %v5049 = vpack.c.bf16 %v4979, %v4977
    %v5050 = vpack.c.bf16 %v4980, %v4978
    %v5051 = vpack.c.bf16 %v4983, %v4981
    %v5052 = vpack.c.bf16 %v4984, %v4982
    %v5053 = vpack.c.bf16 %v4987, %v4985
    %v5054 = vpack.c.bf16 %v4988, %v4986
    %v5055 = vpack.c.bf16 %v4991, %v4989
    %v5056 = vpack.c.bf16 %v4992, %v4990
    %v5057 = vpack.c.bf16 %v4995, %v4993
    %v5058 = vpack.c.bf16 %v4996, %v4994
    %v5059 = vpack.c.bf16 %v4999, %v4997
    %v5060 = vpack.c.bf16 %v5000, %v4998
    %v5061 = vpack.c.bf16 %v5003, %v5001
    %v5062 = vpack.c.bf16 %v5004, %v5002
    %v5063 = vpack.c.bf16 %v5007, %v5005
    %v5064 = vpack.c.bf16 %v5008, %v5006
    %v5065 = vld [vmem:[%s11] sm:$0xff]
    %v5066 = vld [vmem:[%s11 + $0x8] sm:$0xff]
    %v5067 = vld [vmem:[%s11 + $0x10] sm:$0xff]
    %v5068 = vld [vmem:[%s11 + $0x18] sm:$0xff]
    %v5069 = vld [vmem:[%s11 + $0x20] sm:$0xff]
    %v5070 = vld [vmem:[%s11 + $0x28] sm:$0xff]
    %v5071 = vld [vmem:[%s11 + $0x30] sm:$0xff]
    %v5072 = vld [vmem:[%s11 + $0x38] sm:$0xff]
    %v5073 = vld [vmem:[%s11 + $0x40] sm:$0xff]
    %v5074 = vld [vmem:[%s11 + $0x48] sm:$0xff]
    %v5075 = vld [vmem:[%s11 + $0x50] sm:$0xff]
    %v5076 = vld [vmem:[%s11 + $0x58] sm:$0xff]
    %v5077 = vld [vmem:[%s11 + $0x60] sm:$0xff]
    %v5078 = vld [vmem:[%s11 + $0x68] sm:$0xff]
    %v5079 = vld [vmem:[%s11 + $0x70] sm:$0xff]
    %v5080 = vld [vmem:[%s11 + $0x78] sm:$0xff]
    %v5081 = vld [vmem:[%s11 + $0x80] sm:$0xff]
    %v5082 = vld [vmem:[%s11 + $0x88] sm:$0xff]
    %v5083 = vld [vmem:[%s11 + $0x90] sm:$0x77]
    %v5084 = vlaneseq
    %v5085 = vshrl.u32 %v5084, 7
    %v5086 = vsub.s32 3, %v5085
    %v5087 = vrot.slane %v126, %v5086
    %v5088 = vlaneseq
    %v5089 = vshrl.u32 %v5088, 7
    %v5090 = vsub.s32 3, %v5089
    %v5091 = vrot.slane %v127, %v5090
    %v5111 = vunpack.c.l.b16 %v5065
    %v5112 = vunpack.c.h.b16 %v5065
    %v5113 = vunpack.c.l.b16 %v5066
    %v5114 = vunpack.c.h.b16 %v5066
    %v5115 = vunpack.c.l.b16 %v5067
    %v5116 = vunpack.c.h.b16 %v5067
    %v5117 = vunpack.c.l.b16 %v5068
    %v5118 = vunpack.c.h.b16 %v5068
    %v5119 = vunpack.c.l.b16 %v5069
    %v5120 = vunpack.c.h.b16 %v5069
    %v5121 = vunpack.c.l.b16 %v5070
    %v5122 = vunpack.c.h.b16 %v5070
    %v5123 = vunpack.c.l.b16 %v5071
    %v5124 = vunpack.c.h.b16 %v5071
    %v5125 = vunpack.c.l.b16 %v5072
    %v5126 = vunpack.c.h.b16 %v5072
    %v5127 = vunpack.c.l.b16 %v5073
    %v5128 = vunpack.c.h.b16 %v5073
    %v5129 = vunpack.c.l.b16 %v5074
    %v5130 = vunpack.c.h.b16 %v5074
    %v5131 = vunpack.c.l.b16 %v5075
    %v5132 = vunpack.c.h.b16 %v5075
    %v5133 = vunpack.c.l.b16 %v5076
    %v5134 = vunpack.c.h.b16 %v5076
    %v5135 = vunpack.c.l.b16 %v5077
    %v5136 = vunpack.c.h.b16 %v5077
    %v5137 = vunpack.c.l.b16 %v5078
    %v5138 = vunpack.c.h.b16 %v5078
    %v5139 = vunpack.c.l.b16 %v5079
    %v5140 = vunpack.c.h.b16 %v5079
    %v5141 = vunpack.c.l.b16 %v5080
    %v5142 = vunpack.c.h.b16 %v5080
    %v5143 = vunpack.c.l.b16 %v5081
    %v5144 = vunpack.c.h.b16 %v5081
    %v5145 = vunpack.c.l.b16 %v5082
    %v5146 = vunpack.c.h.b16 %v5082
    %v5147 = vunpack.c.l.b16 %v5083
    %v5148 = vunpack.c.h.b16 %v5083
    %v5149 = vpack.c.b16 %v5113, %v5111
    %v5150 = vpack.c.b16 %v5114, %v5112
    %v5151 = vpack.c.b16 %v5117, %v5115
    %v5152 = vpack.c.b16 %v5118, %v5116
    %v5153 = vpack.c.b16 %v5121, %v5119
    %v5154 = vpack.c.b16 %v5122, %v5120
    %v5155 = vpack.c.b16 %v5125, %v5123
    %v5156 = vpack.c.b16 %v5126, %v5124
    %v5157 = vpack.c.b16 %v5129, %v5127
    %v5158 = vpack.c.b16 %v5130, %v5128
    %v5159 = vpack.c.b16 %v5133, %v5131
    %v5160 = vpack.c.b16 %v5134, %v5132
    %v5161 = vpack.c.b16 %v5137, %v5135
    %v5162 = vpack.c.b16 %v5138, %v5136
    %v5163 = vpack.c.b16 %v5141, %v5139
    %v5164 = vpack.c.b16 %v5142, %v5140
    %v5165 = vpack.c.b16 %v5145, %v5143
    %v5166 = vpack.c.b16 %v5146, %v5144
    %v5167 = vpack.c.b16 %v5147, %v5147
    %v5168 = vpack.c.b16 %v5148, %v5148
    %v5188 = vsel %vm3800, %v5010, 0
    %v5191 = vsel %vm3800, %v5012, 0
    %v5194 = vsel %vm3800, %v5014, 0
    %v5197 = vsel %vm3800, %v5016, 0
    %v5200 = vsel %vm3800, %v5018, 0
    %v5203 = vsel %vm3800, %v5020, 0
    %v5206 = vsel %vm3800, %v5022, 0
    %v5209 = vsel %vm3800, %v5024, 0
    %v5212 = vsel %vm3800, %v5026, 0
    %v5215 = vsel %vm3800, %v5028, 0
    %v5218 = vsel %vm3800, %v5030, 0
    %v5221 = vsel %vm3800, %v5032, 0
    %v5224 = vsel %vm3800, %v5034, 0
    %v5227 = vsel %vm3800, %v5036, 0
    %v5230 = vsel %vm3800, %v5038, 0
    %v5233 = vsel %vm3800, %v5040, 0
    %v5236 = vsel %vm3800, %v5042, 0
    %v5239 = vsel %vm3800, %v5044, 0
    %v5242 = vsel %vm3800, %v5046, 0
    %v5245 = vsel %vm3800, %v5048, 0
    %v5248 = vsel %vm3800, %v5050, 0
    %v5251 = vsel %vm3800, %v5052, 0
    %v5254 = vsel %vm3800, %v5054, 0
    %v5257 = vsel %vm3800, %v5056, 0
    %v5260 = vsel %vm3800, %v5058, 0
    %v5263 = vsel %vm3800, %v5060, 0
    %v5266 = vsel %vm3800, %v5062, 0
    %v5269 = vsel %vm3800, %v5064, 0
    %v5272 = vsel %vm2928, %v5167, 0
    %v5275 = vsel %vm2928, %v5168, 0
    %5277 = vmatprep.subr.bf16.mxu0 %v5164
    %5278 = vmatpush1.bf16.msra.mxu0 %v5163
    %5279 = vmatprep.subr.bf16.mxu0 %v5162
    %5280 = vmatpush1.bf16.msra.mxu0 %v5161
    %5281 = vmatprep.subr.bf16.mxu0 %v5160
    %5282 = vmatpush1.bf16.msra.mxu0 %v5159
    %5283 = vmatprep.subr.bf16.mxu0 %v5158
    %5284 = vmatpush1.bf16.msra.mxu0 %v5157
    %5285 = vmatprep.subr.bf16.mxu0 %v5156
    %5286 = vmatpush1.bf16.msra.mxu0 %v5155
    %5287 = vmatprep.subr.bf16.mxu0 %v5154
    %5288 = vmatpush1.bf16.msra.mxu0 %v5153
    %5289 = vmatprep.subr.bf16.mxu0 %v5152
    %5290 = vmatpush1.bf16.msra.mxu0 %v5151
    %5291 = vmatprep.subr.bf16.mxu0 %v5150
    %5292 = vmatpush1.bf16.msra.mxu0 %v5149
    %5293 = vmatprep.subr.bf16.mxu0 0
    %5294 = vmatpush2.bf16.msra.mxu0 0
    %5295 = vmatprep.subr.bf16.mxu0 0
    %5296 = vmatpush2.bf16.msra.mxu0 0
    %5297 = vmatprep.subr.bf16.mxu0 0
    %5298 = vmatpush2.bf16.msra.mxu0 0
    %5299 = vmatprep.subr.bf16.mxu0 0
    %5300 = vmatpush2.bf16.msra.mxu0 0
    %5301 = vmatprep.subr.bf16.mxu0 0
    %5302 = vmatpush2.bf16.msra.mxu0 0
    %5303 = vmatprep.subr.bf16.mxu0 0
    %5304 = vmatpush2.bf16.msra.mxu0 0
    %5305 = vmatprep.subr.bf16.mxu0 %v5275
    %5306 = vmatpush2.bf16.msra.mxu0 %v5272
    %5307 = vmatprep.subr.bf16.mxu0 %v5166
    %5308 = vmatpush2.bf16.msra.mxu0 %v5165
    %5309 = vmatprep.mubr.bf16.mxu0 %v5188
    %5310 = vmatmul.mubr.bf16.gmra.mxu0 %v5009
    %v5311 = vpop.f32.mrf.mxu0
    %v5312 = vadd.f32 %v5087, %v5311
    %v5313 = vpop.f32.mrf.mxu0
    %v5314 = vadd.f32 %v5091, %v5313
    %v5315 = vpop.f32.mrf.mxu0
    %v5316 = vadd.f32 %v5087, %v5315
    %v5317 = vpop.f32.mrf.mxu0
    %v5318 = vadd.f32 %v5091, %v5317
    %5319 = vmatprep.mubr.bf16.mxu0 %v5191
    %5320 = vmatmul.mubr.bf16.gmra.mxu0 %v5011
    %v5321 = vpop.f32.mrf.mxu0
    %v5322 = vadd.f32 %v5087, %v5321
    %v5323 = vpop.f32.mrf.mxu0
    %v5324 = vadd.f32 %v5091, %v5323
    %v5325 = vpop.f32.mrf.mxu0
    %v5326 = vadd.f32 %v5087, %v5325
    %v5327 = vpop.f32.mrf.mxu0
    %v5328 = vadd.f32 %v5091, %v5327
    %5329 = vmatprep.mubr.bf16.mxu0 %v5194
    %5330 = vmatmul.mubr.bf16.gmra.mxu0 %v5013
    %v5331 = vpop.f32.mrf.mxu0
    %v5332 = vadd.f32 %v5087, %v5331
    %v5333 = vpop.f32.mrf.mxu0
    %v5334 = vadd.f32 %v5091, %v5333
    %v5335 = vpop.f32.mrf.mxu0
    %v5336 = vadd.f32 %v5087, %v5335
    %v5337 = vpop.f32.mrf.mxu0
    %v5338 = vadd.f32 %v5091, %v5337
    %5339 = vmatprep.mubr.bf16.mxu0 %v5197
    %5340 = vmatmul.mubr.bf16.gmra.mxu0 %v5015
    %v5341 = vpop.f32.mrf.mxu0
    %v5342 = vadd.f32 %v5087, %v5341
    %v5343 = vpop.f32.mrf.mxu0
    %v5344 = vadd.f32 %v5091, %v5343
    %v5345 = vpop.f32.mrf.mxu0
    %v5346 = vadd.f32 %v5087, %v5345
    %v5347 = vpop.f32.mrf.mxu0
    %v5348 = vadd.f32 %v5091, %v5347
    %5349 = vmatprep.mubr.bf16.mxu0 %v5200
    %5350 = vmatmul.mubr.bf16.gmra.mxu0 %v5017
    %v5351 = vpop.f32.mrf.mxu0
    %v5352 = vadd.f32 %v5087, %v5351
    %v5353 = vpop.f32.mrf.mxu0
    %v5354 = vadd.f32 %v5091, %v5353
    %v5355 = vpop.f32.mrf.mxu0
    %v5356 = vadd.f32 %v5087, %v5355
    %v5357 = vpop.f32.mrf.mxu0
    %v5358 = vadd.f32 %v5091, %v5357
    %5359 = vmatprep.mubr.bf16.mxu0 %v5203
    %5360 = vmatmul.mubr.bf16.gmra.mxu0 %v5019
    %v5361 = vpop.f32.mrf.mxu0
    %v5362 = vadd.f32 %v5087, %v5361
    %v5363 = vpop.f32.mrf.mxu0
    %v5364 = vadd.f32 %v5091, %v5363
    %v5365 = vpop.f32.mrf.mxu0
    %v5366 = vadd.f32 %v5087, %v5365
    %v5367 = vpop.f32.mrf.mxu0
    %v5368 = vadd.f32 %v5091, %v5367
    %5369 = vmatprep.mubr.bf16.mxu0 %v5206
    %5370 = vmatmul.mubr.bf16.gmra.mxu0 %v5021
    %v5371 = vpop.f32.mrf.mxu0
    %v5372 = vadd.f32 %v5087, %v5371
    %v5373 = vpop.f32.mrf.mxu0
    %v5374 = vadd.f32 %v5091, %v5373
    %v5375 = vpop.f32.mrf.mxu0
    %v5376 = vadd.f32 %v5087, %v5375
    %v5377 = vpop.f32.mrf.mxu0
    %v5378 = vadd.f32 %v5091, %v5377
    %5379 = vmatprep.mubr.bf16.mxu0 %v5209
    %5380 = vmatmul.mubr.bf16.gmra.mxu0 %v5023
    %v5381 = vpop.f32.mrf.mxu0
    %v5382 = vadd.f32 %v5087, %v5381
    %v5383 = vpop.f32.mrf.mxu0
    %v5384 = vadd.f32 %v5091, %v5383
    %v5385 = vpop.f32.mrf.mxu0
    %v5386 = vadd.f32 %v5087, %v5385
    %v5387 = vpop.f32.mrf.mxu0
    %v5388 = vadd.f32 %v5091, %v5387
    %5389 = vmatprep.mubr.bf16.mxu0 %v5212
    %5390 = vmatmul.mubr.bf16.gmra.mxu0 %v5025
    %v5391 = vpop.f32.mrf.mxu0
    %v5392 = vadd.f32 %v5087, %v5391
    %v5393 = vpop.f32.mrf.mxu0
    %v5394 = vadd.f32 %v5091, %v5393
    %v5395 = vpop.f32.mrf.mxu0
    %v5396 = vadd.f32 %v5087, %v5395
    %v5397 = vpop.f32.mrf.mxu0
    %v5398 = vadd.f32 %v5091, %v5397
    %5399 = vmatprep.mubr.bf16.mxu0 %v5215
    %5400 = vmatmul.mubr.bf16.gmra.mxu0 %v5027
    %v5401 = vpop.f32.mrf.mxu0
    %v5402 = vadd.f32 %v5087, %v5401
    %v5403 = vpop.f32.mrf.mxu0
    %v5404 = vadd.f32 %v5091, %v5403
    %v5405 = vpop.f32.mrf.mxu0
    %v5406 = vadd.f32 %v5087, %v5405
    %v5407 = vpop.f32.mrf.mxu0
    %v5408 = vadd.f32 %v5091, %v5407
    %5409 = vmatprep.mubr.bf16.mxu0 %v5218
    %5410 = vmatmul.mubr.bf16.gmra.mxu0 %v5029
    %v5411 = vpop.f32.mrf.mxu0
    %v5412 = vadd.f32 %v5087, %v5411
    %v5413 = vpop.f32.mrf.mxu0
    %v5414 = vadd.f32 %v5091, %v5413
    %v5415 = vpop.f32.mrf.mxu0
    %v5416 = vadd.f32 %v5087, %v5415
    %v5417 = vpop.f32.mrf.mxu0
    %v5418 = vadd.f32 %v5091, %v5417
    %5419 = vmatprep.mubr.bf16.mxu0 %v5221
    %5420 = vmatmul.mubr.bf16.gmra.mxu0 %v5031
    %v5421 = vpop.f32.mrf.mxu0
    %v5422 = vadd.f32 %v5087, %v5421
    %v5423 = vpop.f32.mrf.mxu0
    %v5424 = vadd.f32 %v5091, %v5423
    %v5425 = vpop.f32.mrf.mxu0
    %v5426 = vadd.f32 %v5087, %v5425
    %v5427 = vpop.f32.mrf.mxu0
    %v5428 = vadd.f32 %v5091, %v5427
    %5429 = vmatprep.mubr.bf16.mxu0 %v5224
    %5430 = vmatmul.mubr.bf16.gmra.mxu0 %v5033
    %v5431 = vpop.f32.mrf.mxu0
    %v5432 = vadd.f32 %v5087, %v5431
    %v5433 = vpop.f32.mrf.mxu0
    %v5434 = vadd.f32 %v5091, %v5433
    %v5435 = vpop.f32.mrf.mxu0
    %v5436 = vadd.f32 %v5087, %v5435
    %v5437 = vpop.f32.mrf.mxu0
    %v5438 = vadd.f32 %v5091, %v5437
    %5439 = vmatprep.mubr.bf16.mxu0 %v5227
    %5440 = vmatmul.mubr.bf16.gmra.mxu0 %v5035
    %v5441 = vpop.f32.mrf.mxu0
    %v5442 = vadd.f32 %v5087, %v5441
    %v5443 = vpop.f32.mrf.mxu0
    %v5444 = vadd.f32 %v5091, %v5443
    %v5445 = vpop.f32.mrf.mxu0
    %v5446 = vadd.f32 %v5087, %v5445
    %v5447 = vpop.f32.mrf.mxu0
    %v5448 = vadd.f32 %v5091, %v5447
    %5449 = vmatprep.mubr.bf16.mxu0 %v5230
    %5450 = vmatmul.mubr.bf16.gmra.mxu0 %v5037
    %v5451 = vpop.f32.mrf.mxu0
    %v5452 = vadd.f32 %v5087, %v5451
    %v5453 = vpop.f32.mrf.mxu0
    %v5454 = vadd.f32 %v5091, %v5453
    %v5455 = vpop.f32.mrf.mxu0
    %v5456 = vadd.f32 %v5087, %v5455
    %v5457 = vpop.f32.mrf.mxu0
    %v5458 = vadd.f32 %v5091, %v5457
    %5459 = vmatprep.mubr.bf16.mxu0 %v5233
    %5460 = vmatmul.mubr.bf16.gmra.mxu0 %v5039
    %v5461 = vpop.f32.mrf.mxu0
    %v5462 = vadd.f32 %v5087, %v5461
    %v5463 = vpop.f32.mrf.mxu0
    %v5464 = vadd.f32 %v5091, %v5463
    %v5465 = vpop.f32.mrf.mxu0
    %v5466 = vadd.f32 %v5087, %v5465
    %v5467 = vpop.f32.mrf.mxu0
    %v5468 = vadd.f32 %v5091, %v5467
    %5469 = vmatprep.mubr.bf16.mxu0 %v5236
    %5470 = vmatmul.mubr.bf16.gmra.mxu0 %v5041
    %v5471 = vpop.f32.mrf.mxu0
    %v5472 = vadd.f32 %v5087, %v5471
    %v5473 = vpop.f32.mrf.mxu0
    %v5474 = vadd.f32 %v5091, %v5473
    %v5475 = vpop.f32.mrf.mxu0
    %v5476 = vadd.f32 %v5087, %v5475
    %v5477 = vpop.f32.mrf.mxu0
    %v5478 = vadd.f32 %v5091, %v5477
    %5479 = vmatprep.mubr.bf16.mxu0 %v5239
    %5480 = vmatmul.mubr.bf16.gmra.mxu0 %v5043
    %v5481 = vpop.f32.mrf.mxu0
    %v5482 = vadd.f32 %v5087, %v5481
    %v5483 = vpop.f32.mrf.mxu0
    %v5484 = vadd.f32 %v5091, %v5483
    %v5485 = vpop.f32.mrf.mxu0
    %v5486 = vadd.f32 %v5087, %v5485
    %v5487 = vpop.f32.mrf.mxu0
    %v5488 = vadd.f32 %v5091, %v5487
    %5489 = vmatprep.mubr.bf16.mxu0 %v5242
    %5490 = vmatmul.mubr.bf16.gmra.mxu0 %v5045
    %v5491 = vpop.f32.mrf.mxu0
    %v5492 = vadd.f32 %v5087, %v5491
    %v5493 = vpop.f32.mrf.mxu0
    %v5494 = vadd.f32 %v5091, %v5493
    %v5495 = vpop.f32.mrf.mxu0
    %v5496 = vadd.f32 %v5087, %v5495
    %v5497 = vpop.f32.mrf.mxu0
    %v5498 = vadd.f32 %v5091, %v5497
    %5499 = vmatprep.mubr.bf16.mxu0 %v5245
    %5500 = vmatmul.mubr.bf16.gmra.mxu0 %v5047
    %v5501 = vpop.f32.mrf.mxu0
    %v5502 = vadd.f32 %v5087, %v5501
    %v5503 = vpop.f32.mrf.mxu0
    %v5504 = vadd.f32 %v5091, %v5503
    %v5505 = vpop.f32.mrf.mxu0
    %v5506 = vadd.f32 %v5087, %v5505
    %v5507 = vpop.f32.mrf.mxu0
    %v5508 = vadd.f32 %v5091, %v5507
    %5509 = vmatprep.mubr.bf16.mxu0 %v5248
    %5510 = vmatmul.mubr.bf16.gmra.mxu0 %v5049
    %v5511 = vpop.f32.mrf.mxu0
    %v5512 = vadd.f32 %v5087, %v5511
    %v5513 = vpop.f32.mrf.mxu0
    %v5514 = vadd.f32 %v5091, %v5513
    %v5515 = vpop.f32.mrf.mxu0
    %v5516 = vadd.f32 %v5087, %v5515
    %v5517 = vpop.f32.mrf.mxu0
    %v5518 = vadd.f32 %v5091, %v5517
    %5519 = vmatprep.mubr.bf16.mxu0 %v5251
    %5520 = vmatmul.mubr.bf16.gmra.mxu0 %v5051
    %v5521 = vpop.f32.mrf.mxu0
    %v5522 = vadd.f32 %v5087, %v5521
    %v5523 = vpop.f32.mrf.mxu0
    %v5524 = vadd.f32 %v5091, %v5523
    %v5525 = vpop.f32.mrf.mxu0
    %v5526 = vadd.f32 %v5087, %v5525
    %v5527 = vpop.f32.mrf.mxu0
    %v5528 = vadd.f32 %v5091, %v5527
    %5529 = vmatprep.mubr.bf16.mxu0 %v5254
    %5530 = vmatmul.mubr.bf16.gmra.mxu0 %v5053
    %v5531 = vpop.f32.mrf.mxu0
    %v5532 = vadd.f32 %v5087, %v5531
    %v5533 = vpop.f32.mrf.mxu0
    %v5534 = vadd.f32 %v5091, %v5533
    %v5535 = vpop.f32.mrf.mxu0
    %v5536 = vadd.f32 %v5087, %v5535
    %v5537 = vpop.f32.mrf.mxu0
    %v5538 = vadd.f32 %v5091, %v5537
    %5539 = vmatprep.mubr.bf16.mxu0 %v5257
    %5540 = vmatmul.mubr.bf16.gmra.mxu0 %v5055
    %v5541 = vpop.f32.mrf.mxu0
    %v5542 = vadd.f32 %v5087, %v5541
    %v5543 = vpop.f32.mrf.mxu0
    %v5544 = vadd.f32 %v5091, %v5543
    %v5545 = vpop.f32.mrf.mxu0
    %v5546 = vadd.f32 %v5087, %v5545
    %v5547 = vpop.f32.mrf.mxu0
    %v5548 = vadd.f32 %v5091, %v5547
    %5549 = vmatprep.mubr.bf16.mxu0 %v5260
    %5550 = vmatmul.mubr.bf16.gmra.mxu0 %v5057
    %v5551 = vpop.f32.mrf.mxu0
    %v5552 = vadd.f32 %v5087, %v5551
    %v5553 = vpop.f32.mrf.mxu0
    %v5554 = vadd.f32 %v5091, %v5553
    %v5555 = vpop.f32.mrf.mxu0
    %v5556 = vadd.f32 %v5087, %v5555
    %v5557 = vpop.f32.mrf.mxu0
    %v5558 = vadd.f32 %v5091, %v5557
    %5559 = vmatprep.mubr.bf16.mxu0 %v5263
    %5560 = vmatmul.mubr.bf16.gmra.mxu0 %v5059
    %v5561 = vpop.f32.mrf.mxu0
    %v5562 = vadd.f32 %v5087, %v5561
    %v5563 = vpop.f32.mrf.mxu0
    %v5564 = vadd.f32 %v5091, %v5563
    %v5565 = vpop.f32.mrf.mxu0
    %v5566 = vadd.f32 %v5087, %v5565
    %v5567 = vpop.f32.mrf.mxu0
    %v5568 = vadd.f32 %v5091, %v5567
    %5569 = vmatprep.mubr.bf16.mxu0 %v5266
    %5570 = vmatmul.mubr.bf16.gmra.mxu0 %v5061
    %v5571 = vpop.f32.mrf.mxu0
    %v5572 = vadd.f32 %v5087, %v5571
    %v5573 = vpop.f32.mrf.mxu0
    %v5574 = vadd.f32 %v5091, %v5573
    %v5575 = vpop.f32.mrf.mxu0
    %v5576 = vadd.f32 %v5087, %v5575
    %v5577 = vpop.f32.mrf.mxu0
    %v5578 = vadd.f32 %v5091, %v5577
    %5579 = vmatprep.mubr.bf16.mxu0 %v5269
    %5580 = vmatmul.mubr.bf16.gmra.mxu0 %v5063
    %v5581 = vpop.f32.mrf.mxu0
    %v5582 = vadd.f32 %v5087, %v5581
    %v5583 = vpop.f32.mrf.mxu0
    %v5584 = vadd.f32 %v5091, %v5583
    %v5585 = vpop.f32.mrf.mxu0
    %v5586 = vadd.f32 %v5087, %v5585
    %v5587 = vpop.f32.mrf.mxu0
    %v5588 = vadd.f32 %v5091, %v5587
    %5589 = vdwg.mxu0
    %v5590 = vmax.f32 %v5312, 0.0
    %v5591 = vmax.f32 %v5314, 0.0
    %v5592 = vmax.f32 %v5316, 0.0
    %v5593 = vmax.f32 %v5318, 0.0
    %v5594 = vmax.f32 %v5322, 0.0
    %v5595 = vmax.f32 %v5324, 0.0
    %v5596 = vmax.f32 %v5326, 0.0
    %v5597 = vmax.f32 %v5328, 0.0
    %v5598 = vmax.f32 %v5332, 0.0
    %v5599 = vmax.f32 %v5334, 0.0
    %v5600 = vmax.f32 %v5336, 0.0
    %v5601 = vmax.f32 %v5338, 0.0
    %v5602 = vmax.f32 %v5342, 0.0
    %v5603 = vmax.f32 %v5344, 0.0
    %v5604 = vmax.f32 %v5346, 0.0
    %v5605 = vmax.f32 %v5348, 0.0
    %v5606 = vmax.f32 %v5352, 0.0
    %v5607 = vmax.f32 %v5354, 0.0
    %v5608 = vmax.f32 %v5356, 0.0
    %v5609 = vmax.f32 %v5358, 0.0
    %v5610 = vmax.f32 %v5362, 0.0
    %v5611 = vmax.f32 %v5364, 0.0
    %v5612 = vmax.f32 %v5366, 0.0
    %v5613 = vmax.f32 %v5368, 0.0
    %v5614 = vmax.f32 %v5372, 0.0
    %v5615 = vmax.f32 %v5374, 0.0
    %v5616 = vmax.f32 %v5376, 0.0
    %v5617 = vmax.f32 %v5378, 0.0
    %v5618 = vmax.f32 %v5382, 0.0
    %v5619 = vmax.f32 %v5384, 0.0
    %v5620 = vmax.f32 %v5386, 0.0
    %v5621 = vmax.f32 %v5388, 0.0
    %v5622 = vmax.f32 %v5392, 0.0
    %v5623 = vmax.f32 %v5394, 0.0
    %v5624 = vmax.f32 %v5396, 0.0
    %v5625 = vmax.f32 %v5398, 0.0
    %v5626 = vmax.f32 %v5402, 0.0
    %v5627 = vmax.f32 %v5404, 0.0
    %v5628 = vmax.f32 %v5406, 0.0
    %v5629 = vmax.f32 %v5408, 0.0
    %v5630 = vmax.f32 %v5412, 0.0
    %v5631 = vmax.f32 %v5414, 0.0
    %v5632 = vmax.f32 %v5416, 0.0
    %v5633 = vmax.f32 %v5418, 0.0
    %v5634 = vmax.f32 %v5422, 0.0
    %v5635 = vmax.f32 %v5424, 0.0
    %v5636 = vmax.f32 %v5426, 0.0
    %v5637 = vmax.f32 %v5428, 0.0
    %v5638 = vmax.f32 %v5432, 0.0
    %v5639 = vmax.f32 %v5434, 0.0
    %v5640 = vmax.f32 %v5436, 0.0
    %v5641 = vmax.f32 %v5438, 0.0
    %v5642 = vmax.f32 %v5442, 0.0
    %v5643 = vmax.f32 %v5444, 0.0
    %v5644 = vmax.f32 %v5446, 0.0
    %v5645 = vmax.f32 %v5448, 0.0
    %v5646 = vmax.f32 %v5452, 0.0
    %v5647 = vmax.f32 %v5454, 0.0
    %v5648 = vmax.f32 %v5456, 0.0
    %v5649 = vmax.f32 %v5458, 0.0
    %v5650 = vmax.f32 %v5462, 0.0
    %v5651 = vmax.f32 %v5464, 0.0
    %v5652 = vmax.f32 %v5466, 0.0
    %v5653 = vmax.f32 %v5468, 0.0
    %v5654 = vmax.f32 %v5472, 0.0
    %v5655 = vmax.f32 %v5474, 0.0
    %v5656 = vmax.f32 %v5476, 0.0
    %v5657 = vmax.f32 %v5478, 0.0
    %v5658 = vmax.f32 %v5482, 0.0
    %v5659 = vmax.f32 %v5484, 0.0
    %v5660 = vmax.f32 %v5486, 0.0
    %v5661 = vmax.f32 %v5488, 0.0
    %v5662 = vmax.f32 %v5492, 0.0
    %v5663 = vmax.f32 %v5494, 0.0
    %v5664 = vmax.f32 %v5496, 0.0
    %v5665 = vmax.f32 %v5498, 0.0
    %v5666 = vmax.f32 %v5502, 0.0
    %v5667 = vmax.f32 %v5504, 0.0
    %v5668 = vmax.f32 %v5506, 0.0
    %v5669 = vmax.f32 %v5508, 0.0
    %v5670 = vmax.f32 %v5512, 0.0
    %v5671 = vmax.f32 %v5514, 0.0
    %v5672 = vmax.f32 %v5516, 0.0
    %v5673 = vmax.f32 %v5518, 0.0
    %v5674 = vmax.f32 %v5522, 0.0
    %v5675 = vmax.f32 %v5524, 0.0
    %v5676 = vmax.f32 %v5526, 0.0
    %v5677 = vmax.f32 %v5528, 0.0
    %v5678 = vmax.f32 %v5532, 0.0
    %v5679 = vmax.f32 %v5534, 0.0
    %v5680 = vmax.f32 %v5536, 0.0
    %v5681 = vmax.f32 %v5538, 0.0
    %v5682 = vmax.f32 %v5542, 0.0
    %v5683 = vmax.f32 %v5544, 0.0
    %v5684 = vmax.f32 %v5546, 0.0
    %v5685 = vmax.f32 %v5548, 0.0
    %v5686 = vmax.f32 %v5552, 0.0
    %v5687 = vmax.f32 %v5554, 0.0
    %v5688 = vmax.f32 %v5556, 0.0
    %v5689 = vmax.f32 %v5558, 0.0
    %v5690 = vmax.f32 %v5562, 0.0
    %v5691 = vmax.f32 %v5564, 0.0
    %v5692 = vmax.f32 %v5566, 0.0
    %v5693 = vmax.f32 %v5568, 0.0
    %v5694 = vmax.f32 %v5572, 0.0
    %v5695 = vmax.f32 %v5574, 0.0
    %v5696 = vmax.f32 %v5576, 0.0
    %v5697 = vmax.f32 %v5578, 0.0
    %v5698 = vmax.f32 %v5582, 0.0
    %v5699 = vmax.f32 %v5584, 0.0
    %v5700 = vmax.f32 %v5586, 0.0
    %v5701 = vmax.f32 %v5588, 0.0
    %v5702 = vpack.c.bf16 %v5592, %v5590
    %v5703 = vpack.c.bf16 %v5593, %v5591
    %v5704 = vpack.c.bf16 %v5596, %v5594
    %v5705 = vpack.c.bf16 %v5597, %v5595
    %v5706 = vpack.c.bf16 %v5600, %v5598
    %v5707 = vpack.c.bf16 %v5601, %v5599
    %v5708 = vpack.c.bf16 %v5604, %v5602
    %v5709 = vpack.c.bf16 %v5605, %v5603
    %v5710 = vpack.c.bf16 %v5608, %v5606
    %v5711 = vpack.c.bf16 %v5609, %v5607
    %v5712 = vpack.c.bf16 %v5612, %v5610
    %v5713 = vpack.c.bf16 %v5613, %v5611
    %v5714 = vpack.c.bf16 %v5616, %v5614
    %v5715 = vpack.c.bf16 %v5617, %v5615
    %v5716 = vpack.c.bf16 %v5620, %v5618
    %v5717 = vpack.c.bf16 %v5621, %v5619
    %v5718 = vpack.c.bf16 %v5624, %v5622
    %v5719 = vpack.c.bf16 %v5625, %v5623
    %v5720 = vpack.c.bf16 %v5628, %v5626
    %v5721 = vpack.c.bf16 %v5629, %v5627
    %v5722 = vpack.c.bf16 %v5632, %v5630
    %v5723 = vpack.c.bf16 %v5633, %v5631
    %v5724 = vpack.c.bf16 %v5636, %v5634
    %v5725 = vpack.c.bf16 %v5637, %v5635
    %v5726 = vpack.c.bf16 %v5640, %v5638
    %v5727 = vpack.c.bf16 %v5641, %v5639
    %v5728 = vpack.c.bf16 %v5644, %v5642
    %v5729 = vpack.c.bf16 %v5645, %v5643
    %v5730 = vpack.c.bf16 %v5648, %v5646
    %v5731 = vpack.c.bf16 %v5649, %v5647
    %v5732 = vpack.c.bf16 %v5652, %v5650
    %v5733 = vpack.c.bf16 %v5653, %v5651
    %v5734 = vpack.c.bf16 %v5656, %v5654
    %v5735 = vpack.c.bf16 %v5657, %v5655
    %v5736 = vpack.c.bf16 %v5660, %v5658
    %v5737 = vpack.c.bf16 %v5661, %v5659
    %v5738 = vpack.c.bf16 %v5664, %v5662
    %v5739 = vpack.c.bf16 %v5665, %v5663
    %v5740 = vpack.c.bf16 %v5668, %v5666
    %v5741 = vpack.c.bf16 %v5669, %v5667
    %v5742 = vpack.c.bf16 %v5672, %v5670
    %v5743 = vpack.c.bf16 %v5673, %v5671
    %v5744 = vpack.c.bf16 %v5676, %v5674
    %v5745 = vpack.c.bf16 %v5677, %v5675
    %v5746 = vpack.c.bf16 %v5680, %v5678
    %v5747 = vpack.c.bf16 %v5681, %v5679
    %v5748 = vpack.c.bf16 %v5684, %v5682
    %v5749 = vpack.c.bf16 %v5685, %v5683
    %v5750 = vpack.c.bf16 %v5688, %v5686
    %v5751 = vpack.c.bf16 %v5689, %v5687
    %v5752 = vpack.c.bf16 %v5692, %v5690
    %v5753 = vpack.c.bf16 %v5693, %v5691
    %v5754 = vpack.c.bf16 %v5696, %v5694
    %v5755 = vpack.c.bf16 %v5697, %v5695
    %v5756 = vpack.c.bf16 %v5700, %v5698
    %v5757 = vpack.c.bf16 %v5701, %v5699
    %v5758 = vld [vmem:[%s12] sm:$0xf]
    %v5759 = vld [vmem:[%s12 + $0x4] sm:$0xf]
    %v5760 = vld [vmem:[%s12 + $0x8] sm:$0xf]
    %v5761 = vld [vmem:[%s12 + $0xc] sm:$0xf]
    %v5762 = vld [vmem:[%s12 + $0x10] sm:$0xf]
    %v5763 = vld [vmem:[%s12 + $0x14] sm:$0xf]
    %v5764 = vld [vmem:[%s12 + $0x18] sm:$0xf]
    %v5765 = vld [vmem:[%s12 + $0x1c] sm:$0xf]
    %v5766 = vld [vmem:[%s12 + $0x20] sm:$0xf]
    %v5767 = vld [vmem:[%s12 + $0x24] sm:$0xf]
    %v5768 = vld [vmem:[%s12 + $0x28] sm:$0xf]
    %v5769 = vld [vmem:[%s12 + $0x2c] sm:$0xf]
    %v5770 = vld [vmem:[%s12 + $0x30] sm:$0xf]
    %v5771 = vld [vmem:[%s12 + $0x34] sm:$0xf]
    %v5772 = vld [vmem:[%s12 + $0x38] sm:$0xf]
    %v5773 = vld [vmem:[%s12 + $0x3c] sm:$0xf]
    %v5774 = vld [vmem:[%s12 + $0x40] sm:$0xf]
    %v5775 = vld [vmem:[%s12 + $0x44] sm:$0xf]
    %v5776 = vld [vmem:[%s12 + $0x48] sm:$0x7]
    %v5777 = vlaneseq
    %v5778 = vshrl.u32 %v5777, 7
    %v5779 = vsub.s32 4, %v5778
    %v5780 = vrot.slane %v126, %v5779
    %v5800 = vunpack.c.l.b16 %v5758
    %v5801 = vunpack.c.l.b16 %v5759
    %v5802 = vunpack.c.l.b16 %v5760
    %v5803 = vunpack.c.l.b16 %v5761
    %v5804 = vunpack.c.l.b16 %v5762
    %v5805 = vunpack.c.l.b16 %v5763
    %v5806 = vunpack.c.l.b16 %v5764
    %v5807 = vunpack.c.l.b16 %v5765
    %v5808 = vunpack.c.l.b16 %v5766
    %v5809 = vunpack.c.l.b16 %v5767
    %v5810 = vunpack.c.l.b16 %v5768
    %v5811 = vunpack.c.l.b16 %v5769
    %v5812 = vunpack.c.l.b16 %v5770
    %v5813 = vunpack.c.l.b16 %v5771
    %v5814 = vunpack.c.l.b16 %v5772
    %v5815 = vunpack.c.l.b16 %v5773
    %v5816 = vunpack.c.l.b16 %v5774
    %v5817 = vunpack.c.l.b16 %v5775
    %v5818 = vunpack.c.l.b16 %v5776
    %v5819 = vpack.c.b16 %v5801, %v5800
    %v5820 = vpack.c.b16 %v5803, %v5802
    %v5821 = vpack.c.b16 %v5805, %v5804
    %v5822 = vpack.c.b16 %v5807, %v5806
    %v5823 = vpack.c.b16 %v5809, %v5808
    %v5824 = vpack.c.b16 %v5811, %v5810
    %v5825 = vpack.c.b16 %v5813, %v5812
    %v5826 = vpack.c.b16 %v5815, %v5814
    %v5827 = vpack.c.b16 %v5817, %v5816
    %v5828 = vpack.c.b16 %v5818, %v5818
    %v5839 = vsel %vm3800, %v5703, 0
    %v5842 = vsel %vm3800, %v5705, 0
    %v5845 = vsel %vm3800, %v5707, 0
    %v5848 = vsel %vm3800, %v5709, 0
    %v5851 = vsel %vm3800, %v5711, 0
    %v5854 = vsel %vm3800, %v5713, 0
    %v5857 = vsel %vm3800, %v5715, 0
    %v5860 = vsel %vm3800, %v5717, 0
    %v5863 = vsel %vm3800, %v5719, 0
    %v5866 = vsel %vm3800, %v5721, 0
    %v5869 = vsel %vm3800, %v5723, 0
    %v5872 = vsel %vm3800, %v5725, 0
    %v5875 = vsel %vm3800, %v5727, 0
    %v5878 = vsel %vm3800, %v5729, 0
    %v5881 = vsel %vm3800, %v5731, 0
    %v5884 = vsel %vm3800, %v5733, 0
    %v5887 = vsel %vm3800, %v5735, 0
    %v5890 = vsel %vm3800, %v5737, 0
    %v5893 = vsel %vm3800, %v5739, 0
    %v5896 = vsel %vm3800, %v5741, 0
    %v5899 = vsel %vm3800, %v5743, 0
    %v5902 = vsel %vm3800, %v5745, 0
    %v5905 = vsel %vm3800, %v5747, 0
    %v5908 = vsel %vm3800, %v5749, 0
    %v5911 = vsel %vm3800, %v5751, 0
    %v5914 = vsel %vm3800, %v5753, 0
    %v5917 = vsel %vm3800, %v5755, 0
    %v5920 = vsel %vm3800, %v5757, 0
    %v5923 = vsel %vm2928, %v5828, 0
    %5925 = vmatprep.subr.bf16.mxu0 0
    %5926 = vmatpush1.bf16.msra.mxu0 %v5826
    %5927 = vmatprep.subr.bf16.mxu0 0
    %5928 = vmatpush1.bf16.msra.mxu0 %v5825
    %5929 = vmatprep.subr.bf16.mxu0 0
    %5930 = vmatpush1.bf16.msra.mxu0 %v5824
    %5931 = vmatprep.subr.bf16.mxu0 0
    %5932 = vmatpush1.bf16.msra.mxu0 %v5823
    %5933 = vmatprep.subr.bf16.mxu0 0
    %5934 = vmatpush1.bf16.msra.mxu0 %v5822
    %5935 = vmatprep.subr.bf16.mxu0 0
    %5936 = vmatpush1.bf16.msra.mxu0 %v5821
    %5937 = vmatprep.subr.bf16.mxu0 0
    %5938 = vmatpush1.bf16.msra.mxu0 %v5820
    %5939 = vmatprep.subr.bf16.mxu0 0
    %5940 = vmatpush1.bf16.msra.mxu0 %v5819
    %5941 = vmatprep.subr.bf16.mxu0 0
    %5942 = vmatpush2.bf16.msra.mxu0 0
    %5943 = vmatprep.subr.bf16.mxu0 0
    %5944 = vmatpush2.bf16.msra.mxu0 0
    %5945 = vmatprep.subr.bf16.mxu0 0
    %5946 = vmatpush2.bf16.msra.mxu0 0
    %5947 = vmatprep.subr.bf16.mxu0 0
    %5948 = vmatpush2.bf16.msra.mxu0 0
    %5949 = vmatprep.subr.bf16.mxu0 0
    %5950 = vmatpush2.bf16.msra.mxu0 0
    %5951 = vmatprep.subr.bf16.mxu0 0
    %5952 = vmatpush2.bf16.msra.mxu0 0
    %5953 = vmatprep.subr.bf16.mxu0 0
    %5954 = vmatpush2.bf16.msra.mxu0 %v5923
    %5955 = vmatprep.subr.bf16.mxu0 0
    %5956 = vmatpush2.bf16.msra.mxu0 %v5827
    %5957 = vmatprep.mubr.bf16.mxu0 %v5839
    %5958 = vmatmul.mubr.bf16.gmra.mxu0 %v5702
    %v5959 = vpop.f32.mrf.mxu0
    %v5960 = vadd.f32 %v5780, %v5959
    %v5961 = vpop.f32.mrf.mxu0
    %v5962 = vpop.f32.mrf.mxu0
    %v5963 = vadd.f32 %v5780, %v5962
    %v5964 = vpop.f32.mrf.mxu0
    %5965 = vmatprep.mubr.bf16.mxu0 %v5842
    %5966 = vmatmul.mubr.bf16.gmra.mxu0 %v5704
    %v5967 = vpop.f32.mrf.mxu0
    %v5968 = vadd.f32 %v5780, %v5967
    %v5969 = vpop.f32.mrf.mxu0
    %v5970 = vpop.f32.mrf.mxu0
    %v5971 = vadd.f32 %v5780, %v5970
    %v5972 = vpop.f32.mrf.mxu0
    %5973 = vmatprep.mubr.bf16.mxu0 %v5845
    %5974 = vmatmul.mubr.bf16.gmra.mxu0 %v5706
    %v5975 = vpop.f32.mrf.mxu0
    %v5976 = vadd.f32 %v5780, %v5975
    %v5977 = vpop.f32.mrf.mxu0
    %v5978 = vpop.f32.mrf.mxu0
    %v5979 = vadd.f32 %v5780, %v5978
    %v5980 = vpop.f32.mrf.mxu0
    %5981 = vmatprep.mubr.bf16.mxu0 %v5848
    %5982 = vmatmul.mubr.bf16.gmra.mxu0 %v5708
    %v5983 = vpop.f32.mrf.mxu0
    %v5984 = vadd.f32 %v5780, %v5983
    %v5985 = vpop.f32.mrf.mxu0
    %v5986 = vpop.f32.mrf.mxu0
    %v5987 = vadd.f32 %v5780, %v5986
    %v5988 = vpop.f32.mrf.mxu0
    %5989 = vmatprep.mubr.bf16.mxu0 %v5851
    %5990 = vmatmul.mubr.bf16.gmra.mxu0 %v5710
    %v5991 = vpop.f32.mrf.mxu0
    %v5992 = vadd.f32 %v5780, %v5991
    %v5993 = vpop.f32.mrf.mxu0
    %v5994 = vpop.f32.mrf.mxu0
    %v5995 = vadd.f32 %v5780, %v5994
    %v5996 = vpop.f32.mrf.mxu0
    %5997 = vmatprep.mubr.bf16.mxu0 %v5854
    %5998 = vmatmul.mubr.bf16.gmra.mxu0 %v5712
    %v5999 = vpop.f32.mrf.mxu0
    %v6000 = vadd.f32 %v5780, %v5999
    %v6001 = vpop.f32.mrf.mxu0
    %v6002 = vpop.f32.mrf.mxu0
    %v6003 = vadd.f32 %v5780, %v6002
    %v6004 = vpop.f32.mrf.mxu0
    %6005 = vmatprep.mubr.bf16.mxu0 %v5857
    %6006 = vmatmul.mubr.bf16.gmra.mxu0 %v5714
    %v6007 = vpop.f32.mrf.mxu0
    %v6008 = vadd.f32 %v5780, %v6007
    %v6009 = vpop.f32.mrf.mxu0
    %v6010 = vpop.f32.mrf.mxu0
    %v6011 = vadd.f32 %v5780, %v6010
    %v6012 = vpop.f32.mrf.mxu0
    %6013 = vmatprep.mubr.bf16.mxu0 %v5860
    %6014 = vmatmul.mubr.bf16.gmra.mxu0 %v5716
    %v6015 = vpop.f32.mrf.mxu0
    %v6016 = vadd.f32 %v5780, %v6015
    %v6017 = vpop.f32.mrf.mxu0
    %v6018 = vpop.f32.mrf.mxu0
    %v6019 = vadd.f32 %v5780, %v6018
    %v6020 = vpop.f32.mrf.mxu0
    %6021 = vmatprep.mubr.bf16.mxu0 %v5863
    %6022 = vmatmul.mubr.bf16.gmra.mxu0 %v5718
    %v6023 = vpop.f32.mrf.mxu0
    %v6024 = vadd.f32 %v5780, %v6023
    %v6025 = vpop.f32.mrf.mxu0
    %v6026 = vpop.f32.mrf.mxu0
    %v6027 = vadd.f32 %v5780, %v6026
    %v6028 = vpop.f32.mrf.mxu0
    %6029 = vmatprep.mubr.bf16.mxu0 %v5866
    %6030 = vmatmul.mubr.bf16.gmra.mxu0 %v5720
    %v6031 = vpop.f32.mrf.mxu0
    %v6032 = vadd.f32 %v5780, %v6031
    %v6033 = vpop.f32.mrf.mxu0
    %v6034 = vpop.f32.mrf.mxu0
    %v6035 = vadd.f32 %v5780, %v6034
    %v6036 = vpop.f32.mrf.mxu0
    %6037 = vmatprep.mubr.bf16.mxu0 %v5869
    %6038 = vmatmul.mubr.bf16.gmra.mxu0 %v5722
    %v6039 = vpop.f32.mrf.mxu0
    %v6040 = vadd.f32 %v5780, %v6039
    %v6041 = vpop.f32.mrf.mxu0
    %v6042 = vpop.f32.mrf.mxu0
    %v6043 = vadd.f32 %v5780, %v6042
    %v6044 = vpop.f32.mrf.mxu0
    %6045 = vmatprep.mubr.bf16.mxu0 %v5872
    %6046 = vmatmul.mubr.bf16.gmra.mxu0 %v5724
    %v6047 = vpop.f32.mrf.mxu0
    %v6048 = vadd.f32 %v5780, %v6047
    %v6049 = vpop.f32.mrf.mxu0
    %v6050 = vpop.f32.mrf.mxu0
    %v6051 = vadd.f32 %v5780, %v6050
    %v6052 = vpop.f32.mrf.mxu0
    %6053 = vmatprep.mubr.bf16.mxu0 %v5875
    %6054 = vmatmul.mubr.bf16.gmra.mxu0 %v5726
    %v6055 = vpop.f32.mrf.mxu0
    %v6056 = vadd.f32 %v5780, %v6055
    %v6057 = vpop.f32.mrf.mxu0
    %v6058 = vpop.f32.mrf.mxu0
    %v6059 = vadd.f32 %v5780, %v6058
    %v6060 = vpop.f32.mrf.mxu0
    %6061 = vmatprep.mubr.bf16.mxu0 %v5878
    %6062 = vmatmul.mubr.bf16.gmra.mxu0 %v5728
    %v6063 = vpop.f32.mrf.mxu0
    %v6064 = vadd.f32 %v5780, %v6063
    %v6065 = vpop.f32.mrf.mxu0
    %v6066 = vpop.f32.mrf.mxu0
    %v6067 = vadd.f32 %v5780, %v6066
    %v6068 = vpop.f32.mrf.mxu0
    %6069 = vmatprep.mubr.bf16.mxu0 %v5881
    %6070 = vmatmul.mubr.bf16.gmra.mxu0 %v5730
    %v6071 = vpop.f32.mrf.mxu0
    %v6072 = vadd.f32 %v5780, %v6071
    %v6073 = vpop.f32.mrf.mxu0
    %v6074 = vpop.f32.mrf.mxu0
    %v6075 = vadd.f32 %v5780, %v6074
    %v6076 = vpop.f32.mrf.mxu0
    %6077 = vmatprep.mubr.bf16.mxu0 %v5884
    %6078 = vmatmul.mubr.bf16.gmra.mxu0 %v5732
    %v6079 = vpop.f32.mrf.mxu0
    %v6080 = vadd.f32 %v5780, %v6079
    %v6081 = vpop.f32.mrf.mxu0
    %v6082 = vpop.f32.mrf.mxu0
    %v6083 = vadd.f32 %v5780, %v6082
    %v6084 = vpop.f32.mrf.mxu0
    %6085 = vmatprep.mubr.bf16.mxu0 %v5887
    %6086 = vmatmul.mubr.bf16.gmra.mxu0 %v5734
    %v6087 = vpop.f32.mrf.mxu0
    %v6088 = vadd.f32 %v5780, %v6087
    %v6089 = vpop.f32.mrf.mxu0
    %v6090 = vpop.f32.mrf.mxu0
    %v6091 = vadd.f32 %v5780, %v6090
    %v6092 = vpop.f32.mrf.mxu0
    %6093 = vmatprep.mubr.bf16.mxu0 %v5890
    %6094 = vmatmul.mubr.bf16.gmra.mxu0 %v5736
    %v6095 = vpop.f32.mrf.mxu0
    %v6096 = vadd.f32 %v5780, %v6095
    %v6097 = vpop.f32.mrf.mxu0
    %v6098 = vpop.f32.mrf.mxu0
    %v6099 = vadd.f32 %v5780, %v6098
    %v6100 = vpop.f32.mrf.mxu0
    %6101 = vmatprep.mubr.bf16.mxu0 %v5893
    %6102 = vmatmul.mubr.bf16.gmra.mxu0 %v5738
    %v6103 = vpop.f32.mrf.mxu0
    %v6104 = vadd.f32 %v5780, %v6103
    %v6105 = vpop.f32.mrf.mxu0
    %v6106 = vpop.f32.mrf.mxu0
    %v6107 = vadd.f32 %v5780, %v6106
    %v6108 = vpop.f32.mrf.mxu0
    %6109 = vmatprep.mubr.bf16.mxu0 %v5896
    %6110 = vmatmul.mubr.bf16.gmra.mxu0 %v5740
    %v6111 = vpop.f32.mrf.mxu0
    %v6112 = vadd.f32 %v5780, %v6111
    %v6113 = vpop.f32.mrf.mxu0
    %v6114 = vpop.f32.mrf.mxu0
    %v6115 = vadd.f32 %v5780, %v6114
    %v6116 = vpop.f32.mrf.mxu0
    %6117 = vmatprep.mubr.bf16.mxu0 %v5899
    %6118 = vmatmul.mubr.bf16.gmra.mxu0 %v5742
    %v6119 = vpop.f32.mrf.mxu0
    %v6120 = vadd.f32 %v5780, %v6119
    %v6121 = vpop.f32.mrf.mxu0
    %v6122 = vpop.f32.mrf.mxu0
    %v6123 = vadd.f32 %v5780, %v6122
    %v6124 = vpop.f32.mrf.mxu0
    %6125 = vmatprep.mubr.bf16.mxu0 %v5902
    %6126 = vmatmul.mubr.bf16.gmra.mxu0 %v5744
    %v6127 = vpop.f32.mrf.mxu0
    %v6128 = vadd.f32 %v5780, %v6127
    %v6129 = vpop.f32.mrf.mxu0
    %v6130 = vpop.f32.mrf.mxu0
    %v6131 = vadd.f32 %v5780, %v6130
    %v6132 = vpop.f32.mrf.mxu0
    %6133 = vmatprep.mubr.bf16.mxu0 %v5905
    %6134 = vmatmul.mubr.bf16.gmra.mxu0 %v5746
    %v6135 = vpop.f32.mrf.mxu0
    %v6136 = vadd.f32 %v5780, %v6135
    %v6137 = vpop.f32.mrf.mxu0
    %v6138 = vpop.f32.mrf.mxu0
    %v6139 = vadd.f32 %v5780, %v6138
    %v6140 = vpop.f32.mrf.mxu0
    %6141 = vmatprep.mubr.bf16.mxu0 %v5908
    %6142 = vmatmul.mubr.bf16.gmra.mxu0 %v5748
    %v6143 = vpop.f32.mrf.mxu0
    %v6144 = vadd.f32 %v5780, %v6143
    %v6145 = vpop.f32.mrf.mxu0
    %v6146 = vpop.f32.mrf.mxu0
    %v6147 = vadd.f32 %v5780, %v6146
    %v6148 = vpop.f32.mrf.mxu0
    %6149 = vmatprep.mubr.bf16.mxu0 %v5911
    %6150 = vmatmul.mubr.bf16.gmra.mxu0 %v5750
    %v6151 = vpop.f32.mrf.mxu0
    %v6152 = vadd.f32 %v5780, %v6151
    %v6153 = vpop.f32.mrf.mxu0
    %v6154 = vpop.f32.mrf.mxu0
    %v6155 = vadd.f32 %v5780, %v6154
    %v6156 = vpop.f32.mrf.mxu0
    %6157 = vmatprep.mubr.bf16.mxu0 %v5914
    %6158 = vmatmul.mubr.bf16.gmra.mxu0 %v5752
    %v6159 = vpop.f32.mrf.mxu0
    %v6160 = vadd.f32 %v5780, %v6159
    %v6161 = vpop.f32.mrf.mxu0
    %v6162 = vpop.f32.mrf.mxu0
    %v6163 = vadd.f32 %v5780, %v6162
    %v6164 = vpop.f32.mrf.mxu0
    %6165 = vmatprep.mubr.bf16.mxu0 %v5917
    %6166 = vmatmul.mubr.bf16.gmra.mxu0 %v5754
    %v6167 = vpop.f32.mrf.mxu0
    %v6168 = vadd.f32 %v5780, %v6167
    %v6169 = vpop.f32.mrf.mxu0
    %v6170 = vpop.f32.mrf.mxu0
    %v6171 = vadd.f32 %v5780, %v6170
    %v6172 = vpop.f32.mrf.mxu0
    %6173 = vmatprep.mubr.bf16.mxu0 %v5920
    %6174 = vmatmul.mubr.bf16.gmra.mxu0 %v5756
    %v6175 = vpop.f32.mrf.mxu0
    %v6176 = vadd.f32 %v5780, %v6175
    %v6177 = vpop.f32.mrf.mxu0
    %v6178 = vpop.f32.mrf.mxu0
    %v6179 = vadd.f32 %v5780, %v6178
    %v6180 = vpop.f32.mrf.mxu0
    %6181 = vdwg.mxu0
    %v6182 = vld [vmem:[%s1] sm:$0xf]
    %v6183 = vld [vmem:[%s1 + $0x4] sm:$0xf]
    %v6184 = vld [vmem:[%s1 + $0x8] sm:$0xf]
    %v6185 = vld [vmem:[%s1 + $0xc] sm:$0xf]
    %v6186 = vld [vmem:[%s1 + $0x10] sm:$0xf]
    %v6187 = vld [vmem:[%s1 + $0x14] sm:$0xf]
    %v6188 = vld [vmem:[%s1 + $0x18] sm:$0xf]
    %v6189 = vld [vmem:[%s1 + $0x1c] sm:$0xf]
    %vm6190 = vcmask 457728
    %v6192 = vsel %vm6190, %v6182, 0
    %6194 = vmatprep.subr.mxu0 0.0
    %6195 = vmatpush1.msra.mxu0 0.0
    %6196 = vmatprep.subr.mxu0 0.0
    %6197 = vmatpush1.msra.mxu0 0.0
    %6198 = vmatprep.subr.mxu0 0.0
    %6199 = vmatpush1.msra.mxu0 0.0
    %6200 = vmatprep.subr.mxu0 0.0
    %6201 = vmatpush1.msra.mxu0 0.0
    %6202 = vmatprep.subr.mxu0 0.0
    %6203 = vmatpush1.msra.mxu0 0.0
    %6204 = vmatprep.subr.mxu0 0.0
    %6205 = vmatpush1.msra.mxu0 0.0
    %6206 = vmatprep.subr.mxu0 0.0
    %6207 = vmatpush1.msra.mxu0 0.0
    %6208 = vmatprep.subr.mxu0 0.0
    %6209 = vmatpush1.msra.mxu0 0.0
    %6210 = vmatprep.subr.mxu0 0.0
    %6211 = vmatpush1.msra.mxu0 0.0
    %6212 = vmatprep.subr.mxu0 0.0
    %6213 = vmatpush1.msra.mxu0 %v5984
    %6214 = vmatprep.subr.mxu0 0.0
    %6215 = vmatpush1.msra.mxu0 %v5979
    %6216 = vmatprep.subr.mxu0 0.0
    %6217 = vmatpush1.msra.mxu0 %v5976
    %6218 = vmatprep.subr.mxu0 0.0
    %6219 = vmatpush1.msra.mxu0 %v5971
    %6220 = vmatprep.subr.mxu0 0.0
    %6221 = vmatpush1.msra.mxu0 %v5968
    %6222 = vmatprep.subr.mxu0 0.0
    %6223 = vmatpush1.msra.mxu0 %v5963
    %6224 = vmatprep.subr.mxu0 0.0
    %6225 = vmatpush1.msra.mxu0 %v5960
    %6226 = vmatprep.subr.mxu0 0.0
    %6227 = vmatpush2.msra.mxu0 0.0
    %6228 = vmatprep.subr.mxu0 0.0
    %6229 = vmatpush2.msra.mxu0 0.0
    %6230 = vmatprep.subr.mxu0 0.0
    %6231 = vmatpush2.msra.mxu0 0.0
    %6232 = vmatprep.subr.mxu0 0.0
    %6233 = vmatpush2.msra.mxu0 0.0
    %6234 = vmatprep.subr.mxu0 0.0
    %6235 = vmatpush2.msra.mxu0 0.0
    %6236 = vmatprep.subr.mxu0 0.0
    %6237 = vmatpush2.msra.mxu0 0.0
    %6238 = vmatprep.subr.mxu0 0.0
    %6239 = vmatpush2.msra.mxu0 0.0
    %6240 = vmatprep.subr.mxu0 0.0
    %6241 = vmatpush2.msra.mxu0 0.0
    %6242 = vmatprep.subr.mxu0 0.0
    %6243 = vmatpush2.msra.mxu0 0.0
    %6244 = vmatprep.subr.mxu0 0.0
    %6245 = vmatpush2.msra.mxu0 0.0
    %6246 = vmatprep.subr.mxu0 0.0
    %6247 = vmatpush2.msra.mxu0 0.0
    %6248 = vmatprep.subr.mxu0 0.0
    %6249 = vmatpush2.msra.mxu0 0.0
    %6250 = vmatprep.subr.mxu0 0.0
    %6251 = vmatpush2.msra.mxu0 0.0
    %6252 = vmatprep.subr.mxu0 0.0
    %6253 = vmatpush2.msra.mxu0 0.0
    %6254 = vmatprep.subr.mxu0 0.0
    %6255 = vmatpush2.msra.mxu0 0.0
    %6256 = vmatprep.subr.mxu0 0.0
    %6257 = vmatpush2.msra.mxu0 0.0
    %6258 = vmatprep.mubr.bf16.mxu0 0
    %6259 = vmatmul.mubr.bf16.gmra.mxu0 %v6192
    %v6260 = vpop.f32.mrf.mxu0
    %v6261 = vadd.f32 0.0, %v6260
    %v6262 = vpop.f32.mrf.mxu0
    %v6263 = vpop.f32.mrf.mxu0
    %v6264 = vpop.f32.mrf.mxu0
    %6265 = vdwg.mxu0
    %v6267 = vsel %vm6190, %v6183, 0
    %6269 = vmatprep.subr.mxu0 0.0
    %6270 = vmatpush1.msra.mxu0 0.0
    %6271 = vmatprep.subr.mxu0 0.0
    %6272 = vmatpush1.msra.mxu0 0.0
    %6273 = vmatprep.subr.mxu0 0.0
    %6274 = vmatpush1.msra.mxu0 0.0
    %6275 = vmatprep.subr.mxu0 0.0
    %6276 = vmatpush1.msra.mxu0 0.0
    %6277 = vmatprep.subr.mxu0 0.0
    %6278 = vmatpush1.msra.mxu0 0.0
    %6279 = vmatprep.subr.mxu0 0.0
    %6280 = vmatpush1.msra.mxu0 0.0
    %6281 = vmatprep.subr.mxu0 0.0
    %6282 = vmatpush1.msra.mxu0 0.0
    %6283 = vmatprep.subr.mxu0 0.0
    %6284 = vmatpush1.msra.mxu0 0.0
    %6285 = vmatprep.subr.mxu0 0.0
    %6286 = vmatpush1.msra.mxu0 0.0
    %6287 = vmatprep.subr.mxu0 0.0
    %6288 = vmatpush1.msra.mxu0 %v6011
    %6289 = vmatprep.subr.mxu0 0.0
    %6290 = vmatpush1.msra.mxu0 %v6008
    %6291 = vmatprep.subr.mxu0 0.0
    %6292 = vmatpush1.msra.mxu0 %v6003
    %6293 = vmatprep.subr.mxu0 0.0
    %6294 = vmatpush1.msra.mxu0 %v6000
    %6295 = vmatprep.subr.mxu0 0.0
    %6296 = vmatpush1.msra.mxu0 %v5995
    %6297 = vmatprep.subr.mxu0 0.0
    %6298 = vmatpush1.msra.mxu0 %v5992
    %6299 = vmatprep.subr.mxu0 0.0
    %6300 = vmatpush1.msra.mxu0 %v5987
    %6301 = vmatprep.subr.mxu0 0.0
    %6302 = vmatpush2.msra.mxu0 0.0
    %6303 = vmatprep.subr.mxu0 0.0
    %6304 = vmatpush2.msra.mxu0 0.0
    %6305 = vmatprep.subr.mxu0 0.0
    %6306 = vmatpush2.msra.mxu0 0.0
    %6307 = vmatprep.subr.mxu0 0.0
    %6308 = vmatpush2.msra.mxu0 0.0
    %6309 = vmatprep.subr.mxu0 0.0
    %6310 = vmatpush2.msra.mxu0 0.0
    %6311 = vmatprep.subr.mxu0 0.0
    %6312 = vmatpush2.msra.mxu0 0.0
    %6313 = vmatprep.subr.mxu0 0.0
    %6314 = vmatpush2.msra.mxu0 0.0
    %6315 = vmatprep.subr.mxu0 0.0
    %6316 = vmatpush2.msra.mxu0 0.0
    %6317 = vmatprep.subr.mxu0 0.0
    %6318 = vmatpush2.msra.mxu0 0.0
    %6319 = vmatprep.subr.mxu0 0.0
    %6320 = vmatpush2.msra.mxu0 0.0
    %6321 = vmatprep.subr.mxu0 0.0
    %6322 = vmatpush2.msra.mxu0 0.0
    %6323 = vmatprep.subr.mxu0 0.0
    %6324 = vmatpush2.msra.mxu0 0.0
    %6325 = vmatprep.subr.mxu0 0.0
    %6326 = vmatpush2.msra.mxu0 0.0
    %6327 = vmatprep.subr.mxu0 0.0
    %6328 = vmatpush2.msra.mxu0 0.0
    %6329 = vmatprep.subr.mxu0 0.0
    %6330 = vmatpush2.msra.mxu0 0.0
    %6331 = vmatprep.subr.mxu0 0.0
    %6332 = vmatpush2.msra.mxu0 0.0
    %6333 = vmatprep.mubr.bf16.mxu0 0
    %6334 = vmatmul.mubr.bf16.gmra.mxu0 %v6267
    %v6335 = vpop.f32.mrf.mxu0
    %v6336 = vadd.f32 0.0, %v6335
    %v6337 = vpop.f32.mrf.mxu0
    %v6338 = vpop.f32.mrf.mxu0
    %v6339 = vpop.f32.mrf.mxu0
    %6340 = vdwg.mxu0
    %v6342 = vsel %vm6190, %v6184, 0
    %6344 = vmatprep.subr.mxu0 0.0
    %6345 = vmatpush1.msra.mxu0 0.0
    %6346 = vmatprep.subr.mxu0 0.0
    %6347 = vmatpush1.msra.mxu0 0.0
    %6348 = vmatprep.subr.mxu0 0.0
    %6349 = vmatpush1.msra.mxu0 0.0
    %6350 = vmatprep.subr.mxu0 0.0
    %6351 = vmatpush1.msra.mxu0 0.0
    %6352 = vmatprep.subr.mxu0 0.0
    %6353 = vmatpush1.msra.mxu0 0.0
    %6354 = vmatprep.subr.mxu0 0.0
    %6355 = vmatpush1.msra.mxu0 0.0
    %6356 = vmatprep.subr.mxu0 0.0
    %6357 = vmatpush1.msra.mxu0 0.0
    %6358 = vmatprep.subr.mxu0 0.0
    %6359 = vmatpush1.msra.mxu0 0.0
    %6360 = vmatprep.subr.mxu0 0.0
    %6361 = vmatpush1.msra.mxu0 0.0
    %6362 = vmatprep.subr.mxu0 0.0
    %6363 = vmatpush1.msra.mxu0 %v6040
    %6364 = vmatprep.subr.mxu0 0.0
    %6365 = vmatpush1.msra.mxu0 %v6035
    %6366 = vmatprep.subr.mxu0 0.0
    %6367 = vmatpush1.msra.mxu0 %v6032
    %6368 = vmatprep.subr.mxu0 0.0
    %6369 = vmatpush1.msra.mxu0 %v6027
    %6370 = vmatprep.subr.mxu0 0.0
    %6371 = vmatpush1.msra.mxu0 %v6024
    %6372 = vmatprep.subr.mxu0 0.0
    %6373 = vmatpush1.msra.mxu0 %v6019
    %6374 = vmatprep.subr.mxu0 0.0
    %6375 = vmatpush1.msra.mxu0 %v6016
    %6376 = vmatprep.subr.mxu0 0.0
    %6377 = vmatpush2.msra.mxu0 0.0
    %6378 = vmatprep.subr.mxu0 0.0
    %6379 = vmatpush2.msra.mxu0 0.0
    %6380 = vmatprep.subr.mxu0 0.0
    %6381 = vmatpush2.msra.mxu0 0.0
    %6382 = vmatprep.subr.mxu0 0.0
    %6383 = vmatpush2.msra.mxu0 0.0
    %6384 = vmatprep.subr.mxu0 0.0
    %6385 = vmatpush2.msra.mxu0 0.0
    %6386 = vmatprep.subr.mxu0 0.0
    %6387 = vmatpush2.msra.mxu0 0.0
    %6388 = vmatprep.subr.mxu0 0.0
    %6389 = vmatpush2.msra.mxu0 0.0
    %6390 = vmatprep.subr.mxu0 0.0
    %6391 = vmatpush2.msra.mxu0 0.0
    %6392 = vmatprep.subr.mxu0 0.0
    %6393 = vmatpush2.msra.mxu0 0.0
    %6394 = vmatprep.subr.mxu0 0.0
    %6395 = vmatpush2.msra.mxu0 0.0
    %6396 = vmatprep.subr.mxu0 0.0
    %6397 = vmatpush2.msra.mxu0 0.0
    %6398 = vmatprep.subr.mxu0 0.0
    %6399 = vmatpush2.msra.mxu0 0.0
    %6400 = vmatprep.subr.mxu0 0.0
    %6401 = vmatpush2.msra.mxu0 0.0
    %6402 = vmatprep.subr.mxu0 0.0
    %6403 = vmatpush2.msra.mxu0 0.0
    %6404 = vmatprep.subr.mxu0 0.0
    %6405 = vmatpush2.msra.mxu0 0.0
    %6406 = vmatprep.subr.mxu0 0.0
    %6407 = vmatpush2.msra.mxu0 0.0
    %6408 = vmatprep.mubr.bf16.mxu0 0
    %6409 = vmatmul.mubr.bf16.gmra.mxu0 %v6342
    %v6410 = vpop.f32.mrf.mxu0
    %v6411 = vadd.f32 0.0, %v6410
    %v6412 = vpop.f32.mrf.mxu0
    %v6413 = vpop.f32.mrf.mxu0
    %v6414 = vpop.f32.mrf.mxu0
    %6415 = vdwg.mxu0
    %v6417 = vsel %vm6190, %v6185, 0
    %6419 = vmatprep.subr.mxu0 0.0
    %6420 = vmatpush1.msra.mxu0 0.0
    %6421 = vmatprep.subr.mxu0 0.0
    %6422 = vmatpush1.msra.mxu0 0.0
    %6423 = vmatprep.subr.mxu0 0.0
    %6424 = vmatpush1.msra.mxu0 0.0
    %6425 = vmatprep.subr.mxu0 0.0
    %6426 = vmatpush1.msra.mxu0 0.0
    %6427 = vmatprep.subr.mxu0 0.0
    %6428 = vmatpush1.msra.mxu0 0.0
    %6429 = vmatprep.subr.mxu0 0.0
    %6430 = vmatpush1.msra.mxu0 0.0
    %6431 = vmatprep.subr.mxu0 0.0
    %6432 = vmatpush1.msra.mxu0 0.0
    %6433 = vmatprep.subr.mxu0 0.0
    %6434 = vmatpush1.msra.mxu0 0.0
    %6435 = vmatprep.subr.mxu0 0.0
    %6436 = vmatpush1.msra.mxu0 0.0
    %6437 = vmatprep.subr.mxu0 0.0
    %6438 = vmatpush1.msra.mxu0 %v6067
    %6439 = vmatprep.subr.mxu0 0.0
    %6440 = vmatpush1.msra.mxu0 %v6064
    %6441 = vmatprep.subr.mxu0 0.0
    %6442 = vmatpush1.msra.mxu0 %v6059
    %6443 = vmatprep.subr.mxu0 0.0
    %6444 = vmatpush1.msra.mxu0 %v6056
    %6445 = vmatprep.subr.mxu0 0.0
    %6446 = vmatpush1.msra.mxu0 %v6051
    %6447 = vmatprep.subr.mxu0 0.0
    %6448 = vmatpush1.msra.mxu0 %v6048
    %6449 = vmatprep.subr.mxu0 0.0
    %6450 = vmatpush1.msra.mxu0 %v6043
    %6451 = vmatprep.subr.mxu0 0.0
    %6452 = vmatpush2.msra.mxu0 0.0
    %6453 = vmatprep.subr.mxu0 0.0
    %6454 = vmatpush2.msra.mxu0 0.0
    %6455 = vmatprep.subr.mxu0 0.0
    %6456 = vmatpush2.msra.mxu0 0.0
    %6457 = vmatprep.subr.mxu0 0.0
    %6458 = vmatpush2.msra.mxu0 0.0
    %6459 = vmatprep.subr.mxu0 0.0
    %6460 = vmatpush2.msra.mxu0 0.0
    %6461 = vmatprep.subr.mxu0 0.0
    %6462 = vmatpush2.msra.mxu0 0.0
    %6463 = vmatprep.subr.mxu0 0.0
    %6464 = vmatpush2.msra.mxu0 0.0
    %6465 = vmatprep.subr.mxu0 0.0
    %6466 = vmatpush2.msra.mxu0 0.0
    %6467 = vmatprep.subr.mxu0 0.0
    %6468 = vmatpush2.msra.mxu0 0.0
    %6469 = vmatprep.subr.mxu0 0.0
    %6470 = vmatpush2.msra.mxu0 0.0
    %6471 = vmatprep.subr.mxu0 0.0
    %6472 = vmatpush2.msra.mxu0 0.0
    %6473 = vmatprep.subr.mxu0 0.0
    %6474 = vmatpush2.msra.mxu0 0.0
    %6475 = vmatprep.subr.mxu0 0.0
    %6476 = vmatpush2.msra.mxu0 0.0
    %6477 = vmatprep.subr.mxu0 0.0
    %6478 = vmatpush2.msra.mxu0 0.0
    %6479 = vmatprep.subr.mxu0 0.0
    %6480 = vmatpush2.msra.mxu0 0.0
    %6481 = vmatprep.subr.mxu0 0.0
    %6482 = vmatpush2.msra.mxu0 0.0
    %6483 = vmatprep.mubr.bf16.mxu0 0
    %6484 = vmatmul.mubr.bf16.gmra.mxu0 %v6417
    %v6485 = vpop.f32.mrf.mxu0
    %v6486 = vadd.f32 0.0, %v6485
    %v6487 = vpop.f32.mrf.mxu0
    %v6488 = vpop.f32.mrf.mxu0
    %v6489 = vpop.f32.mrf.mxu0
    %6490 = vdwg.mxu0
    %v6492 = vsel %vm6190, %v6186, 0
    %6494 = vmatprep.subr.mxu0 0.0
    %6495 = vmatpush1.msra.mxu0 0.0
    %6496 = vmatprep.subr.mxu0 0.0
    %6497 = vmatpush1.msra.mxu0 0.0
    %6498 = vmatprep.subr.mxu0 0.0
    %6499 = vmatpush1.msra.mxu0 0.0
    %6500 = vmatprep.subr.mxu0 0.0
    %6501 = vmatpush1.msra.mxu0 0.0
    %6502 = vmatprep.subr.mxu0 0.0
    %6503 = vmatpush1.msra.mxu0 0.0
    %6504 = vmatprep.subr.mxu0 0.0
    %6505 = vmatpush1.msra.mxu0 0.0
    %6506 = vmatprep.subr.mxu0 0.0
    %6507 = vmatpush1.msra.mxu0 0.0
    %6508 = vmatprep.subr.mxu0 0.0
    %6509 = vmatpush1.msra.mxu0 0.0
    %6510 = vmatprep.subr.mxu0 0.0
    %6511 = vmatpush1.msra.mxu0 0.0
    %6512 = vmatprep.subr.mxu0 0.0
    %6513 = vmatpush1.msra.mxu0 %v6096
    %6514 = vmatprep.subr.mxu0 0.0
    %6515 = vmatpush1.msra.mxu0 %v6091
    %6516 = vmatprep.subr.mxu0 0.0
    %6517 = vmatpush1.msra.mxu0 %v6088
    %6518 = vmatprep.subr.mxu0 0.0
    %6519 = vmatpush1.msra.mxu0 %v6083
    %6520 = vmatprep.subr.mxu0 0.0
    %6521 = vmatpush1.msra.mxu0 %v6080
    %6522 = vmatprep.subr.mxu0 0.0
    %6523 = vmatpush1.msra.mxu0 %v6075
    %6524 = vmatprep.subr.mxu0 0.0
    %6525 = vmatpush1.msra.mxu0 %v6072
    %6526 = vmatprep.subr.mxu0 0.0
    %6527 = vmatpush2.msra.mxu0 0.0
    %6528 = vmatprep.subr.mxu0 0.0
    %6529 = vmatpush2.msra.mxu0 0.0
    %6530 = vmatprep.subr.mxu0 0.0
    %6531 = vmatpush2.msra.mxu0 0.0
    %6532 = vmatprep.subr.mxu0 0.0
    %6533 = vmatpush2.msra.mxu0 0.0
    %6534 = vmatprep.subr.mxu0 0.0
    %6535 = vmatpush2.msra.mxu0 0.0
    %6536 = vmatprep.subr.mxu0 0.0
    %6537 = vmatpush2.msra.mxu0 0.0
    %6538 = vmatprep.subr.mxu0 0.0
    %6539 = vmatpush2.msra.mxu0 0.0
    %6540 = vmatprep.subr.mxu0 0.0
    %6541 = vmatpush2.msra.mxu0 0.0
    %6542 = vmatprep.subr.mxu0 0.0
    %6543 = vmatpush2.msra.mxu0 0.0
    %6544 = vmatprep.subr.mxu0 0.0
    %6545 = vmatpush2.msra.mxu0 0.0
    %6546 = vmatprep.subr.mxu0 0.0
    %6547 = vmatpush2.msra.mxu0 0.0
    %6548 = vmatprep.subr.mxu0 0.0
    %6549 = vmatpush2.msra.mxu0 0.0
    %6550 = vmatprep.subr.mxu0 0.0
    %6551 = vmatpush2.msra.mxu0 0.0
    %6552 = vmatprep.subr.mxu0 0.0
    %6553 = vmatpush2.msra.mxu0 0.0
    %6554 = vmatprep.subr.mxu0 0.0
    %6555 = vmatpush2.msra.mxu0 0.0
    %6556 = vmatprep.subr.mxu0 0.0
    %6557 = vmatpush2.msra.mxu0 0.0
    %6558 = vmatprep.mubr.bf16.mxu0 0
    %6559 = vmatmul.mubr.bf16.gmra.mxu0 %v6492
    %v6560 = vpop.f32.mrf.mxu0
    %v6561 = vadd.f32 0.0, %v6560
    %v6562 = vpop.f32.mrf.mxu0
    %v6563 = vpop.f32.mrf.mxu0
    %v6564 = vpop.f32.mrf.mxu0
    %6565 = vdwg.mxu0
    %v6567 = vsel %vm6190, %v6187, 0
    %6569 = vmatprep.subr.mxu0 0.0
    %6570 = vmatpush1.msra.mxu0 0.0
    %6571 = vmatprep.subr.mxu0 0.0
    %6572 = vmatpush1.msra.mxu0 0.0
    %6573 = vmatprep.subr.mxu0 0.0
    %6574 = vmatpush1.msra.mxu0 0.0
    %6575 = vmatprep.subr.mxu0 0.0
    %6576 = vmatpush1.msra.mxu0 0.0
    %6577 = vmatprep.subr.mxu0 0.0
    %6578 = vmatpush1.msra.mxu0 0.0
    %6579 = vmatprep.subr.mxu0 0.0
    %6580 = vmatpush1.msra.mxu0 0.0
    %6581 = vmatprep.subr.mxu0 0.0
    %6582 = vmatpush1.msra.mxu0 0.0
    %6583 = vmatprep.subr.mxu0 0.0
    %6584 = vmatpush1.msra.mxu0 0.0
    %6585 = vmatprep.subr.mxu0 0.0
    %6586 = vmatpush1.msra.mxu0 0.0
    %6587 = vmatprep.subr.mxu0 0.0
    %6588 = vmatpush1.msra.mxu0 %v6123
    %6589 = vmatprep.subr.mxu0 0.0
    %6590 = vmatpush1.msra.mxu0 %v6120
    %6591 = vmatprep.subr.mxu0 0.0
    %6592 = vmatpush1.msra.mxu0 %v6115
    %6593 = vmatprep.subr.mxu0 0.0
    %6594 = vmatpush1.msra.mxu0 %v6112
    %6595 = vmatprep.subr.mxu0 0.0
    %6596 = vmatpush1.msra.mxu0 %v6107
    %6597 = vmatprep.subr.mxu0 0.0
    %6598 = vmatpush1.msra.mxu0 %v6104
    %6599 = vmatprep.subr.mxu0 0.0
    %6600 = vmatpush1.msra.mxu0 %v6099
    %6601 = vmatprep.subr.mxu0 0.0
    %6602 = vmatpush2.msra.mxu0 0.0
    %6603 = vmatprep.subr.mxu0 0.0
    %6604 = vmatpush2.msra.mxu0 0.0
    %6605 = vmatprep.subr.mxu0 0.0
    %6606 = vmatpush2.msra.mxu0 0.0
    %6607 = vmatprep.subr.mxu0 0.0
    %6608 = vmatpush2.msra.mxu0 0.0
    %6609 = vmatprep.subr.mxu0 0.0
    %6610 = vmatpush2.msra.mxu0 0.0
    %6611 = vmatprep.subr.mxu0 0.0
    %6612 = vmatpush2.msra.mxu0 0.0
    %6613 = vmatprep.subr.mxu0 0.0
    %6614 = vmatpush2.msra.mxu0 0.0
    %6615 = vmatprep.subr.mxu0 0.0
    %6616 = vmatpush2.msra.mxu0 0.0
    %6617 = vmatprep.subr.mxu0 0.0
    %6618 = vmatpush2.msra.mxu0 0.0
    %6619 = vmatprep.subr.mxu0 0.0
    %6620 = vmatpush2.msra.mxu0 0.0
    %6621 = vmatprep.subr.mxu0 0.0
    %6622 = vmatpush2.msra.mxu0 0.0
    %6623 = vmatprep.subr.mxu0 0.0
    %6624 = vmatpush2.msra.mxu0 0.0
    %6625 = vmatprep.subr.mxu0 0.0
    %6626 = vmatpush2.msra.mxu0 0.0
    %6627 = vmatprep.subr.mxu0 0.0
    %6628 = vmatpush2.msra.mxu0 0.0
    %6629 = vmatprep.subr.mxu0 0.0
    %6630 = vmatpush2.msra.mxu0 0.0
    %6631 = vmatprep.subr.mxu0 0.0
    %6632 = vmatpush2.msra.mxu0 0.0
    %6633 = vmatprep.mubr.bf16.mxu0 0
    %6634 = vmatmul.mubr.bf16.gmra.mxu0 %v6567
    %v6635 = vpop.f32.mrf.mxu0
    %v6636 = vadd.f32 0.0, %v6635
    %v6637 = vpop.f32.mrf.mxu0
    %v6638 = vpop.f32.mrf.mxu0
    %v6639 = vpop.f32.mrf.mxu0
    %6640 = vdwg.mxu0
    %v6642 = vsel %vm6190, %v6188, 0
    %6644 = vmatprep.subr.mxu0 0.0
    %6645 = vmatpush1.msra.mxu0 0.0
    %6646 = vmatprep.subr.mxu0 0.0
    %6647 = vmatpush1.msra.mxu0 0.0
    %6648 = vmatprep.subr.mxu0 0.0
    %6649 = vmatpush1.msra.mxu0 0.0
    %6650 = vmatprep.subr.mxu0 0.0
    %6651 = vmatpush1.msra.mxu0 0.0
    %6652 = vmatprep.subr.mxu0 0.0
    %6653 = vmatpush1.msra.mxu0 0.0
    %6654 = vmatprep.subr.mxu0 0.0
    %6655 = vmatpush1.msra.mxu0 0.0
    %6656 = vmatprep.subr.mxu0 0.0
    %6657 = vmatpush1.msra.mxu0 0.0
    %6658 = vmatprep.subr.mxu0 0.0
    %6659 = vmatpush1.msra.mxu0 0.0
    %6660 = vmatprep.subr.mxu0 0.0
    %6661 = vmatpush1.msra.mxu0 0.0
    %6662 = vmatprep.subr.mxu0 0.0
    %6663 = vmatpush1.msra.mxu0 %v6152
    %6664 = vmatprep.subr.mxu0 0.0
    %6665 = vmatpush1.msra.mxu0 %v6147
    %6666 = vmatprep.subr.mxu0 0.0
    %6667 = vmatpush1.msra.mxu0 %v6144
    %6668 = vmatprep.subr.mxu0 0.0
    %6669 = vmatpush1.msra.mxu0 %v6139
    %6670 = vmatprep.subr.mxu0 0.0
    %6671 = vmatpush1.msra.mxu0 %v6136
    %6672 = vmatprep.subr.mxu0 0.0
    %6673 = vmatpush1.msra.mxu0 %v6131
    %6674 = vmatprep.subr.mxu0 0.0
    %6675 = vmatpush1.msra.mxu0 %v6128
    %6676 = vmatprep.subr.mxu0 0.0
    %6677 = vmatpush2.msra.mxu0 0.0
    %6678 = vmatprep.subr.mxu0 0.0
    %6679 = vmatpush2.msra.mxu0 0.0
    %6680 = vmatprep.subr.mxu0 0.0
    %6681 = vmatpush2.msra.mxu0 0.0
    %6682 = vmatprep.subr.mxu0 0.0
    %6683 = vmatpush2.msra.mxu0 0.0
    %6684 = vmatprep.subr.mxu0 0.0
    %6685 = vmatpush2.msra.mxu0 0.0
    %6686 = vmatprep.subr.mxu0 0.0
    %6687 = vmatpush2.msra.mxu0 0.0
    %6688 = vmatprep.subr.mxu0 0.0
    %6689 = vmatpush2.msra.mxu0 0.0
    %6690 = vmatprep.subr.mxu0 0.0
    %6691 = vmatpush2.msra.mxu0 0.0
    %6692 = vmatprep.subr.mxu0 0.0
    %6693 = vmatpush2.msra.mxu0 0.0
    %6694 = vmatprep.subr.mxu0 0.0
    %6695 = vmatpush2.msra.mxu0 0.0
    %6696 = vmatprep.subr.mxu0 0.0
    %6697 = vmatpush2.msra.mxu0 0.0
    %6698 = vmatprep.subr.mxu0 0.0
    %6699 = vmatpush2.msra.mxu0 0.0
    %6700 = vmatprep.subr.mxu0 0.0
    %6701 = vmatpush2.msra.mxu0 0.0
    %6702 = vmatprep.subr.mxu0 0.0
    %6703 = vmatpush2.msra.mxu0 0.0
    %6704 = vmatprep.subr.mxu0 0.0
    %6705 = vmatpush2.msra.mxu0 0.0
    %6706 = vmatprep.subr.mxu0 0.0
    %6707 = vmatpush2.msra.mxu0 0.0
    %6708 = vmatprep.mubr.bf16.mxu0 0
    %6709 = vmatmul.mubr.bf16.gmra.mxu0 %v6642
    %v6710 = vpop.f32.mrf.mxu0
    %v6711 = vadd.f32 0.0, %v6710
    %v6712 = vpop.f32.mrf.mxu0
    %v6713 = vpop.f32.mrf.mxu0
    %v6714 = vpop.f32.mrf.mxu0
    %6715 = vdwg.mxu0
    %v6717 = vsel %vm6190, %v6189, 0
    %6719 = vmatprep.subr.mxu0 0.0
    %6720 = vmatpush1.msra.mxu0 0.0
    %6721 = vmatprep.subr.mxu0 0.0
    %6722 = vmatpush1.msra.mxu0 0.0
    %6723 = vmatprep.subr.mxu0 0.0
    %6724 = vmatpush1.msra.mxu0 0.0
    %6725 = vmatprep.subr.mxu0 0.0
    %6726 = vmatpush1.msra.mxu0 0.0
    %6727 = vmatprep.subr.mxu0 0.0
    %6728 = vmatpush1.msra.mxu0 0.0
    %6729 = vmatprep.subr.mxu0 0.0
    %6730 = vmatpush1.msra.mxu0 0.0
    %6731 = vmatprep.subr.mxu0 0.0
    %6732 = vmatpush1.msra.mxu0 0.0
    %6733 = vmatprep.subr.mxu0 0.0
    %6734 = vmatpush1.msra.mxu0 0.0
    %6735 = vmatprep.subr.mxu0 0.0
    %6736 = vmatpush1.msra.mxu0 0.0
    %6737 = vmatprep.subr.mxu0 0.0
    %6738 = vmatpush1.msra.mxu0 %v6179
    %6739 = vmatprep.subr.mxu0 0.0
    %6740 = vmatpush1.msra.mxu0 %v6176
    %6741 = vmatprep.subr.mxu0 0.0
    %6742 = vmatpush1.msra.mxu0 %v6171
    %6743 = vmatprep.subr.mxu0 0.0
    %6744 = vmatpush1.msra.mxu0 %v6168
    %6745 = vmatprep.subr.mxu0 0.0
    %6746 = vmatpush1.msra.mxu0 %v6163
    %6747 = vmatprep.subr.mxu0 0.0
    %6748 = vmatpush1.msra.mxu0 %v6160
    %6749 = vmatprep.subr.mxu0 0.0
    %6750 = vmatpush1.msra.mxu0 %v6155
    %6751 = vmatprep.subr.mxu0 0.0
    %6752 = vmatpush2.msra.mxu0 0.0
    %6753 = vmatprep.subr.mxu0 0.0
    %6754 = vmatpush2.msra.mxu0 0.0
    %6755 = vmatprep.subr.mxu0 0.0
    %6756 = vmatpush2.msra.mxu0 0.0
    %6757 = vmatprep.subr.mxu0 0.0
    %6758 = vmatpush2.msra.mxu0 0.0
    %6759 = vmatprep.subr.mxu0 0.0
    %6760 = vmatpush2.msra.mxu0 0.0
    %6761 = vmatprep.subr.mxu0 0.0
    %6762 = vmatpush2.msra.mxu0 0.0
    %6763 = vmatprep.subr.mxu0 0.0
    %6764 = vmatpush2.msra.mxu0 0.0
    %6765 = vmatprep.subr.mxu0 0.0
    %6766 = vmatpush2.msra.mxu0 0.0
    %6767 = vmatprep.subr.mxu0 0.0
    %6768 = vmatpush2.msra.mxu0 0.0
    %6769 = vmatprep.subr.mxu0 0.0
    %6770 = vmatpush2.msra.mxu0 0.0
    %6771 = vmatprep.subr.mxu0 0.0
    %6772 = vmatpush2.msra.mxu0 0.0
    %6773 = vmatprep.subr.mxu0 0.0
    %6774 = vmatpush2.msra.mxu0 0.0
    %6775 = vmatprep.subr.mxu0 0.0
    %6776 = vmatpush2.msra.mxu0 0.0
    %6777 = vmatprep.subr.mxu0 0.0
    %6778 = vmatpush2.msra.mxu0 0.0
    %6779 = vmatprep.subr.mxu0 0.0
    %6780 = vmatpush2.msra.mxu0 0.0
    %6781 = vmatprep.subr.mxu0 0.0
    %6782 = vmatpush2.msra.mxu0 0.0
    %6783 = vmatprep.mubr.bf16.mxu0 0
    %6784 = vmatmul.mubr.bf16.gmra.mxu0 %v6717
    %v6785 = vpop.f32.mrf.mxu0
    %v6786 = vadd.f32 0.0, %v6785
    %v6787 = vpop.f32.mrf.mxu0
    %v6788 = vpop.f32.mrf.mxu0
    %v6789 = vpop.f32.mrf.mxu0
    %6790 = vdwg.mxu0
    %v6791 = vld [vmem:[%s5] sm:$0xff]
    %v6792 = vld [vmem:[%s5 + $0x8] sm:$0xff]
    %v6793 = vld [vmem:[%s5 + $0x10] sm:$0xff]
    %v6794 = vld [vmem:[%s5 + $0x18] sm:$0xff]
    %v6795 = vld [vmem:[%s5 + $0x20] sm:$0xff]
    %v6796 = vld [vmem:[%s5 + $0x28] sm:$0xff]
    %v6797 = vld [vmem:[%s5 + $0x30] sm:$0xff]
    %v6798 = vld [vmem:[%s5 + $0x38] sm:$0xff]
    %v6799 = vld [vmem:[%s13] sm:$0xff]
    %v6800 = vld [vmem:[%s13 + $0x8] sm:$0xff]
    %v6801 = vld [vmem:[%s13 + $0x10] sm:$0x1]
    %v6802 = vld [vmem:[%s15] sm:$0xff]
    %v6803 = vld [vmem:[%s15 + $0x8] sm:$0xff]
    %v6804 = vld [vmem:[%s15 + $0x10] sm:$0xff]
    %v6805 = vld [vmem:[%s15 + $0x18] sm:$0xff]
    %v6806 = vld [vmem:[%s15 + $0x20] sm:$0xff]
    %v6807 = vld [vmem:[%s15 + $0x28] sm:$0xff]
    %v6808 = vld [vmem:[%s15 + $0x30] sm:$0x3]
    %vm6809 = vcmask 408576
    %v6811 = vsel %vm6809, %v6261, 0
    %v6814 = vsel %vm6809, %v6336, 0
    %v6817 = vsel %vm6809, %v6411, 0
    %v6820 = vsel %vm6809, %v6486, 0
    %v6823 = vsel %vm6809, %v6561, 0
    %v6826 = vsel %vm6809, %v6636, 0
    %v6829 = vsel %vm6809, %v6711, 0
    %v6832 = vsel %vm6809, %v6786, 0
    %vm6834 = vcmask 1041408
    %v6836 = vsel %vm6834, %v6808, 0
    %6838 = vmatprep.subr.mxu0 0.0
    %6839 = vmatpush1.msra.mxu0 0.0
    %6840 = vmatprep.subr.mxu0 0.0
    %6841 = vmatpush1.msra.mxu0 0.0
    %6842 = vmatprep.subr.mxu0 0.0
    %6843 = vmatpush1.msra.mxu0 0.0
    %6844 = vmatprep.subr.mxu0 0.0
    %6845 = vmatpush1.msra.mxu0 0.0
    %6846 = vmatprep.subr.mxu0 0.0
    %6847 = vmatpush1.msra.mxu0 0.0
    %6848 = vmatprep.subr.mxu0 0.0
    %6849 = vmatpush1.msra.mxu0 0.0
    %6850 = vmatprep.subr.mxu0 0.0
    %6851 = vmatpush1.msra.mxu0 0.0
    %6852 = vmatprep.subr.mxu0 0.0
    %6853 = vmatpush1.msra.mxu0 0.0
    %6854 = vmatprep.subr.mxu0 0.0
    %6855 = vmatpush1.msra.mxu0 0.0
    %6856 = vmatprep.subr.mxu0 0.0
    %6857 = vmatpush1.msra.mxu0 %v6836
    %6858 = vmatprep.subr.mxu0 0.0
    %6859 = vmatpush1.msra.mxu0 %v6807
    %6860 = vmatprep.subr.mxu0 0.0
    %6861 = vmatpush1.msra.mxu0 %v6806
    %6862 = vmatprep.subr.mxu0 0.0
    %6863 = vmatpush1.msra.mxu0 %v6805
    %6864 = vmatprep.subr.mxu0 0.0
    %6865 = vmatpush1.msra.mxu0 %v6804
    %6866 = vmatprep.subr.mxu0 0.0
    %6867 = vmatpush1.msra.mxu0 %v6803
    %6868 = vmatprep.subr.mxu0 0.0
    %6869 = vmatpush1.msra.mxu0 %v6802
    %6870 = vmatprep.subr.mxu0 0.0
    %6871 = vmatpush2.msra.mxu0 0.0
    %6872 = vmatprep.subr.mxu0 0.0
    %6873 = vmatpush2.msra.mxu0 0.0
    %6874 = vmatprep.subr.mxu0 0.0
    %6875 = vmatpush2.msra.mxu0 0.0
    %6876 = vmatprep.subr.mxu0 0.0
    %6877 = vmatpush2.msra.mxu0 0.0
    %6878 = vmatprep.subr.mxu0 0.0
    %6879 = vmatpush2.msra.mxu0 0.0
    %6880 = vmatprep.subr.mxu0 0.0
    %6881 = vmatpush2.msra.mxu0 0.0
    %6882 = vmatprep.subr.mxu0 0.0
    %6883 = vmatpush2.msra.mxu0 0.0
    %6884 = vmatprep.subr.mxu0 0.0
    %6885 = vmatpush2.msra.mxu0 0.0
    %6886 = vmatprep.subr.mxu0 0.0
    %6887 = vmatpush2.msra.mxu0 0.0
    %6888 = vmatprep.subr.mxu0 0.0
    %6889 = vmatpush2.msra.mxu0 0.0
    %6890 = vmatprep.subr.mxu0 0.0
    %6891 = vmatpush2.msra.mxu0 0.0
    %6892 = vmatprep.subr.mxu0 0.0
    %6893 = vmatpush2.msra.mxu0 0.0
    %6894 = vmatprep.subr.mxu0 0.0
    %6895 = vmatpush2.msra.mxu0 0.0
    %6896 = vmatprep.subr.mxu0 0.0
    %6897 = vmatpush2.msra.mxu0 0.0
    %6898 = vmatprep.subr.mxu0 0.0
    %6899 = vmatpush2.msra.mxu0 0.0
    %6900 = vmatprep.subr.mxu0 0.0
    %6901 = vmatpush2.msra.mxu0 0.0
    %6902 = vmatprep.mubr.f32.mxu0 0.0
    %6903 = vmatmul.mubr.f32.gmra.mxu0 %v6811
    %v6904 = vpop.f32.mrf.mxu0
    %v6905 = vadd.f32 0.0, %v6904
    %v6906 = vpop.f32.mrf.mxu0
    %6907 = vmatprep.mubr.f32.mxu0 0.0
    %6908 = vmatmul.mubr.f32.gmra.mxu0 %v6814
    %v6909 = vpop.f32.mrf.mxu0
    %v6910 = vadd.f32 0.0, %v6909
    %v6911 = vpop.f32.mrf.mxu0
    %6912 = vmatprep.mubr.f32.mxu0 0.0
    %6913 = vmatmul.mubr.f32.gmra.mxu0 %v6817
    %v6914 = vpop.f32.mrf.mxu0
    %v6915 = vadd.f32 0.0, %v6914
    %v6916 = vpop.f32.mrf.mxu0
    %6917 = vmatprep.mubr.f32.mxu0 0.0
    %6918 = vmatmul.mubr.f32.gmra.mxu0 %v6820
    %v6919 = vpop.f32.mrf.mxu0
    %v6920 = vadd.f32 0.0, %v6919
    %v6921 = vpop.f32.mrf.mxu0
    %6922 = vmatprep.mubr.f32.mxu0 0.0
    %6923 = vmatmul.mubr.f32.gmra.mxu0 %v6823
    %v6924 = vpop.f32.mrf.mxu0
    %v6925 = vadd.f32 0.0, %v6924
    %v6926 = vpop.f32.mrf.mxu0
    %6927 = vmatprep.mubr.f32.mxu0 0.0
    %6928 = vmatmul.mubr.f32.gmra.mxu0 %v6826
    %v6929 = vpop.f32.mrf.mxu0
    %v6930 = vadd.f32 0.0, %v6929
    %v6931 = vpop.f32.mrf.mxu0
    %6932 = vmatprep.mubr.f32.mxu0 0.0
    %6933 = vmatmul.mubr.f32.gmra.mxu0 %v6829
    %v6934 = vpop.f32.mrf.mxu0
    %v6935 = vadd.f32 0.0, %v6934
    %v6936 = vpop.f32.mrf.mxu0
    %6937 = vmatprep.mubr.f32.mxu0 0.0
    %6938 = vmatmul.mubr.f32.gmra.mxu0 %v6832
    %v6939 = vpop.f32.mrf.mxu0
    %v6940 = vadd.f32 0.0, %v6939
    %v6941 = vpop.f32.mrf.mxu0
    %6942 = vdwg.mxu0
    %v6944 = vsel %vm159, %v6801, 0
    %6946 = vmatprep.subr.mxu0 0.0
    %6947 = vmatpush1.msra.mxu0 0.0
    %6948 = vmatprep.subr.mxu0 0.0
    %6949 = vmatpush1.msra.mxu0 0.0
    %6950 = vmatprep.subr.mxu0 0.0
    %6951 = vmatpush1.msra.mxu0 0.0
    %6952 = vmatprep.subr.mxu0 0.0
    %6953 = vmatpush1.msra.mxu0 0.0
    %6954 = vmatprep.subr.mxu0 0.0
    %6955 = vmatpush1.msra.mxu0 0.0
    %6956 = vmatprep.subr.mxu0 0.0
    %6957 = vmatpush1.msra.mxu0 0.0
    %6958 = vmatprep.subr.mxu0 0.0
    %6959 = vmatpush1.msra.mxu0 0.0
    %6960 = vmatprep.subr.mxu0 0.0
    %6961 = vmatpush1.msra.mxu0 0.0
    %6962 = vmatprep.subr.mxu0 0.0
    %6963 = vmatpush1.msra.mxu0 0.0
    %6964 = vmatprep.subr.mxu0 0.0
    %6965 = vmatpush1.msra.mxu0 0.0
    %6966 = vmatprep.subr.mxu0 0.0
    %6967 = vmatpush1.msra.mxu0 0.0
    %6968 = vmatprep.subr.mxu0 0.0
    %6969 = vmatpush1.msra.mxu0 0.0
    %6970 = vmatprep.subr.mxu0 0.0
    %6971 = vmatpush1.msra.mxu0 0.0
    %6972 = vmatprep.subr.mxu0 0.0
    %6973 = vmatpush1.msra.mxu0 %v6944
    %6974 = vmatprep.subr.mxu0 0.0
    %6975 = vmatpush1.msra.mxu0 %v6800
    %6976 = vmatprep.subr.mxu0 0.0
    %6977 = vmatpush1.msra.mxu0 %v6799
    %6978 = vmatprep.subr.mxu0 0.0
    %6979 = vmatpush2.msra.mxu0 0.0
    %6980 = vmatprep.subr.mxu0 0.0
    %6981 = vmatpush2.msra.mxu0 0.0
    %6982 = vmatprep.subr.mxu0 0.0
    %6983 = vmatpush2.msra.mxu0 0.0
    %6984 = vmatprep.subr.mxu0 0.0
    %6985 = vmatpush2.msra.mxu0 0.0
    %6986 = vmatprep.subr.mxu0 0.0
    %6987 = vmatpush2.msra.mxu0 0.0
    %6988 = vmatprep.subr.mxu0 0.0
    %6989 = vmatpush2.msra.mxu0 0.0
    %6990 = vmatprep.subr.mxu0 0.0
    %6991 = vmatpush2.msra.mxu0 0.0
    %6992 = vmatprep.subr.mxu0 0.0
    %6993 = vmatpush2.msra.mxu0 0.0
    %6994 = vmatprep.subr.mxu0 0.0
    %6995 = vmatpush2.msra.mxu0 0.0
    %6996 = vmatprep.subr.mxu0 0.0
    %6997 = vmatpush2.msra.mxu0 0.0
    %6998 = vmatprep.subr.mxu0 0.0
    %6999 = vmatpush2.msra.mxu0 0.0
    %7000 = vmatprep.subr.mxu0 0.0
    %7001 = vmatpush2.msra.mxu0 0.0
    %7002 = vmatprep.subr.mxu0 0.0
    %7003 = vmatpush2.msra.mxu0 0.0
    %7004 = vmatprep.subr.mxu0 0.0
    %7005 = vmatpush2.msra.mxu0 0.0
    %7006 = vmatprep.subr.mxu0 0.0
    %7007 = vmatpush2.msra.mxu0 0.0
    %7008 = vmatprep.subr.mxu0 0.0
    %7009 = vmatpush2.msra.mxu0 0.0
    %7010 = vmatprep.mubr.f32.mxu0 0.0
    %7011 = vmatmul.mubr.f32.gmra.mxu0 %v136
    %v7012 = vpop.f32.mrf.mxu0
    %v7013 = vadd.f32 %v6905, %v7012
    %v7014 = vpop.f32.mrf.mxu0
    %7015 = vmatprep.mubr.f32.mxu0 0.0
    %7016 = vmatmul.mubr.f32.gmra.mxu0 %v139
    %v7017 = vpop.f32.mrf.mxu0
    %v7018 = vadd.f32 %v6910, %v7017
    %v7019 = vpop.f32.mrf.mxu0
    %7020 = vmatprep.mubr.f32.mxu0 0.0
    %7021 = vmatmul.mubr.f32.gmra.mxu0 %v142
    %v7022 = vpop.f32.mrf.mxu0
    %v7023 = vadd.f32 %v6915, %v7022
    %v7024 = vpop.f32.mrf.mxu0
    %7025 = vmatprep.mubr.f32.mxu0 0.0
    %7026 = vmatmul.mubr.f32.gmra.mxu0 %v145
    %v7027 = vpop.f32.mrf.mxu0
    %v7028 = vadd.f32 %v6920, %v7027
    %v7029 = vpop.f32.mrf.mxu0
    %7030 = vmatprep.mubr.f32.mxu0 0.0
    %7031 = vmatmul.mubr.f32.gmra.mxu0 %v148
    %v7032 = vpop.f32.mrf.mxu0
    %v7033 = vadd.f32 %v6925, %v7032
    %v7034 = vpop.f32.mrf.mxu0
    %7035 = vmatprep.mubr.f32.mxu0 0.0
    %7036 = vmatmul.mubr.f32.gmra.mxu0 %v151
    %v7037 = vpop.f32.mrf.mxu0
    %v7038 = vadd.f32 %v6930, %v7037
    %v7039 = vpop.f32.mrf.mxu0
    %7040 = vmatprep.mubr.f32.mxu0 0.0
    %7041 = vmatmul.mubr.f32.gmra.mxu0 %v154
    %v7042 = vpop.f32.mrf.mxu0
    %v7043 = vadd.f32 %v6935, %v7042
    %v7044 = vpop.f32.mrf.mxu0
    %7045 = vmatprep.mubr.f32.mxu0 0.0
    %7046 = vmatmul.mubr.f32.gmra.mxu0 %v157
    %v7047 = vpop.f32.mrf.mxu0
    %v7048 = vadd.f32 %v6940, %v7047
    %v7049 = vpop.f32.mrf.mxu0
    %7050 = vdwg.mxu0
    %v7051 = vld [vmem:[%s14] sm:$0x1]
    %7053 = vset.pattern.permute.xlu0 0
    %7054 = vperm.xlu0 %7053, %v6791
    %v7055 = vpop.permute.xlu0 %7054
    %7058 = vset.pattern.permute.xlu0 0
    %7059 = vperm.xlu0 %7058, %v6792
    %v7060 = vpop.permute.xlu0 %7059
    %7063 = vset.pattern.permute.xlu0 0
    %7064 = vperm.xlu0 %7063, %v6793
    %v7065 = vpop.permute.xlu0 %7064
    %7068 = vset.pattern.permute.xlu0 0
    %7069 = vperm.xlu0 %7068, %v6794
    %v7070 = vpop.permute.xlu0 %7069
    %7073 = vset.pattern.permute.xlu0 0
    %7074 = vperm.xlu0 %7073, %v6795
    %v7075 = vpop.permute.xlu0 %7074
    %7078 = vset.pattern.permute.xlu0 0
    %7079 = vperm.xlu0 %7078, %v6796
    %v7080 = vpop.permute.xlu0 %7079
    %7083 = vset.pattern.permute.xlu0 0
    %7084 = vperm.xlu0 %7083, %v6797
    %v7085 = vpop.permute.xlu0 %7084
    %7088 = vset.pattern.permute.xlu0 0
    %7089 = vperm.xlu0 %7088, %v6798
    %v7090 = vpop.permute.xlu0 %7089
    %v7093 = vlaneseq
    %v7094 = vshrl.u32 %v7093, 7
    %v7095 = vsub.s32 0, %v7094
    %v7096 = vrot.slane %v7051, %v7095
    %v7098 = vmul.f32 %v7055, %v7096
    %v7099 = vmul.f32 %v7060, %v7096
    %v7100 = vmul.f32 %v7065, %v7096
    %v7101 = vmul.f32 %v7070, %v7096
    %v7102 = vmul.f32 %v7075, %v7096
    %v7103 = vmul.f32 %v7080, %v7096
    %v7104 = vmul.f32 %v7085, %v7096
    %v7105 = vmul.f32 %v7090, %v7096
    %v7106 = vadd.f32 %v7013, %v7098
    %v7107 = vadd.f32 %v7018, %v7099
    %v7108 = vadd.f32 %v7023, %v7100
    %v7109 = vadd.f32 %v7028, %v7101
    %v7110 = vadd.f32 %v7033, %v7102
    %v7111 = vadd.f32 %v7038, %v7103
    %v7112 = vadd.f32 %v7043, %v7104
    %v7113 = vadd.f32 %v7048, %v7105
    %v7114 = vlaneseq
    %v7115 = vshrl.u32 %v7114, 7
    %v7116 = vsub.s32 5, %v7115
    %v7117 = vrot.slane %v126, %v7116
    %v7118 = vadd.f32 %v7106, %v7117
    %v7119 = vadd.f32 %v7107, %v7117
    %v7120 = vadd.f32 %v7108, %v7117
    %v7121 = vadd.f32 %v7109, %v7117
    %v7122 = vadd.f32 %v7110, %v7117
    %v7123 = vadd.f32 %v7111, %v7117
    %v7124 = vadd.f32 %v7112, %v7117
    %v7125 = vadd.f32 %v7113, %v7117
    %v7126 = vmax.f32 %v7118, 0.0
    %v7127 = vmax.f32 %v7119, 0.0
    %v7128 = vmax.f32 %v7120, 0.0
    %v7129 = vmax.f32 %v7121, 0.0
    %v7130 = vmax.f32 %v7122, 0.0
    %v7131 = vmax.f32 %v7123, 0.0
    %v7132 = vmax.f32 %v7124, 0.0
    %v7133 = vmax.f32 %v7125, 0.0
    %v7134 = vld [vmem:[%s16] sm:$0xff]
    %v7135 = vld [vmem:[%s16 + $0x8] sm:$0xff]
    %v7136 = vld [vmem:[%s16 + $0x10] sm:$0xff]
    %v7137 = vld [vmem:[%s16 + $0x18] sm:$0xff]
    %v7138 = vld [vmem:[%s16 + $0x20] sm:$0xff]
    %v7139 = vld [vmem:[%s16 + $0x28] sm:$0xff]
    %v7140 = vld [vmem:[%s16 + $0x30] sm:$0xff]
    %v7141 = vld [vmem:[%s16 + $0x38] sm:$0xff]
    %v7142 = vld [vmem:[%s16 + $0x40] sm:$0xff]
    %v7143 = vld [vmem:[%s16 + $0x48] sm:$0xff]
    %v7144 = vld [vmem:[%s16 + $0x50] sm:$0xff]
    %v7145 = vld [vmem:[%s16 + $0x58] sm:$0xff]
    %v7146 = vld [vmem:[%s16 + $0x60] sm:$0xf]
    %v7147 = vlaneseq
    %v7148 = vshrl.u32 %v7147, 7
    %v7149 = vsub.s32 6, %v7148
    %v7150 = vrot.slane %v126, %v7149
    %vm7151 = vcmask 818176
    %v7153 = vsel %vm7151, %v7126, 0
    %v7156 = vsel %vm7151, %v7127, 0
    %v7159 = vsel %vm7151, %v7128, 0
    %v7162 = vsel %vm7151, %v7129, 0
    %v7165 = vsel %vm7151, %v7130, 0
    %v7168 = vsel %vm7151, %v7131, 0
    %v7171 = vsel %vm7151, %v7132, 0
    %v7174 = vsel %vm7151, %v7133, 0
    %vm7176 = vcmask 1043456
    %v7178 = vsel %vm7176, %v7146, 0
    %7180 = vmatprep.subr.mxu0 0.0
    %7181 = vmatpush1.msra.mxu0 0.0
    %7182 = vmatprep.subr.mxu0 0.0
    %7183 = vmatpush1.msra.mxu0 0.0
    %7184 = vmatprep.subr.mxu0 0.0
    %7185 = vmatpush1.msra.mxu0 0.0
    %7186 = vmatprep.subr.mxu0 0.0
    %7187 = vmatpush1.msra.mxu0 %v7178
    %7188 = vmatprep.subr.mxu0 0.0
    %7189 = vmatpush1.msra.mxu0 %v7145
    %7190 = vmatprep.subr.mxu0 0.0
    %7191 = vmatpush1.msra.mxu0 %v7144
    %7192 = vmatprep.subr.mxu0 0.0
    %7193 = vmatpush1.msra.mxu0 %v7143
    %7194 = vmatprep.subr.mxu0 0.0
    %7195 = vmatpush1.msra.mxu0 %v7142
    %7196 = vmatprep.subr.mxu0 0.0
    %7197 = vmatpush1.msra.mxu0 %v7141
    %7198 = vmatprep.subr.mxu0 0.0
    %7199 = vmatpush1.msra.mxu0 %v7140
    %7200 = vmatprep.subr.mxu0 0.0
    %7201 = vmatpush1.msra.mxu0 %v7139
    %7202 = vmatprep.subr.mxu0 0.0
    %7203 = vmatpush1.msra.mxu0 %v7138
    %7204 = vmatprep.subr.mxu0 0.0
    %7205 = vmatpush1.msra.mxu0 %v7137
    %7206 = vmatprep.subr.mxu0 0.0
    %7207 = vmatpush1.msra.mxu0 %v7136
    %7208 = vmatprep.subr.mxu0 0.0
    %7209 = vmatpush1.msra.mxu0 %v7135
    %7210 = vmatprep.subr.mxu0 0.0
    %7211 = vmatpush1.msra.mxu0 %v7134
    %7212 = vmatprep.subr.mxu0 0.0
    %7213 = vmatpush2.msra.mxu0 0.0
    %7214 = vmatprep.subr.mxu0 0.0
    %7215 = vmatpush2.msra.mxu0 0.0
    %7216 = vmatprep.subr.mxu0 0.0
    %7217 = vmatpush2.msra.mxu0 0.0
    %7218 = vmatprep.subr.mxu0 0.0
    %7219 = vmatpush2.msra.mxu0 0.0
    %7220 = vmatprep.subr.mxu0 0.0
    %7221 = vmatpush2.msra.mxu0 0.0
    %7222 = vmatprep.subr.mxu0 0.0
    %7223 = vmatpush2.msra.mxu0 0.0
    %7224 = vmatprep.subr.mxu0 0.0
    %7225 = vmatpush2.msra.mxu0 0.0
    %7226 = vmatprep.subr.mxu0 0.0
    %7227 = vmatpush2.msra.mxu0 0.0
    %7228 = vmatprep.subr.mxu0 0.0
    %7229 = vmatpush2.msra.mxu0 0.0
    %7230 = vmatprep.subr.mxu0 0.0
    %7231 = vmatpush2.msra.mxu0 0.0
    %7232 = vmatprep.subr.mxu0 0.0
    %7233 = vmatpush2.msra.mxu0 0.0
    %7234 = vmatprep.subr.mxu0 0.0
    %7235 = vmatpush2.msra.mxu0 0.0
    %7236 = vmatprep.subr.mxu0 0.0
    %7237 = vmatpush2.msra.mxu0 0.0
    %7238 = vmatprep.subr.mxu0 0.0
    %7239 = vmatpush2.msra.mxu0 0.0
    %7240 = vmatprep.subr.mxu0 0.0
    %7241 = vmatpush2.msra.mxu0 0.0
    %7242 = vmatprep.subr.mxu0 0.0
    %7243 = vmatpush2.msra.mxu0 0.0
    %7244 = vmatprep.mubr.f32.mxu0 0.0
    %7245 = vmatmul.mubr.f32.gmra.mxu0 %v7153
    %v7246 = vpop.f32.mrf.mxu0
    %v7247 = vadd.f32 %v7150, %v7246
    %v7248 = vpop.f32.mrf.mxu0
    %7249 = vmatprep.mubr.f32.mxu0 0.0
    %7250 = vmatmul.mubr.f32.gmra.mxu0 %v7156
    %v7251 = vpop.f32.mrf.mxu0
    %v7252 = vadd.f32 %v7150, %v7251
    %v7253 = vpop.f32.mrf.mxu0
    %7254 = vmatprep.mubr.f32.mxu0 0.0
    %7255 = vmatmul.mubr.f32.gmra.mxu0 %v7159
    %v7256 = vpop.f32.mrf.mxu0
    %v7257 = vadd.f32 %v7150, %v7256
    %v7258 = vpop.f32.mrf.mxu0
    %7259 = vmatprep.mubr.f32.mxu0 0.0
    %7260 = vmatmul.mubr.f32.gmra.mxu0 %v7162
    %v7261 = vpop.f32.mrf.mxu0
    %v7262 = vadd.f32 %v7150, %v7261
    %v7263 = vpop.f32.mrf.mxu0
    %7264 = vmatprep.mubr.f32.mxu0 0.0
    %7265 = vmatmul.mubr.f32.gmra.mxu0 %v7165
    %v7266 = vpop.f32.mrf.mxu0
    %v7267 = vadd.f32 %v7150, %v7266
    %v7268 = vpop.f32.mrf.mxu0
    %7269 = vmatprep.mubr.f32.mxu0 0.0
    %7270 = vmatmul.mubr.f32.gmra.mxu0 %v7168
    %v7271 = vpop.f32.mrf.mxu0
    %v7272 = vadd.f32 %v7150, %v7271
    %v7273 = vpop.f32.mrf.mxu0
    %7274 = vmatprep.mubr.f32.mxu0 0.0
    %7275 = vmatmul.mubr.f32.gmra.mxu0 %v7171
    %v7276 = vpop.f32.mrf.mxu0
    %v7277 = vadd.f32 %v7150, %v7276
    %v7278 = vpop.f32.mrf.mxu0
    %7279 = vmatprep.mubr.f32.mxu0 0.0
    %7280 = vmatmul.mubr.f32.gmra.mxu0 %v7174
    %v7281 = vpop.f32.mrf.mxu0
    %v7282 = vadd.f32 %v7150, %v7281
    %v7283 = vpop.f32.mrf.mxu0
    %7284 = vdwg.mxu0
    %v7285 = vadd.f32 %v62, %v7247
    %v7286 = vadd.f32 %v64, %v7252
    %v7287 = vadd.f32 %v66, %v7257
    %v7288 = vadd.f32 %v68, %v7262
    %v7289 = vadd.f32 %v70, %v7267
    %v7290 = vadd.f32 %v72, %v7272
    %v7291 = vadd.f32 %v74, %v7277
    %v7292 = vadd.f32 %v76, %v7282
    %v7293 = vsel %vm117, %v7285, %v62
    %v7294 = vsel %vm117, %v7286, %v64
    %v7295 = vsel %vm117, %v7287, %v66
    %v7296 = vsel %vm117, %v7288, %v68
    %v7297 = vsel %vm117, %v7289, %v70
    %v7298 = vsel %vm117, %v7290, %v72
    %v7299 = vsel %vm117, %v7291, %v74
    %v7300 = vsel %vm117, %v7292, %v76
    %vm7301 = vcmask 113664
    %7302 = vst.msk [vmem:[#allocation2] sm:$0xff] %vm7301, %v7293
    %7303 = vst.msk [vmem:[#allocation2 + $0x8] sm:$0xff] %vm7301, %v7294
    %7304 = vst.msk [vmem:[#allocation2 + $0x10] sm:$0xff] %vm7301, %v7295
    %7305 = vst.msk [vmem:[#allocation2 + $0x18] sm:$0xff] %vm7301, %v7296
    %7306 = vst.msk [vmem:[#allocation2 + $0x20] sm:$0xff] %vm7301, %v7297
    %7307 = vst.msk [vmem:[#allocation2 + $0x28] sm:$0xff] %vm7301, %v7298
    %7308 = vst.msk [vmem:[#allocation2 + $0x30] sm:$0xff] %vm7301, %v7299
    %7309 = vst.msk [vmem:[#allocation2 + $0x38] sm:$0xff] %vm7301, %v7300
    // Predicated region
    $region74: #{tpu_custom_call.1} parent=1 // pred_check
      _
    $region75: #{tpu_custom_call.1} parent=1 // pred_check_branch
      %7311 = sbr.rel (0) target = $region77
    $region76: #{tpu_custom_call.1} parent=1 // pred_region
      %s7313 = ssub.s32 1024, 1024
      %7314 = vsyncadd [#allocation3], %s7313
      %s7315 = sshll.u32 [#allocation2], 4
      %s7316 = int_to_ptr.vmem [resolvable:$true] %s7315
      %7321 = dma.vmem_to_hbm [thread:$0]  %s7316, 1024, %s18, [#allocation3], 128, 128, 8
    $region77: #{tpu_custom_call.1} parent=1 // pred_fallthru
      _
    // Predicated region
    $region78: #{tpu_custom_call.1} parent=1 // pred_check
      _
    $region79: #{tpu_custom_call.1} parent=1 // pred_check_branch
      %7323 = sbr.rel (0) target = $region81
    $region80: #{tpu_custom_call.1} parent=1 // pred_region
      %7324 = dma.done [#allocation3], 1024
    $region81: #{tpu_custom_call.1} parent=1 // pred_fallthru
      _
    %7325 = vsyncpa [#allocation3], 1

</llo_original>
